<compile_context>
chip_gen: v6e
topology: v6e:2x2x1
jax: 0.10.0
libtpu: 0.0.40
codegen_flags: <defaults>
</compile_context>

<pallas_src>
import functools

import jax
import jax.numpy as jnp
import numpy as np
from jax import lax
from jax.experimental import pallas as pl
from jax.experimental.pallas import tpu as pltpu


def _round_up(x, m):
    return (x + m - 1) // m * m


# ------------------------------ Fused kernel ---------------------------------

def _fused_lstm_kernel(x_ref, h0_ref, c0_ref, wih_ref, whh_ref, b_ref,
                       dec_w_ref, dec_b_ref,
                       logits_ref, hT_ref, cT_ref,
                       seq_a, seq_b, gx_i, gx_f, gx_g, gx_o):
    """Whole forward (all LSTM layers + decoder) in one kernel invocation.

    Static shapes:
      x_ref      : (S*Bp, H)     batch-padded, flattened embedded input
      h0/c0_ref  : (L, Bp, H)
      wih/whh_ref: (L, 4, H, H)  per-gate (i, f, g, o) weights, pre-transposed
      b_ref      : (L, 4, 1, H)  per-gate bias (b_ih + b_hh)
      dec_w_ref  : (H, Vp), dec_b_ref: (1, Vp)
      logits_ref : (S*Bp, Vp)
      hT/cT_ref  : (L, Bp, H)
    """
    L, Bp, H = h0_ref.shape
    SB = x_ref.shape[0]
    S = SB // Bp

    bufs = (seq_a, seq_b)
    gx_refs = (gx_i, gx_f, gx_g, gx_o)

    src = x_ref                                   # layer-0 input lives in its ref
    for layer in range(L):                        # L is small; static unroll
        dst = bufs[layer % 2]

        # ---- input projection hoisted out of the recurrence (one MXU call
        #      per gate per layer over all timesteps at once) ----
        x_all = src[...]                          # (S*Bp, H)
        for g in range(4):
            gx_refs[g][...] = (
                jnp.dot(x_all, wih_ref[layer, g],
                        preferred_element_type=jnp.float32)
                + b_ref[layer, g])                # (S*Bp, H)

        # ---- recurrent weights hoisted out of the time loop ----
        w_hi = whh_ref[layer, 0]
        w_hf = whh_ref[layer, 1]
        w_hg = whh_ref[layer, 2]
        w_ho = whh_ref[layer, 3]

        def step(t, carry):
            h, c = carry
            row = pl.multiple_of(t * Bp, Bp)      # Bp is a multiple of 8
            sl = pl.ds(row, Bp)
            i_g = jax.nn.sigmoid(
                gx_i[sl, :] + jnp.dot(h, w_hi, preferred_element_type=jnp.float32))
            f_g = jax.nn.sigmoid(
                gx_f[sl, :] + jnp.dot(h, w_hf, preferred_element_type=jnp.float32))
            g_g = jnp.tanh(
                gx_g[sl, :] + jnp.dot(h, w_hg, preferred_element_type=jnp.float32))
            o_g = jax.nn.sigmoid(
                gx_o[sl, :] + jnp.dot(h, w_ho, preferred_element_type=jnp.float32))
            c_new = f_g * c + i_g * g_g
            h_new = o_g * jnp.tanh(c_new)
            dst[sl, :] = h_new                    # next layer's input / output seq
            return (h_new, c_new)

        hT, cT = lax.fori_loop(0, S, step,
                               (h0_ref[layer], c0_ref[layer]),
                               unroll=True)
        hT_ref[layer] = hT
        cT_ref[layer] = cT
        src = dst

    # ---- decoder: one lane-dense (S*Bp, H) @ (H, Vp) matmul ----
    y_all = src[...]
    logits_ref[...] = (jnp.dot(y_all, dec_w_ref[...],
                               preferred_element_type=jnp.float32)
                       + dec_b_ref[...])


def _fused_forward_call(x_flat, h0, c0, wih, whh, b, dec_w, dec_b):
    SB, H = x_flat.shape
    L, Bp, _ = h0.shape
    Vp = dec_w.shape[1]

    out_shapes = (
        jax.ShapeDtypeStruct((SB, Vp), jnp.float32),   # logits (padded)
        jax.ShapeDtypeStruct((L, Bp, H), jnp.float32),  # final h
        jax.ShapeDtypeStruct((L, Bp, H), jnp.float32),  # final c
    )
    grid_spec = pltpu.PrefetchScalarGridSpec(
        num_scalar_prefetch=0,
        grid=(1,),
        in_specs=[
            pl.BlockSpec((SB, H), lambda i: (0, 0)),            # x
            pl.BlockSpec((L, Bp, H), lambda i: (0, 0, 0)),      # h0
            pl.BlockSpec((L, Bp, H), lambda i: (0, 0, 0)),      # c0
            pl.BlockSpec((L, 4, H, H), lambda i: (0, 0, 0, 0)),  # W_ih (per gate)
            pl.BlockSpec((L, 4, H, H), lambda i: (0, 0, 0, 0)),  # W_hh (per gate)
            pl.BlockSpec((L, 4, 1, H), lambda i: (0, 0, 0, 0)),  # bias (per gate)
            pl.BlockSpec((H, Vp), lambda i: (0, 0)),            # decoder W^T
            pl.BlockSpec((1, Vp), lambda i: (0, 0)),            # decoder b
        ],
        out_specs=[
            pl.BlockSpec((SB, Vp), lambda i: (0, 0)),
            pl.BlockSpec((L, Bp, H), lambda i: (0, 0, 0)),
            pl.BlockSpec((L, Bp, H), lambda i: (0, 0, 0)),
        ],
        scratch_shapes=[
            pltpu.VMEM((SB, H), jnp.float32),   # layer activation ping
            pltpu.VMEM((SB, H), jnp.float32),   # layer activation pong
            pltpu.VMEM((SB, H), jnp.float32),   # gates_x (i)
            pltpu.VMEM((SB, H), jnp.float32),   # gates_x (f)
            pltpu.VMEM((SB, H), jnp.float32),   # gates_x (g)
            pltpu.VMEM((SB, H), jnp.float32),   # gates_x (o)
        ],
    )
    return pl.pallas_call(
        _fused_lstm_kernel,
        out_shape=out_shapes,
        grid_spec=grid_spec,
        compiler_params=pltpu.CompilerParams(
            dimension_semantics=("arbitrary",)),
    )(x_flat, h0, c0, wih, whh, b, dec_w, dec_b)


# ------------------------------ Full forward ----------------------------------

def simple_lstm_forward(data, hidden, params, *, nlayers, nhid, ntokens):
    """data: (S, B) int32 tokens; hidden = (h0, c0) each (nlayers, B, nhid)."""
    h0, c0 = hidden
    S, B = data.shape
    H, V = nhid, ntokens
    Bp = _round_up(B, 8)      # sublane-aligned batch
    Vp = _round_up(V, 128)    # lane-dense decoder output

    # Embedding lookup (data-dependent gather) stays in plain JAX glue.
    x = jnp.take(params["emb"], data, axis=0)             # (S, B, H), float32
    # dropout = identity (eval mode)

    x = jnp.pad(x, ((0, 0), (0, Bp - B), (0, 0)))
    x_flat = x.reshape(S * Bp, H)
    h0p = jnp.pad(h0, ((0, 0), (0, Bp - B), (0, 0)))
    c0p = jnp.pad(c0, ((0, 0), (0, Bp - B), (0, 0)))
    dec_w = jnp.pad(params["dec_w_t"], ((0, 0), (0, Vp - V)))
    dec_b = jnp.pad(params["dec_b"], ((0, 0), (0, Vp - V)))

    logits_p, hT_p, cT_p = _fused_forward_call(
        x_flat, h0p, c0p,
        params["wih_g"], params["whh_g"], params["b_g"],
        dec_w, dec_b)

    # dropout = identity (eval mode)
    logits = logits_p.reshape(S, Bp, Vp)[:, :B, :V]
    return logits, (hT_p[:, :B, :], cT_p[:, :B, :])


# ------------------------------ Reference (pure JAX) ---------------------------

def _reference_forward(data, hidden, params, *, nlayers, nhid, ntokens):
    h0, c0 = hidden
    S, B = data.shape
    x = jnp.take(params["emb"], data, axis=0)
    hs, cs = [], []
    for l in range(nlayers):
        wih = params["wih_g"][l]   # (4, H, H)
        whh = params["whh_g"][l]   # (4, H, H)
        b = params["b_g"][l]       # (4, 1, H)

        def step(carry, x_t, wih=wih, whh=whh, b=b):
            h, c = carry
            i_g = jax.nn.sigmoid(x_t @ wih[0] + h @ whh[0] + b[0])
            f_g = jax.nn.sigmoid(x_t @ wih[1] + h @ whh[1] + b[1])
            g_g = jnp.tanh(x_t @ wih[2] + h @ whh[2] + b[2])
            o_g = jax.nn.sigmoid(x_t @ wih[3] + h @ whh[3] + b[3])
            c_new = f_g * c + i_g * g_g
            h_new = o_g * jnp.tanh(c_new)
            return (h_new, c_new), h_new

        (hT, cT), x = jax.lax.scan(step, (h0[l], c0[l]), x)
        hs.append(hT)
        cs.append(cT)
    logits = x.reshape(S * B, nhid) @ params["dec_w_t"] + params["dec_b"][0]
    return logits.reshape(S, B, ntokens), (jnp.stack(hs), jnp.stack(cs))


# ----------------------------------- Main --------------------------------------

if __name__ == "__main__":
    SEQ, BATCH, NHID, NTOKENS, NLAYERS = 8, 4, 32, 64, 2

    key = jax.random.PRNGKey(0)
    keys = jax.random.split(key, 3 + 4 * NLAYERS)
    ki = iter(keys)

    init_range = 0.1
    bound = 1.0 / np.sqrt(NHID)   # PyTorch nn.LSTM default init range

    emb = jax.random.uniform(next(ki), (NTOKENS, NHID),
                             minval=-init_range, maxval=init_range,
                             dtype=jnp.float32)
    dec_w_t = jax.random.uniform(next(ki), (NHID, NTOKENS),
                                 minval=-init_range, maxval=init_range,
                                 dtype=jnp.float32)
    dec_b = jnp.zeros((1, NTOKENS), jnp.float32)

    wih_list, whh_list, b_list = [], [], []
    for _ in range(NLAYERS):
        # Per-gate (i, f, g, o) weights, pre-transposed so kernels do x @ W.
        wih = jax.random.uniform(next(ki), (4, NHID, NHID),
                                 minval=-bound, maxval=bound, dtype=jnp.float32)
        whh = jax.random.uniform(next(ki), (4, NHID, NHID),
                                 minval=-bound, maxval=bound, dtype=jnp.float32)
        b_ih = jax.random.uniform(next(ki), (4, 1, NHID),
                                  minval=-bound, maxval=bound, dtype=jnp.float32)
        b_hh = jax.random.uniform(next(ki), (4, 1, NHID),
                                  minval=-bound, maxval=bound, dtype=jnp.float32)
        wih_list.append(wih)
        whh_list.append(whh)
        b_list.append(b_ih + b_hh)

    params = {
        "emb": emb,
        "dec_w_t": dec_w_t,
        "dec_b": dec_b,
        "wih_g": jnp.stack(wih_list),   # (L, 4, H, H)
        "whh_g": jnp.stack(whh_list),   # (L, 4, H, H)
        "b_g": jnp.stack(b_list),       # (L, 4, 1, H)
    }

    data = jax.random.randint(next(ki), (SEQ, BATCH), 0, NTOKENS, dtype=jnp.int32)
    h0 = jnp.zeros((NLAYERS, BATCH, NHID), jnp.float32)   # init_hidden()
    c0 = jnp.zeros((NLAYERS, BATCH, NHID), jnp.float32)

    fwd = functools.partial(simple_lstm_forward,
                            nlayers=NLAYERS, nhid=NHID, ntokens=NTOKENS)
    logits, (h_out, c_out) = fwd(data, (h0, c0), params)
    jax.block_until_ready((logits, h_out, c_out))

    # Correctness check against a pure-JAX reference.
    ref_logits, (ref_h, ref_c) = _reference_forward(
        data, (h0, c0), params, nlayers=NLAYERS, nhid=NHID, ntokens=NTOKENS)
    np.testing.assert_allclose(np.asarray(logits), np.asarray(ref_logits),
                               rtol=1e-5, atol=1e-5)
    np.testing.assert_allclose(np.asarray(h_out), np.asarray(ref_h),
                               rtol=1e-5, atol=1e-5)
    np.testing.assert_allclose(np.asarray(c_out), np.asarray(ref_c),
                               rtol=1e-5, atol=1e-5)

    assert logits.shape == (SEQ, BATCH, NTOKENS)
    assert h_out.shape == (NLAYERS, BATCH, NHID) and c_out.shape == (NLAYERS, BATCH, NHID)
    print("KERNEL_OK")
</pallas_src>

<mosaic_0001>
module attributes {stable_mosaic.version = 11 : i64} {
  func.func @_fused_lstm_kernel(%arg0: i32, %arg1: memref<64x32xf32, #tpu.memory_space<vmem>>, %arg2: memref<2x8x32xf32, #tpu.memory_space<vmem>>, %arg3: memref<2x8x32xf32, #tpu.memory_space<vmem>>, %arg4: memref<2x4x32x32xf32, #tpu.memory_space<vmem>>, %arg5: memref<2x4x32x32xf32, #tpu.memory_space<vmem>>, %arg6: memref<2x4x1x32xf32, #tpu.memory_space<vmem>>, %arg7: memref<32x128xf32, #tpu.memory_space<vmem>>, %arg8: memref<1x128xf32, #tpu.memory_space<vmem>>, %arg9: memref<64x128xf32, #tpu.memory_space<vmem>>, %arg10: memref<2x8x32xf32, #tpu.memory_space<vmem>>, %arg11: memref<2x8x32xf32, #tpu.memory_space<vmem>>, %arg12: memref<64x32xf32, #tpu.memory_space<vmem>>, %arg13: memref<64x32xf32, #tpu.memory_space<vmem>>, %arg14: memref<64x32xf32, #tpu.memory_space<vmem>>, %arg15: memref<64x32xf32, #tpu.memory_space<vmem>>, %arg16: memref<64x32xf32, #tpu.memory_space<vmem>>, %arg17: memref<64x32xf32, #tpu.memory_space<vmem>>) attributes {dimension_semantics = [#tpu.dimension_semantics<arbitrary>], iteration_bounds = array<i64: 1>, scalar_prefetch = 0 : i64, scratch_operands = 6 : i64, tpu.core_type = #tpu.core_type<tc>, window_params = [{pipeline_mode = #tpu.pipeline_mode<synchronous>, transform_indices = @transform_0, window_bounds = array<i64: 64, 32>}, {pipeline_mode = #tpu.pipeline_mode<synchronous>, transform_indices = @transform_1, window_bounds = array<i64: 2, 8, 32>}, {pipeline_mode = #tpu.pipeline_mode<synchronous>, transform_indices = @transform_2, window_bounds = array<i64: 2, 8, 32>}, {pipeline_mode = #tpu.pipeline_mode<synchronous>, transform_indices = @transform_3, window_bounds = array<i64: 2, 4, 32, 32>}, {pipeline_mode = #tpu.pipeline_mode<synchronous>, transform_indices = @transform_4, window_bounds = array<i64: 2, 4, 32, 32>}, {pipeline_mode = #tpu.pipeline_mode<synchronous>, transform_indices = @transform_5, window_bounds = array<i64: 2, 4, 1, 32>}, {pipeline_mode = #tpu.pipeline_mode<synchronous>, transform_indices = @transform_6, window_bounds = array<i64: 32, 128>}, {pipeline_mode = #tpu.pipeline_mode<synchronous>, transform_indices = @transform_7, window_bounds = array<i64: 1, 128>}, {pipeline_mode = #tpu.pipeline_mode<synchronous>, transform_indices = @transform_8, window_bounds = array<i64: 64, 128>}, {pipeline_mode = #tpu.pipeline_mode<synchronous>, transform_indices = @transform_9, window_bounds = array<i64: 2, 8, 32>}, {pipeline_mode = #tpu.pipeline_mode<synchronous>, transform_indices = @transform_10, window_bounds = array<i64: 2, 8, 32>}]} {
    %c0 = arith.constant 0 : index
    %c0_0 = arith.constant 0 : index
    %0 = vector.load %arg1[%c0, %c0_0] : memref<64x32xf32, #tpu.memory_space<vmem>>, vector<64x32xf32>
    %c0_1 = arith.constant 0 : index
    %c0_2 = arith.constant 0 : index
    %c0_3 = arith.constant 0 : index
    %c0_4 = arith.constant 0 : index
    %1 = vector.load %arg4[%c0_1, %c0_2, %c0_3, %c0_4] : memref<2x4x32x32xf32, #tpu.memory_space<vmem>>, vector<1x1x32x32xf32>
    %2 = vector.shape_cast %1 : vector<1x1x32x32xf32> to vector<32x32xf32>
    %cst = arith.constant dense<0.000000e+00> : vector<64x32xf32>
    %3 = tpu.matmul %0, %2, %cst {dimension_numbers = #tpu.dot_dimension_numbers<[1], [0], [0], [1], [0, 0, 1, 1], [], []>} : vector<64x32xf32>, vector<32x32xf32>, vector<64x32xf32> -> vector<64x32xf32>
    %c0_5 = arith.constant 0 : index
    %c0_6 = arith.constant 0 : index
    %c0_7 = arith.constant 0 : index
    %c0_8 = arith.constant 0 : index
    %4 = vector.load %arg6[%c0_5, %c0_6, %c0_7, %c0_8] : memref<2x4x1x32xf32, #tpu.memory_space<vmem>>, vector<1x1x1x32xf32>
    %5 = vector.shape_cast %4 : vector<1x1x1x32xf32> to vector<1x32xf32>
    %6 = vector.broadcast %5 : vector<1x32xf32> to vector<64x32xf32>
    %7 = arith.addf %3, %6 : vector<64x32xf32>
    %c0_9 = arith.constant 0 : index
    %c0_10 = arith.constant 0 : index
    %8 = vector.load %arg14[%c0_9, %c0_10] : memref<64x32xf32, #tpu.memory_space<vmem>>, vector<64x32xf32>
    tpu.vector_store %arg14[%c0_9, %c0_10], %7 {strides = array<i32>} : memref<64x32xf32, #tpu.memory_space<vmem>>, vector<64x32xf32>,
    %c0_11 = arith.constant 0 : index
    %c1 = arith.constant 1 : index
    %c0_12 = arith.constant 0 : index
    %c0_13 = arith.constant 0 : index
    %9 = vector.load %arg4[%c0_11, %c1, %c0_12, %c0_13] : memref<2x4x32x32xf32, #tpu.memory_space<vmem>>, vector<1x1x32x32xf32>
    %10 = vector.shape_cast %9 : vector<1x1x32x32xf32> to vector<32x32xf32>
    %cst_14 = arith.constant dense<0.000000e+00> : vector<64x32xf32>
    %11 = tpu.matmul %0, %10, %cst_14 {dimension_numbers = #tpu.dot_dimension_numbers<[1], [0], [0], [1], [0, 0, 1, 1], [], []>} : vector<64x32xf32>, vector<32x32xf32>, vector<64x32xf32> -> vector<64x32xf32>
    %c0_15 = arith.constant 0 : index
    %c1_16 = arith.constant 1 : index
    %c0_17 = arith.constant 0 : index
    %c0_18 = arith.constant 0 : index
    %12 = vector.load %arg6[%c0_15, %c1_16, %c0_17, %c0_18] : memref<2x4x1x32xf32, #tpu.memory_space<vmem>>, vector<1x1x1x32xf32>
    %13 = vector.shape_cast %12 : vector<1x1x1x32xf32> to vector<1x32xf32>
    %14 = vector.broadcast %13 : vector<1x32xf32> to vector<64x32xf32>
    %15 = arith.addf %11, %14 : vector<64x32xf32>
    %c0_19 = arith.constant 0 : index
    %c0_20 = arith.constant 0 : index
    %16 = vector.load %arg15[%c0_19, %c0_20] : memref<64x32xf32, #tpu.memory_space<vmem>>, vector<64x32xf32>
    tpu.vector_store %arg15[%c0_19, %c0_20], %15 {strides = array<i32>} : memref<64x32xf32, #tpu.memory_space<vmem>>, vector<64x32xf32>,
    %c0_21 = arith.constant 0 : index
    %c2 = arith.constant 2 : index
    %c0_22 = arith.constant 0 : index
    %c0_23 = arith.constant 0 : index
    %17 = vector.load %arg4[%c0_21, %c2, %c0_22, %c0_23] : memref<2x4x32x32xf32, #tpu.memory_space<vmem>>, vector<1x1x32x32xf32>
    %18 = vector.shape_cast %17 : vector<1x1x32x32xf32> to vector<32x32xf32>
    %cst_24 = arith.constant dense<0.000000e+00> : vector<64x32xf32>
    %19 = tpu.matmul %0, %18, %cst_24 {dimension_numbers = #tpu.dot_dimension_numbers<[1], [0], [0], [1], [0, 0, 1, 1], [], []>} : vector<64x32xf32>, vector<32x32xf32>, vector<64x32xf32> -> vector<64x32xf32>
    %c0_25 = arith.constant 0 : index
    %c2_26 = arith.constant 2 : index
    %c0_27 = arith.constant 0 : index
    %c0_28 = arith.constant 0 : index
    %20 = vector.load %arg6[%c0_25, %c2_26, %c0_27, %c0_28] : memref<2x4x1x32xf32, #tpu.memory_space<vmem>>, vector<1x1x1x32xf32>
    %21 = vector.shape_cast %20 : vector<1x1x1x32xf32> to vector<1x32xf32>
    %22 = vector.broadcast %21 : vector<1x32xf32> to vector<64x32xf32>
    %23 = arith.addf %19, %22 : vector<64x32xf32>
    %c0_29 = arith.constant 0 : index
    %c0_30 = arith.constant 0 : index
    %24 = vector.load %arg16[%c0_29, %c0_30] : memref<64x32xf32, #tpu.memory_space<vmem>>, vector<64x32xf32>
    tpu.vector_store %arg16[%c0_29, %c0_30], %23 {strides = array<i32>} : memref<64x32xf32, #tpu.memory_space<vmem>>, vector<64x32xf32>,
    %c0_31 = arith.constant 0 : index
    %c3 = arith.constant 3 : index
    %c0_32 = arith.constant 0 : index
    %c0_33 = arith.constant 0 : index
    %25 = vector.load %arg4[%c0_31, %c3, %c0_32, %c0_33] : memref<2x4x32x32xf32, #tpu.memory_space<vmem>>, vector<1x1x32x32xf32>
    %26 = vector.shape_cast %25 : vector<1x1x32x32xf32> to vector<32x32xf32>
    %cst_34 = arith.constant dense<0.000000e+00> : vector<64x32xf32>
    %27 = tpu.matmul %0, %26, %cst_34 {dimension_numbers = #tpu.dot_dimension_numbers<[1], [0], [0], [1], [0, 0, 1, 1], [], []>} : vector<64x32xf32>, vector<32x32xf32>, vector<64x32xf32> -> vector<64x32xf32>
    %c0_35 = arith.constant 0 : index
    %c3_36 = arith.constant 3 : index
    %c0_37 = arith.constant 0 : index
    %c0_38 = arith.constant 0 : index
    %28 = vector.load %arg6[%c0_35, %c3_36, %c0_37, %c0_38] : memref<2x4x1x32xf32, #tpu.memory_space<vmem>>, vector<1x1x1x32xf32>
    %29 = vector.shape_cast %28 : vector<1x1x1x32xf32> to vector<1x32xf32>
    %30 = vector.broadcast %29 : vector<1x32xf32> to vector<64x32xf32>
    %31 = arith.addf %27, %30 : vector<64x32xf32>
    %c0_39 = arith.constant 0 : index
    %c0_40 = arith.constant 0 : index
    %32 = vector.load %arg17[%c0_39, %c0_40] : memref<64x32xf32, #tpu.memory_space<vmem>>, vector<64x32xf32>
    tpu.vector_store %arg17[%c0_39, %c0_40], %31 {strides = array<i32>} : memref<64x32xf32, #tpu.memory_space<vmem>>, vector<64x32xf32>,
    %c0_41 = arith.constant 0 : index
    %c0_42 = arith.constant 0 : index
    %c0_43 = arith.constant 0 : index
    %c0_44 = arith.constant 0 : index
    %33 = vector.load %arg5[%c0_41, %c0_42, %c0_43, %c0_44] : memref<2x4x32x32xf32, #tpu.memory_space<vmem>>, vector<1x1x32x32xf32>
    %34 = vector.shape_cast %33 : vector<1x1x32x32xf32> to vector<32x32xf32>
    %c0_45 = arith.constant 0 : index
    %c1_46 = arith.constant 1 : index
    %c0_47 = arith.constant 0 : index
    %c0_48 = arith.constant 0 : index
    %35 = vector.load %arg5[%c0_45, %c1_46, %c0_47, %c0_48] : memref<2x4x32x32xf32, #tpu.memory_space<vmem>>, vector<1x1x32x32xf32>
    %36 = vector.shape_cast %35 : vector<1x1x32x32xf32> to vector<32x32xf32>
    %c0_49 = arith.constant 0 : index
    %c2_50 = arith.constant 2 : index
    %c0_51 = arith.constant 0 : index
    %c0_52 = arith.constant 0 : index
    %37 = vector.load %arg5[%c0_49, %c2_50, %c0_51, %c0_52] : memref<2x4x32x32xf32, #tpu.memory_space<vmem>>, vector<1x1x32x32xf32>
    %38 = vector.shape_cast %37 : vector<1x1x32x32xf32> to vector<32x32xf32>
    %c0_53 = arith.constant 0 : index
    %c3_54 = arith.constant 3 : index
    %c0_55 = arith.constant 0 : index
    %c0_56 = arith.constant 0 : index
    %39 = vector.load %arg5[%c0_53, %c3_54, %c0_55, %c0_56] : memref<2x4x32x32xf32, #tpu.memory_space<vmem>>, vector<1x1x32x32xf32>
    %40 = vector.shape_cast %39 : vector<1x1x32x32xf32> to vector<32x32xf32>
    %c0_57 = arith.constant 0 : index
    %c0_58 = arith.constant 0 : index
    %c0_59 = arith.constant 0 : index
    %41 = vector.load %arg2[%c0_57, %c0_58, %c0_59] : memref<2x8x32xf32, #tpu.memory_space<vmem>>, vector<1x8x32xf32>
    %42 = vector.shape_cast %41 : vector<1x8x32xf32> to vector<8x32xf32>
    %c0_60 = arith.constant 0 : index
    %c0_61 = arith.constant 0 : index
    %c0_62 = arith.constant 0 : index
    %43 = vector.load %arg3[%c0_60, %c0_61, %c0_62] : memref<2x8x32xf32, #tpu.memory_space<vmem>>, vector<1x8x32xf32>
    %44 = vector.shape_cast %43 : vector<1x8x32xf32> to vector<8x32xf32>
    %c0_i32 = arith.constant 0 : i32
    %c8_i32 = arith.constant 8 : i32
    %45 = arith.muli %c0_i32, %c8_i32 : i32
    %46 = tpu.assume_multiple %45, 8 : i32
    %47 = arith.index_cast %46 : i32 to index
    %c0_63 = arith.constant 0 : index
    %48 = vector.load %arg14[%47, %c0_63] : memref<64x32xf32, #tpu.memory_space<vmem>>, vector<8x32xf32>
    %cst_64 = arith.constant dense<0.000000e+00> : vector<8x32xf32>
    %49 = tpu.matmul %42, %34, %cst_64 {dimension_numbers = #tpu.dot_dimension_numbers<[1], [0], [0], [1], [0, 0, 1, 1], [], []>} : vector<8x32xf32>, vector<32x32xf32>, vector<8x32xf32> -> vector<8x32xf32>
    %50 = arith.addf %48, %49 : vector<8x32xf32>
    %51 = arith.negf %50 : vector<8x32xf32>
    %52 = math.exp %51 : vector<8x32xf32>
    %cst_65 = arith.constant 1.000000e+00 : f32
    %53 = vector.broadcast %cst_65 : f32 to vector<8x32xf32>
    %54 = arith.addf %53, %52 : vector<8x32xf32>
    %55 = arith.divf %53, %54 : vector<8x32xf32>
    %56 = arith.index_cast %46 : i32 to index
    %c0_66 = arith.constant 0 : index
    %57 = vector.load %arg15[%56, %c0_66] : memref<64x32xf32, #tpu.memory_space<vmem>>, vector<8x32xf32>
    %cst_67 = arith.constant dense<0.000000e+00> : vector<8x32xf32>
    %58 = tpu.matmul %42, %36, %cst_67 {dimension_numbers = #tpu.dot_dimension_numbers<[1], [0], [0], [1], [0, 0, 1, 1], [], []>} : vector<8x32xf32>, vector<32x32xf32>, vector<8x32xf32> -> vector<8x32xf32>
    %59 = arith.addf %57, %58 : vector<8x32xf32>
    %60 = arith.negf %59 : vector<8x32xf32>
    %61 = math.exp %60 : vector<8x32xf32>
    %cst_68 = arith.constant 1.000000e+00 : f32
    %62 = vector.broadcast %cst_68 : f32 to vector<8x32xf32>
    %63 = arith.addf %62, %61 : vector<8x32xf32>
    %64 = arith.divf %62, %63 : vector<8x32xf32>
    %65 = arith.index_cast %46 : i32 to index
    %c0_69 = arith.constant 0 : index
    %66 = vector.load %arg16[%65, %c0_69] : memref<64x32xf32, #tpu.memory_space<vmem>>, vector<8x32xf32>
    %cst_70 = arith.constant dense<0.000000e+00> : vector<8x32xf32>
    %67 = tpu.matmul %42, %38, %cst_70 {dimension_numbers = #tpu.dot_dimension_numbers<[1], [0], [0], [1], [0, 0, 1, 1], [], []>} : vector<8x32xf32>, vector<32x32xf32>, vector<8x32xf32> -> vector<8x32xf32>
    %68 = arith.addf %66, %67 : vector<8x32xf32>
    %69 = math.tanh %68 : vector<8x32xf32>
    %70 = arith.index_cast %46 : i32 to index
    %c0_71 = arith.constant 0 : index
    %71 = vector.load %arg17[%70, %c0_71] : memref<64x32xf32, #tpu.memory_space<vmem>>, vector<8x32xf32>
    %cst_72 = arith.constant dense<0.000000e+00> : vector<8x32xf32>
    %72 = tpu.matmul %42, %40, %cst_72 {dimension_numbers = #tpu.dot_dimension_numbers<[1], [0], [0], [1], [0, 0, 1, 1], [], []>} : vector<8x32xf32>, vector<32x32xf32>, vector<8x32xf32> -> vector<8x32xf32>
    %73 = arith.addf %71, %72 : vector<8x32xf32>
    %74 = arith.negf %73 : vector<8x32xf32>
    %75 = math.exp %74 : vector<8x32xf32>
    %cst_73 = arith.constant 1.000000e+00 : f32
    %76 = vector.broadcast %cst_73 : f32 to vector<8x32xf32>
    %77 = arith.addf %76, %75 : vector<8x32xf32>
    %78 = arith.divf %76, %77 : vector<8x32xf32>
    %79 = arith.mulf %64, %44 : vector<8x32xf32>
    %80 = arith.mulf %55, %69 : vector<8x32xf32>
    %81 = arith.addf %79, %80 : vector<8x32xf32>
    %82 = math.tanh %81 : vector<8x32xf32>
    %83 = arith.mulf %78, %82 : vector<8x32xf32>
    %84 = arith.index_cast %46 : i32 to index
    %c0_74 = arith.constant 0 : index
    %85 = vector.load %arg12[%84, %c0_74] : memref<64x32xf32, #tpu.memory_space<vmem>>, vector<8x32xf32>
    tpu.vector_store %arg12[%84, %c0_74], %83 {strides = array<i32>} : memref<64x32xf32, #tpu.memory_space<vmem>>, vector<8x32xf32>,
    %c1_i32 = arith.constant 1 : i32
    %c8_i32_75 = arith.constant 8 : i32
    %86 = arith.muli %c1_i32, %c8_i32_75 : i32
    %87 = tpu.assume_multiple %86, 8 : i32
    %88 = arith.index_cast %87 : i32 to index
    %c0_76 = arith.constant 0 : index
    %89 = vector.load %arg14[%88, %c0_76] : memref<64x32xf32, #tpu.memory_space<vmem>>, vector<8x32xf32>
    %cst_77 = arith.constant dense<0.000000e+00> : vector<8x32xf32>
    %90 = tpu.matmul %83, %34, %cst_77 {dimension_numbers = #tpu.dot_dimension_numbers<[1], [0], [0], [1], [0, 0, 1, 1], [], []>} : vector<8x32xf32>, vector<32x32xf32>, vector<8x32xf32> -> vector<8x32xf32>
    %91 = arith.addf %89, %90 : vector<8x32xf32>
    %92 = arith.negf %91 : vector<8x32xf32>
    %93 = math.exp %92 : vector<8x32xf32>
    %cst_78 = arith.constant 1.000000e+00 : f32
    %94 = vector.broadcast %cst_78 : f32 to vector<8x32xf32>
    %95 = arith.addf %94, %93 : vector<8x32xf32>
    %96 = arith.divf %94, %95 : vector<8x32xf32>
    %97 = arith.index_cast %87 : i32 to index
    %c0_79 = arith.constant 0 : index
    %98 = vector.load %arg15[%97, %c0_79] : memref<64x32xf32, #tpu.memory_space<vmem>>, vector<8x32xf32>
    %cst_80 = arith.constant dense<0.000000e+00> : vector<8x32xf32>
    %99 = tpu.matmul %83, %36, %cst_80 {dimension_numbers = #tpu.dot_dimension_numbers<[1], [0], [0], [1], [0, 0, 1, 1], [], []>} : vector<8x32xf32>, vector<32x32xf32>, vector<8x32xf32> -> vector<8x32xf32>
    %100 = arith.addf %98, %99 : vector<8x32xf32>
    %101 = arith.negf %100 : vector<8x32xf32>
    %102 = math.exp %101 : vector<8x32xf32>
    %cst_81 = arith.constant 1.000000e+00 : f32
    %103 = vector.broadcast %cst_81 : f32 to vector<8x32xf32>
    %104 = arith.addf %103, %102 : vector<8x32xf32>
    %105 = arith.divf %103, %104 : vector<8x32xf32>
    %106 = arith.index_cast %87 : i32 to index
    %c0_82 = arith.constant 0 : index
    %107 = vector.load %arg16[%106, %c0_82] : memref<64x32xf32, #tpu.memory_space<vmem>>, vector<8x32xf32>
    %cst_83 = arith.constant dense<0.000000e+00> : vector<8x32xf32>
    %108 = tpu.matmul %83, %38, %cst_83 {dimension_numbers = #tpu.dot_dimension_numbers<[1], [0], [0], [1], [0, 0, 1, 1], [], []>} : vector<8x32xf32>, vector<32x32xf32>, vector<8x32xf32> -> vector<8x32xf32>
    %109 = arith.addf %107, %108 : vector<8x32xf32>
    %110 = math.tanh %109 : vector<8x32xf32>
    %111 = arith.index_cast %87 : i32 to index
    %c0_84 = arith.constant 0 : index
    %112 = vector.load %arg17[%111, %c0_84] : memref<64x32xf32, #tpu.memory_space<vmem>>, vector<8x32xf32>
    %cst_85 = arith.constant dense<0.000000e+00> : vector<8x32xf32>
    %113 = tpu.matmul %83, %40, %cst_85 {dimension_numbers = #tpu.dot_dimension_numbers<[1], [0], [0], [1], [0, 0, 1, 1], [], []>} : vector<8x32xf32>, vector<32x32xf32>, vector<8x32xf32> -> vector<8x32xf32>
    %114 = arith.addf %112, %113 : vector<8x32xf32>
    %115 = arith.negf %114 : vector<8x32xf32>
    %116 = math.exp %115 : vector<8x32xf32>
    %cst_86 = arith.constant 1.000000e+00 : f32
    %117 = vector.broadcast %cst_86 : f32 to vector<8x32xf32>
    %118 = arith.addf %117, %116 : vector<8x32xf32>
    %119 = arith.divf %117, %118 : vector<8x32xf32>
    %120 = arith.mulf %105, %81 : vector<8x32xf32>
    %121 = arith.mulf %96, %110 : vector<8x32xf32>
    %122 = arith.addf %120, %121 : vector<8x32xf32>
    %123 = math.tanh %122 : vector<8x32xf32>
    %124 = arith.mulf %119, %123 : vector<8x32xf32>
    %125 = arith.index_cast %87 : i32 to index
    %c0_87 = arith.constant 0 : index
    %126 = vector.load %arg12[%125, %c0_87] : memref<64x32xf32, #tpu.memory_space<vmem>>, vector<8x32xf32>
    tpu.vector_store %arg12[%125, %c0_87], %124 {strides = array<i32>} : memref<64x32xf32, #tpu.memory_space<vmem>>, vector<8x32xf32>,
    %c2_i32 = arith.constant 2 : i32
    %c8_i32_88 = arith.constant 8 : i32
    %127 = arith.muli %c2_i32, %c8_i32_88 : i32
    %128 = tpu.assume_multiple %127, 8 : i32
    %129 = arith.index_cast %128 : i32 to index
    %c0_89 = arith.constant 0 : index
    %130 = vector.load %arg14[%129, %c0_89] : memref<64x32xf32, #tpu.memory_space<vmem>>, vector<8x32xf32>
    %cst_90 = arith.constant dense<0.000000e+00> : vector<8x32xf32>
    %131 = tpu.matmul %124, %34, %cst_90 {dimension_numbers = #tpu.dot_dimension_numbers<[1], [0], [0], [1], [0, 0, 1, 1], [], []>} : vector<8x32xf32>, vector<32x32xf32>, vector<8x32xf32> -> vector<8x32xf32>
    %132 = arith.addf %130, %131 : vector<8x32xf32>
    %133 = arith.negf %132 : vector<8x32xf32>
    %134 = math.exp %133 : vector<8x32xf32>
    %cst_91 = arith.constant 1.000000e+00 : f32
    %135 = vector.broadcast %cst_91 : f32 to vector<8x32xf32>
    %136 = arith.addf %135, %134 : vector<8x32xf32>
    %137 = arith.divf %135, %136 : vector<8x32xf32>
    %138 = arith.index_cast %128 : i32 to index
    %c0_92 = arith.constant 0 : index
    %139 = vector.load %arg15[%138, %c0_92] : memref<64x32xf32, #tpu.memory_space<vmem>>, vector<8x32xf32>
    %cst_93 = arith.constant dense<0.000000e+00> : vector<8x32xf32>
    %140 = tpu.matmul %124, %36, %cst_93 {dimension_numbers = #tpu.dot_dimension_numbers<[1], [0], [0], [1], [0, 0, 1, 1], [], []>} : vector<8x32xf32>, vector<32x32xf32>, vector<8x32xf32> -> vector<8x32xf32>
    %141 = arith.addf %139, %140 : vector<8x32xf32>
    %142 = arith.negf %141 : vector<8x32xf32>
    %143 = math.exp %142 : vector<8x32xf32>
    %cst_94 = arith.constant 1.000000e+00 : f32
    %144 = vector.broadcast %cst_94 : f32 to vector<8x32xf32>
    %145 = arith.addf %144, %143 : vector<8x32xf32>
    %146 = arith.divf %144, %145 : vector<8x32xf32>
    %147 = arith.index_cast %128 : i32 to index
    %c0_95 = arith.constant 0 : index
    %148 = vector.load %arg16[%147, %c0_95] : memref<64x32xf32, #tpu.memory_space<vmem>>, vector<8x32xf32>
    %cst_96 = arith.constant dense<0.000000e+00> : vector<8x32xf32>
    %149 = tpu.matmul %124, %38, %cst_96 {dimension_numbers = #tpu.dot_dimension_numbers<[1], [0], [0], [1], [0, 0, 1, 1], [], []>} : vector<8x32xf32>, vector<32x32xf32>, vector<8x32xf32> -> vector<8x32xf32>
    %150 = arith.addf %148, %149 : vector<8x32xf32>
    %151 = math.tanh %150 : vector<8x32xf32>
    %152 = arith.index_cast %128 : i32 to index
    %c0_97 = arith.constant 0 : index
    %153 = vector.load %arg17[%152, %c0_97] : memref<64x32xf32, #tpu.memory_space<vmem>>, vector<8x32xf32>
    %cst_98 = arith.constant dense<0.000000e+00> : vector<8x32xf32>
    %154 = tpu.matmul %124, %40, %cst_98 {dimension_numbers = #tpu.dot_dimension_numbers<[1], [0], [0], [1], [0, 0, 1, 1], [], []>} : vector<8x32xf32>, vector<32x32xf32>, vector<8x32xf32> -> vector<8x32xf32>
    %155 = arith.addf %153, %154 : vector<8x32xf32>
    %156 = arith.negf %155 : vector<8x32xf32>
    %157 = math.exp %156 : vector<8x32xf32>
    %cst_99 = arith.constant 1.000000e+00 : f32
    %158 = vector.broadcast %cst_99 : f32 to vector<8x32xf32>
    %159 = arith.addf %158, %157 : vector<8x32xf32>
    %160 = arith.divf %158, %159 : vector<8x32xf32>
    %161 = arith.mulf %146, %122 : vector<8x32xf32>
    %162 = arith.mulf %137, %151 : vector<8x32xf32>
    %163 = arith.addf %161, %162 : vector<8x32xf32>
    %164 = math.tanh %163 : vector<8x32xf32>
    %165 = arith.mulf %160, %164 : vector<8x32xf32>
    %166 = arith.index_cast %128 : i32 to index
    %c0_100 = arith.constant 0 : index
    %167 = vector.load %arg12[%166, %c0_100] : memref<64x32xf32, #tpu.memory_space<vmem>>, vector<8x32xf32>
    tpu.vector_store %arg12[%166, %c0_100], %165 {strides = array<i32>} : memref<64x32xf32, #tpu.memory_space<vmem>>, vector<8x32xf32>,
    %c3_i32 = arith.constant 3 : i32
    %c8_i32_101 = arith.constant 8 : i32
    %168 = arith.muli %c3_i32, %c8_i32_101 : i32
    %169 = tpu.assume_multiple %168, 8 : i32
    %170 = arith.index_cast %169 : i32 to index
    %c0_102 = arith.constant 0 : index
    %171 = vector.load %arg14[%170, %c0_102] : memref<64x32xf32, #tpu.memory_space<vmem>>, vector<8x32xf32>
    %cst_103 = arith.constant dense<0.000000e+00> : vector<8x32xf32>
    %172 = tpu.matmul %165, %34, %cst_103 {dimension_numbers = #tpu.dot_dimension_numbers<[1], [0], [0], [1], [0, 0, 1, 1], [], []>} : vector<8x32xf32>, vector<32x32xf32>, vector<8x32xf32> -> vector<8x32xf32>
    %173 = arith.addf %171, %172 : vector<8x32xf32>
    %174 = arith.negf %173 : vector<8x32xf32>
    %175 = math.exp %174 : vector<8x32xf32>
    %cst_104 = arith.constant 1.000000e+00 : f32
    %176 = vector.broadcast %cst_104 : f32 to vector<8x32xf32>
    %177 = arith.addf %176, %175 : vector<8x32xf32>
    %178 = arith.divf %176, %177 : vector<8x32xf32>
    %179 = arith.index_cast %169 : i32 to index
    %c0_105 = arith.constant 0 : index
    %180 = vector.load %arg15[%179, %c0_105] : memref<64x32xf32, #tpu.memory_space<vmem>>, vector<8x32xf32>
    %cst_106 = arith.constant dense<0.000000e+00> : vector<8x32xf32>
    %181 = tpu.matmul %165, %36, %cst_106 {dimension_numbers = #tpu.dot_dimension_numbers<[1], [0], [0], [1], [0, 0, 1, 1], [], []>} : vector<8x32xf32>, vector<32x32xf32>, vector<8x32xf32> -> vector<8x32xf32>
    %182 = arith.addf %180, %181 : vector<8x32xf32>
    %183 = arith.negf %182 : vector<8x32xf32>
    %184 = math.exp %183 : vector<8x32xf32>
    %cst_107 = arith.constant 1.000000e+00 : f32
    %185 = vector.broadcast %cst_107 : f32 to vector<8x32xf32>
    %186 = arith.addf %185, %184 : vector<8x32xf32>
    %187 = arith.divf %185, %186 : vector<8x32xf32>
    %188 = arith.index_cast %169 : i32 to index
    %c0_108 = arith.constant 0 : index
    %189 = vector.load %arg16[%188, %c0_108] : memref<64x32xf32, #tpu.memory_space<vmem>>, vector<8x32xf32>
    %cst_109 = arith.constant dense<0.000000e+00> : vector<8x32xf32>
    %190 = tpu.matmul %165, %38, %cst_109 {dimension_numbers = #tpu.dot_dimension_numbers<[1], [0], [0], [1], [0, 0, 1, 1], [], []>} : vector<8x32xf32>, vector<32x32xf32>, vector<8x32xf32> -> vector<8x32xf32>
    %191 = arith.addf %189, %190 : vector<8x32xf32>
    %192 = math.tanh %191 : vector<8x32xf32>
    %193 = arith.index_cast %169 : i32 to index
    %c0_110 = arith.constant 0 : index
    %194 = vector.load %arg17[%193, %c0_110] : memref<64x32xf32, #tpu.memory_space<vmem>>, vector<8x32xf32>
    %cst_111 = arith.constant dense<0.000000e+00> : vector<8x32xf32>
    %195 = tpu.matmul %165, %40, %cst_111 {dimension_numbers = #tpu.dot_dimension_numbers<[1], [0], [0], [1], [0, 0, 1, 1], [], []>} : vector<8x32xf32>, vector<32x32xf32>, vector<8x32xf32> -> vector<8x32xf32>
    %196 = arith.addf %194, %195 : vector<8x32xf32>
    %197 = arith.negf %196 : vector<8x32xf32>
    %198 = math.exp %197 : vector<8x32xf32>
    %cst_112 = arith.constant 1.000000e+00 : f32
    %199 = vector.broadcast %cst_112 : f32 to vector<8x32xf32>
    %200 = arith.addf %199, %198 : vector<8x32xf32>
    %201 = arith.divf %199, %200 : vector<8x32xf32>
    %202 = arith.mulf %187, %163 : vector<8x32xf32>
    %203 = arith.mulf %178, %192 : vector<8x32xf32>
    %204 = arith.addf %202, %203 : vector<8x32xf32>
    %205 = math.tanh %204 : vector<8x32xf32>
    %206 = arith.mulf %201, %205 : vector<8x32xf32>
    %207 = arith.index_cast %169 : i32 to index
    %c0_113 = arith.constant 0 : index
    %208 = vector.load %arg12[%207, %c0_113] : memref<64x32xf32, #tpu.memory_space<vmem>>, vector<8x32xf32>
    tpu.vector_store %arg12[%207, %c0_113], %206 {strides = array<i32>} : memref<64x32xf32, #tpu.memory_space<vmem>>, vector<8x32xf32>,
    %c4_i32 = arith.constant 4 : i32
    %c8_i32_114 = arith.constant 8 : i32
    %209 = arith.muli %c4_i32, %c8_i32_114 : i32
    %210 = tpu.assume_multiple %209, 8 : i32
    %211 = arith.index_cast %210 : i32 to index
    %c0_115 = arith.constant 0 : index
    %212 = vector.load %arg14[%211, %c0_115] : memref<64x32xf32, #tpu.memory_space<vmem>>, vector<8x32xf32>
    %cst_116 = arith.constant dense<0.000000e+00> : vector<8x32xf32>
    %213 = tpu.matmul %206, %34, %cst_116 {dimension_numbers = #tpu.dot_dimension_numbers<[1], [0], [0], [1], [0, 0, 1, 1], [], []>} : vector<8x32xf32>, vector<32x32xf32>, vector<8x32xf32> -> vector<8x32xf32>
    %214 = arith.addf %212, %213 : vector<8x32xf32>
    %215 = arith.negf %214 : vector<8x32xf32>
    %216 = math.exp %215 : vector<8x32xf32>
    %cst_117 = arith.constant 1.000000e+00 : f32
    %217 = vector.broadcast %cst_117 : f32 to vector<8x32xf32>
    %218 = arith.addf %217, %216 : vector<8x32xf32>
    %219 = arith.divf %217, %218 : vector<8x32xf32>
    %220 = arith.index_cast %210 : i32 to index
    %c0_118 = arith.constant 0 : index
    %221 = vector.load %arg15[%220, %c0_118] : memref<64x32xf32, #tpu.memory_space<vmem>>, vector<8x32xf32>
    %cst_119 = arith.constant dense<0.000000e+00> : vector<8x32xf32>
    %222 = tpu.matmul %206, %36, %cst_119 {dimension_numbers = #tpu.dot_dimension_numbers<[1], [0], [0], [1], [0, 0, 1, 1], [], []>} : vector<8x32xf32>, vector<32x32xf32>, vector<8x32xf32> -> vector<8x32xf32>
    %223 = arith.addf %221, %222 : vector<8x32xf32>
    %224 = arith.negf %223 : vector<8x32xf32>
    %225 = math.exp %224 : vector<8x32xf32>
    %cst_120 = arith.constant 1.000000e+00 : f32
    %226 = vector.broadcast %cst_120 : f32 to vector<8x32xf32>
    %227 = arith.addf %226, %225 : vector<8x32xf32>
    %228 = arith.divf %226, %227 : vector<8x32xf32>
    %229 = arith.index_cast %210 : i32 to index
    %c0_121 = arith.constant 0 : index
    %230 = vector.load %arg16[%229, %c0_121] : memref<64x32xf32, #tpu.memory_space<vmem>>, vector<8x32xf32>
    %cst_122 = arith.constant dense<0.000000e+00> : vector<8x32xf32>
    %231 = tpu.matmul %206, %38, %cst_122 {dimension_numbers = #tpu.dot_dimension_numbers<[1], [0], [0], [1], [0, 0, 1, 1], [], []>} : vector<8x32xf32>, vector<32x32xf32>, vector<8x32xf32> -> vector<8x32xf32>
    %232 = arith.addf %230, %231 : vector<8x32xf32>
    %233 = math.tanh %232 : vector<8x32xf32>
    %234 = arith.index_cast %210 : i32 to index
    %c0_123 = arith.constant 0 : index
    %235 = vector.load %arg17[%234, %c0_123] : memref<64x32xf32, #tpu.memory_space<vmem>>, vector<8x32xf32>
    %cst_124 = arith.constant dense<0.000000e+00> : vector<8x32xf32>
    %236 = tpu.matmul %206, %40, %cst_124 {dimension_numbers = #tpu.dot_dimension_numbers<[1], [0], [0], [1], [0, 0, 1, 1], [], []>} : vector<8x32xf32>, vector<32x32xf32>, vector<8x32xf32> -> vector<8x32xf32>
    %237 = arith.addf %235, %236 : vector<8x32xf32>
    %238 = arith.negf %237 : vector<8x32xf32>
    %239 = math.exp %238 : vector<8x32xf32>
    %cst_125 = arith.constant 1.000000e+00 : f32
    %240 = vector.broadcast %cst_125 : f32 to vector<8x32xf32>
    %241 = arith.addf %240, %239 : vector<8x32xf32>
    %242 = arith.divf %240, %241 : vector<8x32xf32>
    %243 = arith.mulf %228, %204 : vector<8x32xf32>
    %244 = arith.mulf %219, %233 : vector<8x32xf32>
    %245 = arith.addf %243, %244 : vector<8x32xf32>
    %246 = math.tanh %245 : vector<8x32xf32>
    %247 = arith.mulf %242, %246 : vector<8x32xf32>
    %248 = arith.index_cast %210 : i32 to index
    %c0_126 = arith.constant 0 : index
    %249 = vector.load %arg12[%248, %c0_126] : memref<64x32xf32, #tpu.memory_space<vmem>>, vector<8x32xf32>
    tpu.vector_store %arg12[%248, %c0_126], %247 {strides = array<i32>} : memref<64x32xf32, #tpu.memory_space<vmem>>, vector<8x32xf32>,
    %c5_i32 = arith.constant 5 : i32
    %c8_i32_127 = arith.constant 8 : i32
    %250 = arith.muli %c5_i32, %c8_i32_127 : i32
    %251 = tpu.assume_multiple %250, 8 : i32
    %252 = arith.index_cast %251 : i32 to index
    %c0_128 = arith.constant 0 : index
    %253 = vector.load %arg14[%252, %c0_128] : memref<64x32xf32, #tpu.memory_space<vmem>>, vector<8x32xf32>
    %cst_129 = arith.constant dense<0.000000e+00> : vector<8x32xf32>
    %254 = tpu.matmul %247, %34, %cst_129 {dimension_numbers = #tpu.dot_dimension_numbers<[1], [0], [0], [1], [0, 0, 1, 1], [], []>} : vector<8x32xf32>, vector<32x32xf32>, vector<8x32xf32> -> vector<8x32xf32>
    %255 = arith.addf %253, %254 : vector<8x32xf32>
    %256 = arith.negf %255 : vector<8x32xf32>
    %257 = math.exp %256 : vector<8x32xf32>
    %cst_130 = arith.constant 1.000000e+00 : f32
    %258 = vector.broadcast %cst_130 : f32 to vector<8x32xf32>
    %259 = arith.addf %258, %257 : vector<8x32xf32>
    %260 = arith.divf %258, %259 : vector<8x32xf32>
    %261 = arith.index_cast %251 : i32 to index
    %c0_131 = arith.constant 0 : index
    %262 = vector.load %arg15[%261, %c0_131] : memref<64x32xf32, #tpu.memory_space<vmem>>, vector<8x32xf32>
    %cst_132 = arith.constant dense<0.000000e+00> : vector<8x32xf32>
    %263 = tpu.matmul %247, %36, %cst_132 {dimension_numbers = #tpu.dot_dimension_numbers<[1], [0], [0], [1], [0, 0, 1, 1], [], []>} : vector<8x32xf32>, vector<32x32xf32>, vector<8x32xf32> -> vector<8x32xf32>
    %264 = arith.addf %262, %263 : vector<8x32xf32>
    %265 = arith.negf %264 : vector<8x32xf32>
    %266 = math.exp %265 : vector<8x32xf32>
    %cst_133 = arith.constant 1.000000e+00 : f32
    %267 = vector.broadcast %cst_133 : f32 to vector<8x32xf32>
    %268 = arith.addf %267, %266 : vector<8x32xf32>
    %269 = arith.divf %267, %268 : vector<8x32xf32>
    %270 = arith.index_cast %251 : i32 to index
    %c0_134 = arith.constant 0 : index
    %271 = vector.load %arg16[%270, %c0_134] : memref<64x32xf32, #tpu.memory_space<vmem>>, vector<8x32xf32>
    %cst_135 = arith.constant dense<0.000000e+00> : vector<8x32xf32>
    %272 = tpu.matmul %247, %38, %cst_135 {dimension_numbers = #tpu.dot_dimension_numbers<[1], [0], [0], [1], [0, 0, 1, 1], [], []>} : vector<8x32xf32>, vector<32x32xf32>, vector<8x32xf32> -> vector<8x32xf32>
    %273 = arith.addf %271, %272 : vector<8x32xf32>
    %274 = math.tanh %273 : vector<8x32xf32>
    %275 = arith.index_cast %251 : i32 to index
    %c0_136 = arith.constant 0 : index
    %276 = vector.load %arg17[%275, %c0_136] : memref<64x32xf32, #tpu.memory_space<vmem>>, vector<8x32xf32>
    %cst_137 = arith.constant dense<0.000000e+00> : vector<8x32xf32>
    %277 = tpu.matmul %247, %40, %cst_137 {dimension_numbers = #tpu.dot_dimension_numbers<[1], [0], [0], [1], [0, 0, 1, 1], [], []>} : vector<8x32xf32>, vector<32x32xf32>, vector<8x32xf32> -> vector<8x32xf32>
    %278 = arith.addf %276, %277 : vector<8x32xf32>
    %279 = arith.negf %278 : vector<8x32xf32>
    %280 = math.exp %279 : vector<8x32xf32>
    %cst_138 = arith.constant 1.000000e+00 : f32
    %281 = vector.broadcast %cst_138 : f32 to vector<8x32xf32>
    %282 = arith.addf %281, %280 : vector<8x32xf32>
    %283 = arith.divf %281, %282 : vector<8x32xf32>
    %284 = arith.mulf %269, %245 : vector<8x32xf32>
    %285 = arith.mulf %260, %274 : vector<8x32xf32>
    %286 = arith.addf %284, %285 : vector<8x32xf32>
    %287 = math.tanh %286 : vector<8x32xf32>
    %288 = arith.mulf %283, %287 : vector<8x32xf32>
    %289 = arith.index_cast %251 : i32 to index
    %c0_139 = arith.constant 0 : index
    %290 = vector.load %arg12[%289, %c0_139] : memref<64x32xf32, #tpu.memory_space<vmem>>, vector<8x32xf32>
    tpu.vector_store %arg12[%289, %c0_139], %288 {strides = array<i32>} : memref<64x32xf32, #tpu.memory_space<vmem>>, vector<8x32xf32>,
    %c6_i32 = arith.constant 6 : i32
    %c8_i32_140 = arith.constant 8 : i32
    %291 = arith.muli %c6_i32, %c8_i32_140 : i32
    %292 = tpu.assume_multiple %291, 8 : i32
    %293 = arith.index_cast %292 : i32 to index
    %c0_141 = arith.constant 0 : index
    %294 = vector.load %arg14[%293, %c0_141] : memref<64x32xf32, #tpu.memory_space<vmem>>, vector<8x32xf32>
    %cst_142 = arith.constant dense<0.000000e+00> : vector<8x32xf32>
    %295 = tpu.matmul %288, %34, %cst_142 {dimension_numbers = #tpu.dot_dimension_numbers<[1], [0], [0], [1], [0, 0, 1, 1], [], []>} : vector<8x32xf32>, vector<32x32xf32>, vector<8x32xf32> -> vector<8x32xf32>
    %296 = arith.addf %294, %295 : vector<8x32xf32>
    %297 = arith.negf %296 : vector<8x32xf32>
    %298 = math.exp %297 : vector<8x32xf32>
    %cst_143 = arith.constant 1.000000e+00 : f32
    %299 = vector.broadcast %cst_143 : f32 to vector<8x32xf32>
    %300 = arith.addf %299, %298 : vector<8x32xf32>
    %301 = arith.divf %299, %300 : vector<8x32xf32>
    %302 = arith.index_cast %292 : i32 to index
    %c0_144 = arith.constant 0 : index
    %303 = vector.load %arg15[%302, %c0_144] : memref<64x32xf32, #tpu.memory_space<vmem>>, vector<8x32xf32>
    %cst_145 = arith.constant dense<0.000000e+00> : vector<8x32xf32>
    %304 = tpu.matmul %288, %36, %cst_145 {dimension_numbers = #tpu.dot_dimension_numbers<[1], [0], [0], [1], [0, 0, 1, 1], [], []>} : vector<8x32xf32>, vector<32x32xf32>, vector<8x32xf32> -> vector<8x32xf32>
    %305 = arith.addf %303, %304 : vector<8x32xf32>
    %306 = arith.negf %305 : vector<8x32xf32>
    %307 = math.exp %306 : vector<8x32xf32>
    %cst_146 = arith.constant 1.000000e+00 : f32
    %308 = vector.broadcast %cst_146 : f32 to vector<8x32xf32>
    %309 = arith.addf %308, %307 : vector<8x32xf32>
    %310 = arith.divf %308, %309 : vector<8x32xf32>
    %311 = arith.index_cast %292 : i32 to index
    %c0_147 = arith.constant 0 : index
    %312 = vector.load %arg16[%311, %c0_147] : memref<64x32xf32, #tpu.memory_space<vmem>>, vector<8x32xf32>
    %cst_148 = arith.constant dense<0.000000e+00> : vector<8x32xf32>
    %313 = tpu.matmul %288, %38, %cst_148 {dimension_numbers = #tpu.dot_dimension_numbers<[1], [0], [0], [1], [0, 0, 1, 1], [], []>} : vector<8x32xf32>, vector<32x32xf32>, vector<8x32xf32> -> vector<8x32xf32>
    %314 = arith.addf %312, %313 : vector<8x32xf32>
    %315 = math.tanh %314 : vector<8x32xf32>
    %316 = arith.index_cast %292 : i32 to index
    %c0_149 = arith.constant 0 : index
    %317 = vector.load %arg17[%316, %c0_149] : memref<64x32xf32, #tpu.memory_space<vmem>>, vector<8x32xf32>
    %cst_150 = arith.constant dense<0.000000e+00> : vector<8x32xf32>
    %318 = tpu.matmul %288, %40, %cst_150 {dimension_numbers = #tpu.dot_dimension_numbers<[1], [0], [0], [1], [0, 0, 1, 1], [], []>} : vector<8x32xf32>, vector<32x32xf32>, vector<8x32xf32> -> vector<8x32xf32>
    %319 = arith.addf %317, %318 : vector<8x32xf32>
    %320 = arith.negf %319 : vector<8x32xf32>
    %321 = math.exp %320 : vector<8x32xf32>
    %cst_151 = arith.constant 1.000000e+00 : f32
    %322 = vector.broadcast %cst_151 : f32 to vector<8x32xf32>
    %323 = arith.addf %322, %321 : vector<8x32xf32>
    %324 = arith.divf %322, %323 : vector<8x32xf32>
    %325 = arith.mulf %310, %286 : vector<8x32xf32>
    %326 = arith.mulf %301, %315 : vector<8x32xf32>
    %327 = arith.addf %325, %326 : vector<8x32xf32>
    %328 = math.tanh %327 : vector<8x32xf32>
    %329 = arith.mulf %324, %328 : vector<8x32xf32>
    %330 = arith.index_cast %292 : i32 to index
    %c0_152 = arith.constant 0 : index
    %331 = vector.load %arg12[%330, %c0_152] : memref<64x32xf32, #tpu.memory_space<vmem>>, vector<8x32xf32>
    tpu.vector_store %arg12[%330, %c0_152], %329 {strides = array<i32>} : memref<64x32xf32, #tpu.memory_space<vmem>>, vector<8x32xf32>,
    %c7_i32 = arith.constant 7 : i32
    %c8_i32_153 = arith.constant 8 : i32
    %332 = arith.muli %c7_i32, %c8_i32_153 : i32
    %333 = tpu.assume_multiple %332, 8 : i32
    %334 = arith.index_cast %333 : i32 to index
    %c0_154 = arith.constant 0 : index
    %335 = vector.load %arg14[%334, %c0_154] : memref<64x32xf32, #tpu.memory_space<vmem>>, vector<8x32xf32>
    %cst_155 = arith.constant dense<0.000000e+00> : vector<8x32xf32>
    %336 = tpu.matmul %329, %34, %cst_155 {dimension_numbers = #tpu.dot_dimension_numbers<[1], [0], [0], [1], [0, 0, 1, 1], [], []>} : vector<8x32xf32>, vector<32x32xf32>, vector<8x32xf32> -> vector<8x32xf32>
    %337 = arith.addf %335, %336 : vector<8x32xf32>
    %338 = arith.negf %337 : vector<8x32xf32>
    %339 = math.exp %338 : vector<8x32xf32>
    %cst_156 = arith.constant 1.000000e+00 : f32
    %340 = vector.broadcast %cst_156 : f32 to vector<8x32xf32>
    %341 = arith.addf %340, %339 : vector<8x32xf32>
    %342 = arith.divf %340, %341 : vector<8x32xf32>
    %343 = arith.index_cast %333 : i32 to index
    %c0_157 = arith.constant 0 : index
    %344 = vector.load %arg15[%343, %c0_157] : memref<64x32xf32, #tpu.memory_space<vmem>>, vector<8x32xf32>
    %cst_158 = arith.constant dense<0.000000e+00> : vector<8x32xf32>
    %345 = tpu.matmul %329, %36, %cst_158 {dimension_numbers = #tpu.dot_dimension_numbers<[1], [0], [0], [1], [0, 0, 1, 1], [], []>} : vector<8x32xf32>, vector<32x32xf32>, vector<8x32xf32> -> vector<8x32xf32>
    %346 = arith.addf %344, %345 : vector<8x32xf32>
    %347 = arith.negf %346 : vector<8x32xf32>
    %348 = math.exp %347 : vector<8x32xf32>
    %cst_159 = arith.constant 1.000000e+00 : f32
    %349 = vector.broadcast %cst_159 : f32 to vector<8x32xf32>
    %350 = arith.addf %349, %348 : vector<8x32xf32>
    %351 = arith.divf %349, %350 : vector<8x32xf32>
    %352 = arith.index_cast %333 : i32 to index
    %c0_160 = arith.constant 0 : index
    %353 = vector.load %arg16[%352, %c0_160] : memref<64x32xf32, #tpu.memory_space<vmem>>, vector<8x32xf32>
    %cst_161 = arith.constant dense<0.000000e+00> : vector<8x32xf32>
    %354 = tpu.matmul %329, %38, %cst_161 {dimension_numbers = #tpu.dot_dimension_numbers<[1], [0], [0], [1], [0, 0, 1, 1], [], []>} : vector<8x32xf32>, vector<32x32xf32>, vector<8x32xf32> -> vector<8x32xf32>
    %355 = arith.addf %353, %354 : vector<8x32xf32>
    %356 = math.tanh %355 : vector<8x32xf32>
    %357 = arith.index_cast %333 : i32 to index
    %c0_162 = arith.constant 0 : index
    %358 = vector.load %arg17[%357, %c0_162] : memref<64x32xf32, #tpu.memory_space<vmem>>, vector<8x32xf32>
    %cst_163 = arith.constant dense<0.000000e+00> : vector<8x32xf32>
    %359 = tpu.matmul %329, %40, %cst_163 {dimension_numbers = #tpu.dot_dimension_numbers<[1], [0], [0], [1], [0, 0, 1, 1], [], []>} : vector<8x32xf32>, vector<32x32xf32>, vector<8x32xf32> -> vector<8x32xf32>
    %360 = arith.addf %358, %359 : vector<8x32xf32>
    %361 = arith.negf %360 : vector<8x32xf32>
    %362 = math.exp %361 : vector<8x32xf32>
    %cst_164 = arith.constant 1.000000e+00 : f32
    %363 = vector.broadcast %cst_164 : f32 to vector<8x32xf32>
    %364 = arith.addf %363, %362 : vector<8x32xf32>
    %365 = arith.divf %363, %364 : vector<8x32xf32>
    %366 = arith.mulf %351, %327 : vector<8x32xf32>
    %367 = arith.mulf %342, %356 : vector<8x32xf32>
    %368 = arith.addf %366, %367 : vector<8x32xf32>
    %369 = math.tanh %368 : vector<8x32xf32>
    %370 = arith.mulf %365, %369 : vector<8x32xf32>
    %371 = arith.index_cast %333 : i32 to index
    %c0_165 = arith.constant 0 : index
    %372 = vector.load %arg12[%371, %c0_165] : memref<64x32xf32, #tpu.memory_space<vmem>>, vector<8x32xf32>
    tpu.vector_store %arg12[%371, %c0_165], %370 {strides = array<i32>} : memref<64x32xf32, #tpu.memory_space<vmem>>, vector<8x32xf32>,
    %c8_i32_166 = arith.constant 8 : i32
    %c0_167 = arith.constant 0 : index
    %c0_168 = arith.constant 0 : index
    %c0_169 = arith.constant 0 : index
    %373 = vector.load %arg10[%c0_167, %c0_168, %c0_169] : memref<2x8x32xf32, #tpu.memory_space<vmem>>, vector<1x8x32xf32>
    %374 = vector.shape_cast %373 : vector<1x8x32xf32> to vector<8x32xf32>
    %375 = vector.shape_cast %370 : vector<8x32xf32> to vector<1x8x32xf32>
    tpu.vector_store %arg10[%c0_167, %c0_168, %c0_169], %375 {strides = array<i32>} : memref<2x8x32xf32, #tpu.memory_space<vmem>>, vector<1x8x32xf32>,
    %c0_170 = arith.constant 0 : index
    %c0_171 = arith.constant 0 : index
    %c0_172 = arith.constant 0 : index
    %376 = vector.load %arg11[%c0_170, %c0_171, %c0_172] : memref<2x8x32xf32, #tpu.memory_space<vmem>>, vector<1x8x32xf32>
    %377 = vector.shape_cast %376 : vector<1x8x32xf32> to vector<8x32xf32>
    %378 = vector.shape_cast %368 : vector<8x32xf32> to vector<1x8x32xf32>
    tpu.vector_store %arg11[%c0_170, %c0_171, %c0_172], %378 {strides = array<i32>} : memref<2x8x32xf32, #tpu.memory_space<vmem>>, vector<1x8x32xf32>,
    %c0_173 = arith.constant 0 : index
    %c0_174 = arith.constant 0 : index
    %379 = vector.load %arg12[%c0_173, %c0_174] : memref<64x32xf32, #tpu.memory_space<vmem>>, vector<64x32xf32>
    %c1_175 = arith.constant 1 : index
    %c0_176 = arith.constant 0 : index
    %c0_177 = arith.constant 0 : index
    %c0_178 = arith.constant 0 : index
    %380 = vector.load %arg4[%c1_175, %c0_176, %c0_177, %c0_178] : memref<2x4x32x32xf32, #tpu.memory_space<vmem>>, vector<1x1x32x32xf32>
    %381 = vector.shape_cast %380 : vector<1x1x32x32xf32> to vector<32x32xf32>
    %cst_179 = arith.constant dense<0.000000e+00> : vector<64x32xf32>
    %382 = tpu.matmul %379, %381, %cst_179 {dimension_numbers = #tpu.dot_dimension_numbers<[1], [0], [0], [1], [0, 0, 1, 1], [], []>} : vector<64x32xf32>, vector<32x32xf32>, vector<64x32xf32> -> vector<64x32xf32>
    %c1_180 = arith.constant 1 : index
    %c0_181 = arith.constant 0 : index
    %c0_182 = arith.constant 0 : index
    %c0_183 = arith.constant 0 : index
    %383 = vector.load %arg6[%c1_180, %c0_181, %c0_182, %c0_183] : memref<2x4x1x32xf32, #tpu.memory_space<vmem>>, vector<1x1x1x32xf32>
    %384 = vector.shape_cast %383 : vector<1x1x1x32xf32> to vector<1x32xf32>
    %385 = vector.broadcast %384 : vector<1x32xf32> to vector<64x32xf32>
    %386 = arith.addf %382, %385 : vector<64x32xf32>
    %c0_184 = arith.constant 0 : index
    %c0_185 = arith.constant 0 : index
    %387 = vector.load %arg14[%c0_184, %c0_185] : memref<64x32xf32, #tpu.memory_space<vmem>>, vector<64x32xf32>
    tpu.vector_store %arg14[%c0_184, %c0_185], %386 {strides = array<i32>} : memref<64x32xf32, #tpu.memory_space<vmem>>, vector<64x32xf32>,
    %c1_186 = arith.constant 1 : index
    %c1_187 = arith.constant 1 : index
    %c0_188 = arith.constant 0 : index
    %c0_189 = arith.constant 0 : index
    %388 = vector.load %arg4[%c1_186, %c1_187, %c0_188, %c0_189] : memref<2x4x32x32xf32, #tpu.memory_space<vmem>>, vector<1x1x32x32xf32>
    %389 = vector.shape_cast %388 : vector<1x1x32x32xf32> to vector<32x32xf32>
    %cst_190 = arith.constant dense<0.000000e+00> : vector<64x32xf32>
    %390 = tpu.matmul %379, %389, %cst_190 {dimension_numbers = #tpu.dot_dimension_numbers<[1], [0], [0], [1], [0, 0, 1, 1], [], []>} : vector<64x32xf32>, vector<32x32xf32>, vector<64x32xf32> -> vector<64x32xf32>
    %c1_191 = arith.constant 1 : index
    %c1_192 = arith.constant 1 : index
    %c0_193 = arith.constant 0 : index
    %c0_194 = arith.constant 0 : index
    %391 = vector.load %arg6[%c1_191, %c1_192, %c0_193, %c0_194] : memref<2x4x1x32xf32, #tpu.memory_space<vmem>>, vector<1x1x1x32xf32>
    %392 = vector.shape_cast %391 : vector<1x1x1x32xf32> to vector<1x32xf32>
    %393 = vector.broadcast %392 : vector<1x32xf32> to vector<64x32xf32>
    %394 = arith.addf %390, %393 : vector<64x32xf32>
    %c0_195 = arith.constant 0 : index
    %c0_196 = arith.constant 0 : index
    %395 = vector.load %arg15[%c0_195, %c0_196] : memref<64x32xf32, #tpu.memory_space<vmem>>, vector<64x32xf32>
    tpu.vector_store %arg15[%c0_195, %c0_196], %394 {strides = array<i32>} : memref<64x32xf32, #tpu.memory_space<vmem>>, vector<64x32xf32>,
    %c1_197 = arith.constant 1 : index
    %c2_198 = arith.constant 2 : index
    %c0_199 = arith.constant 0 : index
    %c0_200 = arith.constant 0 : index
    %396 = vector.load %arg4[%c1_197, %c2_198, %c0_199, %c0_200] : memref<2x4x32x32xf32, #tpu.memory_space<vmem>>, vector<1x1x32x32xf32>
    %397 = vector.shape_cast %396 : vector<1x1x32x32xf32> to vector<32x32xf32>
    %cst_201 = arith.constant dense<0.000000e+00> : vector<64x32xf32>
    %398 = tpu.matmul %379, %397, %cst_201 {dimension_numbers = #tpu.dot_dimension_numbers<[1], [0], [0], [1], [0, 0, 1, 1], [], []>} : vector<64x32xf32>, vector<32x32xf32>, vector<64x32xf32> -> vector<64x32xf32>
    %c1_202 = arith.constant 1 : index
    %c2_203 = arith.constant 2 : index
    %c0_204 = arith.constant 0 : index
    %c0_205 = arith.constant 0 : index
    %399 = vector.load %arg6[%c1_202, %c2_203, %c0_204, %c0_205] : memref<2x4x1x32xf32, #tpu.memory_space<vmem>>, vector<1x1x1x32xf32>
    %400 = vector.shape_cast %399 : vector<1x1x1x32xf32> to vector<1x32xf32>
    %401 = vector.broadcast %400 : vector<1x32xf32> to vector<64x32xf32>
    %402 = arith.addf %398, %401 : vector<64x32xf32>
    %c0_206 = arith.constant 0 : index
    %c0_207 = arith.constant 0 : index
    %403 = vector.load %arg16[%c0_206, %c0_207] : memref<64x32xf32, #tpu.memory_space<vmem>>, vector<64x32xf32>
    tpu.vector_store %arg16[%c0_206, %c0_207], %402 {strides = array<i32>} : memref<64x32xf32, #tpu.memory_space<vmem>>, vector<64x32xf32>,
    %c1_208 = arith.constant 1 : index
    %c3_209 = arith.constant 3 : index
    %c0_210 = arith.constant 0 : index
    %c0_211 = arith.constant 0 : index
    %404 = vector.load %arg4[%c1_208, %c3_209, %c0_210, %c0_211] : memref<2x4x32x32xf32, #tpu.memory_space<vmem>>, vector<1x1x32x32xf32>
    %405 = vector.shape_cast %404 : vector<1x1x32x32xf32> to vector<32x32xf32>
    %cst_212 = arith.constant dense<0.000000e+00> : vector<64x32xf32>
    %406 = tpu.matmul %379, %405, %cst_212 {dimension_numbers = #tpu.dot_dimension_numbers<[1], [0], [0], [1], [0, 0, 1, 1], [], []>} : vector<64x32xf32>, vector<32x32xf32>, vector<64x32xf32> -> vector<64x32xf32>
    %c1_213 = arith.constant 1 : index
    %c3_214 = arith.constant 3 : index
    %c0_215 = arith.constant 0 : index
    %c0_216 = arith.constant 0 : index
    %407 = vector.load %arg6[%c1_213, %c3_214, %c0_215, %c0_216] : memref<2x4x1x32xf32, #tpu.memory_space<vmem>>, vector<1x1x1x32xf32>
    %408 = vector.shape_cast %407 : vector<1x1x1x32xf32> to vector<1x32xf32>
    %409 = vector.broadcast %408 : vector<1x32xf32> to vector<64x32xf32>
    %410 = arith.addf %406, %409 : vector<64x32xf32>
    %c0_217 = arith.constant 0 : index
    %c0_218 = arith.constant 0 : index
    %411 = vector.load %arg17[%c0_217, %c0_218] : memref<64x32xf32, #tpu.memory_space<vmem>>, vector<64x32xf32>
    tpu.vector_store %arg17[%c0_217, %c0_218], %410 {strides = array<i32>} : memref<64x32xf32, #tpu.memory_space<vmem>>, vector<64x32xf32>,
    %c1_219 = arith.constant 1 : index
    %c0_220 = arith.constant 0 : index
    %c0_221 = arith.constant 0 : index
    %c0_222 = arith.constant 0 : index
    %412 = vector.load %arg5[%c1_219, %c0_220, %c0_221, %c0_222] : memref<2x4x32x32xf32, #tpu.memory_space<vmem>>, vector<1x1x32x32xf32>
    %413 = vector.shape_cast %412 : vector<1x1x32x32xf32> to vector<32x32xf32>
    %c1_223 = arith.constant 1 : index
    %c1_224 = arith.constant 1 : index
    %c0_225 = arith.constant 0 : index
    %c0_226 = arith.constant 0 : index
    %414 = vector.load %arg5[%c1_223, %c1_224, %c0_225, %c0_226] : memref<2x4x32x32xf32, #tpu.memory_space<vmem>>, vector<1x1x32x32xf32>
    %415 = vector.shape_cast %414 : vector<1x1x32x32xf32> to vector<32x32xf32>
    %c1_227 = arith.constant 1 : index
    %c2_228 = arith.constant 2 : index
    %c0_229 = arith.constant 0 : index
    %c0_230 = arith.constant 0 : index
    %416 = vector.load %arg5[%c1_227, %c2_228, %c0_229, %c0_230] : memref<2x4x32x32xf32, #tpu.memory_space<vmem>>, vector<1x1x32x32xf32>
    %417 = vector.shape_cast %416 : vector<1x1x32x32xf32> to vector<32x32xf32>
    %c1_231 = arith.constant 1 : index
    %c3_232 = arith.constant 3 : index
    %c0_233 = arith.constant 0 : index
    %c0_234 = arith.constant 0 : index
    %418 = vector.load %arg5[%c1_231, %c3_232, %c0_233, %c0_234] : memref<2x4x32x32xf32, #tpu.memory_space<vmem>>, vector<1x1x32x32xf32>
    %419 = vector.shape_cast %418 : vector<1x1x32x32xf32> to vector<32x32xf32>
    %c1_235 = arith.constant 1 : index
    %c0_236 = arith.constant 0 : index
    %c0_237 = arith.constant 0 : index
    %420 = vector.load %arg2[%c1_235, %c0_236, %c0_237] : memref<2x8x32xf32, #tpu.memory_space<vmem>>, vector<1x8x32xf32>
    %421 = vector.shape_cast %420 : vector<1x8x32xf32> to vector<8x32xf32>
    %c1_238 = arith.constant 1 : index
    %c0_239 = arith.constant 0 : index
    %c0_240 = arith.constant 0 : index
    %422 = vector.load %arg3[%c1_238, %c0_239, %c0_240] : memref<2x8x32xf32, #tpu.memory_space<vmem>>, vector<1x8x32xf32>
    %423 = vector.shape_cast %422 : vector<1x8x32xf32> to vector<8x32xf32>
    %c0_i32_241 = arith.constant 0 : i32
    %c8_i32_242 = arith.constant 8 : i32
    %424 = arith.muli %c0_i32_241, %c8_i32_242 : i32
    %425 = tpu.assume_multiple %424, 8 : i32
    %426 = arith.index_cast %425 : i32 to index
    %c0_243 = arith.constant 0 : index
    %427 = vector.load %arg14[%426, %c0_243] : memref<64x32xf32, #tpu.memory_space<vmem>>, vector<8x32xf32>
    %cst_244 = arith.constant dense<0.000000e+00> : vector<8x32xf32>
    %428 = tpu.matmul %421, %413, %cst_244 {dimension_numbers = #tpu.dot_dimension_numbers<[1], [0], [0], [1], [0, 0, 1, 1], [], []>} : vector<8x32xf32>, vector<32x32xf32>, vector<8x32xf32> -> vector<8x32xf32>
    %429 = arith.addf %427, %428 : vector<8x32xf32>
    %430 = arith.negf %429 : vector<8x32xf32>
    %431 = math.exp %430 : vector<8x32xf32>
    %cst_245 = arith.constant 1.000000e+00 : f32
    %432 = vector.broadcast %cst_245 : f32 to vector<8x32xf32>
    %433 = arith.addf %432, %431 : vector<8x32xf32>
    %434 = arith.divf %432, %433 : vector<8x32xf32>
    %435 = arith.index_cast %425 : i32 to index
    %c0_246 = arith.constant 0 : index
    %436 = vector.load %arg15[%435, %c0_246] : memref<64x32xf32, #tpu.memory_space<vmem>>, vector<8x32xf32>
    %cst_247 = arith.constant dense<0.000000e+00> : vector<8x32xf32>
    %437 = tpu.matmul %421, %415, %cst_247 {dimension_numbers = #tpu.dot_dimension_numbers<[1], [0], [0], [1], [0, 0, 1, 1], [], []>} : vector<8x32xf32>, vector<32x32xf32>, vector<8x32xf32> -> vector<8x32xf32>
    %438 = arith.addf %436, %437 : vector<8x32xf32>
    %439 = arith.negf %438 : vector<8x32xf32>
    %440 = math.exp %439 : vector<8x32xf32>
    %cst_248 = arith.constant 1.000000e+00 : f32
    %441 = vector.broadcast %cst_248 : f32 to vector<8x32xf32>
    %442 = arith.addf %441, %440 : vector<8x32xf32>
    %443 = arith.divf %441, %442 : vector<8x32xf32>
    %444 = arith.index_cast %425 : i32 to index
    %c0_249 = arith.constant 0 : index
    %445 = vector.load %arg16[%444, %c0_249] : memref<64x32xf32, #tpu.memory_space<vmem>>, vector<8x32xf32>
    %cst_250 = arith.constant dense<0.000000e+00> : vector<8x32xf32>
    %446 = tpu.matmul %421, %417, %cst_250 {dimension_numbers = #tpu.dot_dimension_numbers<[1], [0], [0], [1], [0, 0, 1, 1], [], []>} : vector<8x32xf32>, vector<32x32xf32>, vector<8x32xf32> -> vector<8x32xf32>
    %447 = arith.addf %445, %446 : vector<8x32xf32>
    %448 = math.tanh %447 : vector<8x32xf32>
    %449 = arith.index_cast %425 : i32 to index
    %c0_251 = arith.constant 0 : index
    %450 = vector.load %arg17[%449, %c0_251] : memref<64x32xf32, #tpu.memory_space<vmem>>, vector<8x32xf32>
    %cst_252 = arith.constant dense<0.000000e+00> : vector<8x32xf32>
    %451 = tpu.matmul %421, %419, %cst_252 {dimension_numbers = #tpu.dot_dimension_numbers<[1], [0], [0], [1], [0, 0, 1, 1], [], []>} : vector<8x32xf32>, vector<32x32xf32>, vector<8x32xf32> -> vector<8x32xf32>
    %452 = arith.addf %450, %451 : vector<8x32xf32>
    %453 = arith.negf %452 : vector<8x32xf32>
    %454 = math.exp %453 : vector<8x32xf32>
    %cst_253 = arith.constant 1.000000e+00 : f32
    %455 = vector.broadcast %cst_253 : f32 to vector<8x32xf32>
    %456 = arith.addf %455, %454 : vector<8x32xf32>
    %457 = arith.divf %455, %456 : vector<8x32xf32>
    %458 = arith.mulf %443, %423 : vector<8x32xf32>
    %459 = arith.mulf %434, %448 : vector<8x32xf32>
    %460 = arith.addf %458, %459 : vector<8x32xf32>
    %461 = math.tanh %460 : vector<8x32xf32>
    %462 = arith.mulf %457, %461 : vector<8x32xf32>
    %463 = arith.index_cast %425 : i32 to index
    %c0_254 = arith.constant 0 : index
    %464 = vector.load %arg13[%463, %c0_254] : memref<64x32xf32, #tpu.memory_space<vmem>>, vector<8x32xf32>
    tpu.vector_store %arg13[%463, %c0_254], %462 {strides = array<i32>} : memref<64x32xf32, #tpu.memory_space<vmem>>, vector<8x32xf32>,
    %c1_i32_255 = arith.constant 1 : i32
    %c8_i32_256 = arith.constant 8 : i32
    %465 = arith.muli %c1_i32_255, %c8_i32_256 : i32
    %466 = tpu.assume_multiple %465, 8 : i32
    %467 = arith.index_cast %466 : i32 to index
    %c0_257 = arith.constant 0 : index
    %468 = vector.load %arg14[%467, %c0_257] : memref<64x32xf32, #tpu.memory_space<vmem>>, vector<8x32xf32>
    %cst_258 = arith.constant dense<0.000000e+00> : vector<8x32xf32>
    %469 = tpu.matmul %462, %413, %cst_258 {dimension_numbers = #tpu.dot_dimension_numbers<[1], [0], [0], [1], [0, 0, 1, 1], [], []>} : vector<8x32xf32>, vector<32x32xf32>, vector<8x32xf32> -> vector<8x32xf32>
    %470 = arith.addf %468, %469 : vector<8x32xf32>
    %471 = arith.negf %470 : vector<8x32xf32>
    %472 = math.exp %471 : vector<8x32xf32>
    %cst_259 = arith.constant 1.000000e+00 : f32
    %473 = vector.broadcast %cst_259 : f32 to vector<8x32xf32>
    %474 = arith.addf %473, %472 : vector<8x32xf32>
    %475 = arith.divf %473, %474 : vector<8x32xf32>
    %476 = arith.index_cast %466 : i32 to index
    %c0_260 = arith.constant 0 : index
    %477 = vector.load %arg15[%476, %c0_260] : memref<64x32xf32, #tpu.memory_space<vmem>>, vector<8x32xf32>
    %cst_261 = arith.constant dense<0.000000e+00> : vector<8x32xf32>
    %478 = tpu.matmul %462, %415, %cst_261 {dimension_numbers = #tpu.dot_dimension_numbers<[1], [0], [0], [1], [0, 0, 1, 1], [], []>} : vector<8x32xf32>, vector<32x32xf32>, vector<8x32xf32> -> vector<8x32xf32>
    %479 = arith.addf %477, %478 : vector<8x32xf32>
    %480 = arith.negf %479 : vector<8x32xf32>
    %481 = math.exp %480 : vector<8x32xf32>
    %cst_262 = arith.constant 1.000000e+00 : f32
    %482 = vector.broadcast %cst_262 : f32 to vector<8x32xf32>
    %483 = arith.addf %482, %481 : vector<8x32xf32>
    %484 = arith.divf %482, %483 : vector<8x32xf32>
    %485 = arith.index_cast %466 : i32 to index
    %c0_263 = arith.constant 0 : index
    %486 = vector.load %arg16[%485, %c0_263] : memref<64x32xf32, #tpu.memory_space<vmem>>, vector<8x32xf32>
    %cst_264 = arith.constant dense<0.000000e+00> : vector<8x32xf32>
    %487 = tpu.matmul %462, %417, %cst_264 {dimension_numbers = #tpu.dot_dimension_numbers<[1], [0], [0], [1], [0, 0, 1, 1], [], []>} : vector<8x32xf32>, vector<32x32xf32>, vector<8x32xf32> -> vector<8x32xf32>
    %488 = arith.addf %486, %487 : vector<8x32xf32>
    %489 = math.tanh %488 : vector<8x32xf32>
    %490 = arith.index_cast %466 : i32 to index
    %c0_265 = arith.constant 0 : index
    %491 = vector.load %arg17[%490, %c0_265] : memref<64x32xf32, #tpu.memory_space<vmem>>, vector<8x32xf32>
    %cst_266 = arith.constant dense<0.000000e+00> : vector<8x32xf32>
    %492 = tpu.matmul %462, %419, %cst_266 {dimension_numbers = #tpu.dot_dimension_numbers<[1], [0], [0], [1], [0, 0, 1, 1], [], []>} : vector<8x32xf32>, vector<32x32xf32>, vector<8x32xf32> -> vector<8x32xf32>
    %493 = arith.addf %491, %492 : vector<8x32xf32>
    %494 = arith.negf %493 : vector<8x32xf32>
    %495 = math.exp %494 : vector<8x32xf32>
    %cst_267 = arith.constant 1.000000e+00 : f32
    %496 = vector.broadcast %cst_267 : f32 to vector<8x32xf32>
    %497 = arith.addf %496, %495 : vector<8x32xf32>
    %498 = arith.divf %496, %497 : vector<8x32xf32>
    %499 = arith.mulf %484, %460 : vector<8x32xf32>
    %500 = arith.mulf %475, %489 : vector<8x32xf32>
    %501 = arith.addf %499, %500 : vector<8x32xf32>
    %502 = math.tanh %501 : vector<8x32xf32>
    %503 = arith.mulf %498, %502 : vector<8x32xf32>
    %504 = arith.index_cast %466 : i32 to index
    %c0_268 = arith.constant 0 : index
    %505 = vector.load %arg13[%504, %c0_268] : memref<64x32xf32, #tpu.memory_space<vmem>>, vector<8x32xf32>
    tpu.vector_store %arg13[%504, %c0_268], %503 {strides = array<i32>} : memref<64x32xf32, #tpu.memory_space<vmem>>, vector<8x32xf32>,
    %c2_i32_269 = arith.constant 2 : i32
    %c8_i32_270 = arith.constant 8 : i32
    %506 = arith.muli %c2_i32_269, %c8_i32_270 : i32
    %507 = tpu.assume_multiple %506, 8 : i32
    %508 = arith.index_cast %507 : i32 to index
    %c0_271 = arith.constant 0 : index
    %509 = vector.load %arg14[%508, %c0_271] : memref<64x32xf32, #tpu.memory_space<vmem>>, vector<8x32xf32>
    %cst_272 = arith.constant dense<0.000000e+00> : vector<8x32xf32>
    %510 = tpu.matmul %503, %413, %cst_272 {dimension_numbers = #tpu.dot_dimension_numbers<[1], [0], [0], [1], [0, 0, 1, 1], [], []>} : vector<8x32xf32>, vector<32x32xf32>, vector<8x32xf32> -> vector<8x32xf32>
    %511 = arith.addf %509, %510 : vector<8x32xf32>
    %512 = arith.negf %511 : vector<8x32xf32>
    %513 = math.exp %512 : vector<8x32xf32>
    %cst_273 = arith.constant 1.000000e+00 : f32
    %514 = vector.broadcast %cst_273 : f32 to vector<8x32xf32>
    %515 = arith.addf %514, %513 : vector<8x32xf32>
    %516 = arith.divf %514, %515 : vector<8x32xf32>
    %517 = arith.index_cast %507 : i32 to index
    %c0_274 = arith.constant 0 : index
    %518 = vector.load %arg15[%517, %c0_274] : memref<64x32xf32, #tpu.memory_space<vmem>>, vector<8x32xf32>
    %cst_275 = arith.constant dense<0.000000e+00> : vector<8x32xf32>
    %519 = tpu.matmul %503, %415, %cst_275 {dimension_numbers = #tpu.dot_dimension_numbers<[1], [0], [0], [1], [0, 0, 1, 1], [], []>} : vector<8x32xf32>, vector<32x32xf32>, vector<8x32xf32> -> vector<8x32xf32>
    %520 = arith.addf %518, %519 : vector<8x32xf32>
    %521 = arith.negf %520 : vector<8x32xf32>
    %522 = math.exp %521 : vector<8x32xf32>
    %cst_276 = arith.constant 1.000000e+00 : f32
    %523 = vector.broadcast %cst_276 : f32 to vector<8x32xf32>
    %524 = arith.addf %523, %522 : vector<8x32xf32>
    %525 = arith.divf %523, %524 : vector<8x32xf32>
    %526 = arith.index_cast %507 : i32 to index
    %c0_277 = arith.constant 0 : index
    %527 = vector.load %arg16[%526, %c0_277] : memref<64x32xf32, #tpu.memory_space<vmem>>, vector<8x32xf32>
    %cst_278 = arith.constant dense<0.000000e+00> : vector<8x32xf32>
    %528 = tpu.matmul %503, %417, %cst_278 {dimension_numbers = #tpu.dot_dimension_numbers<[1], [0], [0], [1], [0, 0, 1, 1], [], []>} : vector<8x32xf32>, vector<32x32xf32>, vector<8x32xf32> -> vector<8x32xf32>
    %529 = arith.addf %527, %528 : vector<8x32xf32>
    %530 = math.tanh %529 : vector<8x32xf32>
    %531 = arith.index_cast %507 : i32 to index
    %c0_279 = arith.constant 0 : index
    %532 = vector.load %arg17[%531, %c0_279] : memref<64x32xf32, #tpu.memory_space<vmem>>, vector<8x32xf32>
    %cst_280 = arith.constant dense<0.000000e+00> : vector<8x32xf32>
    %533 = tpu.matmul %503, %419, %cst_280 {dimension_numbers = #tpu.dot_dimension_numbers<[1], [0], [0], [1], [0, 0, 1, 1], [], []>} : vector<8x32xf32>, vector<32x32xf32>, vector<8x32xf32> -> vector<8x32xf32>
    %534 = arith.addf %532, %533 : vector<8x32xf32>
    %535 = arith.negf %534 : vector<8x32xf32>
    %536 = math.exp %535 : vector<8x32xf32>
    %cst_281 = arith.constant 1.000000e+00 : f32
    %537 = vector.broadcast %cst_281 : f32 to vector<8x32xf32>
    %538 = arith.addf %537, %536 : vector<8x32xf32>
    %539 = arith.divf %537, %538 : vector<8x32xf32>
    %540 = arith.mulf %525, %501 : vector<8x32xf32>
    %541 = arith.mulf %516, %530 : vector<8x32xf32>
    %542 = arith.addf %540, %541 : vector<8x32xf32>
    %543 = math.tanh %542 : vector<8x32xf32>
    %544 = arith.mulf %539, %543 : vector<8x32xf32>
    %545 = arith.index_cast %507 : i32 to index
    %c0_282 = arith.constant 0 : index
    %546 = vector.load %arg13[%545, %c0_282] : memref<64x32xf32, #tpu.memory_space<vmem>>, vector<8x32xf32>
    tpu.vector_store %arg13[%545, %c0_282], %544 {strides = array<i32>} : memref<64x32xf32, #tpu.memory_space<vmem>>, vector<8x32xf32>,
    %c3_i32_283 = arith.constant 3 : i32
    %c8_i32_284 = arith.constant 8 : i32
    %547 = arith.muli %c3_i32_283, %c8_i32_284 : i32
    %548 = tpu.assume_multiple %547, 8 : i32
    %549 = arith.index_cast %548 : i32 to index
    %c0_285 = arith.constant 0 : index
    %550 = vector.load %arg14[%549, %c0_285] : memref<64x32xf32, #tpu.memory_space<vmem>>, vector<8x32xf32>
    %cst_286 = arith.constant dense<0.000000e+00> : vector<8x32xf32>
    %551 = tpu.matmul %544, %413, %cst_286 {dimension_numbers = #tpu.dot_dimension_numbers<[1], [0], [0], [1], [0, 0, 1, 1], [], []>} : vector<8x32xf32>, vector<32x32xf32>, vector<8x32xf32> -> vector<8x32xf32>
    %552 = arith.addf %550, %551 : vector<8x32xf32>
    %553 = arith.negf %552 : vector<8x32xf32>
    %554 = math.exp %553 : vector<8x32xf32>
    %cst_287 = arith.constant 1.000000e+00 : f32
    %555 = vector.broadcast %cst_287 : f32 to vector<8x32xf32>
    %556 = arith.addf %555, %554 : vector<8x32xf32>
    %557 = arith.divf %555, %556 : vector<8x32xf32>
    %558 = arith.index_cast %548 : i32 to index
    %c0_288 = arith.constant 0 : index
    %559 = vector.load %arg15[%558, %c0_288] : memref<64x32xf32, #tpu.memory_space<vmem>>, vector<8x32xf32>
    %cst_289 = arith.constant dense<0.000000e+00> : vector<8x32xf32>
    %560 = tpu.matmul %544, %415, %cst_289 {dimension_numbers = #tpu.dot_dimension_numbers<[1], [0], [0], [1], [0, 0, 1, 1], [], []>} : vector<8x32xf32>, vector<32x32xf32>, vector<8x32xf32> -> vector<8x32xf32>
    %561 = arith.addf %559, %560 : vector<8x32xf32>
    %562 = arith.negf %561 : vector<8x32xf32>
    %563 = math.exp %562 : vector<8x32xf32>
    %cst_290 = arith.constant 1.000000e+00 : f32
    %564 = vector.broadcast %cst_290 : f32 to vector<8x32xf32>
    %565 = arith.addf %564, %563 : vector<8x32xf32>
    %566 = arith.divf %564, %565 : vector<8x32xf32>
    %567 = arith.index_cast %548 : i32 to index
    %c0_291 = arith.constant 0 : index
    %568 = vector.load %arg16[%567, %c0_291] : memref<64x32xf32, #tpu.memory_space<vmem>>, vector<8x32xf32>
    %cst_292 = arith.constant dense<0.000000e+00> : vector<8x32xf32>
    %569 = tpu.matmul %544, %417, %cst_292 {dimension_numbers = #tpu.dot_dimension_numbers<[1], [0], [0], [1], [0, 0, 1, 1], [], []>} : vector<8x32xf32>, vector<32x32xf32>, vector<8x32xf32> -> vector<8x32xf32>
    %570 = arith.addf %568, %569 : vector<8x32xf32>
    %571 = math.tanh %570 : vector<8x32xf32>
    %572 = arith.index_cast %548 : i32 to index
    %c0_293 = arith.constant 0 : index
    %573 = vector.load %arg17[%572, %c0_293] : memref<64x32xf32, #tpu.memory_space<vmem>>, vector<8x32xf32>
    %cst_294 = arith.constant dense<0.000000e+00> : vector<8x32xf32>
    %574 = tpu.matmul %544, %419, %cst_294 {dimension_numbers = #tpu.dot_dimension_numbers<[1], [0], [0], [1], [0, 0, 1, 1], [], []>} : vector<8x32xf32>, vector<32x32xf32>, vector<8x32xf32> -> vector<8x32xf32>
    %575 = arith.addf %573, %574 : vector<8x32xf32>
    %576 = arith.negf %575 : vector<8x32xf32>
    %577 = math.exp %576 : vector<8x32xf32>
    %cst_295 = arith.constant 1.000000e+00 : f32
    %578 = vector.broadcast %cst_295 : f32 to vector<8x32xf32>
    %579 = arith.addf %578, %577 : vector<8x32xf32>
    %580 = arith.divf %578, %579 : vector<8x32xf32>
    %581 = arith.mulf %566, %542 : vector<8x32xf32>
    %582 = arith.mulf %557, %571 : vector<8x32xf32>
    %583 = arith.addf %581, %582 : vector<8x32xf32>
    %584 = math.tanh %583 : vector<8x32xf32>
    %585 = arith.mulf %580, %584 : vector<8x32xf32>
    %586 = arith.index_cast %548 : i32 to index
    %c0_296 = arith.constant 0 : index
    %587 = vector.load %arg13[%586, %c0_296] : memref<64x32xf32, #tpu.memory_space<vmem>>, vector<8x32xf32>
    tpu.vector_store %arg13[%586, %c0_296], %585 {strides = array<i32>} : memref<64x32xf32, #tpu.memory_space<vmem>>, vector<8x32xf32>,
    %c4_i32_297 = arith.constant 4 : i32
    %c8_i32_298 = arith.constant 8 : i32
    %588 = arith.muli %c4_i32_297, %c8_i32_298 : i32
    %589 = tpu.assume_multiple %588, 8 : i32
    %590 = arith.index_cast %589 : i32 to index
    %c0_299 = arith.constant 0 : index
    %591 = vector.load %arg14[%590, %c0_299] : memref<64x32xf32, #tpu.memory_space<vmem>>, vector<8x32xf32>
    %cst_300 = arith.constant dense<0.000000e+00> : vector<8x32xf32>
    %592 = tpu.matmul %585, %413, %cst_300 {dimension_numbers = #tpu.dot_dimension_numbers<[1], [0], [0], [1], [0, 0, 1, 1], [], []>} : vector<8x32xf32>, vector<32x32xf32>, vector<8x32xf32> -> vector<8x32xf32>
    %593 = arith.addf %591, %592 : vector<8x32xf32>
    %594 = arith.negf %593 : vector<8x32xf32>
    %595 = math.exp %594 : vector<8x32xf32>
    %cst_301 = arith.constant 1.000000e+00 : f32
    %596 = vector.broadcast %cst_301 : f32 to vector<8x32xf32>
    %597 = arith.addf %596, %595 : vector<8x32xf32>
    %598 = arith.divf %596, %597 : vector<8x32xf32>
    %599 = arith.index_cast %589 : i32 to index
    %c0_302 = arith.constant 0 : index
    %600 = vector.load %arg15[%599, %c0_302] : memref<64x32xf32, #tpu.memory_space<vmem>>, vector<8x32xf32>
    %cst_303 = arith.constant dense<0.000000e+00> : vector<8x32xf32>
    %601 = tpu.matmul %585, %415, %cst_303 {dimension_numbers = #tpu.dot_dimension_numbers<[1], [0], [0], [1], [0, 0, 1, 1], [], []>} : vector<8x32xf32>, vector<32x32xf32>, vector<8x32xf32> -> vector<8x32xf32>
    %602 = arith.addf %600, %601 : vector<8x32xf32>
    %603 = arith.negf %602 : vector<8x32xf32>
    %604 = math.exp %603 : vector<8x32xf32>
    %cst_304 = arith.constant 1.000000e+00 : f32
    %605 = vector.broadcast %cst_304 : f32 to vector<8x32xf32>
    %606 = arith.addf %605, %604 : vector<8x32xf32>
    %607 = arith.divf %605, %606 : vector<8x32xf32>
    %608 = arith.index_cast %589 : i32 to index
    %c0_305 = arith.constant 0 : index
    %609 = vector.load %arg16[%608, %c0_305] : memref<64x32xf32, #tpu.memory_space<vmem>>, vector<8x32xf32>
    %cst_306 = arith.constant dense<0.000000e+00> : vector<8x32xf32>
    %610 = tpu.matmul %585, %417, %cst_306 {dimension_numbers = #tpu.dot_dimension_numbers<[1], [0], [0], [1], [0, 0, 1, 1], [], []>} : vector<8x32xf32>, vector<32x32xf32>, vector<8x32xf32> -> vector<8x32xf32>
    %611 = arith.addf %609, %610 : vector<8x32xf32>
    %612 = math.tanh %611 : vector<8x32xf32>
    %613 = arith.index_cast %589 : i32 to index
    %c0_307 = arith.constant 0 : index
    %614 = vector.load %arg17[%613, %c0_307] : memref<64x32xf32, #tpu.memory_space<vmem>>, vector<8x32xf32>
    %cst_308 = arith.constant dense<0.000000e+00> : vector<8x32xf32>
    %615 = tpu.matmul %585, %419, %cst_308 {dimension_numbers = #tpu.dot_dimension_numbers<[1], [0], [0], [1], [0, 0, 1, 1], [], []>} : vector<8x32xf32>, vector<32x32xf32>, vector<8x32xf32> -> vector<8x32xf32>
    %616 = arith.addf %614, %615 : vector<8x32xf32>
    %617 = arith.negf %616 : vector<8x32xf32>
    %618 = math.exp %617 : vector<8x32xf32>
    %cst_309 = arith.constant 1.000000e+00 : f32
    %619 = vector.broadcast %cst_309 : f32 to vector<8x32xf32>
    %620 = arith.addf %619, %618 : vector<8x32xf32>
    %621 = arith.divf %619, %620 : vector<8x32xf32>
    %622 = arith.mulf %607, %583 : vector<8x32xf32>
    %623 = arith.mulf %598, %612 : vector<8x32xf32>
    %624 = arith.addf %622, %623 : vector<8x32xf32>
    %625 = math.tanh %624 : vector<8x32xf32>
    %626 = arith.mulf %621, %625 : vector<8x32xf32>
    %627 = arith.index_cast %589 : i32 to index
    %c0_310 = arith.constant 0 : index
    %628 = vector.load %arg13[%627, %c0_310] : memref<64x32xf32, #tpu.memory_space<vmem>>, vector<8x32xf32>
    tpu.vector_store %arg13[%627, %c0_310], %626 {strides = array<i32>} : memref<64x32xf32, #tpu.memory_space<vmem>>, vector<8x32xf32>,
    %c5_i32_311 = arith.constant 5 : i32
    %c8_i32_312 = arith.constant 8 : i32
    %629 = arith.muli %c5_i32_311, %c8_i32_312 : i32
    %630 = tpu.assume_multiple %629, 8 : i32
    %631 = arith.index_cast %630 : i32 to index
    %c0_313 = arith.constant 0 : index
    %632 = vector.load %arg14[%631, %c0_313] : memref<64x32xf32, #tpu.memory_space<vmem>>, vector<8x32xf32>
    %cst_314 = arith.constant dense<0.000000e+00> : vector<8x32xf32>
    %633 = tpu.matmul %626, %413, %cst_314 {dimension_numbers = #tpu.dot_dimension_numbers<[1], [0], [0], [1], [0, 0, 1, 1], [], []>} : vector<8x32xf32>, vector<32x32xf32>, vector<8x32xf32> -> vector<8x32xf32>
    %634 = arith.addf %632, %633 : vector<8x32xf32>
    %635 = arith.negf %634 : vector<8x32xf32>
    %636 = math.exp %635 : vector<8x32xf32>
    %cst_315 = arith.constant 1.000000e+00 : f32
    %637 = vector.broadcast %cst_315 : f32 to vector<8x32xf32>
    %638 = arith.addf %637, %636 : vector<8x32xf32>
    %639 = arith.divf %637, %638 : vector<8x32xf32>
    %640 = arith.index_cast %630 : i32 to index
    %c0_316 = arith.constant 0 : index
    %641 = vector.load %arg15[%640, %c0_316] : memref<64x32xf32, #tpu.memory_space<vmem>>, vector<8x32xf32>
    %cst_317 = arith.constant dense<0.000000e+00> : vector<8x32xf32>
    %642 = tpu.matmul %626, %415, %cst_317 {dimension_numbers = #tpu.dot_dimension_numbers<[1], [0], [0], [1], [0, 0, 1, 1], [], []>} : vector<8x32xf32>, vector<32x32xf32>, vector<8x32xf32> -> vector<8x32xf32>
    %643 = arith.addf %641, %642 : vector<8x32xf32>
    %644 = arith.negf %643 : vector<8x32xf32>
    %645 = math.exp %644 : vector<8x32xf32>
    %cst_318 = arith.constant 1.000000e+00 : f32
    %646 = vector.broadcast %cst_318 : f32 to vector<8x32xf32>
    %647 = arith.addf %646, %645 : vector<8x32xf32>
    %648 = arith.divf %646, %647 : vector<8x32xf32>
    %649 = arith.index_cast %630 : i32 to index
    %c0_319 = arith.constant 0 : index
    %650 = vector.load %arg16[%649, %c0_319] : memref<64x32xf32, #tpu.memory_space<vmem>>, vector<8x32xf32>
    %cst_320 = arith.constant dense<0.000000e+00> : vector<8x32xf32>
    %651 = tpu.matmul %626, %417, %cst_320 {dimension_numbers = #tpu.dot_dimension_numbers<[1], [0], [0], [1], [0, 0, 1, 1], [], []>} : vector<8x32xf32>, vector<32x32xf32>, vector<8x32xf32> -> vector<8x32xf32>
    %652 = arith.addf %650, %651 : vector<8x32xf32>
    %653 = math.tanh %652 : vector<8x32xf32>
    %654 = arith.index_cast %630 : i32 to index
    %c0_321 = arith.constant 0 : index
    %655 = vector.load %arg17[%654, %c0_321] : memref<64x32xf32, #tpu.memory_space<vmem>>, vector<8x32xf32>
    %cst_322 = arith.constant dense<0.000000e+00> : vector<8x32xf32>
    %656 = tpu.matmul %626, %419, %cst_322 {dimension_numbers = #tpu.dot_dimension_numbers<[1], [0], [0], [1], [0, 0, 1, 1], [], []>} : vector<8x32xf32>, vector<32x32xf32>, vector<8x32xf32> -> vector<8x32xf32>
    %657 = arith.addf %655, %656 : vector<8x32xf32>
    %658 = arith.negf %657 : vector<8x32xf32>
    %659 = math.exp %658 : vector<8x32xf32>
    %cst_323 = arith.constant 1.000000e+00 : f32
    %660 = vector.broadcast %cst_323 : f32 to vector<8x32xf32>
    %661 = arith.addf %660, %659 : vector<8x32xf32>
    %662 = arith.divf %660, %661 : vector<8x32xf32>
    %663 = arith.mulf %648, %624 : vector<8x32xf32>
    %664 = arith.mulf %639, %653 : vector<8x32xf32>
    %665 = arith.addf %663, %664 : vector<8x32xf32>
    %666 = math.tanh %665 : vector<8x32xf32>
    %667 = arith.mulf %662, %666 : vector<8x32xf32>
    %668 = arith.index_cast %630 : i32 to index
    %c0_324 = arith.constant 0 : index
    %669 = vector.load %arg13[%668, %c0_324] : memref<64x32xf32, #tpu.memory_space<vmem>>, vector<8x32xf32>
    tpu.vector_store %arg13[%668, %c0_324], %667 {strides = array<i32>} : memref<64x32xf32, #tpu.memory_space<vmem>>, vector<8x32xf32>,
    %c6_i32_325 = arith.constant 6 : i32
    %c8_i32_326 = arith.constant 8 : i32
    %670 = arith.muli %c6_i32_325, %c8_i32_326 : i32
    %671 = tpu.assume_multiple %670, 8 : i32
    %672 = arith.index_cast %671 : i32 to index
    %c0_327 = arith.constant 0 : index
    %673 = vector.load %arg14[%672, %c0_327] : memref<64x32xf32, #tpu.memory_space<vmem>>, vector<8x32xf32>
    %cst_328 = arith.constant dense<0.000000e+00> : vector<8x32xf32>
    %674 = tpu.matmul %667, %413, %cst_328 {dimension_numbers = #tpu.dot_dimension_numbers<[1], [0], [0], [1], [0, 0, 1, 1], [], []>} : vector<8x32xf32>, vector<32x32xf32>, vector<8x32xf32> -> vector<8x32xf32>
    %675 = arith.addf %673, %674 : vector<8x32xf32>
    %676 = arith.negf %675 : vector<8x32xf32>
    %677 = math.exp %676 : vector<8x32xf32>
    %cst_329 = arith.constant 1.000000e+00 : f32
    %678 = vector.broadcast %cst_329 : f32 to vector<8x32xf32>
    %679 = arith.addf %678, %677 : vector<8x32xf32>
    %680 = arith.divf %678, %679 : vector<8x32xf32>
    %681 = arith.index_cast %671 : i32 to index
    %c0_330 = arith.constant 0 : index
    %682 = vector.load %arg15[%681, %c0_330] : memref<64x32xf32, #tpu.memory_space<vmem>>, vector<8x32xf32>
    %cst_331 = arith.constant dense<0.000000e+00> : vector<8x32xf32>
    %683 = tpu.matmul %667, %415, %cst_331 {dimension_numbers = #tpu.dot_dimension_numbers<[1], [0], [0], [1], [0, 0, 1, 1], [], []>} : vector<8x32xf32>, vector<32x32xf32>, vector<8x32xf32> -> vector<8x32xf32>
    %684 = arith.addf %682, %683 : vector<8x32xf32>
    %685 = arith.negf %684 : vector<8x32xf32>
    %686 = math.exp %685 : vector<8x32xf32>
    %cst_332 = arith.constant 1.000000e+00 : f32
    %687 = vector.broadcast %cst_332 : f32 to vector<8x32xf32>
    %688 = arith.addf %687, %686 : vector<8x32xf32>
    %689 = arith.divf %687, %688 : vector<8x32xf32>
    %690 = arith.index_cast %671 : i32 to index
    %c0_333 = arith.constant 0 : index
    %691 = vector.load %arg16[%690, %c0_333] : memref<64x32xf32, #tpu.memory_space<vmem>>, vector<8x32xf32>
    %cst_334 = arith.constant dense<0.000000e+00> : vector<8x32xf32>
    %692 = tpu.matmul %667, %417, %cst_334 {dimension_numbers = #tpu.dot_dimension_numbers<[1], [0], [0], [1], [0, 0, 1, 1], [], []>} : vector<8x32xf32>, vector<32x32xf32>, vector<8x32xf32> -> vector<8x32xf32>
    %693 = arith.addf %691, %692 : vector<8x32xf32>
    %694 = math.tanh %693 : vector<8x32xf32>
    %695 = arith.index_cast %671 : i32 to index
    %c0_335 = arith.constant 0 : index
    %696 = vector.load %arg17[%695, %c0_335] : memref<64x32xf32, #tpu.memory_space<vmem>>, vector<8x32xf32>
    %cst_336 = arith.constant dense<0.000000e+00> : vector<8x32xf32>
    %697 = tpu.matmul %667, %419, %cst_336 {dimension_numbers = #tpu.dot_dimension_numbers<[1], [0], [0], [1], [0, 0, 1, 1], [], []>} : vector<8x32xf32>, vector<32x32xf32>, vector<8x32xf32> -> vector<8x32xf32>
    %698 = arith.addf %696, %697 : vector<8x32xf32>
    %699 = arith.negf %698 : vector<8x32xf32>
    %700 = math.exp %699 : vector<8x32xf32>
    %cst_337 = arith.constant 1.000000e+00 : f32
    %701 = vector.broadcast %cst_337 : f32 to vector<8x32xf32>
    %702 = arith.addf %701, %700 : vector<8x32xf32>
    %703 = arith.divf %701, %702 : vector<8x32xf32>
    %704 = arith.mulf %689, %665 : vector<8x32xf32>
    %705 = arith.mulf %680, %694 : vector<8x32xf32>
    %706 = arith.addf %704, %705 : vector<8x32xf32>
    %707 = math.tanh %706 : vector<8x32xf32>
    %708 = arith.mulf %703, %707 : vector<8x32xf32>
    %709 = arith.index_cast %671 : i32 to index
    %c0_338 = arith.constant 0 : index
    %710 = vector.load %arg13[%709, %c0_338] : memref<64x32xf32, #tpu.memory_space<vmem>>, vector<8x32xf32>
    tpu.vector_store %arg13[%709, %c0_338], %708 {strides = array<i32>} : memref<64x32xf32, #tpu.memory_space<vmem>>, vector<8x32xf32>,
    %c7_i32_339 = arith.constant 7 : i32
    %c8_i32_340 = arith.constant 8 : i32
    %711 = arith.muli %c7_i32_339, %c8_i32_340 : i32
    %712 = tpu.assume_multiple %711, 8 : i32
    %713 = arith.index_cast %712 : i32 to index
    %c0_341 = arith.constant 0 : index
    %714 = vector.load %arg14[%713, %c0_341] : memref<64x32xf32, #tpu.memory_space<vmem>>, vector<8x32xf32>
    %cst_342 = arith.constant dense<0.000000e+00> : vector<8x32xf32>
    %715 = tpu.matmul %708, %413, %cst_342 {dimension_numbers = #tpu.dot_dimension_numbers<[1], [0], [0], [1], [0, 0, 1, 1], [], []>} : vector<8x32xf32>, vector<32x32xf32>, vector<8x32xf32> -> vector<8x32xf32>
    %716 = arith.addf %714, %715 : vector<8x32xf32>
    %717 = arith.negf %716 : vector<8x32xf32>
    %718 = math.exp %717 : vector<8x32xf32>
    %cst_343 = arith.constant 1.000000e+00 : f32
    %719 = vector.broadcast %cst_343 : f32 to vector<8x32xf32>
    %720 = arith.addf %719, %718 : vector<8x32xf32>
    %721 = arith.divf %719, %720 : vector<8x32xf32>
    %722 = arith.index_cast %712 : i32 to index
    %c0_344 = arith.constant 0 : index
    %723 = vector.load %arg15[%722, %c0_344] : memref<64x32xf32, #tpu.memory_space<vmem>>, vector<8x32xf32>
    %cst_345 = arith.constant dense<0.000000e+00> : vector<8x32xf32>
    %724 = tpu.matmul %708, %415, %cst_345 {dimension_numbers = #tpu.dot_dimension_numbers<[1], [0], [0], [1], [0, 0, 1, 1], [], []>} : vector<8x32xf32>, vector<32x32xf32>, vector<8x32xf32> -> vector<8x32xf32>
    %725 = arith.addf %723, %724 : vector<8x32xf32>
    %726 = arith.negf %725 : vector<8x32xf32>
    %727 = math.exp %726 : vector<8x32xf32>
    %cst_346 = arith.constant 1.000000e+00 : f32
    %728 = vector.broadcast %cst_346 : f32 to vector<8x32xf32>
    %729 = arith.addf %728, %727 : vector<8x32xf32>
    %730 = arith.divf %728, %729 : vector<8x32xf32>
    %731 = arith.index_cast %712 : i32 to index
    %c0_347 = arith.constant 0 : index
    %732 = vector.load %arg16[%731, %c0_347] : memref<64x32xf32, #tpu.memory_space<vmem>>, vector<8x32xf32>
    %cst_348 = arith.constant dense<0.000000e+00> : vector<8x32xf32>
    %733 = tpu.matmul %708, %417, %cst_348 {dimension_numbers = #tpu.dot_dimension_numbers<[1], [0], [0], [1], [0, 0, 1, 1], [], []>} : vector<8x32xf32>, vector<32x32xf32>, vector<8x32xf32> -> vector<8x32xf32>
    %734 = arith.addf %732, %733 : vector<8x32xf32>
    %735 = math.tanh %734 : vector<8x32xf32>
    %736 = arith.index_cast %712 : i32 to index
    %c0_349 = arith.constant 0 : index
    %737 = vector.load %arg17[%736, %c0_349] : memref<64x32xf32, #tpu.memory_space<vmem>>, vector<8x32xf32>
    %cst_350 = arith.constant dense<0.000000e+00> : vector<8x32xf32>
    %738 = tpu.matmul %708, %419, %cst_350 {dimension_numbers = #tpu.dot_dimension_numbers<[1], [0], [0], [1], [0, 0, 1, 1], [], []>} : vector<8x32xf32>, vector<32x32xf32>, vector<8x32xf32> -> vector<8x32xf32>
    %739 = arith.addf %737, %738 : vector<8x32xf32>
    %740 = arith.negf %739 : vector<8x32xf32>
    %741 = math.exp %740 : vector<8x32xf32>
    %cst_351 = arith.constant 1.000000e+00 : f32
    %742 = vector.broadcast %cst_351 : f32 to vector<8x32xf32>
    %743 = arith.addf %742, %741 : vector<8x32xf32>
    %744 = arith.divf %742, %743 : vector<8x32xf32>
    %745 = arith.mulf %730, %706 : vector<8x32xf32>
    %746 = arith.mulf %721, %735 : vector<8x32xf32>
    %747 = arith.addf %745, %746 : vector<8x32xf32>
    %748 = math.tanh %747 : vector<8x32xf32>
    %749 = arith.mulf %744, %748 : vector<8x32xf32>
    %750 = arith.index_cast %712 : i32 to index
    %c0_352 = arith.constant 0 : index
    %751 = vector.load %arg13[%750, %c0_352] : memref<64x32xf32, #tpu.memory_space<vmem>>, vector<8x32xf32>
    tpu.vector_store %arg13[%750, %c0_352], %749 {strides = array<i32>} : memref<64x32xf32, #tpu.memory_space<vmem>>, vector<8x32xf32>,
    %c8_i32_353 = arith.constant 8 : i32
    %c1_354 = arith.constant 1 : index
    %c0_355 = arith.constant 0 : index
    %c0_356 = arith.constant 0 : index
    %752 = vector.load %arg10[%c1_354, %c0_355, %c0_356] : memref<2x8x32xf32, #tpu.memory_space<vmem>>, vector<1x8x32xf32>
    %753 = vector.shape_cast %752 : vector<1x8x32xf32> to vector<8x32xf32>
    %754 = vector.shape_cast %749 : vector<8x32xf32> to vector<1x8x32xf32>
    tpu.vector_store %arg10[%c1_354, %c0_355, %c0_356], %754 {strides = array<i32>} : memref<2x8x32xf32, #tpu.memory_space<vmem>>, vector<1x8x32xf32>,
    %c1_357 = arith.constant 1 : index
    %c0_358 = arith.constant 0 : index
    %c0_359 = arith.constant 0 : index
    %755 = vector.load %arg11[%c1_357, %c0_358, %c0_359] : memref<2x8x32xf32, #tpu.memory_space<vmem>>, vector<1x8x32xf32>
    %756 = vector.shape_cast %755 : vector<1x8x32xf32> to vector<8x32xf32>
    %757 = vector.shape_cast %747 : vector<8x32xf32> to vector<1x8x32xf32>
    tpu.vector_store %arg11[%c1_357, %c0_358, %c0_359], %757 {strides = array<i32>} : memref<2x8x32xf32, #tpu.memory_space<vmem>>, vector<1x8x32xf32>,
    %c0_360 = arith.constant 0 : index
    %c0_361 = arith.constant 0 : index
    %758 = vector.load %arg13[%c0_360, %c0_361] : memref<64x32xf32, #tpu.memory_space<vmem>>, vector<64x32xf32>
    %c0_362 = arith.constant 0 : index
    %c0_363 = arith.constant 0 : index
    %759 = vector.load %arg7[%c0_362, %c0_363] : memref<32x128xf32, #tpu.memory_space<vmem>>, vector<32x128xf32>
    %cst_364 = arith.constant dense<0.000000e+00> : vector<64x128xf32>
    %760 = tpu.matmul %758, %759, %cst_364 {dimension_numbers = #tpu.dot_dimension_numbers<[1], [0], [0], [1], [0, 0, 1, 1], [], []>} : vector<64x32xf32>, vector<32x128xf32>, vector<64x128xf32> -> vector<64x128xf32>
    %c0_365 = arith.constant 0 : index
    %c0_366 = arith.constant 0 : index
    %761 = vector.load %arg8[%c0_365, %c0_366] : memref<1x128xf32, #tpu.memory_space<vmem>>, vector<1x128xf32>
    %762 = vector.broadcast %761 : vector<1x128xf32> to vector<64x128xf32>
    %763 = arith.addf %760, %762 : vector<64x128xf32>
    %c0_367 = arith.constant 0 : index
    %c0_368 = arith.constant 0 : index
    %764 = vector.load %arg9[%c0_367, %c0_368] : memref<64x128xf32, #tpu.memory_space<vmem>>, vector<64x128xf32>
    tpu.vector_store %arg9[%c0_367, %c0_368], %763 {strides = array<i32>} : memref<64x128xf32, #tpu.memory_space<vmem>>, vector<64x128xf32>,
    return
  }
  func.func @transform_0(%arg0: i32) -> (i32, i32) {
    %c0_i32 = arith.constant 0 : i32
    %c0_i32_0 = arith.constant 0 : i32
    %c0_i32_1 = arith.constant 0 : i32
    return %c0_i32, %c0_i32_0 : i32, i32
  }
  func.func @transform_1(%arg0: i32) -> (i32, i32, i32) {
    %c0_i32 = arith.constant 0 : i32
    %c0_i32_0 = arith.constant 0 : i32
    %c0_i32_1 = arith.constant 0 : i32
    %c0_i32_2 = arith.constant 0 : i32
    return %c0_i32, %c0_i32_0, %c0_i32_1 : i32, i32, i32
  }
  func.func @transform_2(%arg0: i32) -> (i32, i32, i32) {
    %c0_i32 = arith.constant 0 : i32
    %c0_i32_0 = arith.constant 0 : i32
    %c0_i32_1 = arith.constant 0 : i32
    %c0_i32_2 = arith.constant 0 : i32
    return %c0_i32, %c0_i32_0, %c0_i32_1 : i32, i32, i32
  }
  func.func @transform_3(%arg0: i32) -> (i32, i32, i32, i32) {
    %c0_i32 = arith.constant 0 : i32
    %c0_i32_0 = arith.constant 0 : i32
    %c0_i32_1 = arith.constant 0 : i32
    %c0_i32_2 = arith.constant 0 : i32
    %c0_i32_3 = arith.constant 0 : i32
    return %c0_i32, %c0_i32_0, %c0_i32_1, %c0_i32_2 : i32, i32, i32, i32
  }
  func.func @transform_4(%arg0: i32) -> (i32, i32, i32, i32) {
    %c0_i32 = arith.constant 0 : i32
    %c0_i32_0 = arith.constant 0 : i32
    %c0_i32_1 = arith.constant 0 : i32
    %c0_i32_2 = arith.constant 0 : i32
    %c0_i32_3 = arith.constant 0 : i32
    return %c0_i32, %c0_i32_0, %c0_i32_1, %c0_i32_2 : i32, i32, i32, i32
  }
  func.func @transform_5(%arg0: i32) -> (i32, i32, i32, i32) {
    %c0_i32 = arith.constant 0 : i32
    %c0_i32_0 = arith.constant 0 : i32
    %c0_i32_1 = arith.constant 0 : i32
    %c0_i32_2 = arith.constant 0 : i32
    %c0_i32_3 = arith.constant 0 : i32
    return %c0_i32, %c0_i32_0, %c0_i32_1, %c0_i32_2 : i32, i32, i32, i32
  }
  func.func @transform_6(%arg0: i32) -> (i32, i32) {
    %c0_i32 = arith.constant 0 : i32
    %c0_i32_0 = arith.constant 0 : i32
    %c0_i32_1 = arith.constant 0 : i32
    return %c0_i32, %c0_i32_0 : i32, i32
  }
  func.func @transform_7(%arg0: i32) -> (i32, i32) {
    %c0_i32 = arith.constant 0 : i32
    %c0_i32_0 = arith.constant 0 : i32
    %c0_i32_1 = arith.constant 0 : i32
    return %c0_i32, %c0_i32_0 : i32, i32
  }
  func.func @transform_8(%arg0: i32) -> (i32, i32) {
    %c0_i32 = arith.constant 0 : i32
    %c0_i32_0 = arith.constant 0 : i32
    %c0_i32_1 = arith.constant 0 : i32
    return %c0_i32, %c0_i32_0 : i32, i32
  }
  func.func @transform_9(%arg0: i32) -> (i32, i32, i32) {
    %c0_i32 = arith.constant 0 : i32
    %c0_i32_0 = arith.constant 0 : i32
    %c0_i32_1 = arith.constant 0 : i32
    %c0_i32_2 = arith.constant 0 : i32
    return %c0_i32, %c0_i32_0, %c0_i32_1 : i32, i32, i32
  }
  func.func @transform_10(%arg0: i32) -> (i32, i32, i32) {
    %c0_i32 = arith.constant 0 : i32
    %c0_i32_0 = arith.constant 0 : i32
    %c0_i32_1 = arith.constant 0 : i32
    %c0_i32_2 = arith.constant 0 : i32
    return %c0_i32, %c0_i32_0, %c0_i32_1 : i32, i32, i32
  }
}

</mosaic_0001>

<llo_original>
// kernel: tpu_custom_call.1
$region0: #{tpu_custom_call.1}
  #allocation0 [shape = 'u32[]', space=smem, size = 0x4, offset = 0x4, fixed_abs, tag = 'smem constant byte address 0x4 - core index']
  #allocation1 [shape = 'u32[144,128]{1,0:T(1,128)}', space=vmem, size = 0x12000, scoped, tag = 'internal scratch']
  #allocation2 [shape = 'f32[64,32]{1,0:T(8,128)}', space=vmem, size = 0x8000, scoped, tag = 'scratch operand']
  #allocation3 [shape = 'f32[64,32]{1,0:T(8,128)}', space=vmem, size = 0x8000, scoped, tag = 'scratch operand']
  #allocation4 [shape = 'f32[64,32]{1,0:T(8,128)}', space=vmem, size = 0x8000, scoped, tag = 'scratch operand']
  #allocation5 [shape = 'f32[64,32]{1,0:T(8,128)}', space=vmem, size = 0x8000, scoped, tag = 'scratch operand']
  #allocation6 [shape = 'f32[64,32]{1,0:T(8,128)}', space=vmem, size = 0x8000, scoped, tag = 'scratch operand']
  #allocation7 [shape = 'f32[64,32]{1,0:T(8,128)}', space=vmem, size = 0x8000, scoped, tag = 'scratch operand']
  %s0 = inlined_call_operand.vmem [shape: f32[64,32], index: 0, kind: input, shape index: {}]
  %s1 = inlined_call_operand.vmem [shape: f32[2,8,32], index: 1, kind: input, shape index: {}]
  %s2 = inlined_call_operand.vmem [shape: f32[2,8,32], index: 2, kind: input, shape index: {}]
  %s3 = inlined_call_operand.hbm [shape: f32[2,4,32,32], index: 3, kind: input, shape index: {}]
  %s4 = inlined_call_operand.hbm [shape: f32[2,4,32,32], index: 4, kind: input, shape index: {}]
  %s5 = inlined_call_operand.vmem [shape: f32[2,4,1,32], index: 5, kind: input, shape index: {}]
  %s6 = inlined_call_operand.vmem [shape: f32[32,128], index: 6, kind: input, shape index: {}]
  %s7 = inlined_call_operand.vmem [shape: f32[1,128], index: 7, kind: input, shape index: {}]
  %s8 = inlined_call_operand.hbm [shape: f32[64,128], index: 8, kind: output, shape index: {0}]
  %s9 = inlined_call_operand.hbm [shape: f32[2,8,32], index: 9, kind: output, shape index: {1}]
  %s10 = inlined_call_operand.hbm [shape: f32[2,8,32], index: 10, kind: output, shape index: {2}]
  %11 = xla_tuple %s8, %s9, %s10
  %s12 = sld [smem:[#allocation0]]
  $region66: #{tpu_custom_call.1} parent=0
    _
  %s14 = ssub.s32 1, %s12
  %s15 = scalar_select 0, %s14, %s12
  $region1: #{tpu_custom_call.1} parent=0
    #allocation8 [shape = 'u8[131072]{0}', space=vmem, size = 0x20000, scoped, tag = 'input window, operand 3, single buffered']
    #allocation9 [shape = 's32[1]{0}', space=sflag, size = 0x4, scoped, tag = 'scoped memory for tpu_custom_call.1']
    #allocation10 [shape = 's32[1]{0}', space=sflag, size = 0x4, scoped, tag = 'scoped memory for tpu_custom_call.1']
    #allocation11 [shape = 'u8[131072]{0}', space=vmem, size = 0x20000, scoped, tag = 'input window, operand 4, single buffered']
    #allocation12 [shape = 's32[1]{0}', space=sflag, size = 0x4, scoped, tag = 'scoped memory for tpu_custom_call.1']
    #allocation13 [shape = 'u8[32768]{0}', space=vmem, size = 0x8000, scoped, tag = 'output window, operand 0, single buffered']
    #allocation14 [shape = 'u8[8192]{0}', space=vmem, size = 0x2000, scoped, tag = 'output window, operand 1, single buffered']
    #allocation15 [shape = 's32[1]{0}', space=sflag, size = 0x4, scoped, tag = 'scoped memory for tpu_custom_call.1']
    #allocation16 [shape = 'u8[8192]{0}', space=vmem, size = 0x2000, scoped, tag = 'output window, operand 2, single buffered']
    %16 = vsyncpa [#allocation9], 0
    %17 = vsyncpa [#allocation12], 0
    %18 = vsyncpa [#allocation10], 0
    %19 = vsyncpa [#allocation15], 0
    // Predicated region
    $region2: #{tpu_custom_call.1} parent=1 // pred_check
      _
    $region3: #{tpu_custom_call.1} parent=1 // pred_check_branch
      %21 = sbr.rel (0) target = $region5
    $region4: #{tpu_custom_call.1} parent=1 // pred_region
      _
    $region5: #{tpu_custom_call.1} parent=1 // pred_fallthru
      _
    // Predicated region
    $region6: #{tpu_custom_call.1} parent=1 // pred_check
      _
    $region7: #{tpu_custom_call.1} parent=1 // pred_check_branch
      %23 = sbr.rel (0) target = $region9
    $region8: #{tpu_custom_call.1} parent=1 // pred_region
      _
    $region9: #{tpu_custom_call.1} parent=1 // pred_fallthru
      _
    // Predicated region
    $region10: #{tpu_custom_call.1} parent=1 // pred_check
      _
    $region11: #{tpu_custom_call.1} parent=1 // pred_check_branch
      %25 = sbr.rel (0) target = $region13
    $region12: #{tpu_custom_call.1} parent=1 // pred_region
      _
    $region13: #{tpu_custom_call.1} parent=1 // pred_fallthru
      _
    // Predicated region
    $region14: #{tpu_custom_call.1} parent=1 // pred_check
      _
    $region15: #{tpu_custom_call.1} parent=1 // pred_check_branch
      %27 = sbr.rel (0) target = $region17
    $region16: #{tpu_custom_call.1} parent=1 // pred_region
      %s29 = ssub.s32 4096, 4096
      %30 = vsyncadd [#allocation9], %s29
      %s31 = sshll.u32 [#allocation8], 4
      %s32 = int_to_ptr.vmem [resolvable:$true] %s31
      %37 = dma.hbm_to_vmem [thread:$0]  %s3, 4096, %s32, [#allocation9], 128, 128, 8
    $region17: #{tpu_custom_call.1} parent=1 // pred_fallthru
      _
    // Predicated region
    $region18: #{tpu_custom_call.1} parent=1 // pred_check
      _
    $region19: #{tpu_custom_call.1} parent=1 // pred_check_branch
      %39 = sbr.rel (0) target = $region21
    $region20: #{tpu_custom_call.1} parent=1 // pred_region
      %s41 = ssub.s32 4096, 4096
      %42 = vsyncadd [#allocation12], %s41
      %s43 = sshll.u32 [#allocation11], 4
      %s44 = int_to_ptr.vmem [resolvable:$true] %s43
      %49 = dma.hbm_to_vmem [thread:$0]  %s4, 4096, %s44, [#allocation12], 128, 128, 8
    $region21: #{tpu_custom_call.1} parent=1 // pred_fallthru
      _
    // Predicated region
    $region22: #{tpu_custom_call.1} parent=1 // pred_check
      _
    $region23: #{tpu_custom_call.1} parent=1 // pred_check_branch
      %51 = sbr.rel (0) target = $region25
    $region24: #{tpu_custom_call.1} parent=1 // pred_region
      _
    $region25: #{tpu_custom_call.1} parent=1 // pred_fallthru
      _
    // Predicated region
    $region26: #{tpu_custom_call.1} parent=1 // pred_check
      _
    $region27: #{tpu_custom_call.1} parent=1 // pred_check_branch
      %53 = sbr.rel (0) target = $region29
    $region28: #{tpu_custom_call.1} parent=1 // pred_region
      _
    $region29: #{tpu_custom_call.1} parent=1 // pred_fallthru
      _
    // Predicated region
    $region30: #{tpu_custom_call.1} parent=1 // pred_check
      _
    $region31: #{tpu_custom_call.1} parent=1 // pred_check_branch
      %55 = sbr.rel (0) target = $region33
    $region32: #{tpu_custom_call.1} parent=1 // pred_region
      _
    $region33: #{tpu_custom_call.1} parent=1 // pred_fallthru
      _
    // Predicated region
    $region34: #{tpu_custom_call.1} parent=1 // pred_check
      _
    $region35: #{tpu_custom_call.1} parent=1 // pred_check_branch
      %57 = sbr.rel (0) target = $region37
    $region36: #{tpu_custom_call.1} parent=1 // pred_region
      %58 = dma.done [#allocation9], 4096
    $region37: #{tpu_custom_call.1} parent=1 // pred_fallthru
      _
    // Predicated region
    $region38: #{tpu_custom_call.1} parent=1 // pred_check
      _
    $region39: #{tpu_custom_call.1} parent=1 // pred_check_branch
      %60 = sbr.rel (0) target = $region41
    $region40: #{tpu_custom_call.1} parent=1 // pred_region
      %61 = dma.done [#allocation12], 4096
    $region41: #{tpu_custom_call.1} parent=1 // pred_fallthru
      _
    %v62 = vld [vmem:[%s0] sm:$0xff]
    %v63 = vld [vmem:[%s0 + $0x8] sm:$0xff]
    %v64 = vld [vmem:[%s0 + $0x10] sm:$0xff]
    %v65 = vld [vmem:[%s0 + $0x18] sm:$0xff]
    %v66 = vld [vmem:[%s0 + $0x20] sm:$0xff]
    %v67 = vld [vmem:[%s0 + $0x28] sm:$0xff]
    %v68 = vld [vmem:[%s0 + $0x30] sm:$0xff]
    %v69 = vld [vmem:[%s0 + $0x38] sm:$0xff]
    %v70 = vld [vmem:[#allocation8] sm:$0xff]
    %v71 = vld [vmem:[#allocation8 + $0x8] sm:$0xff]
    %v72 = vld [vmem:[#allocation8 + $0x10] sm:$0xff]
    %v73 = vld [vmem:[#allocation8 + $0x18] sm:$0xff]
    %v74 = vld [vmem:[%s5] sm:$0x1]
    %v76 = vlaneseq
    %v77 = vshrl.u32 %v76, 7
    %v78 = vsub.s32 0, %v77
    %v79 = vrot.slane %v74, %v78
    %vm81 = vcmask 261120
    %v83 = vsel %vm81, %v62, 0
    %v86 = vsel %vm81, %v63, 0
    %v89 = vsel %vm81, %v64, 0
    %v92 = vsel %vm81, %v65, 0
    %v95 = vsel %vm81, %v66, 0
    %v98 = vsel %vm81, %v67, 0
    %v101 = vsel %vm81, %v68, 0
    %v104 = vsel %vm81, %v69, 0
    %106 = vmatprep.subr.mxu0 0.0
    %107 = vmatpush1.msra.mxu0 0.0
    %108 = vmatprep.subr.mxu0 0.0
    %109 = vmatpush1.msra.mxu0 0.0
    %110 = vmatprep.subr.mxu0 0.0
    %111 = vmatpush1.msra.mxu0 0.0
    %112 = vmatprep.subr.mxu0 0.0
    %113 = vmatpush1.msra.mxu0 0.0
    %114 = vmatprep.subr.mxu0 0.0
    %115 = vmatpush1.msra.mxu0 0.0
    %116 = vmatprep.subr.mxu0 0.0
    %117 = vmatpush1.msra.mxu0 0.0
    %118 = vmatprep.subr.mxu0 0.0
    %119 = vmatpush1.msra.mxu0 0.0
    %120 = vmatprep.subr.mxu0 0.0
    %121 = vmatpush1.msra.mxu0 0.0
    %122 = vmatprep.subr.mxu0 0.0
    %123 = vmatpush1.msra.mxu0 0.0
    %124 = vmatprep.subr.mxu0 0.0
    %125 = vmatpush1.msra.mxu0 0.0
    %126 = vmatprep.subr.mxu0 0.0
    %127 = vmatpush1.msra.mxu0 0.0
    %128 = vmatprep.subr.mxu0 0.0
    %129 = vmatpush1.msra.mxu0 0.0
    %130 = vmatprep.subr.mxu0 0.0
    %131 = vmatpush1.msra.mxu0 %v73
    %132 = vmatprep.subr.mxu0 0.0
    %133 = vmatpush1.msra.mxu0 %v72
    %134 = vmatprep.subr.mxu0 0.0
    %135 = vmatpush1.msra.mxu0 %v71
    %136 = vmatprep.subr.mxu0 0.0
    %137 = vmatpush1.msra.mxu0 %v70
    %138 = vmatprep.subr.mxu0 0.0
    %139 = vmatpush2.msra.mxu0 0.0
    %140 = vmatprep.subr.mxu0 0.0
    %141 = vmatpush2.msra.mxu0 0.0
    %142 = vmatprep.subr.mxu0 0.0
    %143 = vmatpush2.msra.mxu0 0.0
    %144 = vmatprep.subr.mxu0 0.0
    %145 = vmatpush2.msra.mxu0 0.0
    %146 = vmatprep.subr.mxu0 0.0
    %147 = vmatpush2.msra.mxu0 0.0
    %148 = vmatprep.subr.mxu0 0.0
    %149 = vmatpush2.msra.mxu0 0.0
    %150 = vmatprep.subr.mxu0 0.0
    %151 = vmatpush2.msra.mxu0 0.0
    %152 = vmatprep.subr.mxu0 0.0
    %153 = vmatpush2.msra.mxu0 0.0
    %154 = vmatprep.subr.mxu0 0.0
    %155 = vmatpush2.msra.mxu0 0.0
    %156 = vmatprep.subr.mxu0 0.0
    %157 = vmatpush2.msra.mxu0 0.0
    %158 = vmatprep.subr.mxu0 0.0
    %159 = vmatpush2.msra.mxu0 0.0
    %160 = vmatprep.subr.mxu0 0.0
    %161 = vmatpush2.msra.mxu0 0.0
    %162 = vmatprep.subr.mxu0 0.0
    %163 = vmatpush2.msra.mxu0 0.0
    %164 = vmatprep.subr.mxu0 0.0
    %165 = vmatpush2.msra.mxu0 0.0
    %166 = vmatprep.subr.mxu0 0.0
    %167 = vmatpush2.msra.mxu0 0.0
    %168 = vmatprep.subr.mxu0 0.0
    %169 = vmatpush2.msra.mxu0 0.0
    %170 = vmatprep.mubr.f32.mxu0 0.0
    %171 = vmatmul.mubr.f32.gmra.mxu0 %v83
    %v172 = vpop.f32.mrf.mxu0
    %v173 = vadd.f32 %v79, %v172
    %v174 = vpop.f32.mrf.mxu0
    %175 = vmatprep.mubr.f32.mxu0 0.0
    %176 = vmatmul.mubr.f32.gmra.mxu0 %v86
    %v177 = vpop.f32.mrf.mxu0
    %v178 = vadd.f32 %v79, %v177
    %v179 = vpop.f32.mrf.mxu0
    %180 = vmatprep.mubr.f32.mxu0 0.0
    %181 = vmatmul.mubr.f32.gmra.mxu0 %v89
    %v182 = vpop.f32.mrf.mxu0
    %v183 = vadd.f32 %v79, %v182
    %v184 = vpop.f32.mrf.mxu0
    %185 = vmatprep.mubr.f32.mxu0 0.0
    %186 = vmatmul.mubr.f32.gmra.mxu0 %v92
    %v187 = vpop.f32.mrf.mxu0
    %v188 = vadd.f32 %v79, %v187
    %v189 = vpop.f32.mrf.mxu0
    %190 = vmatprep.mubr.f32.mxu0 0.0
    %191 = vmatmul.mubr.f32.gmra.mxu0 %v95
    %v192 = vpop.f32.mrf.mxu0
    %v193 = vadd.f32 %v79, %v192
    %v194 = vpop.f32.mrf.mxu0
    %195 = vmatprep.mubr.f32.mxu0 0.0
    %196 = vmatmul.mubr.f32.gmra.mxu0 %v98
    %v197 = vpop.f32.mrf.mxu0
    %v198 = vadd.f32 %v79, %v197
    %v199 = vpop.f32.mrf.mxu0
    %200 = vmatprep.mubr.f32.mxu0 0.0
    %201 = vmatmul.mubr.f32.gmra.mxu0 %v101
    %v202 = vpop.f32.mrf.mxu0
    %v203 = vadd.f32 %v79, %v202
    %v204 = vpop.f32.mrf.mxu0
    %205 = vmatprep.mubr.f32.mxu0 0.0
    %206 = vmatmul.mubr.f32.gmra.mxu0 %v104
    %v207 = vpop.f32.mrf.mxu0
    %v208 = vadd.f32 %v79, %v207
    %v209 = vpop.f32.mrf.mxu0
    %210 = vdwg.mxu0
    %211 = vst.msk [vmem:[#allocation4] sm:$0xff] %vm81, %v173
    %212 = vst.msk [vmem:[#allocation4 + $0x8] sm:$0xff] %vm81, %v178
    %213 = vst.msk [vmem:[#allocation4 + $0x10] sm:$0xff] %vm81, %v183
    %214 = vst.msk [vmem:[#allocation4 + $0x18] sm:$0xff] %vm81, %v188
    %215 = vst.msk [vmem:[#allocation4 + $0x20] sm:$0xff] %vm81, %v193
    %216 = vst.msk [vmem:[#allocation4 + $0x28] sm:$0xff] %vm81, %v198
    %217 = vst.msk [vmem:[#allocation4 + $0x30] sm:$0xff] %vm81, %v203
    %218 = vst.msk [vmem:[#allocation4 + $0x38] sm:$0xff] %vm81, %v208
    %s219 = scalar_lea.vmem [#allocation8], 32
    %v220 = vld [vmem:[%s219] sm:$0xff]
    %v221 = vld [vmem:[%s219 + $0x8] sm:$0xff]
    %v222 = vld [vmem:[%s219 + $0x10] sm:$0xff]
    %v223 = vld [vmem:[%s219 + $0x18] sm:$0xff]
    %s224 = scalar_lea.vmem %s5, 1
    %v225 = vld [vmem:[%s224] sm:$0x1]
    %v227 = vlaneseq
    %v228 = vshrl.u32 %v227, 7
    %v229 = vsub.s32 0, %v228
    %v230 = vrot.slane %v225, %v229
    %232 = vmatprep.subr.mxu0 0.0
    %233 = vmatpush1.msra.mxu0 0.0
    %234 = vmatprep.subr.mxu0 0.0
    %235 = vmatpush1.msra.mxu0 0.0
    %236 = vmatprep.subr.mxu0 0.0
    %237 = vmatpush1.msra.mxu0 0.0
    %238 = vmatprep.subr.mxu0 0.0
    %239 = vmatpush1.msra.mxu0 0.0
    %240 = vmatprep.subr.mxu0 0.0
    %241 = vmatpush1.msra.mxu0 0.0
    %242 = vmatprep.subr.mxu0 0.0
    %243 = vmatpush1.msra.mxu0 0.0
    %244 = vmatprep.subr.mxu0 0.0
    %245 = vmatpush1.msra.mxu0 0.0
    %246 = vmatprep.subr.mxu0 0.0
    %247 = vmatpush1.msra.mxu0 0.0
    %248 = vmatprep.subr.mxu0 0.0
    %249 = vmatpush1.msra.mxu0 0.0
    %250 = vmatprep.subr.mxu0 0.0
    %251 = vmatpush1.msra.mxu0 0.0
    %252 = vmatprep.subr.mxu0 0.0
    %253 = vmatpush1.msra.mxu0 0.0
    %254 = vmatprep.subr.mxu0 0.0
    %255 = vmatpush1.msra.mxu0 0.0
    %256 = vmatprep.subr.mxu0 0.0
    %257 = vmatpush1.msra.mxu0 %v223
    %258 = vmatprep.subr.mxu0 0.0
    %259 = vmatpush1.msra.mxu0 %v222
    %260 = vmatprep.subr.mxu0 0.0
    %261 = vmatpush1.msra.mxu0 %v221
    %262 = vmatprep.subr.mxu0 0.0
    %263 = vmatpush1.msra.mxu0 %v220
    %264 = vmatprep.subr.mxu0 0.0
    %265 = vmatpush2.msra.mxu0 0.0
    %266 = vmatprep.subr.mxu0 0.0
    %267 = vmatpush2.msra.mxu0 0.0
    %268 = vmatprep.subr.mxu0 0.0
    %269 = vmatpush2.msra.mxu0 0.0
    %270 = vmatprep.subr.mxu0 0.0
    %271 = vmatpush2.msra.mxu0 0.0
    %272 = vmatprep.subr.mxu0 0.0
    %273 = vmatpush2.msra.mxu0 0.0
    %274 = vmatprep.subr.mxu0 0.0
    %275 = vmatpush2.msra.mxu0 0.0
    %276 = vmatprep.subr.mxu0 0.0
    %277 = vmatpush2.msra.mxu0 0.0
    %278 = vmatprep.subr.mxu0 0.0
    %279 = vmatpush2.msra.mxu0 0.0
    %280 = vmatprep.subr.mxu0 0.0
    %281 = vmatpush2.msra.mxu0 0.0
    %282 = vmatprep.subr.mxu0 0.0
    %283 = vmatpush2.msra.mxu0 0.0
    %284 = vmatprep.subr.mxu0 0.0
    %285 = vmatpush2.msra.mxu0 0.0
    %286 = vmatprep.subr.mxu0 0.0
    %287 = vmatpush2.msra.mxu0 0.0
    %288 = vmatprep.subr.mxu0 0.0
    %289 = vmatpush2.msra.mxu0 0.0
    %290 = vmatprep.subr.mxu0 0.0
    %291 = vmatpush2.msra.mxu0 0.0
    %292 = vmatprep.subr.mxu0 0.0
    %293 = vmatpush2.msra.mxu0 0.0
    %294 = vmatprep.subr.mxu0 0.0
    %295 = vmatpush2.msra.mxu0 0.0
    %296 = vmatprep.mubr.f32.mxu0 0.0
    %297 = vmatmul.mubr.f32.gmra.mxu0 %v83
    %v298 = vpop.f32.mrf.mxu0
    %v299 = vadd.f32 %v230, %v298
    %v300 = vpop.f32.mrf.mxu0
    %301 = vmatprep.mubr.f32.mxu0 0.0
    %302 = vmatmul.mubr.f32.gmra.mxu0 %v86
    %v303 = vpop.f32.mrf.mxu0
    %v304 = vadd.f32 %v230, %v303
    %v305 = vpop.f32.mrf.mxu0
    %306 = vmatprep.mubr.f32.mxu0 0.0
    %307 = vmatmul.mubr.f32.gmra.mxu0 %v89
    %v308 = vpop.f32.mrf.mxu0
    %v309 = vadd.f32 %v230, %v308
    %v310 = vpop.f32.mrf.mxu0
    %311 = vmatprep.mubr.f32.mxu0 0.0
    %312 = vmatmul.mubr.f32.gmra.mxu0 %v92
    %v313 = vpop.f32.mrf.mxu0
    %v314 = vadd.f32 %v230, %v313
    %v315 = vpop.f32.mrf.mxu0
    %316 = vmatprep.mubr.f32.mxu0 0.0
    %317 = vmatmul.mubr.f32.gmra.mxu0 %v95
    %v318 = vpop.f32.mrf.mxu0
    %v319 = vadd.f32 %v230, %v318
    %v320 = vpop.f32.mrf.mxu0
    %321 = vmatprep.mubr.f32.mxu0 0.0
    %322 = vmatmul.mubr.f32.gmra.mxu0 %v98
    %v323 = vpop.f32.mrf.mxu0
    %v324 = vadd.f32 %v230, %v323
    %v325 = vpop.f32.mrf.mxu0
    %326 = vmatprep.mubr.f32.mxu0 0.0
    %327 = vmatmul.mubr.f32.gmra.mxu0 %v101
    %v328 = vpop.f32.mrf.mxu0
    %v329 = vadd.f32 %v230, %v328
    %v330 = vpop.f32.mrf.mxu0
    %331 = vmatprep.mubr.f32.mxu0 0.0
    %332 = vmatmul.mubr.f32.gmra.mxu0 %v104
    %v333 = vpop.f32.mrf.mxu0
    %v334 = vadd.f32 %v230, %v333
    %v335 = vpop.f32.mrf.mxu0
    %336 = vdwg.mxu0
    %337 = vst.msk [vmem:[#allocation5] sm:$0xff] %vm81, %v299
    %338 = vst.msk [vmem:[#allocation5 + $0x8] sm:$0xff] %vm81, %v304
    %339 = vst.msk [vmem:[#allocation5 + $0x10] sm:$0xff] %vm81, %v309
    %340 = vst.msk [vmem:[#allocation5 + $0x18] sm:$0xff] %vm81, %v314
    %341 = vst.msk [vmem:[#allocation5 + $0x20] sm:$0xff] %vm81, %v319
    %342 = vst.msk [vmem:[#allocation5 + $0x28] sm:$0xff] %vm81, %v324
    %343 = vst.msk [vmem:[#allocation5 + $0x30] sm:$0xff] %vm81, %v329
    %344 = vst.msk [vmem:[#allocation5 + $0x38] sm:$0xff] %vm81, %v334
    %s345 = scalar_lea.vmem [#allocation8], 64
    %v346 = vld [vmem:[%s345] sm:$0xff]
    %v347 = vld [vmem:[%s345 + $0x8] sm:$0xff]
    %v348 = vld [vmem:[%s345 + $0x10] sm:$0xff]
    %v349 = vld [vmem:[%s345 + $0x18] sm:$0xff]
    %s350 = scalar_lea.vmem %s5, 2
    %v351 = vld [vmem:[%s350] sm:$0x1]
    %v353 = vlaneseq
    %v354 = vshrl.u32 %v353, 7
    %v355 = vsub.s32 0, %v354
    %v356 = vrot.slane %v351, %v355
    %358 = vmatprep.subr.mxu0 0.0
    %359 = vmatpush1.msra.mxu0 0.0
    %360 = vmatprep.subr.mxu0 0.0
    %361 = vmatpush1.msra.mxu0 0.0
    %362 = vmatprep.subr.mxu0 0.0
    %363 = vmatpush1.msra.mxu0 0.0
    %364 = vmatprep.subr.mxu0 0.0
    %365 = vmatpush1.msra.mxu0 0.0
    %366 = vmatprep.subr.mxu0 0.0
    %367 = vmatpush1.msra.mxu0 0.0
    %368 = vmatprep.subr.mxu0 0.0
    %369 = vmatpush1.msra.mxu0 0.0
    %370 = vmatprep.subr.mxu0 0.0
    %371 = vmatpush1.msra.mxu0 0.0
    %372 = vmatprep.subr.mxu0 0.0
    %373 = vmatpush1.msra.mxu0 0.0
    %374 = vmatprep.subr.mxu0 0.0
    %375 = vmatpush1.msra.mxu0 0.0
    %376 = vmatprep.subr.mxu0 0.0
    %377 = vmatpush1.msra.mxu0 0.0
    %378 = vmatprep.subr.mxu0 0.0
    %379 = vmatpush1.msra.mxu0 0.0
    %380 = vmatprep.subr.mxu0 0.0
    %381 = vmatpush1.msra.mxu0 0.0
    %382 = vmatprep.subr.mxu0 0.0
    %383 = vmatpush1.msra.mxu0 %v349
    %384 = vmatprep.subr.mxu0 0.0
    %385 = vmatpush1.msra.mxu0 %v348
    %386 = vmatprep.subr.mxu0 0.0
    %387 = vmatpush1.msra.mxu0 %v347
    %388 = vmatprep.subr.mxu0 0.0
    %389 = vmatpush1.msra.mxu0 %v346
    %390 = vmatprep.subr.mxu0 0.0
    %391 = vmatpush2.msra.mxu0 0.0
    %392 = vmatprep.subr.mxu0 0.0
    %393 = vmatpush2.msra.mxu0 0.0
    %394 = vmatprep.subr.mxu0 0.0
    %395 = vmatpush2.msra.mxu0 0.0
    %396 = vmatprep.subr.mxu0 0.0
    %397 = vmatpush2.msra.mxu0 0.0
    %398 = vmatprep.subr.mxu0 0.0
    %399 = vmatpush2.msra.mxu0 0.0
    %400 = vmatprep.subr.mxu0 0.0
    %401 = vmatpush2.msra.mxu0 0.0
    %402 = vmatprep.subr.mxu0 0.0
    %403 = vmatpush2.msra.mxu0 0.0
    %404 = vmatprep.subr.mxu0 0.0
    %405 = vmatpush2.msra.mxu0 0.0
    %406 = vmatprep.subr.mxu0 0.0
    %407 = vmatpush2.msra.mxu0 0.0
    %408 = vmatprep.subr.mxu0 0.0
    %409 = vmatpush2.msra.mxu0 0.0
    %410 = vmatprep.subr.mxu0 0.0
    %411 = vmatpush2.msra.mxu0 0.0
    %412 = vmatprep.subr.mxu0 0.0
    %413 = vmatpush2.msra.mxu0 0.0
    %414 = vmatprep.subr.mxu0 0.0
    %415 = vmatpush2.msra.mxu0 0.0
    %416 = vmatprep.subr.mxu0 0.0
    %417 = vmatpush2.msra.mxu0 0.0
    %418 = vmatprep.subr.mxu0 0.0
    %419 = vmatpush2.msra.mxu0 0.0
    %420 = vmatprep.subr.mxu0 0.0
    %421 = vmatpush2.msra.mxu0 0.0
    %422 = vmatprep.mubr.f32.mxu0 0.0
    %423 = vmatmul.mubr.f32.gmra.mxu0 %v83
    %v424 = vpop.f32.mrf.mxu0
    %v425 = vadd.f32 %v356, %v424
    %v426 = vpop.f32.mrf.mxu0
    %427 = vmatprep.mubr.f32.mxu0 0.0
    %428 = vmatmul.mubr.f32.gmra.mxu0 %v86
    %v429 = vpop.f32.mrf.mxu0
    %v430 = vadd.f32 %v356, %v429
    %v431 = vpop.f32.mrf.mxu0
    %432 = vmatprep.mubr.f32.mxu0 0.0
    %433 = vmatmul.mubr.f32.gmra.mxu0 %v89
    %v434 = vpop.f32.mrf.mxu0
    %v435 = vadd.f32 %v356, %v434
    %v436 = vpop.f32.mrf.mxu0
    %437 = vmatprep.mubr.f32.mxu0 0.0
    %438 = vmatmul.mubr.f32.gmra.mxu0 %v92
    %v439 = vpop.f32.mrf.mxu0
    %v440 = vadd.f32 %v356, %v439
    %v441 = vpop.f32.mrf.mxu0
    %442 = vmatprep.mubr.f32.mxu0 0.0
    %443 = vmatmul.mubr.f32.gmra.mxu0 %v95
    %v444 = vpop.f32.mrf.mxu0
    %v445 = vadd.f32 %v356, %v444
    %v446 = vpop.f32.mrf.mxu0
    %447 = vmatprep.mubr.f32.mxu0 0.0
    %448 = vmatmul.mubr.f32.gmra.mxu0 %v98
    %v449 = vpop.f32.mrf.mxu0
    %v450 = vadd.f32 %v356, %v449
    %v451 = vpop.f32.mrf.mxu0
    %452 = vmatprep.mubr.f32.mxu0 0.0
    %453 = vmatmul.mubr.f32.gmra.mxu0 %v101
    %v454 = vpop.f32.mrf.mxu0
    %v455 = vadd.f32 %v356, %v454
    %v456 = vpop.f32.mrf.mxu0
    %457 = vmatprep.mubr.f32.mxu0 0.0
    %458 = vmatmul.mubr.f32.gmra.mxu0 %v104
    %v459 = vpop.f32.mrf.mxu0
    %v460 = vadd.f32 %v356, %v459
    %v461 = vpop.f32.mrf.mxu0
    %462 = vdwg.mxu0
    %463 = vst.msk [vmem:[#allocation6] sm:$0xff] %vm81, %v425
    %464 = vst.msk [vmem:[#allocation6 + $0x8] sm:$0xff] %vm81, %v430
    %465 = vst.msk [vmem:[#allocation6 + $0x10] sm:$0xff] %vm81, %v435
    %466 = vst.msk [vmem:[#allocation6 + $0x18] sm:$0xff] %vm81, %v440
    %467 = vst.msk [vmem:[#allocation6 + $0x20] sm:$0xff] %vm81, %v445
    %468 = vst.msk [vmem:[#allocation6 + $0x28] sm:$0xff] %vm81, %v450
    %469 = vst.msk [vmem:[#allocation6 + $0x30] sm:$0xff] %vm81, %v455
    %470 = vst.msk [vmem:[#allocation6 + $0x38] sm:$0xff] %vm81, %v460
    %s471 = scalar_lea.vmem [#allocation8], 96
    %v472 = vld [vmem:[%s471] sm:$0xff]
    %v473 = vld [vmem:[%s471 + $0x8] sm:$0xff]
    %v474 = vld [vmem:[%s471 + $0x10] sm:$0xff]
    %v475 = vld [vmem:[%s471 + $0x18] sm:$0xff]
    %s476 = scalar_lea.vmem %s5, 3
    %v477 = vld [vmem:[%s476] sm:$0x1]
    %v479 = vlaneseq
    %v480 = vshrl.u32 %v479, 7
    %v481 = vsub.s32 0, %v480
    %v482 = vrot.slane %v477, %v481
    %484 = vmatprep.subr.mxu0 0.0
    %485 = vmatpush1.msra.mxu0 0.0
    %486 = vmatprep.subr.mxu0 0.0
    %487 = vmatpush1.msra.mxu0 0.0
    %488 = vmatprep.subr.mxu0 0.0
    %489 = vmatpush1.msra.mxu0 0.0
    %490 = vmatprep.subr.mxu0 0.0
    %491 = vmatpush1.msra.mxu0 0.0
    %492 = vmatprep.subr.mxu0 0.0
    %493 = vmatpush1.msra.mxu0 0.0
    %494 = vmatprep.subr.mxu0 0.0
    %495 = vmatpush1.msra.mxu0 0.0
    %496 = vmatprep.subr.mxu0 0.0
    %497 = vmatpush1.msra.mxu0 0.0
    %498 = vmatprep.subr.mxu0 0.0
    %499 = vmatpush1.msra.mxu0 0.0
    %500 = vmatprep.subr.mxu0 0.0
    %501 = vmatpush1.msra.mxu0 0.0
    %502 = vmatprep.subr.mxu0 0.0
    %503 = vmatpush1.msra.mxu0 0.0
    %504 = vmatprep.subr.mxu0 0.0
    %505 = vmatpush1.msra.mxu0 0.0
    %506 = vmatprep.subr.mxu0 0.0
    %507 = vmatpush1.msra.mxu0 0.0
    %508 = vmatprep.subr.mxu0 0.0
    %509 = vmatpush1.msra.mxu0 %v475
    %510 = vmatprep.subr.mxu0 0.0
    %511 = vmatpush1.msra.mxu0 %v474
    %512 = vmatprep.subr.mxu0 0.0
    %513 = vmatpush1.msra.mxu0 %v473
    %514 = vmatprep.subr.mxu0 0.0
    %515 = vmatpush1.msra.mxu0 %v472
    %516 = vmatprep.subr.mxu0 0.0
    %517 = vmatpush2.msra.mxu0 0.0
    %518 = vmatprep.subr.mxu0 0.0
    %519 = vmatpush2.msra.mxu0 0.0
    %520 = vmatprep.subr.mxu0 0.0
    %521 = vmatpush2.msra.mxu0 0.0
    %522 = vmatprep.subr.mxu0 0.0
    %523 = vmatpush2.msra.mxu0 0.0
    %524 = vmatprep.subr.mxu0 0.0
    %525 = vmatpush2.msra.mxu0 0.0
    %526 = vmatprep.subr.mxu0 0.0
    %527 = vmatpush2.msra.mxu0 0.0
    %528 = vmatprep.subr.mxu0 0.0
    %529 = vmatpush2.msra.mxu0 0.0
    %530 = vmatprep.subr.mxu0 0.0
    %531 = vmatpush2.msra.mxu0 0.0
    %532 = vmatprep.subr.mxu0 0.0
    %533 = vmatpush2.msra.mxu0 0.0
    %534 = vmatprep.subr.mxu0 0.0
    %535 = vmatpush2.msra.mxu0 0.0
    %536 = vmatprep.subr.mxu0 0.0
    %537 = vmatpush2.msra.mxu0 0.0
    %538 = vmatprep.subr.mxu0 0.0
    %539 = vmatpush2.msra.mxu0 0.0
    %540 = vmatprep.subr.mxu0 0.0
    %541 = vmatpush2.msra.mxu0 0.0
    %542 = vmatprep.subr.mxu0 0.0
    %543 = vmatpush2.msra.mxu0 0.0
    %544 = vmatprep.subr.mxu0 0.0
    %545 = vmatpush2.msra.mxu0 0.0
    %546 = vmatprep.subr.mxu0 0.0
    %547 = vmatpush2.msra.mxu0 0.0
    %548 = vmatprep.mubr.f32.mxu0 0.0
    %549 = vmatmul.mubr.f32.gmra.mxu0 %v83
    %v550 = vpop.f32.mrf.mxu0
    %v551 = vadd.f32 %v482, %v550
    %v552 = vpop.f32.mrf.mxu0
    %553 = vmatprep.mubr.f32.mxu0 0.0
    %554 = vmatmul.mubr.f32.gmra.mxu0 %v86
    %v555 = vpop.f32.mrf.mxu0
    %v556 = vadd.f32 %v482, %v555
    %v557 = vpop.f32.mrf.mxu0
    %558 = vmatprep.mubr.f32.mxu0 0.0
    %559 = vmatmul.mubr.f32.gmra.mxu0 %v89
    %v560 = vpop.f32.mrf.mxu0
    %v561 = vadd.f32 %v482, %v560
    %v562 = vpop.f32.mrf.mxu0
    %563 = vmatprep.mubr.f32.mxu0 0.0
    %564 = vmatmul.mubr.f32.gmra.mxu0 %v92
    %v565 = vpop.f32.mrf.mxu0
    %v566 = vadd.f32 %v482, %v565
    %v567 = vpop.f32.mrf.mxu0
    %568 = vmatprep.mubr.f32.mxu0 0.0
    %569 = vmatmul.mubr.f32.gmra.mxu0 %v95
    %v570 = vpop.f32.mrf.mxu0
    %v571 = vadd.f32 %v482, %v570
    %v572 = vpop.f32.mrf.mxu0
    %573 = vmatprep.mubr.f32.mxu0 0.0
    %574 = vmatmul.mubr.f32.gmra.mxu0 %v98
    %v575 = vpop.f32.mrf.mxu0
    %v576 = vadd.f32 %v482, %v575
    %v577 = vpop.f32.mrf.mxu0
    %578 = vmatprep.mubr.f32.mxu0 0.0
    %579 = vmatmul.mubr.f32.gmra.mxu0 %v101
    %v580 = vpop.f32.mrf.mxu0
    %v581 = vadd.f32 %v482, %v580
    %v582 = vpop.f32.mrf.mxu0
    %583 = vmatprep.mubr.f32.mxu0 0.0
    %584 = vmatmul.mubr.f32.gmra.mxu0 %v104
    %v585 = vpop.f32.mrf.mxu0
    %v586 = vadd.f32 %v482, %v585
    %v587 = vpop.f32.mrf.mxu0
    %588 = vdwg.mxu0
    %589 = vst.msk [vmem:[#allocation7] sm:$0xff] %vm81, %v551
    %590 = vst.msk [vmem:[#allocation7 + $0x8] sm:$0xff] %vm81, %v556
    %591 = vst.msk [vmem:[#allocation7 + $0x10] sm:$0xff] %vm81, %v561
    %592 = vst.msk [vmem:[#allocation7 + $0x18] sm:$0xff] %vm81, %v566
    %593 = vst.msk [vmem:[#allocation7 + $0x20] sm:$0xff] %vm81, %v571
    %594 = vst.msk [vmem:[#allocation7 + $0x28] sm:$0xff] %vm81, %v576
    %595 = vst.msk [vmem:[#allocation7 + $0x30] sm:$0xff] %vm81, %v581
    %596 = vst.msk [vmem:[#allocation7 + $0x38] sm:$0xff] %vm81, %v586
    %v597 = vld [vmem:[#allocation11] sm:$0xff]
    %v598 = vld [vmem:[#allocation11 + $0x8] sm:$0xff]
    %v599 = vld [vmem:[#allocation11 + $0x10] sm:$0xff]
    %v600 = vld [vmem:[#allocation11 + $0x18] sm:$0xff]
    %s601 = scalar_lea.vmem [#allocation11], 32
    %v602 = vld [vmem:[%s601] sm:$0xff]
    %v603 = vld [vmem:[%s601 + $0x8] sm:$0xff]
    %v604 = vld [vmem:[%s601 + $0x10] sm:$0xff]
    %v605 = vld [vmem:[%s601 + $0x18] sm:$0xff]
    %s606 = scalar_lea.vmem [#allocation11], 64
    %v607 = vld [vmem:[%s606] sm:$0xff]
    %v608 = vld [vmem:[%s606 + $0x8] sm:$0xff]
    %v609 = vld [vmem:[%s606 + $0x10] sm:$0xff]
    %v610 = vld [vmem:[%s606 + $0x18] sm:$0xff]
    %s611 = scalar_lea.vmem [#allocation11], 96
    %v612 = vld [vmem:[%s611] sm:$0xff]
    %v613 = vld [vmem:[%s611 + $0x8] sm:$0xff]
    %v614 = vld [vmem:[%s611 + $0x10] sm:$0xff]
    %v615 = vld [vmem:[%s611 + $0x18] sm:$0xff]
    %v616 = vld [vmem:[%s1] sm:$0xff]
    %v617 = vld [vmem:[%s2] sm:$0xff]
    %v618 = vld [vmem:[#allocation4] sm:$0xff]
    %v620 = vsel %vm81, %v616, 0
    %622 = vmatprep.subr.mxu0 0.0
    %623 = vmatpush1.msra.mxu0 0.0
    %624 = vmatprep.subr.mxu0 0.0
    %625 = vmatpush1.msra.mxu0 0.0
    %626 = vmatprep.subr.mxu0 0.0
    %627 = vmatpush1.msra.mxu0 0.0
    %628 = vmatprep.subr.mxu0 0.0
    %629 = vmatpush1.msra.mxu0 0.0
    %630 = vmatprep.subr.mxu0 0.0
    %631 = vmatpush1.msra.mxu0 0.0
    %632 = vmatprep.subr.mxu0 0.0
    %633 = vmatpush1.msra.mxu0 0.0
    %634 = vmatprep.subr.mxu0 0.0
    %635 = vmatpush1.msra.mxu0 0.0
    %636 = vmatprep.subr.mxu0 0.0
    %637 = vmatpush1.msra.mxu0 0.0
    %638 = vmatprep.subr.mxu0 0.0
    %639 = vmatpush1.msra.mxu0 0.0
    %640 = vmatprep.subr.mxu0 0.0
    %641 = vmatpush1.msra.mxu0 0.0
    %642 = vmatprep.subr.mxu0 0.0
    %643 = vmatpush1.msra.mxu0 0.0
    %644 = vmatprep.subr.mxu0 0.0
    %645 = vmatpush1.msra.mxu0 0.0
    %646 = vmatprep.subr.mxu0 0.0
    %647 = vmatpush1.msra.mxu0 %v600
    %648 = vmatprep.subr.mxu0 0.0
    %649 = vmatpush1.msra.mxu0 %v599
    %650 = vmatprep.subr.mxu0 0.0
    %651 = vmatpush1.msra.mxu0 %v598
    %652 = vmatprep.subr.mxu0 0.0
    %653 = vmatpush1.msra.mxu0 %v597
    %654 = vmatprep.subr.mxu0 0.0
    %655 = vmatpush2.msra.mxu0 0.0
    %656 = vmatprep.subr.mxu0 0.0
    %657 = vmatpush2.msra.mxu0 0.0
    %658 = vmatprep.subr.mxu0 0.0
    %659 = vmatpush2.msra.mxu0 0.0
    %660 = vmatprep.subr.mxu0 0.0
    %661 = vmatpush2.msra.mxu0 0.0
    %662 = vmatprep.subr.mxu0 0.0
    %663 = vmatpush2.msra.mxu0 0.0
    %664 = vmatprep.subr.mxu0 0.0
    %665 = vmatpush2.msra.mxu0 0.0
    %666 = vmatprep.subr.mxu0 0.0
    %667 = vmatpush2.msra.mxu0 0.0
    %668 = vmatprep.subr.mxu0 0.0
    %669 = vmatpush2.msra.mxu0 0.0
    %670 = vmatprep.subr.mxu0 0.0
    %671 = vmatpush2.msra.mxu0 0.0
    %672 = vmatprep.subr.mxu0 0.0
    %673 = vmatpush2.msra.mxu0 0.0
    %674 = vmatprep.subr.mxu0 0.0
    %675 = vmatpush2.msra.mxu0 0.0
    %676 = vmatprep.subr.mxu0 0.0
    %677 = vmatpush2.msra.mxu0 0.0
    %678 = vmatprep.subr.mxu0 0.0
    %679 = vmatpush2.msra.mxu0 0.0
    %680 = vmatprep.subr.mxu0 0.0
    %681 = vmatpush2.msra.mxu0 0.0
    %682 = vmatprep.subr.mxu0 0.0
    %683 = vmatpush2.msra.mxu0 0.0
    %684 = vmatprep.subr.mxu0 0.0
    %685 = vmatpush2.msra.mxu0 0.0
    %686 = vmatprep.mubr.f32.mxu0 0.0
    %687 = vmatmul.mubr.f32.gmra.mxu0 %v620
    %v688 = vpop.f32.mrf.mxu0
    %v689 = vadd.f32 0.0, %v688
    %v690 = vpop.f32.mrf.mxu0
    %691 = vdwg.mxu0
    %v692 = vadd.f32 %v618, %v689
    %v693 = vxor.u32 %v692, 2147483648
    %v694 = vmul.f32 %v693, 1.442695
    %v695 = vpow.pop %v694
    %v696 = vadd.f32 %v695, 1.0
    %v697 = vrcp.pop %v696
    %v698 = vmul.f32 1.0, %v697
    %v699 = vld [vmem:[#allocation5] sm:$0xff]
    %700 = vmatprep.subr.mxu0 0.0
    %701 = vmatpush1.msra.mxu0 0.0
    %702 = vmatprep.subr.mxu0 0.0
    %703 = vmatpush1.msra.mxu0 0.0
    %704 = vmatprep.subr.mxu0 0.0
    %705 = vmatpush1.msra.mxu0 0.0
    %706 = vmatprep.subr.mxu0 0.0
    %707 = vmatpush1.msra.mxu0 0.0
    %708 = vmatprep.subr.mxu0 0.0
    %709 = vmatpush1.msra.mxu0 0.0
    %710 = vmatprep.subr.mxu0 0.0
    %711 = vmatpush1.msra.mxu0 0.0
    %712 = vmatprep.subr.mxu0 0.0
    %713 = vmatpush1.msra.mxu0 0.0
    %714 = vmatprep.subr.mxu0 0.0
    %715 = vmatpush1.msra.mxu0 0.0
    %716 = vmatprep.subr.mxu0 0.0
    %717 = vmatpush1.msra.mxu0 0.0
    %718 = vmatprep.subr.mxu0 0.0
    %719 = vmatpush1.msra.mxu0 0.0
    %720 = vmatprep.subr.mxu0 0.0
    %721 = vmatpush1.msra.mxu0 0.0
    %722 = vmatprep.subr.mxu0 0.0
    %723 = vmatpush1.msra.mxu0 0.0
    %724 = vmatprep.subr.mxu0 0.0
    %725 = vmatpush1.msra.mxu0 %v605
    %726 = vmatprep.subr.mxu0 0.0
    %727 = vmatpush1.msra.mxu0 %v604
    %728 = vmatprep.subr.mxu0 0.0
    %729 = vmatpush1.msra.mxu0 %v603
    %730 = vmatprep.subr.mxu0 0.0
    %731 = vmatpush1.msra.mxu0 %v602
    %732 = vmatprep.subr.mxu0 0.0
    %733 = vmatpush2.msra.mxu0 0.0
    %734 = vmatprep.subr.mxu0 0.0
    %735 = vmatpush2.msra.mxu0 0.0
    %736 = vmatprep.subr.mxu0 0.0
    %737 = vmatpush2.msra.mxu0 0.0
    %738 = vmatprep.subr.mxu0 0.0
    %739 = vmatpush2.msra.mxu0 0.0
    %740 = vmatprep.subr.mxu0 0.0
    %741 = vmatpush2.msra.mxu0 0.0
    %742 = vmatprep.subr.mxu0 0.0
    %743 = vmatpush2.msra.mxu0 0.0
    %744 = vmatprep.subr.mxu0 0.0
    %745 = vmatpush2.msra.mxu0 0.0
    %746 = vmatprep.subr.mxu0 0.0
    %747 = vmatpush2.msra.mxu0 0.0
    %748 = vmatprep.subr.mxu0 0.0
    %749 = vmatpush2.msra.mxu0 0.0
    %750 = vmatprep.subr.mxu0 0.0
    %751 = vmatpush2.msra.mxu0 0.0
    %752 = vmatprep.subr.mxu0 0.0
    %753 = vmatpush2.msra.mxu0 0.0
    %754 = vmatprep.subr.mxu0 0.0
    %755 = vmatpush2.msra.mxu0 0.0
    %756 = vmatprep.subr.mxu0 0.0
    %757 = vmatpush2.msra.mxu0 0.0
    %758 = vmatprep.subr.mxu0 0.0
    %759 = vmatpush2.msra.mxu0 0.0
    %760 = vmatprep.subr.mxu0 0.0
    %761 = vmatpush2.msra.mxu0 0.0
    %762 = vmatprep.subr.mxu0 0.0
    %763 = vmatpush2.msra.mxu0 0.0
    %764 = vmatprep.mubr.f32.mxu0 0.0
    %765 = vmatmul.mubr.f32.gmra.mxu0 %v620
    %v766 = vpop.f32.mrf.mxu0
    %v767 = vadd.f32 0.0, %v766
    %v768 = vpop.f32.mrf.mxu0
    %769 = vdwg.mxu0
    %v770 = vadd.f32 %v699, %v767
    %v771 = vxor.u32 %v770, 2147483648
    %v772 = vmul.f32 %v771, 1.442695
    %v773 = vpow.pop %v772
    %v774 = vadd.f32 %v773, 1.0
    %v775 = vrcp.pop %v774
    %v776 = vmul.f32 1.0, %v775
    %v777 = vld [vmem:[#allocation6] sm:$0xff]
    %778 = vmatprep.subr.mxu0 0.0
    %779 = vmatpush1.msra.mxu0 0.0
    %780 = vmatprep.subr.mxu0 0.0
    %781 = vmatpush1.msra.mxu0 0.0
    %782 = vmatprep.subr.mxu0 0.0
    %783 = vmatpush1.msra.mxu0 0.0
    %784 = vmatprep.subr.mxu0 0.0
    %785 = vmatpush1.msra.mxu0 0.0
    %786 = vmatprep.subr.mxu0 0.0
    %787 = vmatpush1.msra.mxu0 0.0
    %788 = vmatprep.subr.mxu0 0.0
    %789 = vmatpush1.msra.mxu0 0.0
    %790 = vmatprep.subr.mxu0 0.0
    %791 = vmatpush1.msra.mxu0 0.0
    %792 = vmatprep.subr.mxu0 0.0
    %793 = vmatpush1.msra.mxu0 0.0
    %794 = vmatprep.subr.mxu0 0.0
    %795 = vmatpush1.msra.mxu0 0.0
    %796 = vmatprep.subr.mxu0 0.0
    %797 = vmatpush1.msra.mxu0 0.0
    %798 = vmatprep.subr.mxu0 0.0
    %799 = vmatpush1.msra.mxu0 0.0
    %800 = vmatprep.subr.mxu0 0.0
    %801 = vmatpush1.msra.mxu0 0.0
    %802 = vmatprep.subr.mxu0 0.0
    %803 = vmatpush1.msra.mxu0 %v610
    %804 = vmatprep.subr.mxu0 0.0
    %805 = vmatpush1.msra.mxu0 %v609
    %806 = vmatprep.subr.mxu0 0.0
    %807 = vmatpush1.msra.mxu0 %v608
    %808 = vmatprep.subr.mxu0 0.0
    %809 = vmatpush1.msra.mxu0 %v607
    %810 = vmatprep.subr.mxu0 0.0
    %811 = vmatpush2.msra.mxu0 0.0
    %812 = vmatprep.subr.mxu0 0.0
    %813 = vmatpush2.msra.mxu0 0.0
    %814 = vmatprep.subr.mxu0 0.0
    %815 = vmatpush2.msra.mxu0 0.0
    %816 = vmatprep.subr.mxu0 0.0
    %817 = vmatpush2.msra.mxu0 0.0
    %818 = vmatprep.subr.mxu0 0.0
    %819 = vmatpush2.msra.mxu0 0.0
    %820 = vmatprep.subr.mxu0 0.0
    %821 = vmatpush2.msra.mxu0 0.0
    %822 = vmatprep.subr.mxu0 0.0
    %823 = vmatpush2.msra.mxu0 0.0
    %824 = vmatprep.subr.mxu0 0.0
    %825 = vmatpush2.msra.mxu0 0.0
    %826 = vmatprep.subr.mxu0 0.0
    %827 = vmatpush2.msra.mxu0 0.0
    %828 = vmatprep.subr.mxu0 0.0
    %829 = vmatpush2.msra.mxu0 0.0
    %830 = vmatprep.subr.mxu0 0.0
    %831 = vmatpush2.msra.mxu0 0.0
    %832 = vmatprep.subr.mxu0 0.0
    %833 = vmatpush2.msra.mxu0 0.0
    %834 = vmatprep.subr.mxu0 0.0
    %835 = vmatpush2.msra.mxu0 0.0
    %836 = vmatprep.subr.mxu0 0.0
    %837 = vmatpush2.msra.mxu0 0.0
    %838 = vmatprep.subr.mxu0 0.0
    %839 = vmatpush2.msra.mxu0 0.0
    %840 = vmatprep.subr.mxu0 0.0
    %841 = vmatpush2.msra.mxu0 0.0
    %842 = vmatprep.mubr.f32.mxu0 0.0
    %843 = vmatmul.mubr.f32.gmra.mxu0 %v620
    %v844 = vpop.f32.mrf.mxu0
    %v845 = vadd.f32 0.0, %v844
    %v846 = vpop.f32.mrf.mxu0
    %847 = vdwg.mxu0
    %v848 = vadd.f32 %v777, %v845
    %v849 = vtanh.pop %v848
    %v850 = vld [vmem:[#allocation7] sm:$0xff]
    %851 = vmatprep.subr.mxu0 0.0
    %852 = vmatpush1.msra.mxu0 0.0
    %853 = vmatprep.subr.mxu0 0.0
    %854 = vmatpush1.msra.mxu0 0.0
    %855 = vmatprep.subr.mxu0 0.0
    %856 = vmatpush1.msra.mxu0 0.0
    %857 = vmatprep.subr.mxu0 0.0
    %858 = vmatpush1.msra.mxu0 0.0
    %859 = vmatprep.subr.mxu0 0.0
    %860 = vmatpush1.msra.mxu0 0.0
    %861 = vmatprep.subr.mxu0 0.0
    %862 = vmatpush1.msra.mxu0 0.0
    %863 = vmatprep.subr.mxu0 0.0
    %864 = vmatpush1.msra.mxu0 0.0
    %865 = vmatprep.subr.mxu0 0.0
    %866 = vmatpush1.msra.mxu0 0.0
    %867 = vmatprep.subr.mxu0 0.0
    %868 = vmatpush1.msra.mxu0 0.0
    %869 = vmatprep.subr.mxu0 0.0
    %870 = vmatpush1.msra.mxu0 0.0
    %871 = vmatprep.subr.mxu0 0.0
    %872 = vmatpush1.msra.mxu0 0.0
    %873 = vmatprep.subr.mxu0 0.0
    %874 = vmatpush1.msra.mxu0 0.0
    %875 = vmatprep.subr.mxu0 0.0
    %876 = vmatpush1.msra.mxu0 %v615
    %877 = vmatprep.subr.mxu0 0.0
    %878 = vmatpush1.msra.mxu0 %v614
    %879 = vmatprep.subr.mxu0 0.0
    %880 = vmatpush1.msra.mxu0 %v613
    %881 = vmatprep.subr.mxu0 0.0
    %882 = vmatpush1.msra.mxu0 %v612
    %883 = vmatprep.subr.mxu0 0.0
    %884 = vmatpush2.msra.mxu0 0.0
    %885 = vmatprep.subr.mxu0 0.0
    %886 = vmatpush2.msra.mxu0 0.0
    %887 = vmatprep.subr.mxu0 0.0
    %888 = vmatpush2.msra.mxu0 0.0
    %889 = vmatprep.subr.mxu0 0.0
    %890 = vmatpush2.msra.mxu0 0.0
    %891 = vmatprep.subr.mxu0 0.0
    %892 = vmatpush2.msra.mxu0 0.0
    %893 = vmatprep.subr.mxu0 0.0
    %894 = vmatpush2.msra.mxu0 0.0
    %895 = vmatprep.subr.mxu0 0.0
    %896 = vmatpush2.msra.mxu0 0.0
    %897 = vmatprep.subr.mxu0 0.0
    %898 = vmatpush2.msra.mxu0 0.0
    %899 = vmatprep.subr.mxu0 0.0
    %900 = vmatpush2.msra.mxu0 0.0
    %901 = vmatprep.subr.mxu0 0.0
    %902 = vmatpush2.msra.mxu0 0.0
    %903 = vmatprep.subr.mxu0 0.0
    %904 = vmatpush2.msra.mxu0 0.0
    %905 = vmatprep.subr.mxu0 0.0
    %906 = vmatpush2.msra.mxu0 0.0
    %907 = vmatprep.subr.mxu0 0.0
    %908 = vmatpush2.msra.mxu0 0.0
    %909 = vmatprep.subr.mxu0 0.0
    %910 = vmatpush2.msra.mxu0 0.0
    %911 = vmatprep.subr.mxu0 0.0
    %912 = vmatpush2.msra.mxu0 0.0
    %913 = vmatprep.subr.mxu0 0.0
    %914 = vmatpush2.msra.mxu0 0.0
    %915 = vmatprep.mubr.f32.mxu0 0.0
    %916 = vmatmul.mubr.f32.gmra.mxu0 %v620
    %v917 = vpop.f32.mrf.mxu0
    %v918 = vadd.f32 0.0, %v917
    %v919 = vpop.f32.mrf.mxu0
    %920 = vdwg.mxu0
    %v921 = vadd.f32 %v850, %v918
    %v922 = vxor.u32 %v921, 2147483648
    %v923 = vmul.f32 %v922, 1.442695
    %v924 = vpow.pop %v923
    %v925 = vadd.f32 %v924, 1.0
    %v926 = vrcp.pop %v925
    %v927 = vmul.f32 1.0, %v926
    %v928 = vmul.f32 %v776, %v617
    %v929 = vmul.f32 %v698, %v849
    %v930 = vadd.f32 %v928, %v929
    %v931 = vtanh.pop %v930
    %v932 = vmul.f32 %v927, %v931
    %933 = vst.msk [vmem:[#allocation2] sm:$0xff] %vm81, %v932
    %s934 = scalar_lea.vmem [#allocation4], 8
    %v935 = vld [vmem:[%s934] sm:$0xff]
    %v937 = vsel %vm81, %v932, 0
    %939 = vmatprep.subr.mxu0 0.0
    %940 = vmatpush1.msra.mxu0 0.0
    %941 = vmatprep.subr.mxu0 0.0
    %942 = vmatpush1.msra.mxu0 0.0
    %943 = vmatprep.subr.mxu0 0.0
    %944 = vmatpush1.msra.mxu0 0.0
    %945 = vmatprep.subr.mxu0 0.0
    %946 = vmatpush1.msra.mxu0 0.0
    %947 = vmatprep.subr.mxu0 0.0
    %948 = vmatpush1.msra.mxu0 0.0
    %949 = vmatprep.subr.mxu0 0.0
    %950 = vmatpush1.msra.mxu0 0.0
    %951 = vmatprep.subr.mxu0 0.0
    %952 = vmatpush1.msra.mxu0 0.0
    %953 = vmatprep.subr.mxu0 0.0
    %954 = vmatpush1.msra.mxu0 0.0
    %955 = vmatprep.subr.mxu0 0.0
    %956 = vmatpush1.msra.mxu0 0.0
    %957 = vmatprep.subr.mxu0 0.0
    %958 = vmatpush1.msra.mxu0 0.0
    %959 = vmatprep.subr.mxu0 0.0
    %960 = vmatpush1.msra.mxu0 0.0
    %961 = vmatprep.subr.mxu0 0.0
    %962 = vmatpush1.msra.mxu0 0.0
    %963 = vmatprep.subr.mxu0 0.0
    %964 = vmatpush1.msra.mxu0 %v600
    %965 = vmatprep.subr.mxu0 0.0
    %966 = vmatpush1.msra.mxu0 %v599
    %967 = vmatprep.subr.mxu0 0.0
    %968 = vmatpush1.msra.mxu0 %v598
    %969 = vmatprep.subr.mxu0 0.0
    %970 = vmatpush1.msra.mxu0 %v597
    %971 = vmatprep.subr.mxu0 0.0
    %972 = vmatpush2.msra.mxu0 0.0
    %973 = vmatprep.subr.mxu0 0.0
    %974 = vmatpush2.msra.mxu0 0.0
    %975 = vmatprep.subr.mxu0 0.0
    %976 = vmatpush2.msra.mxu0 0.0
    %977 = vmatprep.subr.mxu0 0.0
    %978 = vmatpush2.msra.mxu0 0.0
    %979 = vmatprep.subr.mxu0 0.0
    %980 = vmatpush2.msra.mxu0 0.0
    %981 = vmatprep.subr.mxu0 0.0
    %982 = vmatpush2.msra.mxu0 0.0
    %983 = vmatprep.subr.mxu0 0.0
    %984 = vmatpush2.msra.mxu0 0.0
    %985 = vmatprep.subr.mxu0 0.0
    %986 = vmatpush2.msra.mxu0 0.0
    %987 = vmatprep.subr.mxu0 0.0
    %988 = vmatpush2.msra.mxu0 0.0
    %989 = vmatprep.subr.mxu0 0.0
    %990 = vmatpush2.msra.mxu0 0.0
    %991 = vmatprep.subr.mxu0 0.0
    %992 = vmatpush2.msra.mxu0 0.0
    %993 = vmatprep.subr.mxu0 0.0
    %994 = vmatpush2.msra.mxu0 0.0
    %995 = vmatprep.subr.mxu0 0.0
    %996 = vmatpush2.msra.mxu0 0.0
    %997 = vmatprep.subr.mxu0 0.0
    %998 = vmatpush2.msra.mxu0 0.0
    %999 = vmatprep.subr.mxu0 0.0
    %1000 = vmatpush2.msra.mxu0 0.0
    %1001 = vmatprep.subr.mxu0 0.0
    %1002 = vmatpush2.msra.mxu0 0.0
    %1003 = vmatprep.mubr.f32.mxu0 0.0
    %1004 = vmatmul.mubr.f32.gmra.mxu0 %v937
    %v1005 = vpop.f32.mrf.mxu0
    %v1006 = vadd.f32 0.0, %v1005
    %v1007 = vpop.f32.mrf.mxu0
    %1008 = vdwg.mxu0
    %v1009 = vadd.f32 %v935, %v1006
    %v1010 = vxor.u32 %v1009, 2147483648
    %v1011 = vmul.f32 %v1010, 1.442695
    %v1012 = vpow.pop %v1011
    %v1013 = vadd.f32 %v1012, 1.0
    %v1014 = vrcp.pop %v1013
    %v1015 = vmul.f32 1.0, %v1014
    %s1016 = scalar_lea.vmem [#allocation5], 8
    %v1017 = vld [vmem:[%s1016] sm:$0xff]
    %1018 = vmatprep.subr.mxu0 0.0
    %1019 = vmatpush1.msra.mxu0 0.0
    %1020 = vmatprep.subr.mxu0 0.0
    %1021 = vmatpush1.msra.mxu0 0.0
    %1022 = vmatprep.subr.mxu0 0.0
    %1023 = vmatpush1.msra.mxu0 0.0
    %1024 = vmatprep.subr.mxu0 0.0
    %1025 = vmatpush1.msra.mxu0 0.0
    %1026 = vmatprep.subr.mxu0 0.0
    %1027 = vmatpush1.msra.mxu0 0.0
    %1028 = vmatprep.subr.mxu0 0.0
    %1029 = vmatpush1.msra.mxu0 0.0
    %1030 = vmatprep.subr.mxu0 0.0
    %1031 = vmatpush1.msra.mxu0 0.0
    %1032 = vmatprep.subr.mxu0 0.0
    %1033 = vmatpush1.msra.mxu0 0.0
    %1034 = vmatprep.subr.mxu0 0.0
    %1035 = vmatpush1.msra.mxu0 0.0
    %1036 = vmatprep.subr.mxu0 0.0
    %1037 = vmatpush1.msra.mxu0 0.0
    %1038 = vmatprep.subr.mxu0 0.0
    %1039 = vmatpush1.msra.mxu0 0.0
    %1040 = vmatprep.subr.mxu0 0.0
    %1041 = vmatpush1.msra.mxu0 0.0
    %1042 = vmatprep.subr.mxu0 0.0
    %1043 = vmatpush1.msra.mxu0 %v605
    %1044 = vmatprep.subr.mxu0 0.0
    %1045 = vmatpush1.msra.mxu0 %v604
    %1046 = vmatprep.subr.mxu0 0.0
    %1047 = vmatpush1.msra.mxu0 %v603
    %1048 = vmatprep.subr.mxu0 0.0
    %1049 = vmatpush1.msra.mxu0 %v602
    %1050 = vmatprep.subr.mxu0 0.0
    %1051 = vmatpush2.msra.mxu0 0.0
    %1052 = vmatprep.subr.mxu0 0.0
    %1053 = vmatpush2.msra.mxu0 0.0
    %1054 = vmatprep.subr.mxu0 0.0
    %1055 = vmatpush2.msra.mxu0 0.0
    %1056 = vmatprep.subr.mxu0 0.0
    %1057 = vmatpush2.msra.mxu0 0.0
    %1058 = vmatprep.subr.mxu0 0.0
    %1059 = vmatpush2.msra.mxu0 0.0
    %1060 = vmatprep.subr.mxu0 0.0
    %1061 = vmatpush2.msra.mxu0 0.0
    %1062 = vmatprep.subr.mxu0 0.0
    %1063 = vmatpush2.msra.mxu0 0.0
    %1064 = vmatprep.subr.mxu0 0.0
    %1065 = vmatpush2.msra.mxu0 0.0
    %1066 = vmatprep.subr.mxu0 0.0
    %1067 = vmatpush2.msra.mxu0 0.0
    %1068 = vmatprep.subr.mxu0 0.0
    %1069 = vmatpush2.msra.mxu0 0.0
    %1070 = vmatprep.subr.mxu0 0.0
    %1071 = vmatpush2.msra.mxu0 0.0
    %1072 = vmatprep.subr.mxu0 0.0
    %1073 = vmatpush2.msra.mxu0 0.0
    %1074 = vmatprep.subr.mxu0 0.0
    %1075 = vmatpush2.msra.mxu0 0.0
    %1076 = vmatprep.subr.mxu0 0.0
    %1077 = vmatpush2.msra.mxu0 0.0
    %1078 = vmatprep.subr.mxu0 0.0
    %1079 = vmatpush2.msra.mxu0 0.0
    %1080 = vmatprep.subr.mxu0 0.0
    %1081 = vmatpush2.msra.mxu0 0.0
    %1082 = vmatprep.mubr.f32.mxu0 0.0
    %1083 = vmatmul.mubr.f32.gmra.mxu0 %v937
    %v1084 = vpop.f32.mrf.mxu0
    %v1085 = vadd.f32 0.0, %v1084
    %v1086 = vpop.f32.mrf.mxu0
    %1087 = vdwg.mxu0
    %v1088 = vadd.f32 %v1017, %v1085
    %v1089 = vxor.u32 %v1088, 2147483648
    %v1090 = vmul.f32 %v1089, 1.442695
    %v1091 = vpow.pop %v1090
    %v1092 = vadd.f32 %v1091, 1.0
    %v1093 = vrcp.pop %v1092
    %v1094 = vmul.f32 1.0, %v1093
    %s1095 = scalar_lea.vmem [#allocation6], 8
    %v1096 = vld [vmem:[%s1095] sm:$0xff]
    %1097 = vmatprep.subr.mxu0 0.0
    %1098 = vmatpush1.msra.mxu0 0.0
    %1099 = vmatprep.subr.mxu0 0.0
    %1100 = vmatpush1.msra.mxu0 0.0
    %1101 = vmatprep.subr.mxu0 0.0
    %1102 = vmatpush1.msra.mxu0 0.0
    %1103 = vmatprep.subr.mxu0 0.0
    %1104 = vmatpush1.msra.mxu0 0.0
    %1105 = vmatprep.subr.mxu0 0.0
    %1106 = vmatpush1.msra.mxu0 0.0
    %1107 = vmatprep.subr.mxu0 0.0
    %1108 = vmatpush1.msra.mxu0 0.0
    %1109 = vmatprep.subr.mxu0 0.0
    %1110 = vmatpush1.msra.mxu0 0.0
    %1111 = vmatprep.subr.mxu0 0.0
    %1112 = vmatpush1.msra.mxu0 0.0
    %1113 = vmatprep.subr.mxu0 0.0
    %1114 = vmatpush1.msra.mxu0 0.0
    %1115 = vmatprep.subr.mxu0 0.0
    %1116 = vmatpush1.msra.mxu0 0.0
    %1117 = vmatprep.subr.mxu0 0.0
    %1118 = vmatpush1.msra.mxu0 0.0
    %1119 = vmatprep.subr.mxu0 0.0
    %1120 = vmatpush1.msra.mxu0 0.0
    %1121 = vmatprep.subr.mxu0 0.0
    %1122 = vmatpush1.msra.mxu0 %v610
    %1123 = vmatprep.subr.mxu0 0.0
    %1124 = vmatpush1.msra.mxu0 %v609
    %1125 = vmatprep.subr.mxu0 0.0
    %1126 = vmatpush1.msra.mxu0 %v608
    %1127 = vmatprep.subr.mxu0 0.0
    %1128 = vmatpush1.msra.mxu0 %v607
    %1129 = vmatprep.subr.mxu0 0.0
    %1130 = vmatpush2.msra.mxu0 0.0
    %1131 = vmatprep.subr.mxu0 0.0
    %1132 = vmatpush2.msra.mxu0 0.0
    %1133 = vmatprep.subr.mxu0 0.0
    %1134 = vmatpush2.msra.mxu0 0.0
    %1135 = vmatprep.subr.mxu0 0.0
    %1136 = vmatpush2.msra.mxu0 0.0
    %1137 = vmatprep.subr.mxu0 0.0
    %1138 = vmatpush2.msra.mxu0 0.0
    %1139 = vmatprep.subr.mxu0 0.0
    %1140 = vmatpush2.msra.mxu0 0.0
    %1141 = vmatprep.subr.mxu0 0.0
    %1142 = vmatpush2.msra.mxu0 0.0
    %1143 = vmatprep.subr.mxu0 0.0
    %1144 = vmatpush2.msra.mxu0 0.0
    %1145 = vmatprep.subr.mxu0 0.0
    %1146 = vmatpush2.msra.mxu0 0.0
    %1147 = vmatprep.subr.mxu0 0.0
    %1148 = vmatpush2.msra.mxu0 0.0
    %1149 = vmatprep.subr.mxu0 0.0
    %1150 = vmatpush2.msra.mxu0 0.0
    %1151 = vmatprep.subr.mxu0 0.0
    %1152 = vmatpush2.msra.mxu0 0.0
    %1153 = vmatprep.subr.mxu0 0.0
    %1154 = vmatpush2.msra.mxu0 0.0
    %1155 = vmatprep.subr.mxu0 0.0
    %1156 = vmatpush2.msra.mxu0 0.0
    %1157 = vmatprep.subr.mxu0 0.0
    %1158 = vmatpush2.msra.mxu0 0.0
    %1159 = vmatprep.subr.mxu0 0.0
    %1160 = vmatpush2.msra.mxu0 0.0
    %1161 = vmatprep.mubr.f32.mxu0 0.0
    %1162 = vmatmul.mubr.f32.gmra.mxu0 %v937
    %v1163 = vpop.f32.mrf.mxu0
    %v1164 = vadd.f32 0.0, %v1163
    %v1165 = vpop.f32.mrf.mxu0
    %1166 = vdwg.mxu0
    %v1167 = vadd.f32 %v1096, %v1164
    %v1168 = vtanh.pop %v1167
    %s1169 = scalar_lea.vmem [#allocation7], 8
    %v1170 = vld [vmem:[%s1169] sm:$0xff]
    %1171 = vmatprep.subr.mxu0 0.0
    %1172 = vmatpush1.msra.mxu0 0.0
    %1173 = vmatprep.subr.mxu0 0.0
    %1174 = vmatpush1.msra.mxu0 0.0
    %1175 = vmatprep.subr.mxu0 0.0
    %1176 = vmatpush1.msra.mxu0 0.0
    %1177 = vmatprep.subr.mxu0 0.0
    %1178 = vmatpush1.msra.mxu0 0.0
    %1179 = vmatprep.subr.mxu0 0.0
    %1180 = vmatpush1.msra.mxu0 0.0
    %1181 = vmatprep.subr.mxu0 0.0
    %1182 = vmatpush1.msra.mxu0 0.0
    %1183 = vmatprep.subr.mxu0 0.0
    %1184 = vmatpush1.msra.mxu0 0.0
    %1185 = vmatprep.subr.mxu0 0.0
    %1186 = vmatpush1.msra.mxu0 0.0
    %1187 = vmatprep.subr.mxu0 0.0
    %1188 = vmatpush1.msra.mxu0 0.0
    %1189 = vmatprep.subr.mxu0 0.0
    %1190 = vmatpush1.msra.mxu0 0.0
    %1191 = vmatprep.subr.mxu0 0.0
    %1192 = vmatpush1.msra.mxu0 0.0
    %1193 = vmatprep.subr.mxu0 0.0
    %1194 = vmatpush1.msra.mxu0 0.0
    %1195 = vmatprep.subr.mxu0 0.0
    %1196 = vmatpush1.msra.mxu0 %v615
    %1197 = vmatprep.subr.mxu0 0.0
    %1198 = vmatpush1.msra.mxu0 %v614
    %1199 = vmatprep.subr.mxu0 0.0
    %1200 = vmatpush1.msra.mxu0 %v613
    %1201 = vmatprep.subr.mxu0 0.0
    %1202 = vmatpush1.msra.mxu0 %v612
    %1203 = vmatprep.subr.mxu0 0.0
    %1204 = vmatpush2.msra.mxu0 0.0
    %1205 = vmatprep.subr.mxu0 0.0
    %1206 = vmatpush2.msra.mxu0 0.0
    %1207 = vmatprep.subr.mxu0 0.0
    %1208 = vmatpush2.msra.mxu0 0.0
    %1209 = vmatprep.subr.mxu0 0.0
    %1210 = vmatpush2.msra.mxu0 0.0
    %1211 = vmatprep.subr.mxu0 0.0
    %1212 = vmatpush2.msra.mxu0 0.0
    %1213 = vmatprep.subr.mxu0 0.0
    %1214 = vmatpush2.msra.mxu0 0.0
    %1215 = vmatprep.subr.mxu0 0.0
    %1216 = vmatpush2.msra.mxu0 0.0
    %1217 = vmatprep.subr.mxu0 0.0
    %1218 = vmatpush2.msra.mxu0 0.0
    %1219 = vmatprep.subr.mxu0 0.0
    %1220 = vmatpush2.msra.mxu0 0.0
    %1221 = vmatprep.subr.mxu0 0.0
    %1222 = vmatpush2.msra.mxu0 0.0
    %1223 = vmatprep.subr.mxu0 0.0
    %1224 = vmatpush2.msra.mxu0 0.0
    %1225 = vmatprep.subr.mxu0 0.0
    %1226 = vmatpush2.msra.mxu0 0.0
    %1227 = vmatprep.subr.mxu0 0.0
    %1228 = vmatpush2.msra.mxu0 0.0
    %1229 = vmatprep.subr.mxu0 0.0
    %1230 = vmatpush2.msra.mxu0 0.0
    %1231 = vmatprep.subr.mxu0 0.0
    %1232 = vmatpush2.msra.mxu0 0.0
    %1233 = vmatprep.subr.mxu0 0.0
    %1234 = vmatpush2.msra.mxu0 0.0
    %1235 = vmatprep.mubr.f32.mxu0 0.0
    %1236 = vmatmul.mubr.f32.gmra.mxu0 %v937
    %v1237 = vpop.f32.mrf.mxu0
    %v1238 = vadd.f32 0.0, %v1237
    %v1239 = vpop.f32.mrf.mxu0
    %1240 = vdwg.mxu0
    %v1241 = vadd.f32 %v1170, %v1238
    %v1242 = vxor.u32 %v1241, 2147483648
    %v1243 = vmul.f32 %v1242, 1.442695
    %v1244 = vpow.pop %v1243
    %v1245 = vadd.f32 %v1244, 1.0
    %v1246 = vrcp.pop %v1245
    %v1247 = vmul.f32 1.0, %v1246
    %v1248 = vmul.f32 %v1094, %v930
    %v1249 = vmul.f32 %v1015, %v1168
    %v1250 = vadd.f32 %v1248, %v1249
    %v1251 = vtanh.pop %v1250
    %v1252 = vmul.f32 %v1247, %v1251
    %s1253 = scalar_lea.vmem [#allocation2], 8
    %1254 = vst.msk [vmem:[%s1253] sm:$0xff] %vm81, %v1252
    %s1255 = scalar_lea.vmem [#allocation4], 16
    %v1256 = vld [vmem:[%s1255] sm:$0xff]
    %v1258 = vsel %vm81, %v1252, 0
    %1260 = vmatprep.subr.mxu0 0.0
    %1261 = vmatpush1.msra.mxu0 0.0
    %1262 = vmatprep.subr.mxu0 0.0
    %1263 = vmatpush1.msra.mxu0 0.0
    %1264 = vmatprep.subr.mxu0 0.0
    %1265 = vmatpush1.msra.mxu0 0.0
    %1266 = vmatprep.subr.mxu0 0.0
    %1267 = vmatpush1.msra.mxu0 0.0
    %1268 = vmatprep.subr.mxu0 0.0
    %1269 = vmatpush1.msra.mxu0 0.0
    %1270 = vmatprep.subr.mxu0 0.0
    %1271 = vmatpush1.msra.mxu0 0.0
    %1272 = vmatprep.subr.mxu0 0.0
    %1273 = vmatpush1.msra.mxu0 0.0
    %1274 = vmatprep.subr.mxu0 0.0
    %1275 = vmatpush1.msra.mxu0 0.0
    %1276 = vmatprep.subr.mxu0 0.0
    %1277 = vmatpush1.msra.mxu0 0.0
    %1278 = vmatprep.subr.mxu0 0.0
    %1279 = vmatpush1.msra.mxu0 0.0
    %1280 = vmatprep.subr.mxu0 0.0
    %1281 = vmatpush1.msra.mxu0 0.0
    %1282 = vmatprep.subr.mxu0 0.0
    %1283 = vmatpush1.msra.mxu0 0.0
    %1284 = vmatprep.subr.mxu0 0.0
    %1285 = vmatpush1.msra.mxu0 %v600
    %1286 = vmatprep.subr.mxu0 0.0
    %1287 = vmatpush1.msra.mxu0 %v599
    %1288 = vmatprep.subr.mxu0 0.0
    %1289 = vmatpush1.msra.mxu0 %v598
    %1290 = vmatprep.subr.mxu0 0.0
    %1291 = vmatpush1.msra.mxu0 %v597
    %1292 = vmatprep.subr.mxu0 0.0
    %1293 = vmatpush2.msra.mxu0 0.0
    %1294 = vmatprep.subr.mxu0 0.0
    %1295 = vmatpush2.msra.mxu0 0.0
    %1296 = vmatprep.subr.mxu0 0.0
    %1297 = vmatpush2.msra.mxu0 0.0
    %1298 = vmatprep.subr.mxu0 0.0
    %1299 = vmatpush2.msra.mxu0 0.0
    %1300 = vmatprep.subr.mxu0 0.0
    %1301 = vmatpush2.msra.mxu0 0.0
    %1302 = vmatprep.subr.mxu0 0.0
    %1303 = vmatpush2.msra.mxu0 0.0
    %1304 = vmatprep.subr.mxu0 0.0
    %1305 = vmatpush2.msra.mxu0 0.0
    %1306 = vmatprep.subr.mxu0 0.0
    %1307 = vmatpush2.msra.mxu0 0.0
    %1308 = vmatprep.subr.mxu0 0.0
    %1309 = vmatpush2.msra.mxu0 0.0
    %1310 = vmatprep.subr.mxu0 0.0
    %1311 = vmatpush2.msra.mxu0 0.0
    %1312 = vmatprep.subr.mxu0 0.0
    %1313 = vmatpush2.msra.mxu0 0.0
    %1314 = vmatprep.subr.mxu0 0.0
    %1315 = vmatpush2.msra.mxu0 0.0
    %1316 = vmatprep.subr.mxu0 0.0
    %1317 = vmatpush2.msra.mxu0 0.0
    %1318 = vmatprep.subr.mxu0 0.0
    %1319 = vmatpush2.msra.mxu0 0.0
    %1320 = vmatprep.subr.mxu0 0.0
    %1321 = vmatpush2.msra.mxu0 0.0
    %1322 = vmatprep.subr.mxu0 0.0
    %1323 = vmatpush2.msra.mxu0 0.0
    %1324 = vmatprep.mubr.f32.mxu0 0.0
    %1325 = vmatmul.mubr.f32.gmra.mxu0 %v1258
    %v1326 = vpop.f32.mrf.mxu0
    %v1327 = vadd.f32 0.0, %v1326
    %v1328 = vpop.f32.mrf.mxu0
    %1329 = vdwg.mxu0
    %v1330 = vadd.f32 %v1256, %v1327
    %v1331 = vxor.u32 %v1330, 2147483648
    %v1332 = vmul.f32 %v1331, 1.442695
    %v1333 = vpow.pop %v1332
    %v1334 = vadd.f32 %v1333, 1.0
    %v1335 = vrcp.pop %v1334
    %v1336 = vmul.f32 1.0, %v1335
    %s1337 = scalar_lea.vmem [#allocation5], 16
    %v1338 = vld [vmem:[%s1337] sm:$0xff]
    %1339 = vmatprep.subr.mxu0 0.0
    %1340 = vmatpush1.msra.mxu0 0.0
    %1341 = vmatprep.subr.mxu0 0.0
    %1342 = vmatpush1.msra.mxu0 0.0
    %1343 = vmatprep.subr.mxu0 0.0
    %1344 = vmatpush1.msra.mxu0 0.0
    %1345 = vmatprep.subr.mxu0 0.0
    %1346 = vmatpush1.msra.mxu0 0.0
    %1347 = vmatprep.subr.mxu0 0.0
    %1348 = vmatpush1.msra.mxu0 0.0
    %1349 = vmatprep.subr.mxu0 0.0
    %1350 = vmatpush1.msra.mxu0 0.0
    %1351 = vmatprep.subr.mxu0 0.0
    %1352 = vmatpush1.msra.mxu0 0.0
    %1353 = vmatprep.subr.mxu0 0.0
    %1354 = vmatpush1.msra.mxu0 0.0
    %1355 = vmatprep.subr.mxu0 0.0
    %1356 = vmatpush1.msra.mxu0 0.0
    %1357 = vmatprep.subr.mxu0 0.0
    %1358 = vmatpush1.msra.mxu0 0.0
    %1359 = vmatprep.subr.mxu0 0.0
    %1360 = vmatpush1.msra.mxu0 0.0
    %1361 = vmatprep.subr.mxu0 0.0
    %1362 = vmatpush1.msra.mxu0 0.0
    %1363 = vmatprep.subr.mxu0 0.0
    %1364 = vmatpush1.msra.mxu0 %v605
    %1365 = vmatprep.subr.mxu0 0.0
    %1366 = vmatpush1.msra.mxu0 %v604
    %1367 = vmatprep.subr.mxu0 0.0
    %1368 = vmatpush1.msra.mxu0 %v603
    %1369 = vmatprep.subr.mxu0 0.0
    %1370 = vmatpush1.msra.mxu0 %v602
    %1371 = vmatprep.subr.mxu0 0.0
    %1372 = vmatpush2.msra.mxu0 0.0
    %1373 = vmatprep.subr.mxu0 0.0
    %1374 = vmatpush2.msra.mxu0 0.0
    %1375 = vmatprep.subr.mxu0 0.0
    %1376 = vmatpush2.msra.mxu0 0.0
    %1377 = vmatprep.subr.mxu0 0.0
    %1378 = vmatpush2.msra.mxu0 0.0
    %1379 = vmatprep.subr.mxu0 0.0
    %1380 = vmatpush2.msra.mxu0 0.0
    %1381 = vmatprep.subr.mxu0 0.0
    %1382 = vmatpush2.msra.mxu0 0.0
    %1383 = vmatprep.subr.mxu0 0.0
    %1384 = vmatpush2.msra.mxu0 0.0
    %1385 = vmatprep.subr.mxu0 0.0
    %1386 = vmatpush2.msra.mxu0 0.0
    %1387 = vmatprep.subr.mxu0 0.0
    %1388 = vmatpush2.msra.mxu0 0.0
    %1389 = vmatprep.subr.mxu0 0.0
    %1390 = vmatpush2.msra.mxu0 0.0
    %1391 = vmatprep.subr.mxu0 0.0
    %1392 = vmatpush2.msra.mxu0 0.0
    %1393 = vmatprep.subr.mxu0 0.0
    %1394 = vmatpush2.msra.mxu0 0.0
    %1395 = vmatprep.subr.mxu0 0.0
    %1396 = vmatpush2.msra.mxu0 0.0
    %1397 = vmatprep.subr.mxu0 0.0
    %1398 = vmatpush2.msra.mxu0 0.0
    %1399 = vmatprep.subr.mxu0 0.0
    %1400 = vmatpush2.msra.mxu0 0.0
    %1401 = vmatprep.subr.mxu0 0.0
    %1402 = vmatpush2.msra.mxu0 0.0
    %1403 = vmatprep.mubr.f32.mxu0 0.0
    %1404 = vmatmul.mubr.f32.gmra.mxu0 %v1258
    %v1405 = vpop.f32.mrf.mxu0
    %v1406 = vadd.f32 0.0, %v1405
    %v1407 = vpop.f32.mrf.mxu0
    %1408 = vdwg.mxu0
    %v1409 = vadd.f32 %v1338, %v1406
    %v1410 = vxor.u32 %v1409, 2147483648
    %v1411 = vmul.f32 %v1410, 1.442695
    %v1412 = vpow.pop %v1411
    %v1413 = vadd.f32 %v1412, 1.0
    %v1414 = vrcp.pop %v1413
    %v1415 = vmul.f32 1.0, %v1414
    %s1416 = scalar_lea.vmem [#allocation6], 16
    %v1417 = vld [vmem:[%s1416] sm:$0xff]
    %1418 = vmatprep.subr.mxu0 0.0
    %1419 = vmatpush1.msra.mxu0 0.0
    %1420 = vmatprep.subr.mxu0 0.0
    %1421 = vmatpush1.msra.mxu0 0.0
    %1422 = vmatprep.subr.mxu0 0.0
    %1423 = vmatpush1.msra.mxu0 0.0
    %1424 = vmatprep.subr.mxu0 0.0
    %1425 = vmatpush1.msra.mxu0 0.0
    %1426 = vmatprep.subr.mxu0 0.0
    %1427 = vmatpush1.msra.mxu0 0.0
    %1428 = vmatprep.subr.mxu0 0.0
    %1429 = vmatpush1.msra.mxu0 0.0
    %1430 = vmatprep.subr.mxu0 0.0
    %1431 = vmatpush1.msra.mxu0 0.0
    %1432 = vmatprep.subr.mxu0 0.0
    %1433 = vmatpush1.msra.mxu0 0.0
    %1434 = vmatprep.subr.mxu0 0.0
    %1435 = vmatpush1.msra.mxu0 0.0
    %1436 = vmatprep.subr.mxu0 0.0
    %1437 = vmatpush1.msra.mxu0 0.0
    %1438 = vmatprep.subr.mxu0 0.0
    %1439 = vmatpush1.msra.mxu0 0.0
    %1440 = vmatprep.subr.mxu0 0.0
    %1441 = vmatpush1.msra.mxu0 0.0
    %1442 = vmatprep.subr.mxu0 0.0
    %1443 = vmatpush1.msra.mxu0 %v610
    %1444 = vmatprep.subr.mxu0 0.0
    %1445 = vmatpush1.msra.mxu0 %v609
    %1446 = vmatprep.subr.mxu0 0.0
    %1447 = vmatpush1.msra.mxu0 %v608
    %1448 = vmatprep.subr.mxu0 0.0
    %1449 = vmatpush1.msra.mxu0 %v607
    %1450 = vmatprep.subr.mxu0 0.0
    %1451 = vmatpush2.msra.mxu0 0.0
    %1452 = vmatprep.subr.mxu0 0.0
    %1453 = vmatpush2.msra.mxu0 0.0
    %1454 = vmatprep.subr.mxu0 0.0
    %1455 = vmatpush2.msra.mxu0 0.0
    %1456 = vmatprep.subr.mxu0 0.0
    %1457 = vmatpush2.msra.mxu0 0.0
    %1458 = vmatprep.subr.mxu0 0.0
    %1459 = vmatpush2.msra.mxu0 0.0
    %1460 = vmatprep.subr.mxu0 0.0
    %1461 = vmatpush2.msra.mxu0 0.0
    %1462 = vmatprep.subr.mxu0 0.0
    %1463 = vmatpush2.msra.mxu0 0.0
    %1464 = vmatprep.subr.mxu0 0.0
    %1465 = vmatpush2.msra.mxu0 0.0
    %1466 = vmatprep.subr.mxu0 0.0
    %1467 = vmatpush2.msra.mxu0 0.0
    %1468 = vmatprep.subr.mxu0 0.0
    %1469 = vmatpush2.msra.mxu0 0.0
    %1470 = vmatprep.subr.mxu0 0.0
    %1471 = vmatpush2.msra.mxu0 0.0
    %1472 = vmatprep.subr.mxu0 0.0
    %1473 = vmatpush2.msra.mxu0 0.0
    %1474 = vmatprep.subr.mxu0 0.0
    %1475 = vmatpush2.msra.mxu0 0.0
    %1476 = vmatprep.subr.mxu0 0.0
    %1477 = vmatpush2.msra.mxu0 0.0
    %1478 = vmatprep.subr.mxu0 0.0
    %1479 = vmatpush2.msra.mxu0 0.0
    %1480 = vmatprep.subr.mxu0 0.0
    %1481 = vmatpush2.msra.mxu0 0.0
    %1482 = vmatprep.mubr.f32.mxu0 0.0
    %1483 = vmatmul.mubr.f32.gmra.mxu0 %v1258
    %v1484 = vpop.f32.mrf.mxu0
    %v1485 = vadd.f32 0.0, %v1484
    %v1486 = vpop.f32.mrf.mxu0
    %1487 = vdwg.mxu0
    %v1488 = vadd.f32 %v1417, %v1485
    %v1489 = vtanh.pop %v1488
    %s1490 = scalar_lea.vmem [#allocation7], 16
    %v1491 = vld [vmem:[%s1490] sm:$0xff]
    %1492 = vmatprep.subr.mxu0 0.0
    %1493 = vmatpush1.msra.mxu0 0.0
    %1494 = vmatprep.subr.mxu0 0.0
    %1495 = vmatpush1.msra.mxu0 0.0
    %1496 = vmatprep.subr.mxu0 0.0
    %1497 = vmatpush1.msra.mxu0 0.0
    %1498 = vmatprep.subr.mxu0 0.0
    %1499 = vmatpush1.msra.mxu0 0.0
    %1500 = vmatprep.subr.mxu0 0.0
    %1501 = vmatpush1.msra.mxu0 0.0
    %1502 = vmatprep.subr.mxu0 0.0
    %1503 = vmatpush1.msra.mxu0 0.0
    %1504 = vmatprep.subr.mxu0 0.0
    %1505 = vmatpush1.msra.mxu0 0.0
    %1506 = vmatprep.subr.mxu0 0.0
    %1507 = vmatpush1.msra.mxu0 0.0
    %1508 = vmatprep.subr.mxu0 0.0
    %1509 = vmatpush1.msra.mxu0 0.0
    %1510 = vmatprep.subr.mxu0 0.0
    %1511 = vmatpush1.msra.mxu0 0.0
    %1512 = vmatprep.subr.mxu0 0.0
    %1513 = vmatpush1.msra.mxu0 0.0
    %1514 = vmatprep.subr.mxu0 0.0
    %1515 = vmatpush1.msra.mxu0 0.0
    %1516 = vmatprep.subr.mxu0 0.0
    %1517 = vmatpush1.msra.mxu0 %v615
    %1518 = vmatprep.subr.mxu0 0.0
    %1519 = vmatpush1.msra.mxu0 %v614
    %1520 = vmatprep.subr.mxu0 0.0
    %1521 = vmatpush1.msra.mxu0 %v613
    %1522 = vmatprep.subr.mxu0 0.0
    %1523 = vmatpush1.msra.mxu0 %v612
    %1524 = vmatprep.subr.mxu0 0.0
    %1525 = vmatpush2.msra.mxu0 0.0
    %1526 = vmatprep.subr.mxu0 0.0
    %1527 = vmatpush2.msra.mxu0 0.0
    %1528 = vmatprep.subr.mxu0 0.0
    %1529 = vmatpush2.msra.mxu0 0.0
    %1530 = vmatprep.subr.mxu0 0.0
    %1531 = vmatpush2.msra.mxu0 0.0
    %1532 = vmatprep.subr.mxu0 0.0
    %1533 = vmatpush2.msra.mxu0 0.0
    %1534 = vmatprep.subr.mxu0 0.0
    %1535 = vmatpush2.msra.mxu0 0.0
    %1536 = vmatprep.subr.mxu0 0.0
    %1537 = vmatpush2.msra.mxu0 0.0
    %1538 = vmatprep.subr.mxu0 0.0
    %1539 = vmatpush2.msra.mxu0 0.0
    %1540 = vmatprep.subr.mxu0 0.0
    %1541 = vmatpush2.msra.mxu0 0.0
    %1542 = vmatprep.subr.mxu0 0.0
    %1543 = vmatpush2.msra.mxu0 0.0
    %1544 = vmatprep.subr.mxu0 0.0
    %1545 = vmatpush2.msra.mxu0 0.0
    %1546 = vmatprep.subr.mxu0 0.0
    %1547 = vmatpush2.msra.mxu0 0.0
    %1548 = vmatprep.subr.mxu0 0.0
    %1549 = vmatpush2.msra.mxu0 0.0
    %1550 = vmatprep.subr.mxu0 0.0
    %1551 = vmatpush2.msra.mxu0 0.0
    %1552 = vmatprep.subr.mxu0 0.0
    %1553 = vmatpush2.msra.mxu0 0.0
    %1554 = vmatprep.subr.mxu0 0.0
    %1555 = vmatpush2.msra.mxu0 0.0
    %1556 = vmatprep.mubr.f32.mxu0 0.0
    %1557 = vmatmul.mubr.f32.gmra.mxu0 %v1258
    %v1558 = vpop.f32.mrf.mxu0
    %v1559 = vadd.f32 0.0, %v1558
    %v1560 = vpop.f32.mrf.mxu0
    %1561 = vdwg.mxu0
    %v1562 = vadd.f32 %v1491, %v1559
    %v1563 = vxor.u32 %v1562, 2147483648
    %v1564 = vmul.f32 %v1563, 1.442695
    %v1565 = vpow.pop %v1564
    %v1566 = vadd.f32 %v1565, 1.0
    %v1567 = vrcp.pop %v1566
    %v1568 = vmul.f32 1.0, %v1567
    %v1569 = vmul.f32 %v1415, %v1250
    %v1570 = vmul.f32 %v1336, %v1489
    %v1571 = vadd.f32 %v1569, %v1570
    %v1572 = vtanh.pop %v1571
    %v1573 = vmul.f32 %v1568, %v1572
    %s1574 = scalar_lea.vmem [#allocation2], 16
    %1575 = vst.msk [vmem:[%s1574] sm:$0xff] %vm81, %v1573
    %s1576 = scalar_lea.vmem [#allocation4], 24
    %v1577 = vld [vmem:[%s1576] sm:$0xff]
    %v1579 = vsel %vm81, %v1573, 0
    %1581 = vmatprep.subr.mxu0 0.0
    %1582 = vmatpush1.msra.mxu0 0.0
    %1583 = vmatprep.subr.mxu0 0.0
    %1584 = vmatpush1.msra.mxu0 0.0
    %1585 = vmatprep.subr.mxu0 0.0
    %1586 = vmatpush1.msra.mxu0 0.0
    %1587 = vmatprep.subr.mxu0 0.0
    %1588 = vmatpush1.msra.mxu0 0.0
    %1589 = vmatprep.subr.mxu0 0.0
    %1590 = vmatpush1.msra.mxu0 0.0
    %1591 = vmatprep.subr.mxu0 0.0
    %1592 = vmatpush1.msra.mxu0 0.0
    %1593 = vmatprep.subr.mxu0 0.0
    %1594 = vmatpush1.msra.mxu0 0.0
    %1595 = vmatprep.subr.mxu0 0.0
    %1596 = vmatpush1.msra.mxu0 0.0
    %1597 = vmatprep.subr.mxu0 0.0
    %1598 = vmatpush1.msra.mxu0 0.0
    %1599 = vmatprep.subr.mxu0 0.0
    %1600 = vmatpush1.msra.mxu0 0.0
    %1601 = vmatprep.subr.mxu0 0.0
    %1602 = vmatpush1.msra.mxu0 0.0
    %1603 = vmatprep.subr.mxu0 0.0
    %1604 = vmatpush1.msra.mxu0 0.0
    %1605 = vmatprep.subr.mxu0 0.0
    %1606 = vmatpush1.msra.mxu0 %v600
    %1607 = vmatprep.subr.mxu0 0.0
    %1608 = vmatpush1.msra.mxu0 %v599
    %1609 = vmatprep.subr.mxu0 0.0
    %1610 = vmatpush1.msra.mxu0 %v598
    %1611 = vmatprep.subr.mxu0 0.0
    %1612 = vmatpush1.msra.mxu0 %v597
    %1613 = vmatprep.subr.mxu0 0.0
    %1614 = vmatpush2.msra.mxu0 0.0
    %1615 = vmatprep.subr.mxu0 0.0
    %1616 = vmatpush2.msra.mxu0 0.0
    %1617 = vmatprep.subr.mxu0 0.0
    %1618 = vmatpush2.msra.mxu0 0.0
    %1619 = vmatprep.subr.mxu0 0.0
    %1620 = vmatpush2.msra.mxu0 0.0
    %1621 = vmatprep.subr.mxu0 0.0
    %1622 = vmatpush2.msra.mxu0 0.0
    %1623 = vmatprep.subr.mxu0 0.0
    %1624 = vmatpush2.msra.mxu0 0.0
    %1625 = vmatprep.subr.mxu0 0.0
    %1626 = vmatpush2.msra.mxu0 0.0
    %1627 = vmatprep.subr.mxu0 0.0
    %1628 = vmatpush2.msra.mxu0 0.0
    %1629 = vmatprep.subr.mxu0 0.0
    %1630 = vmatpush2.msra.mxu0 0.0
    %1631 = vmatprep.subr.mxu0 0.0
    %1632 = vmatpush2.msra.mxu0 0.0
    %1633 = vmatprep.subr.mxu0 0.0
    %1634 = vmatpush2.msra.mxu0 0.0
    %1635 = vmatprep.subr.mxu0 0.0
    %1636 = vmatpush2.msra.mxu0 0.0
    %1637 = vmatprep.subr.mxu0 0.0
    %1638 = vmatpush2.msra.mxu0 0.0
    %1639 = vmatprep.subr.mxu0 0.0
    %1640 = vmatpush2.msra.mxu0 0.0
    %1641 = vmatprep.subr.mxu0 0.0
    %1642 = vmatpush2.msra.mxu0 0.0
    %1643 = vmatprep.subr.mxu0 0.0
    %1644 = vmatpush2.msra.mxu0 0.0
    %1645 = vmatprep.mubr.f32.mxu0 0.0
    %1646 = vmatmul.mubr.f32.gmra.mxu0 %v1579
    %v1647 = vpop.f32.mrf.mxu0
    %v1648 = vadd.f32 0.0, %v1647
    %v1649 = vpop.f32.mrf.mxu0
    %1650 = vdwg.mxu0
    %v1651 = vadd.f32 %v1577, %v1648
    %v1652 = vxor.u32 %v1651, 2147483648
    %v1653 = vmul.f32 %v1652, 1.442695
    %v1654 = vpow.pop %v1653
    %v1655 = vadd.f32 %v1654, 1.0
    %v1656 = vrcp.pop %v1655
    %v1657 = vmul.f32 1.0, %v1656
    %s1658 = scalar_lea.vmem [#allocation5], 24
    %v1659 = vld [vmem:[%s1658] sm:$0xff]
    %1660 = vmatprep.subr.mxu0 0.0
    %1661 = vmatpush1.msra.mxu0 0.0
    %1662 = vmatprep.subr.mxu0 0.0
    %1663 = vmatpush1.msra.mxu0 0.0
    %1664 = vmatprep.subr.mxu0 0.0
    %1665 = vmatpush1.msra.mxu0 0.0
    %1666 = vmatprep.subr.mxu0 0.0
    %1667 = vmatpush1.msra.mxu0 0.0
    %1668 = vmatprep.subr.mxu0 0.0
    %1669 = vmatpush1.msra.mxu0 0.0
    %1670 = vmatprep.subr.mxu0 0.0
    %1671 = vmatpush1.msra.mxu0 0.0
    %1672 = vmatprep.subr.mxu0 0.0
    %1673 = vmatpush1.msra.mxu0 0.0
    %1674 = vmatprep.subr.mxu0 0.0
    %1675 = vmatpush1.msra.mxu0 0.0
    %1676 = vmatprep.subr.mxu0 0.0
    %1677 = vmatpush1.msra.mxu0 0.0
    %1678 = vmatprep.subr.mxu0 0.0
    %1679 = vmatpush1.msra.mxu0 0.0
    %1680 = vmatprep.subr.mxu0 0.0
    %1681 = vmatpush1.msra.mxu0 0.0
    %1682 = vmatprep.subr.mxu0 0.0
    %1683 = vmatpush1.msra.mxu0 0.0
    %1684 = vmatprep.subr.mxu0 0.0
    %1685 = vmatpush1.msra.mxu0 %v605
    %1686 = vmatprep.subr.mxu0 0.0
    %1687 = vmatpush1.msra.mxu0 %v604
    %1688 = vmatprep.subr.mxu0 0.0
    %1689 = vmatpush1.msra.mxu0 %v603
    %1690 = vmatprep.subr.mxu0 0.0
    %1691 = vmatpush1.msra.mxu0 %v602
    %1692 = vmatprep.subr.mxu0 0.0
    %1693 = vmatpush2.msra.mxu0 0.0
    %1694 = vmatprep.subr.mxu0 0.0
    %1695 = vmatpush2.msra.mxu0 0.0
    %1696 = vmatprep.subr.mxu0 0.0
    %1697 = vmatpush2.msra.mxu0 0.0
    %1698 = vmatprep.subr.mxu0 0.0
    %1699 = vmatpush2.msra.mxu0 0.0
    %1700 = vmatprep.subr.mxu0 0.0
    %1701 = vmatpush2.msra.mxu0 0.0
    %1702 = vmatprep.subr.mxu0 0.0
    %1703 = vmatpush2.msra.mxu0 0.0
    %1704 = vmatprep.subr.mxu0 0.0
    %1705 = vmatpush2.msra.mxu0 0.0
    %1706 = vmatprep.subr.mxu0 0.0
    %1707 = vmatpush2.msra.mxu0 0.0
    %1708 = vmatprep.subr.mxu0 0.0
    %1709 = vmatpush2.msra.mxu0 0.0
    %1710 = vmatprep.subr.mxu0 0.0
    %1711 = vmatpush2.msra.mxu0 0.0
    %1712 = vmatprep.subr.mxu0 0.0
    %1713 = vmatpush2.msra.mxu0 0.0
    %1714 = vmatprep.subr.mxu0 0.0
    %1715 = vmatpush2.msra.mxu0 0.0
    %1716 = vmatprep.subr.mxu0 0.0
    %1717 = vmatpush2.msra.mxu0 0.0
    %1718 = vmatprep.subr.mxu0 0.0
    %1719 = vmatpush2.msra.mxu0 0.0
    %1720 = vmatprep.subr.mxu0 0.0
    %1721 = vmatpush2.msra.mxu0 0.0
    %1722 = vmatprep.subr.mxu0 0.0
    %1723 = vmatpush2.msra.mxu0 0.0
    %1724 = vmatprep.mubr.f32.mxu0 0.0
    %1725 = vmatmul.mubr.f32.gmra.mxu0 %v1579
    %v1726 = vpop.f32.mrf.mxu0
    %v1727 = vadd.f32 0.0, %v1726
    %v1728 = vpop.f32.mrf.mxu0
    %1729 = vdwg.mxu0
    %v1730 = vadd.f32 %v1659, %v1727
    %v1731 = vxor.u32 %v1730, 2147483648
    %v1732 = vmul.f32 %v1731, 1.442695
    %v1733 = vpow.pop %v1732
    %v1734 = vadd.f32 %v1733, 1.0
    %v1735 = vrcp.pop %v1734
    %v1736 = vmul.f32 1.0, %v1735
    %s1737 = scalar_lea.vmem [#allocation6], 24
    %v1738 = vld [vmem:[%s1737] sm:$0xff]
    %1739 = vmatprep.subr.mxu0 0.0
    %1740 = vmatpush1.msra.mxu0 0.0
    %1741 = vmatprep.subr.mxu0 0.0
    %1742 = vmatpush1.msra.mxu0 0.0
    %1743 = vmatprep.subr.mxu0 0.0
    %1744 = vmatpush1.msra.mxu0 0.0
    %1745 = vmatprep.subr.mxu0 0.0
    %1746 = vmatpush1.msra.mxu0 0.0
    %1747 = vmatprep.subr.mxu0 0.0
    %1748 = vmatpush1.msra.mxu0 0.0
    %1749 = vmatprep.subr.mxu0 0.0
    %1750 = vmatpush1.msra.mxu0 0.0
    %1751 = vmatprep.subr.mxu0 0.0
    %1752 = vmatpush1.msra.mxu0 0.0
    %1753 = vmatprep.subr.mxu0 0.0
    %1754 = vmatpush1.msra.mxu0 0.0
    %1755 = vmatprep.subr.mxu0 0.0
    %1756 = vmatpush1.msra.mxu0 0.0
    %1757 = vmatprep.subr.mxu0 0.0
    %1758 = vmatpush1.msra.mxu0 0.0
    %1759 = vmatprep.subr.mxu0 0.0
    %1760 = vmatpush1.msra.mxu0 0.0
    %1761 = vmatprep.subr.mxu0 0.0
    %1762 = vmatpush1.msra.mxu0 0.0
    %1763 = vmatprep.subr.mxu0 0.0
    %1764 = vmatpush1.msra.mxu0 %v610
    %1765 = vmatprep.subr.mxu0 0.0
    %1766 = vmatpush1.msra.mxu0 %v609
    %1767 = vmatprep.subr.mxu0 0.0
    %1768 = vmatpush1.msra.mxu0 %v608
    %1769 = vmatprep.subr.mxu0 0.0
    %1770 = vmatpush1.msra.mxu0 %v607
    %1771 = vmatprep.subr.mxu0 0.0
    %1772 = vmatpush2.msra.mxu0 0.0
    %1773 = vmatprep.subr.mxu0 0.0
    %1774 = vmatpush2.msra.mxu0 0.0
    %1775 = vmatprep.subr.mxu0 0.0
    %1776 = vmatpush2.msra.mxu0 0.0
    %1777 = vmatprep.subr.mxu0 0.0
    %1778 = vmatpush2.msra.mxu0 0.0
    %1779 = vmatprep.subr.mxu0 0.0
    %1780 = vmatpush2.msra.mxu0 0.0
    %1781 = vmatprep.subr.mxu0 0.0
    %1782 = vmatpush2.msra.mxu0 0.0
    %1783 = vmatprep.subr.mxu0 0.0
    %1784 = vmatpush2.msra.mxu0 0.0
    %1785 = vmatprep.subr.mxu0 0.0
    %1786 = vmatpush2.msra.mxu0 0.0
    %1787 = vmatprep.subr.mxu0 0.0
    %1788 = vmatpush2.msra.mxu0 0.0
    %1789 = vmatprep.subr.mxu0 0.0
    %1790 = vmatpush2.msra.mxu0 0.0
    %1791 = vmatprep.subr.mxu0 0.0
    %1792 = vmatpush2.msra.mxu0 0.0
    %1793 = vmatprep.subr.mxu0 0.0
    %1794 = vmatpush2.msra.mxu0 0.0
    %1795 = vmatprep.subr.mxu0 0.0
    %1796 = vmatpush2.msra.mxu0 0.0
    %1797 = vmatprep.subr.mxu0 0.0
    %1798 = vmatpush2.msra.mxu0 0.0
    %1799 = vmatprep.subr.mxu0 0.0
    %1800 = vmatpush2.msra.mxu0 0.0
    %1801 = vmatprep.subr.mxu0 0.0
    %1802 = vmatpush2.msra.mxu0 0.0
    %1803 = vmatprep.mubr.f32.mxu0 0.0
    %1804 = vmatmul.mubr.f32.gmra.mxu0 %v1579
    %v1805 = vpop.f32.mrf.mxu0
    %v1806 = vadd.f32 0.0, %v1805
    %v1807 = vpop.f32.mrf.mxu0
    %1808 = vdwg.mxu0
    %v1809 = vadd.f32 %v1738, %v1806
    %v1810 = vtanh.pop %v1809
    %s1811 = scalar_lea.vmem [#allocation7], 24
    %v1812 = vld [vmem:[%s1811] sm:$0xff]
    %1813 = vmatprep.subr.mxu0 0.0
    %1814 = vmatpush1.msra.mxu0 0.0
    %1815 = vmatprep.subr.mxu0 0.0
    %1816 = vmatpush1.msra.mxu0 0.0
    %1817 = vmatprep.subr.mxu0 0.0
    %1818 = vmatpush1.msra.mxu0 0.0
    %1819 = vmatprep.subr.mxu0 0.0
    %1820 = vmatpush1.msra.mxu0 0.0
    %1821 = vmatprep.subr.mxu0 0.0
    %1822 = vmatpush1.msra.mxu0 0.0
    %1823 = vmatprep.subr.mxu0 0.0
    %1824 = vmatpush1.msra.mxu0 0.0
    %1825 = vmatprep.subr.mxu0 0.0
    %1826 = vmatpush1.msra.mxu0 0.0
    %1827 = vmatprep.subr.mxu0 0.0
    %1828 = vmatpush1.msra.mxu0 0.0
    %1829 = vmatprep.subr.mxu0 0.0
    %1830 = vmatpush1.msra.mxu0 0.0
    %1831 = vmatprep.subr.mxu0 0.0
    %1832 = vmatpush1.msra.mxu0 0.0
    %1833 = vmatprep.subr.mxu0 0.0
    %1834 = vmatpush1.msra.mxu0 0.0
    %1835 = vmatprep.subr.mxu0 0.0
    %1836 = vmatpush1.msra.mxu0 0.0
    %1837 = vmatprep.subr.mxu0 0.0
    %1838 = vmatpush1.msra.mxu0 %v615
    %1839 = vmatprep.subr.mxu0 0.0
    %1840 = vmatpush1.msra.mxu0 %v614
    %1841 = vmatprep.subr.mxu0 0.0
    %1842 = vmatpush1.msra.mxu0 %v613
    %1843 = vmatprep.subr.mxu0 0.0
    %1844 = vmatpush1.msra.mxu0 %v612
    %1845 = vmatprep.subr.mxu0 0.0
    %1846 = vmatpush2.msra.mxu0 0.0
    %1847 = vmatprep.subr.mxu0 0.0
    %1848 = vmatpush2.msra.mxu0 0.0
    %1849 = vmatprep.subr.mxu0 0.0
    %1850 = vmatpush2.msra.mxu0 0.0
    %1851 = vmatprep.subr.mxu0 0.0
    %1852 = vmatpush2.msra.mxu0 0.0
    %1853 = vmatprep.subr.mxu0 0.0
    %1854 = vmatpush2.msra.mxu0 0.0
    %1855 = vmatprep.subr.mxu0 0.0
    %1856 = vmatpush2.msra.mxu0 0.0
    %1857 = vmatprep.subr.mxu0 0.0
    %1858 = vmatpush2.msra.mxu0 0.0
    %1859 = vmatprep.subr.mxu0 0.0
    %1860 = vmatpush2.msra.mxu0 0.0
    %1861 = vmatprep.subr.mxu0 0.0
    %1862 = vmatpush2.msra.mxu0 0.0
    %1863 = vmatprep.subr.mxu0 0.0
    %1864 = vmatpush2.msra.mxu0 0.0
    %1865 = vmatprep.subr.mxu0 0.0
    %1866 = vmatpush2.msra.mxu0 0.0
    %1867 = vmatprep.subr.mxu0 0.0
    %1868 = vmatpush2.msra.mxu0 0.0
    %1869 = vmatprep.subr.mxu0 0.0
    %1870 = vmatpush2.msra.mxu0 0.0
    %1871 = vmatprep.subr.mxu0 0.0
    %1872 = vmatpush2.msra.mxu0 0.0
    %1873 = vmatprep.subr.mxu0 0.0
    %1874 = vmatpush2.msra.mxu0 0.0
    %1875 = vmatprep.subr.mxu0 0.0
    %1876 = vmatpush2.msra.mxu0 0.0
    %1877 = vmatprep.mubr.f32.mxu0 0.0
    %1878 = vmatmul.mubr.f32.gmra.mxu0 %v1579
    %v1879 = vpop.f32.mrf.mxu0
    %v1880 = vadd.f32 0.0, %v1879
    %v1881 = vpop.f32.mrf.mxu0
    %1882 = vdwg.mxu0
    %v1883 = vadd.f32 %v1812, %v1880
    %v1884 = vxor.u32 %v1883, 2147483648
    %v1885 = vmul.f32 %v1884, 1.442695
    %v1886 = vpow.pop %v1885
    %v1887 = vadd.f32 %v1886, 1.0
    %v1888 = vrcp.pop %v1887
    %v1889 = vmul.f32 1.0, %v1888
    %v1890 = vmul.f32 %v1736, %v1571
    %v1891 = vmul.f32 %v1657, %v1810
    %v1892 = vadd.f32 %v1890, %v1891
    %v1893 = vtanh.pop %v1892
    %v1894 = vmul.f32 %v1889, %v1893
    %s1895 = scalar_lea.vmem [#allocation2], 24
    %1896 = vst.msk [vmem:[%s1895] sm:$0xff] %vm81, %v1894
    %s1897 = scalar_lea.vmem [#allocation4], 32
    %v1898 = vld [vmem:[%s1897] sm:$0xff]
    %v1900 = vsel %vm81, %v1894, 0
    %1902 = vmatprep.subr.mxu0 0.0
    %1903 = vmatpush1.msra.mxu0 0.0
    %1904 = vmatprep.subr.mxu0 0.0
    %1905 = vmatpush1.msra.mxu0 0.0
    %1906 = vmatprep.subr.mxu0 0.0
    %1907 = vmatpush1.msra.mxu0 0.0
    %1908 = vmatprep.subr.mxu0 0.0
    %1909 = vmatpush1.msra.mxu0 0.0
    %1910 = vmatprep.subr.mxu0 0.0
    %1911 = vmatpush1.msra.mxu0 0.0
    %1912 = vmatprep.subr.mxu0 0.0
    %1913 = vmatpush1.msra.mxu0 0.0
    %1914 = vmatprep.subr.mxu0 0.0
    %1915 = vmatpush1.msra.mxu0 0.0
    %1916 = vmatprep.subr.mxu0 0.0
    %1917 = vmatpush1.msra.mxu0 0.0
    %1918 = vmatprep.subr.mxu0 0.0
    %1919 = vmatpush1.msra.mxu0 0.0
    %1920 = vmatprep.subr.mxu0 0.0
    %1921 = vmatpush1.msra.mxu0 0.0
    %1922 = vmatprep.subr.mxu0 0.0
    %1923 = vmatpush1.msra.mxu0 0.0
    %1924 = vmatprep.subr.mxu0 0.0
    %1925 = vmatpush1.msra.mxu0 0.0
    %1926 = vmatprep.subr.mxu0 0.0
    %1927 = vmatpush1.msra.mxu0 %v600
    %1928 = vmatprep.subr.mxu0 0.0
    %1929 = vmatpush1.msra.mxu0 %v599
    %1930 = vmatprep.subr.mxu0 0.0
    %1931 = vmatpush1.msra.mxu0 %v598
    %1932 = vmatprep.subr.mxu0 0.0
    %1933 = vmatpush1.msra.mxu0 %v597
    %1934 = vmatprep.subr.mxu0 0.0
    %1935 = vmatpush2.msra.mxu0 0.0
    %1936 = vmatprep.subr.mxu0 0.0
    %1937 = vmatpush2.msra.mxu0 0.0
    %1938 = vmatprep.subr.mxu0 0.0
    %1939 = vmatpush2.msra.mxu0 0.0
    %1940 = vmatprep.subr.mxu0 0.0
    %1941 = vmatpush2.msra.mxu0 0.0
    %1942 = vmatprep.subr.mxu0 0.0
    %1943 = vmatpush2.msra.mxu0 0.0
    %1944 = vmatprep.subr.mxu0 0.0
    %1945 = vmatpush2.msra.mxu0 0.0
    %1946 = vmatprep.subr.mxu0 0.0
    %1947 = vmatpush2.msra.mxu0 0.0
    %1948 = vmatprep.subr.mxu0 0.0
    %1949 = vmatpush2.msra.mxu0 0.0
    %1950 = vmatprep.subr.mxu0 0.0
    %1951 = vmatpush2.msra.mxu0 0.0
    %1952 = vmatprep.subr.mxu0 0.0
    %1953 = vmatpush2.msra.mxu0 0.0
    %1954 = vmatprep.subr.mxu0 0.0
    %1955 = vmatpush2.msra.mxu0 0.0
    %1956 = vmatprep.subr.mxu0 0.0
    %1957 = vmatpush2.msra.mxu0 0.0
    %1958 = vmatprep.subr.mxu0 0.0
    %1959 = vmatpush2.msra.mxu0 0.0
    %1960 = vmatprep.subr.mxu0 0.0
    %1961 = vmatpush2.msra.mxu0 0.0
    %1962 = vmatprep.subr.mxu0 0.0
    %1963 = vmatpush2.msra.mxu0 0.0
    %1964 = vmatprep.subr.mxu0 0.0
    %1965 = vmatpush2.msra.mxu0 0.0
    %1966 = vmatprep.mubr.f32.mxu0 0.0
    %1967 = vmatmul.mubr.f32.gmra.mxu0 %v1900
    %v1968 = vpop.f32.mrf.mxu0
    %v1969 = vadd.f32 0.0, %v1968
    %v1970 = vpop.f32.mrf.mxu0
    %1971 = vdwg.mxu0
    %v1972 = vadd.f32 %v1898, %v1969
    %v1973 = vxor.u32 %v1972, 2147483648
    %v1974 = vmul.f32 %v1973, 1.442695
    %v1975 = vpow.pop %v1974
    %v1976 = vadd.f32 %v1975, 1.0
    %v1977 = vrcp.pop %v1976
    %v1978 = vmul.f32 1.0, %v1977
    %s1979 = scalar_lea.vmem [#allocation5], 32
    %v1980 = vld [vmem:[%s1979] sm:$0xff]
    %1981 = vmatprep.subr.mxu0 0.0
    %1982 = vmatpush1.msra.mxu0 0.0
    %1983 = vmatprep.subr.mxu0 0.0
    %1984 = vmatpush1.msra.mxu0 0.0
    %1985 = vmatprep.subr.mxu0 0.0
    %1986 = vmatpush1.msra.mxu0 0.0
    %1987 = vmatprep.subr.mxu0 0.0
    %1988 = vmatpush1.msra.mxu0 0.0
    %1989 = vmatprep.subr.mxu0 0.0
    %1990 = vmatpush1.msra.mxu0 0.0
    %1991 = vmatprep.subr.mxu0 0.0
    %1992 = vmatpush1.msra.mxu0 0.0
    %1993 = vmatprep.subr.mxu0 0.0
    %1994 = vmatpush1.msra.mxu0 0.0
    %1995 = vmatprep.subr.mxu0 0.0
    %1996 = vmatpush1.msra.mxu0 0.0
    %1997 = vmatprep.subr.mxu0 0.0
    %1998 = vmatpush1.msra.mxu0 0.0
    %1999 = vmatprep.subr.mxu0 0.0
    %2000 = vmatpush1.msra.mxu0 0.0
    %2001 = vmatprep.subr.mxu0 0.0
    %2002 = vmatpush1.msra.mxu0 0.0
    %2003 = vmatprep.subr.mxu0 0.0
    %2004 = vmatpush1.msra.mxu0 0.0
    %2005 = vmatprep.subr.mxu0 0.0
    %2006 = vmatpush1.msra.mxu0 %v605
    %2007 = vmatprep.subr.mxu0 0.0
    %2008 = vmatpush1.msra.mxu0 %v604
    %2009 = vmatprep.subr.mxu0 0.0
    %2010 = vmatpush1.msra.mxu0 %v603
    %2011 = vmatprep.subr.mxu0 0.0
    %2012 = vmatpush1.msra.mxu0 %v602
    %2013 = vmatprep.subr.mxu0 0.0
    %2014 = vmatpush2.msra.mxu0 0.0
    %2015 = vmatprep.subr.mxu0 0.0
    %2016 = vmatpush2.msra.mxu0 0.0
    %2017 = vmatprep.subr.mxu0 0.0
    %2018 = vmatpush2.msra.mxu0 0.0
    %2019 = vmatprep.subr.mxu0 0.0
    %2020 = vmatpush2.msra.mxu0 0.0
    %2021 = vmatprep.subr.mxu0 0.0
    %2022 = vmatpush2.msra.mxu0 0.0
    %2023 = vmatprep.subr.mxu0 0.0
    %2024 = vmatpush2.msra.mxu0 0.0
    %2025 = vmatprep.subr.mxu0 0.0
    %2026 = vmatpush2.msra.mxu0 0.0
    %2027 = vmatprep.subr.mxu0 0.0
    %2028 = vmatpush2.msra.mxu0 0.0
    %2029 = vmatprep.subr.mxu0 0.0
    %2030 = vmatpush2.msra.mxu0 0.0
    %2031 = vmatprep.subr.mxu0 0.0
    %2032 = vmatpush2.msra.mxu0 0.0
    %2033 = vmatprep.subr.mxu0 0.0
    %2034 = vmatpush2.msra.mxu0 0.0
    %2035 = vmatprep.subr.mxu0 0.0
    %2036 = vmatpush2.msra.mxu0 0.0
    %2037 = vmatprep.subr.mxu0 0.0
    %2038 = vmatpush2.msra.mxu0 0.0
    %2039 = vmatprep.subr.mxu0 0.0
    %2040 = vmatpush2.msra.mxu0 0.0
    %2041 = vmatprep.subr.mxu0 0.0
    %2042 = vmatpush2.msra.mxu0 0.0
    %2043 = vmatprep.subr.mxu0 0.0
    %2044 = vmatpush2.msra.mxu0 0.0
    %2045 = vmatprep.mubr.f32.mxu0 0.0
    %2046 = vmatmul.mubr.f32.gmra.mxu0 %v1900
    %v2047 = vpop.f32.mrf.mxu0
    %v2048 = vadd.f32 0.0, %v2047
    %v2049 = vpop.f32.mrf.mxu0
    %2050 = vdwg.mxu0
    %v2051 = vadd.f32 %v1980, %v2048
    %v2052 = vxor.u32 %v2051, 2147483648
    %v2053 = vmul.f32 %v2052, 1.442695
    %v2054 = vpow.pop %v2053
    %v2055 = vadd.f32 %v2054, 1.0
    %v2056 = vrcp.pop %v2055
    %v2057 = vmul.f32 1.0, %v2056
    %s2058 = scalar_lea.vmem [#allocation6], 32
    %v2059 = vld [vmem:[%s2058] sm:$0xff]
    %2060 = vmatprep.subr.mxu0 0.0
    %2061 = vmatpush1.msra.mxu0 0.0
    %2062 = vmatprep.subr.mxu0 0.0
    %2063 = vmatpush1.msra.mxu0 0.0
    %2064 = vmatprep.subr.mxu0 0.0
    %2065 = vmatpush1.msra.mxu0 0.0
    %2066 = vmatprep.subr.mxu0 0.0
    %2067 = vmatpush1.msra.mxu0 0.0
    %2068 = vmatprep.subr.mxu0 0.0
    %2069 = vmatpush1.msra.mxu0 0.0
    %2070 = vmatprep.subr.mxu0 0.0
    %2071 = vmatpush1.msra.mxu0 0.0
    %2072 = vmatprep.subr.mxu0 0.0
    %2073 = vmatpush1.msra.mxu0 0.0
    %2074 = vmatprep.subr.mxu0 0.0
    %2075 = vmatpush1.msra.mxu0 0.0
    %2076 = vmatprep.subr.mxu0 0.0
    %2077 = vmatpush1.msra.mxu0 0.0
    %2078 = vmatprep.subr.mxu0 0.0
    %2079 = vmatpush1.msra.mxu0 0.0
    %2080 = vmatprep.subr.mxu0 0.0
    %2081 = vmatpush1.msra.mxu0 0.0
    %2082 = vmatprep.subr.mxu0 0.0
    %2083 = vmatpush1.msra.mxu0 0.0
    %2084 = vmatprep.subr.mxu0 0.0
    %2085 = vmatpush1.msra.mxu0 %v610
    %2086 = vmatprep.subr.mxu0 0.0
    %2087 = vmatpush1.msra.mxu0 %v609
    %2088 = vmatprep.subr.mxu0 0.0
    %2089 = vmatpush1.msra.mxu0 %v608
    %2090 = vmatprep.subr.mxu0 0.0
    %2091 = vmatpush1.msra.mxu0 %v607
    %2092 = vmatprep.subr.mxu0 0.0
    %2093 = vmatpush2.msra.mxu0 0.0
    %2094 = vmatprep.subr.mxu0 0.0
    %2095 = vmatpush2.msra.mxu0 0.0
    %2096 = vmatprep.subr.mxu0 0.0
    %2097 = vmatpush2.msra.mxu0 0.0
    %2098 = vmatprep.subr.mxu0 0.0
    %2099 = vmatpush2.msra.mxu0 0.0
    %2100 = vmatprep.subr.mxu0 0.0
    %2101 = vmatpush2.msra.mxu0 0.0
    %2102 = vmatprep.subr.mxu0 0.0
    %2103 = vmatpush2.msra.mxu0 0.0
    %2104 = vmatprep.subr.mxu0 0.0
    %2105 = vmatpush2.msra.mxu0 0.0
    %2106 = vmatprep.subr.mxu0 0.0
    %2107 = vmatpush2.msra.mxu0 0.0
    %2108 = vmatprep.subr.mxu0 0.0
    %2109 = vmatpush2.msra.mxu0 0.0
    %2110 = vmatprep.subr.mxu0 0.0
    %2111 = vmatpush2.msra.mxu0 0.0
    %2112 = vmatprep.subr.mxu0 0.0
    %2113 = vmatpush2.msra.mxu0 0.0
    %2114 = vmatprep.subr.mxu0 0.0
    %2115 = vmatpush2.msra.mxu0 0.0
    %2116 = vmatprep.subr.mxu0 0.0
    %2117 = vmatpush2.msra.mxu0 0.0
    %2118 = vmatprep.subr.mxu0 0.0
    %2119 = vmatpush2.msra.mxu0 0.0
    %2120 = vmatprep.subr.mxu0 0.0
    %2121 = vmatpush2.msra.mxu0 0.0
    %2122 = vmatprep.subr.mxu0 0.0
    %2123 = vmatpush2.msra.mxu0 0.0
    %2124 = vmatprep.mubr.f32.mxu0 0.0
    %2125 = vmatmul.mubr.f32.gmra.mxu0 %v1900
    %v2126 = vpop.f32.mrf.mxu0
    %v2127 = vadd.f32 0.0, %v2126
    %v2128 = vpop.f32.mrf.mxu0
    %2129 = vdwg.mxu0
    %v2130 = vadd.f32 %v2059, %v2127
    %v2131 = vtanh.pop %v2130
    %s2132 = scalar_lea.vmem [#allocation7], 32
    %v2133 = vld [vmem:[%s2132] sm:$0xff]
    %2134 = vmatprep.subr.mxu0 0.0
    %2135 = vmatpush1.msra.mxu0 0.0
    %2136 = vmatprep.subr.mxu0 0.0
    %2137 = vmatpush1.msra.mxu0 0.0
    %2138 = vmatprep.subr.mxu0 0.0
    %2139 = vmatpush1.msra.mxu0 0.0
    %2140 = vmatprep.subr.mxu0 0.0
    %2141 = vmatpush1.msra.mxu0 0.0
    %2142 = vmatprep.subr.mxu0 0.0
    %2143 = vmatpush1.msra.mxu0 0.0
    %2144 = vmatprep.subr.mxu0 0.0
    %2145 = vmatpush1.msra.mxu0 0.0
    %2146 = vmatprep.subr.mxu0 0.0
    %2147 = vmatpush1.msra.mxu0 0.0
    %2148 = vmatprep.subr.mxu0 0.0
    %2149 = vmatpush1.msra.mxu0 0.0
    %2150 = vmatprep.subr.mxu0 0.0
    %2151 = vmatpush1.msra.mxu0 0.0
    %2152 = vmatprep.subr.mxu0 0.0
    %2153 = vmatpush1.msra.mxu0 0.0
    %2154 = vmatprep.subr.mxu0 0.0
    %2155 = vmatpush1.msra.mxu0 0.0
    %2156 = vmatprep.subr.mxu0 0.0
    %2157 = vmatpush1.msra.mxu0 0.0
    %2158 = vmatprep.subr.mxu0 0.0
    %2159 = vmatpush1.msra.mxu0 %v615
    %2160 = vmatprep.subr.mxu0 0.0
    %2161 = vmatpush1.msra.mxu0 %v614
    %2162 = vmatprep.subr.mxu0 0.0
    %2163 = vmatpush1.msra.mxu0 %v613
    %2164 = vmatprep.subr.mxu0 0.0
    %2165 = vmatpush1.msra.mxu0 %v612
    %2166 = vmatprep.subr.mxu0 0.0
    %2167 = vmatpush2.msra.mxu0 0.0
    %2168 = vmatprep.subr.mxu0 0.0
    %2169 = vmatpush2.msra.mxu0 0.0
    %2170 = vmatprep.subr.mxu0 0.0
    %2171 = vmatpush2.msra.mxu0 0.0
    %2172 = vmatprep.subr.mxu0 0.0
    %2173 = vmatpush2.msra.mxu0 0.0
    %2174 = vmatprep.subr.mxu0 0.0
    %2175 = vmatpush2.msra.mxu0 0.0
    %2176 = vmatprep.subr.mxu0 0.0
    %2177 = vmatpush2.msra.mxu0 0.0
    %2178 = vmatprep.subr.mxu0 0.0
    %2179 = vmatpush2.msra.mxu0 0.0
    %2180 = vmatprep.subr.mxu0 0.0
    %2181 = vmatpush2.msra.mxu0 0.0
    %2182 = vmatprep.subr.mxu0 0.0
    %2183 = vmatpush2.msra.mxu0 0.0
    %2184 = vmatprep.subr.mxu0 0.0
    %2185 = vmatpush2.msra.mxu0 0.0
    %2186 = vmatprep.subr.mxu0 0.0
    %2187 = vmatpush2.msra.mxu0 0.0
    %2188 = vmatprep.subr.mxu0 0.0
    %2189 = vmatpush2.msra.mxu0 0.0
    %2190 = vmatprep.subr.mxu0 0.0
    %2191 = vmatpush2.msra.mxu0 0.0
    %2192 = vmatprep.subr.mxu0 0.0
    %2193 = vmatpush2.msra.mxu0 0.0
    %2194 = vmatprep.subr.mxu0 0.0
    %2195 = vmatpush2.msra.mxu0 0.0
    %2196 = vmatprep.subr.mxu0 0.0
    %2197 = vmatpush2.msra.mxu0 0.0
    %2198 = vmatprep.mubr.f32.mxu0 0.0
    %2199 = vmatmul.mubr.f32.gmra.mxu0 %v1900
    %v2200 = vpop.f32.mrf.mxu0
    %v2201 = vadd.f32 0.0, %v2200
    %v2202 = vpop.f32.mrf.mxu0
    %2203 = vdwg.mxu0
    %v2204 = vadd.f32 %v2133, %v2201
    %v2205 = vxor.u32 %v2204, 2147483648
    %v2206 = vmul.f32 %v2205, 1.442695
    %v2207 = vpow.pop %v2206
    %v2208 = vadd.f32 %v2207, 1.0
    %v2209 = vrcp.pop %v2208
    %v2210 = vmul.f32 1.0, %v2209
    %v2211 = vmul.f32 %v2057, %v1892
    %v2212 = vmul.f32 %v1978, %v2131
    %v2213 = vadd.f32 %v2211, %v2212
    %v2214 = vtanh.pop %v2213
    %v2215 = vmul.f32 %v2210, %v2214
    %s2216 = scalar_lea.vmem [#allocation2], 32
    %2217 = vst.msk [vmem:[%s2216] sm:$0xff] %vm81, %v2215
    %s2218 = scalar_lea.vmem [#allocation4], 40
    %v2219 = vld [vmem:[%s2218] sm:$0xff]
    %v2221 = vsel %vm81, %v2215, 0
    %2223 = vmatprep.subr.mxu0 0.0
    %2224 = vmatpush1.msra.mxu0 0.0
    %2225 = vmatprep.subr.mxu0 0.0
    %2226 = vmatpush1.msra.mxu0 0.0
    %2227 = vmatprep.subr.mxu0 0.0
    %2228 = vmatpush1.msra.mxu0 0.0
    %2229 = vmatprep.subr.mxu0 0.0
    %2230 = vmatpush1.msra.mxu0 0.0
    %2231 = vmatprep.subr.mxu0 0.0
    %2232 = vmatpush1.msra.mxu0 0.0
    %2233 = vmatprep.subr.mxu0 0.0
    %2234 = vmatpush1.msra.mxu0 0.0
    %2235 = vmatprep.subr.mxu0 0.0
    %2236 = vmatpush1.msra.mxu0 0.0
    %2237 = vmatprep.subr.mxu0 0.0
    %2238 = vmatpush1.msra.mxu0 0.0
    %2239 = vmatprep.subr.mxu0 0.0
    %2240 = vmatpush1.msra.mxu0 0.0
    %2241 = vmatprep.subr.mxu0 0.0
    %2242 = vmatpush1.msra.mxu0 0.0
    %2243 = vmatprep.subr.mxu0 0.0
    %2244 = vmatpush1.msra.mxu0 0.0
    %2245 = vmatprep.subr.mxu0 0.0
    %2246 = vmatpush1.msra.mxu0 0.0
    %2247 = vmatprep.subr.mxu0 0.0
    %2248 = vmatpush1.msra.mxu0 %v600
    %2249 = vmatprep.subr.mxu0 0.0
    %2250 = vmatpush1.msra.mxu0 %v599
    %2251 = vmatprep.subr.mxu0 0.0
    %2252 = vmatpush1.msra.mxu0 %v598
    %2253 = vmatprep.subr.mxu0 0.0
    %2254 = vmatpush1.msra.mxu0 %v597
    %2255 = vmatprep.subr.mxu0 0.0
    %2256 = vmatpush2.msra.mxu0 0.0
    %2257 = vmatprep.subr.mxu0 0.0
    %2258 = vmatpush2.msra.mxu0 0.0
    %2259 = vmatprep.subr.mxu0 0.0
    %2260 = vmatpush2.msra.mxu0 0.0
    %2261 = vmatprep.subr.mxu0 0.0
    %2262 = vmatpush2.msra.mxu0 0.0
    %2263 = vmatprep.subr.mxu0 0.0
    %2264 = vmatpush2.msra.mxu0 0.0
    %2265 = vmatprep.subr.mxu0 0.0
    %2266 = vmatpush2.msra.mxu0 0.0
    %2267 = vmatprep.subr.mxu0 0.0
    %2268 = vmatpush2.msra.mxu0 0.0
    %2269 = vmatprep.subr.mxu0 0.0
    %2270 = vmatpush2.msra.mxu0 0.0
    %2271 = vmatprep.subr.mxu0 0.0
    %2272 = vmatpush2.msra.mxu0 0.0
    %2273 = vmatprep.subr.mxu0 0.0
    %2274 = vmatpush2.msra.mxu0 0.0
    %2275 = vmatprep.subr.mxu0 0.0
    %2276 = vmatpush2.msra.mxu0 0.0
    %2277 = vmatprep.subr.mxu0 0.0
    %2278 = vmatpush2.msra.mxu0 0.0
    %2279 = vmatprep.subr.mxu0 0.0
    %2280 = vmatpush2.msra.mxu0 0.0
    %2281 = vmatprep.subr.mxu0 0.0
    %2282 = vmatpush2.msra.mxu0 0.0
    %2283 = vmatprep.subr.mxu0 0.0
    %2284 = vmatpush2.msra.mxu0 0.0
    %2285 = vmatprep.subr.mxu0 0.0
    %2286 = vmatpush2.msra.mxu0 0.0
    %2287 = vmatprep.mubr.f32.mxu0 0.0
    %2288 = vmatmul.mubr.f32.gmra.mxu0 %v2221
    %v2289 = vpop.f32.mrf.mxu0
    %v2290 = vadd.f32 0.0, %v2289
    %v2291 = vpop.f32.mrf.mxu0
    %2292 = vdwg.mxu0
    %v2293 = vadd.f32 %v2219, %v2290
    %v2294 = vxor.u32 %v2293, 2147483648
    %v2295 = vmul.f32 %v2294, 1.442695
    %v2296 = vpow.pop %v2295
    %v2297 = vadd.f32 %v2296, 1.0
    %v2298 = vrcp.pop %v2297
    %v2299 = vmul.f32 1.0, %v2298
    %s2300 = scalar_lea.vmem [#allocation5], 40
    %v2301 = vld [vmem:[%s2300] sm:$0xff]
    %2302 = vmatprep.subr.mxu0 0.0
    %2303 = vmatpush1.msra.mxu0 0.0
    %2304 = vmatprep.subr.mxu0 0.0
    %2305 = vmatpush1.msra.mxu0 0.0
    %2306 = vmatprep.subr.mxu0 0.0
    %2307 = vmatpush1.msra.mxu0 0.0
    %2308 = vmatprep.subr.mxu0 0.0
    %2309 = vmatpush1.msra.mxu0 0.0
    %2310 = vmatprep.subr.mxu0 0.0
    %2311 = vmatpush1.msra.mxu0 0.0
    %2312 = vmatprep.subr.mxu0 0.0
    %2313 = vmatpush1.msra.mxu0 0.0
    %2314 = vmatprep.subr.mxu0 0.0
    %2315 = vmatpush1.msra.mxu0 0.0
    %2316 = vmatprep.subr.mxu0 0.0
    %2317 = vmatpush1.msra.mxu0 0.0
    %2318 = vmatprep.subr.mxu0 0.0
    %2319 = vmatpush1.msra.mxu0 0.0
    %2320 = vmatprep.subr.mxu0 0.0
    %2321 = vmatpush1.msra.mxu0 0.0
    %2322 = vmatprep.subr.mxu0 0.0
    %2323 = vmatpush1.msra.mxu0 0.0
    %2324 = vmatprep.subr.mxu0 0.0
    %2325 = vmatpush1.msra.mxu0 0.0
    %2326 = vmatprep.subr.mxu0 0.0
    %2327 = vmatpush1.msra.mxu0 %v605
    %2328 = vmatprep.subr.mxu0 0.0
    %2329 = vmatpush1.msra.mxu0 %v604
    %2330 = vmatprep.subr.mxu0 0.0
    %2331 = vmatpush1.msra.mxu0 %v603
    %2332 = vmatprep.subr.mxu0 0.0
    %2333 = vmatpush1.msra.mxu0 %v602
    %2334 = vmatprep.subr.mxu0 0.0
    %2335 = vmatpush2.msra.mxu0 0.0
    %2336 = vmatprep.subr.mxu0 0.0
    %2337 = vmatpush2.msra.mxu0 0.0
    %2338 = vmatprep.subr.mxu0 0.0
    %2339 = vmatpush2.msra.mxu0 0.0
    %2340 = vmatprep.subr.mxu0 0.0
    %2341 = vmatpush2.msra.mxu0 0.0
    %2342 = vmatprep.subr.mxu0 0.0
    %2343 = vmatpush2.msra.mxu0 0.0
    %2344 = vmatprep.subr.mxu0 0.0
    %2345 = vmatpush2.msra.mxu0 0.0
    %2346 = vmatprep.subr.mxu0 0.0
    %2347 = vmatpush2.msra.mxu0 0.0
    %2348 = vmatprep.subr.mxu0 0.0
    %2349 = vmatpush2.msra.mxu0 0.0
    %2350 = vmatprep.subr.mxu0 0.0
    %2351 = vmatpush2.msra.mxu0 0.0
    %2352 = vmatprep.subr.mxu0 0.0
    %2353 = vmatpush2.msra.mxu0 0.0
    %2354 = vmatprep.subr.mxu0 0.0
    %2355 = vmatpush2.msra.mxu0 0.0
    %2356 = vmatprep.subr.mxu0 0.0
    %2357 = vmatpush2.msra.mxu0 0.0
    %2358 = vmatprep.subr.mxu0 0.0
    %2359 = vmatpush2.msra.mxu0 0.0
    %2360 = vmatprep.subr.mxu0 0.0
    %2361 = vmatpush2.msra.mxu0 0.0
    %2362 = vmatprep.subr.mxu0 0.0
    %2363 = vmatpush2.msra.mxu0 0.0
    %2364 = vmatprep.subr.mxu0 0.0
    %2365 = vmatpush2.msra.mxu0 0.0
    %2366 = vmatprep.mubr.f32.mxu0 0.0
    %2367 = vmatmul.mubr.f32.gmra.mxu0 %v2221
    %v2368 = vpop.f32.mrf.mxu0
    %v2369 = vadd.f32 0.0, %v2368
    %v2370 = vpop.f32.mrf.mxu0
    %2371 = vdwg.mxu0
    %v2372 = vadd.f32 %v2301, %v2369
    %v2373 = vxor.u32 %v2372, 2147483648
    %v2374 = vmul.f32 %v2373, 1.442695
    %v2375 = vpow.pop %v2374
    %v2376 = vadd.f32 %v2375, 1.0
    %v2377 = vrcp.pop %v2376
    %v2378 = vmul.f32 1.0, %v2377
    %s2379 = scalar_lea.vmem [#allocation6], 40
    %v2380 = vld [vmem:[%s2379] sm:$0xff]
    %2381 = vmatprep.subr.mxu0 0.0
    %2382 = vmatpush1.msra.mxu0 0.0
    %2383 = vmatprep.subr.mxu0 0.0
    %2384 = vmatpush1.msra.mxu0 0.0
    %2385 = vmatprep.subr.mxu0 0.0
    %2386 = vmatpush1.msra.mxu0 0.0
    %2387 = vmatprep.subr.mxu0 0.0
    %2388 = vmatpush1.msra.mxu0 0.0
    %2389 = vmatprep.subr.mxu0 0.0
    %2390 = vmatpush1.msra.mxu0 0.0
    %2391 = vmatprep.subr.mxu0 0.0
    %2392 = vmatpush1.msra.mxu0 0.0
    %2393 = vmatprep.subr.mxu0 0.0
    %2394 = vmatpush1.msra.mxu0 0.0
    %2395 = vmatprep.subr.mxu0 0.0
    %2396 = vmatpush1.msra.mxu0 0.0
    %2397 = vmatprep.subr.mxu0 0.0
    %2398 = vmatpush1.msra.mxu0 0.0
    %2399 = vmatprep.subr.mxu0 0.0
    %2400 = vmatpush1.msra.mxu0 0.0
    %2401 = vmatprep.subr.mxu0 0.0
    %2402 = vmatpush1.msra.mxu0 0.0
    %2403 = vmatprep.subr.mxu0 0.0
    %2404 = vmatpush1.msra.mxu0 0.0
    %2405 = vmatprep.subr.mxu0 0.0
    %2406 = vmatpush1.msra.mxu0 %v610
    %2407 = vmatprep.subr.mxu0 0.0
    %2408 = vmatpush1.msra.mxu0 %v609
    %2409 = vmatprep.subr.mxu0 0.0
    %2410 = vmatpush1.msra.mxu0 %v608
    %2411 = vmatprep.subr.mxu0 0.0
    %2412 = vmatpush1.msra.mxu0 %v607
    %2413 = vmatprep.subr.mxu0 0.0
    %2414 = vmatpush2.msra.mxu0 0.0
    %2415 = vmatprep.subr.mxu0 0.0
    %2416 = vmatpush2.msra.mxu0 0.0
    %2417 = vmatprep.subr.mxu0 0.0
    %2418 = vmatpush2.msra.mxu0 0.0
    %2419 = vmatprep.subr.mxu0 0.0
    %2420 = vmatpush2.msra.mxu0 0.0
    %2421 = vmatprep.subr.mxu0 0.0
    %2422 = vmatpush2.msra.mxu0 0.0
    %2423 = vmatprep.subr.mxu0 0.0
    %2424 = vmatpush2.msra.mxu0 0.0
    %2425 = vmatprep.subr.mxu0 0.0
    %2426 = vmatpush2.msra.mxu0 0.0
    %2427 = vmatprep.subr.mxu0 0.0
    %2428 = vmatpush2.msra.mxu0 0.0
    %2429 = vmatprep.subr.mxu0 0.0
    %2430 = vmatpush2.msra.mxu0 0.0
    %2431 = vmatprep.subr.mxu0 0.0
    %2432 = vmatpush2.msra.mxu0 0.0
    %2433 = vmatprep.subr.mxu0 0.0
    %2434 = vmatpush2.msra.mxu0 0.0
    %2435 = vmatprep.subr.mxu0 0.0
    %2436 = vmatpush2.msra.mxu0 0.0
    %2437 = vmatprep.subr.mxu0 0.0
    %2438 = vmatpush2.msra.mxu0 0.0
    %2439 = vmatprep.subr.mxu0 0.0
    %2440 = vmatpush2.msra.mxu0 0.0
    %2441 = vmatprep.subr.mxu0 0.0
    %2442 = vmatpush2.msra.mxu0 0.0
    %2443 = vmatprep.subr.mxu0 0.0
    %2444 = vmatpush2.msra.mxu0 0.0
    %2445 = vmatprep.mubr.f32.mxu0 0.0
    %2446 = vmatmul.mubr.f32.gmra.mxu0 %v2221
    %v2447 = vpop.f32.mrf.mxu0
    %v2448 = vadd.f32 0.0, %v2447
    %v2449 = vpop.f32.mrf.mxu0
    %2450 = vdwg.mxu0
    %v2451 = vadd.f32 %v2380, %v2448
    %v2452 = vtanh.pop %v2451
    %s2453 = scalar_lea.vmem [#allocation7], 40
    %v2454 = vld [vmem:[%s2453] sm:$0xff]
    %2455 = vmatprep.subr.mxu0 0.0
    %2456 = vmatpush1.msra.mxu0 0.0
    %2457 = vmatprep.subr.mxu0 0.0
    %2458 = vmatpush1.msra.mxu0 0.0
    %2459 = vmatprep.subr.mxu0 0.0
    %2460 = vmatpush1.msra.mxu0 0.0
    %2461 = vmatprep.subr.mxu0 0.0
    %2462 = vmatpush1.msra.mxu0 0.0
    %2463 = vmatprep.subr.mxu0 0.0
    %2464 = vmatpush1.msra.mxu0 0.0
    %2465 = vmatprep.subr.mxu0 0.0
    %2466 = vmatpush1.msra.mxu0 0.0
    %2467 = vmatprep.subr.mxu0 0.0
    %2468 = vmatpush1.msra.mxu0 0.0
    %2469 = vmatprep.subr.mxu0 0.0
    %2470 = vmatpush1.msra.mxu0 0.0
    %2471 = vmatprep.subr.mxu0 0.0
    %2472 = vmatpush1.msra.mxu0 0.0
    %2473 = vmatprep.subr.mxu0 0.0
    %2474 = vmatpush1.msra.mxu0 0.0
    %2475 = vmatprep.subr.mxu0 0.0
    %2476 = vmatpush1.msra.mxu0 0.0
    %2477 = vmatprep.subr.mxu0 0.0
    %2478 = vmatpush1.msra.mxu0 0.0
    %2479 = vmatprep.subr.mxu0 0.0
    %2480 = vmatpush1.msra.mxu0 %v615
    %2481 = vmatprep.subr.mxu0 0.0
    %2482 = vmatpush1.msra.mxu0 %v614
    %2483 = vmatprep.subr.mxu0 0.0
    %2484 = vmatpush1.msra.mxu0 %v613
    %2485 = vmatprep.subr.mxu0 0.0
    %2486 = vmatpush1.msra.mxu0 %v612
    %2487 = vmatprep.subr.mxu0 0.0
    %2488 = vmatpush2.msra.mxu0 0.0
    %2489 = vmatprep.subr.mxu0 0.0
    %2490 = vmatpush2.msra.mxu0 0.0
    %2491 = vmatprep.subr.mxu0 0.0
    %2492 = vmatpush2.msra.mxu0 0.0
    %2493 = vmatprep.subr.mxu0 0.0
    %2494 = vmatpush2.msra.mxu0 0.0
    %2495 = vmatprep.subr.mxu0 0.0
    %2496 = vmatpush2.msra.mxu0 0.0
    %2497 = vmatprep.subr.mxu0 0.0
    %2498 = vmatpush2.msra.mxu0 0.0
    %2499 = vmatprep.subr.mxu0 0.0
    %2500 = vmatpush2.msra.mxu0 0.0
    %2501 = vmatprep.subr.mxu0 0.0
    %2502 = vmatpush2.msra.mxu0 0.0
    %2503 = vmatprep.subr.mxu0 0.0
    %2504 = vmatpush2.msra.mxu0 0.0
    %2505 = vmatprep.subr.mxu0 0.0
    %2506 = vmatpush2.msra.mxu0 0.0
    %2507 = vmatprep.subr.mxu0 0.0
    %2508 = vmatpush2.msra.mxu0 0.0
    %2509 = vmatprep.subr.mxu0 0.0
    %2510 = vmatpush2.msra.mxu0 0.0
    %2511 = vmatprep.subr.mxu0 0.0
    %2512 = vmatpush2.msra.mxu0 0.0
    %2513 = vmatprep.subr.mxu0 0.0
    %2514 = vmatpush2.msra.mxu0 0.0
    %2515 = vmatprep.subr.mxu0 0.0
    %2516 = vmatpush2.msra.mxu0 0.0
    %2517 = vmatprep.subr.mxu0 0.0
    %2518 = vmatpush2.msra.mxu0 0.0
    %2519 = vmatprep.mubr.f32.mxu0 0.0
    %2520 = vmatmul.mubr.f32.gmra.mxu0 %v2221
    %v2521 = vpop.f32.mrf.mxu0
    %v2522 = vadd.f32 0.0, %v2521
    %v2523 = vpop.f32.mrf.mxu0
    %2524 = vdwg.mxu0
    %v2525 = vadd.f32 %v2454, %v2522
    %v2526 = vxor.u32 %v2525, 2147483648
    %v2527 = vmul.f32 %v2526, 1.442695
    %v2528 = vpow.pop %v2527
    %v2529 = vadd.f32 %v2528, 1.0
    %v2530 = vrcp.pop %v2529
    %v2531 = vmul.f32 1.0, %v2530
    %v2532 = vmul.f32 %v2378, %v2213
    %v2533 = vmul.f32 %v2299, %v2452
    %v2534 = vadd.f32 %v2532, %v2533
    %v2535 = vtanh.pop %v2534
    %v2536 = vmul.f32 %v2531, %v2535
    %s2537 = scalar_lea.vmem [#allocation2], 40
    %2538 = vst.msk [vmem:[%s2537] sm:$0xff] %vm81, %v2536
    %s2539 = scalar_lea.vmem [#allocation4], 48
    %v2540 = vld [vmem:[%s2539] sm:$0xff]
    %v2542 = vsel %vm81, %v2536, 0
    %2544 = vmatprep.subr.mxu0 0.0
    %2545 = vmatpush1.msra.mxu0 0.0
    %2546 = vmatprep.subr.mxu0 0.0
    %2547 = vmatpush1.msra.mxu0 0.0
    %2548 = vmatprep.subr.mxu0 0.0
    %2549 = vmatpush1.msra.mxu0 0.0
    %2550 = vmatprep.subr.mxu0 0.0
    %2551 = vmatpush1.msra.mxu0 0.0
    %2552 = vmatprep.subr.mxu0 0.0
    %2553 = vmatpush1.msra.mxu0 0.0
    %2554 = vmatprep.subr.mxu0 0.0
    %2555 = vmatpush1.msra.mxu0 0.0
    %2556 = vmatprep.subr.mxu0 0.0
    %2557 = vmatpush1.msra.mxu0 0.0
    %2558 = vmatprep.subr.mxu0 0.0
    %2559 = vmatpush1.msra.mxu0 0.0
    %2560 = vmatprep.subr.mxu0 0.0
    %2561 = vmatpush1.msra.mxu0 0.0
    %2562 = vmatprep.subr.mxu0 0.0
    %2563 = vmatpush1.msra.mxu0 0.0
    %2564 = vmatprep.subr.mxu0 0.0
    %2565 = vmatpush1.msra.mxu0 0.0
    %2566 = vmatprep.subr.mxu0 0.0
    %2567 = vmatpush1.msra.mxu0 0.0
    %2568 = vmatprep.subr.mxu0 0.0
    %2569 = vmatpush1.msra.mxu0 %v600
    %2570 = vmatprep.subr.mxu0 0.0
    %2571 = vmatpush1.msra.mxu0 %v599
    %2572 = vmatprep.subr.mxu0 0.0
    %2573 = vmatpush1.msra.mxu0 %v598
    %2574 = vmatprep.subr.mxu0 0.0
    %2575 = vmatpush1.msra.mxu0 %v597
    %2576 = vmatprep.subr.mxu0 0.0
    %2577 = vmatpush2.msra.mxu0 0.0
    %2578 = vmatprep.subr.mxu0 0.0
    %2579 = vmatpush2.msra.mxu0 0.0
    %2580 = vmatprep.subr.mxu0 0.0
    %2581 = vmatpush2.msra.mxu0 0.0
    %2582 = vmatprep.subr.mxu0 0.0
    %2583 = vmatpush2.msra.mxu0 0.0
    %2584 = vmatprep.subr.mxu0 0.0
    %2585 = vmatpush2.msra.mxu0 0.0
    %2586 = vmatprep.subr.mxu0 0.0
    %2587 = vmatpush2.msra.mxu0 0.0
    %2588 = vmatprep.subr.mxu0 0.0
    %2589 = vmatpush2.msra.mxu0 0.0
    %2590 = vmatprep.subr.mxu0 0.0
    %2591 = vmatpush2.msra.mxu0 0.0
    %2592 = vmatprep.subr.mxu0 0.0
    %2593 = vmatpush2.msra.mxu0 0.0
    %2594 = vmatprep.subr.mxu0 0.0
    %2595 = vmatpush2.msra.mxu0 0.0
    %2596 = vmatprep.subr.mxu0 0.0
    %2597 = vmatpush2.msra.mxu0 0.0
    %2598 = vmatprep.subr.mxu0 0.0
    %2599 = vmatpush2.msra.mxu0 0.0
    %2600 = vmatprep.subr.mxu0 0.0
    %2601 = vmatpush2.msra.mxu0 0.0
    %2602 = vmatprep.subr.mxu0 0.0
    %2603 = vmatpush2.msra.mxu0 0.0
    %2604 = vmatprep.subr.mxu0 0.0
    %2605 = vmatpush2.msra.mxu0 0.0
    %2606 = vmatprep.subr.mxu0 0.0
    %2607 = vmatpush2.msra.mxu0 0.0
    %2608 = vmatprep.mubr.f32.mxu0 0.0
    %2609 = vmatmul.mubr.f32.gmra.mxu0 %v2542
    %v2610 = vpop.f32.mrf.mxu0
    %v2611 = vadd.f32 0.0, %v2610
    %v2612 = vpop.f32.mrf.mxu0
    %2613 = vdwg.mxu0
    %v2614 = vadd.f32 %v2540, %v2611
    %v2615 = vxor.u32 %v2614, 2147483648
    %v2616 = vmul.f32 %v2615, 1.442695
    %v2617 = vpow.pop %v2616
    %v2618 = vadd.f32 %v2617, 1.0
    %v2619 = vrcp.pop %v2618
    %v2620 = vmul.f32 1.0, %v2619
    %s2621 = scalar_lea.vmem [#allocation5], 48
    %v2622 = vld [vmem:[%s2621] sm:$0xff]
    %2623 = vmatprep.subr.mxu0 0.0
    %2624 = vmatpush1.msra.mxu0 0.0
    %2625 = vmatprep.subr.mxu0 0.0
    %2626 = vmatpush1.msra.mxu0 0.0
    %2627 = vmatprep.subr.mxu0 0.0
    %2628 = vmatpush1.msra.mxu0 0.0
    %2629 = vmatprep.subr.mxu0 0.0
    %2630 = vmatpush1.msra.mxu0 0.0
    %2631 = vmatprep.subr.mxu0 0.0
    %2632 = vmatpush1.msra.mxu0 0.0
    %2633 = vmatprep.subr.mxu0 0.0
    %2634 = vmatpush1.msra.mxu0 0.0
    %2635 = vmatprep.subr.mxu0 0.0
    %2636 = vmatpush1.msra.mxu0 0.0
    %2637 = vmatprep.subr.mxu0 0.0
    %2638 = vmatpush1.msra.mxu0 0.0
    %2639 = vmatprep.subr.mxu0 0.0
    %2640 = vmatpush1.msra.mxu0 0.0
    %2641 = vmatprep.subr.mxu0 0.0
    %2642 = vmatpush1.msra.mxu0 0.0
    %2643 = vmatprep.subr.mxu0 0.0
    %2644 = vmatpush1.msra.mxu0 0.0
    %2645 = vmatprep.subr.mxu0 0.0
    %2646 = vmatpush1.msra.mxu0 0.0
    %2647 = vmatprep.subr.mxu0 0.0
    %2648 = vmatpush1.msra.mxu0 %v605
    %2649 = vmatprep.subr.mxu0 0.0
    %2650 = vmatpush1.msra.mxu0 %v604
    %2651 = vmatprep.subr.mxu0 0.0
    %2652 = vmatpush1.msra.mxu0 %v603
    %2653 = vmatprep.subr.mxu0 0.0
    %2654 = vmatpush1.msra.mxu0 %v602
    %2655 = vmatprep.subr.mxu0 0.0
    %2656 = vmatpush2.msra.mxu0 0.0
    %2657 = vmatprep.subr.mxu0 0.0
    %2658 = vmatpush2.msra.mxu0 0.0
    %2659 = vmatprep.subr.mxu0 0.0
    %2660 = vmatpush2.msra.mxu0 0.0
    %2661 = vmatprep.subr.mxu0 0.0
    %2662 = vmatpush2.msra.mxu0 0.0
    %2663 = vmatprep.subr.mxu0 0.0
    %2664 = vmatpush2.msra.mxu0 0.0
    %2665 = vmatprep.subr.mxu0 0.0
    %2666 = vmatpush2.msra.mxu0 0.0
    %2667 = vmatprep.subr.mxu0 0.0
    %2668 = vmatpush2.msra.mxu0 0.0
    %2669 = vmatprep.subr.mxu0 0.0
    %2670 = vmatpush2.msra.mxu0 0.0
    %2671 = vmatprep.subr.mxu0 0.0
    %2672 = vmatpush2.msra.mxu0 0.0
    %2673 = vmatprep.subr.mxu0 0.0
    %2674 = vmatpush2.msra.mxu0 0.0
    %2675 = vmatprep.subr.mxu0 0.0
    %2676 = vmatpush2.msra.mxu0 0.0
    %2677 = vmatprep.subr.mxu0 0.0
    %2678 = vmatpush2.msra.mxu0 0.0
    %2679 = vmatprep.subr.mxu0 0.0
    %2680 = vmatpush2.msra.mxu0 0.0
    %2681 = vmatprep.subr.mxu0 0.0
    %2682 = vmatpush2.msra.mxu0 0.0
    %2683 = vmatprep.subr.mxu0 0.0
    %2684 = vmatpush2.msra.mxu0 0.0
    %2685 = vmatprep.subr.mxu0 0.0
    %2686 = vmatpush2.msra.mxu0 0.0
    %2687 = vmatprep.mubr.f32.mxu0 0.0
    %2688 = vmatmul.mubr.f32.gmra.mxu0 %v2542
    %v2689 = vpop.f32.mrf.mxu0
    %v2690 = vadd.f32 0.0, %v2689
    %v2691 = vpop.f32.mrf.mxu0
    %2692 = vdwg.mxu0
    %v2693 = vadd.f32 %v2622, %v2690
    %v2694 = vxor.u32 %v2693, 2147483648
    %v2695 = vmul.f32 %v2694, 1.442695
    %v2696 = vpow.pop %v2695
    %v2697 = vadd.f32 %v2696, 1.0
    %v2698 = vrcp.pop %v2697
    %v2699 = vmul.f32 1.0, %v2698
    %s2700 = scalar_lea.vmem [#allocation6], 48
    %v2701 = vld [vmem:[%s2700] sm:$0xff]
    %2702 = vmatprep.subr.mxu0 0.0
    %2703 = vmatpush1.msra.mxu0 0.0
    %2704 = vmatprep.subr.mxu0 0.0
    %2705 = vmatpush1.msra.mxu0 0.0
    %2706 = vmatprep.subr.mxu0 0.0
    %2707 = vmatpush1.msra.mxu0 0.0
    %2708 = vmatprep.subr.mxu0 0.0
    %2709 = vmatpush1.msra.mxu0 0.0
    %2710 = vmatprep.subr.mxu0 0.0
    %2711 = vmatpush1.msra.mxu0 0.0
    %2712 = vmatprep.subr.mxu0 0.0
    %2713 = vmatpush1.msra.mxu0 0.0
    %2714 = vmatprep.subr.mxu0 0.0
    %2715 = vmatpush1.msra.mxu0 0.0
    %2716 = vmatprep.subr.mxu0 0.0
    %2717 = vmatpush1.msra.mxu0 0.0
    %2718 = vmatprep.subr.mxu0 0.0
    %2719 = vmatpush1.msra.mxu0 0.0
    %2720 = vmatprep.subr.mxu0 0.0
    %2721 = vmatpush1.msra.mxu0 0.0
    %2722 = vmatprep.subr.mxu0 0.0
    %2723 = vmatpush1.msra.mxu0 0.0
    %2724 = vmatprep.subr.mxu0 0.0
    %2725 = vmatpush1.msra.mxu0 0.0
    %2726 = vmatprep.subr.mxu0 0.0
    %2727 = vmatpush1.msra.mxu0 %v610
    %2728 = vmatprep.subr.mxu0 0.0
    %2729 = vmatpush1.msra.mxu0 %v609
    %2730 = vmatprep.subr.mxu0 0.0
    %2731 = vmatpush1.msra.mxu0 %v608
    %2732 = vmatprep.subr.mxu0 0.0
    %2733 = vmatpush1.msra.mxu0 %v607
    %2734 = vmatprep.subr.mxu0 0.0
    %2735 = vmatpush2.msra.mxu0 0.0
    %2736 = vmatprep.subr.mxu0 0.0
    %2737 = vmatpush2.msra.mxu0 0.0
    %2738 = vmatprep.subr.mxu0 0.0
    %2739 = vmatpush2.msra.mxu0 0.0
    %2740 = vmatprep.subr.mxu0 0.0
    %2741 = vmatpush2.msra.mxu0 0.0
    %2742 = vmatprep.subr.mxu0 0.0
    %2743 = vmatpush2.msra.mxu0 0.0
    %2744 = vmatprep.subr.mxu0 0.0
    %2745 = vmatpush2.msra.mxu0 0.0
    %2746 = vmatprep.subr.mxu0 0.0
    %2747 = vmatpush2.msra.mxu0 0.0
    %2748 = vmatprep.subr.mxu0 0.0
    %2749 = vmatpush2.msra.mxu0 0.0
    %2750 = vmatprep.subr.mxu0 0.0
    %2751 = vmatpush2.msra.mxu0 0.0
    %2752 = vmatprep.subr.mxu0 0.0
    %2753 = vmatpush2.msra.mxu0 0.0
    %2754 = vmatprep.subr.mxu0 0.0
    %2755 = vmatpush2.msra.mxu0 0.0
    %2756 = vmatprep.subr.mxu0 0.0
    %2757 = vmatpush2.msra.mxu0 0.0
    %2758 = vmatprep.subr.mxu0 0.0
    %2759 = vmatpush2.msra.mxu0 0.0
    %2760 = vmatprep.subr.mxu0 0.0
    %2761 = vmatpush2.msra.mxu0 0.0
    %2762 = vmatprep.subr.mxu0 0.0
    %2763 = vmatpush2.msra.mxu0 0.0
    %2764 = vmatprep.subr.mxu0 0.0
    %2765 = vmatpush2.msra.mxu0 0.0
    %2766 = vmatprep.mubr.f32.mxu0 0.0
    %2767 = vmatmul.mubr.f32.gmra.mxu0 %v2542
    %v2768 = vpop.f32.mrf.mxu0
    %v2769 = vadd.f32 0.0, %v2768
    %v2770 = vpop.f32.mrf.mxu0
    %2771 = vdwg.mxu0
    %v2772 = vadd.f32 %v2701, %v2769
    %v2773 = vtanh.pop %v2772
    %s2774 = scalar_lea.vmem [#allocation7], 48
    %v2775 = vld [vmem:[%s2774] sm:$0xff]
    %2776 = vmatprep.subr.mxu0 0.0
    %2777 = vmatpush1.msra.mxu0 0.0
    %2778 = vmatprep.subr.mxu0 0.0
    %2779 = vmatpush1.msra.mxu0 0.0
    %2780 = vmatprep.subr.mxu0 0.0
    %2781 = vmatpush1.msra.mxu0 0.0
    %2782 = vmatprep.subr.mxu0 0.0
    %2783 = vmatpush1.msra.mxu0 0.0
    %2784 = vmatprep.subr.mxu0 0.0
    %2785 = vmatpush1.msra.mxu0 0.0
    %2786 = vmatprep.subr.mxu0 0.0
    %2787 = vmatpush1.msra.mxu0 0.0
    %2788 = vmatprep.subr.mxu0 0.0
    %2789 = vmatpush1.msra.mxu0 0.0
    %2790 = vmatprep.subr.mxu0 0.0
    %2791 = vmatpush1.msra.mxu0 0.0
    %2792 = vmatprep.subr.mxu0 0.0
    %2793 = vmatpush1.msra.mxu0 0.0
    %2794 = vmatprep.subr.mxu0 0.0
    %2795 = vmatpush1.msra.mxu0 0.0
    %2796 = vmatprep.subr.mxu0 0.0
    %2797 = vmatpush1.msra.mxu0 0.0
    %2798 = vmatprep.subr.mxu0 0.0
    %2799 = vmatpush1.msra.mxu0 0.0
    %2800 = vmatprep.subr.mxu0 0.0
    %2801 = vmatpush1.msra.mxu0 %v615
    %2802 = vmatprep.subr.mxu0 0.0
    %2803 = vmatpush1.msra.mxu0 %v614
    %2804 = vmatprep.subr.mxu0 0.0
    %2805 = vmatpush1.msra.mxu0 %v613
    %2806 = vmatprep.subr.mxu0 0.0
    %2807 = vmatpush1.msra.mxu0 %v612
    %2808 = vmatprep.subr.mxu0 0.0
    %2809 = vmatpush2.msra.mxu0 0.0
    %2810 = vmatprep.subr.mxu0 0.0
    %2811 = vmatpush2.msra.mxu0 0.0
    %2812 = vmatprep.subr.mxu0 0.0
    %2813 = vmatpush2.msra.mxu0 0.0
    %2814 = vmatprep.subr.mxu0 0.0
    %2815 = vmatpush2.msra.mxu0 0.0
    %2816 = vmatprep.subr.mxu0 0.0
    %2817 = vmatpush2.msra.mxu0 0.0
    %2818 = vmatprep.subr.mxu0 0.0
    %2819 = vmatpush2.msra.mxu0 0.0
    %2820 = vmatprep.subr.mxu0 0.0
    %2821 = vmatpush2.msra.mxu0 0.0
    %2822 = vmatprep.subr.mxu0 0.0
    %2823 = vmatpush2.msra.mxu0 0.0
    %2824 = vmatprep.subr.mxu0 0.0
    %2825 = vmatpush2.msra.mxu0 0.0
    %2826 = vmatprep.subr.mxu0 0.0
    %2827 = vmatpush2.msra.mxu0 0.0
    %2828 = vmatprep.subr.mxu0 0.0
    %2829 = vmatpush2.msra.mxu0 0.0
    %2830 = vmatprep.subr.mxu0 0.0
    %2831 = vmatpush2.msra.mxu0 0.0
    %2832 = vmatprep.subr.mxu0 0.0
    %2833 = vmatpush2.msra.mxu0 0.0
    %2834 = vmatprep.subr.mxu0 0.0
    %2835 = vmatpush2.msra.mxu0 0.0
    %2836 = vmatprep.subr.mxu0 0.0
    %2837 = vmatpush2.msra.mxu0 0.0
    %2838 = vmatprep.subr.mxu0 0.0
    %2839 = vmatpush2.msra.mxu0 0.0
    %2840 = vmatprep.mubr.f32.mxu0 0.0
    %2841 = vmatmul.mubr.f32.gmra.mxu0 %v2542
    %v2842 = vpop.f32.mrf.mxu0
    %v2843 = vadd.f32 0.0, %v2842
    %v2844 = vpop.f32.mrf.mxu0
    %2845 = vdwg.mxu0
    %v2846 = vadd.f32 %v2775, %v2843
    %v2847 = vxor.u32 %v2846, 2147483648
    %v2848 = vmul.f32 %v2847, 1.442695
    %v2849 = vpow.pop %v2848
    %v2850 = vadd.f32 %v2849, 1.0
    %v2851 = vrcp.pop %v2850
    %v2852 = vmul.f32 1.0, %v2851
    %v2853 = vmul.f32 %v2699, %v2534
    %v2854 = vmul.f32 %v2620, %v2773
    %v2855 = vadd.f32 %v2853, %v2854
    %v2856 = vtanh.pop %v2855
    %v2857 = vmul.f32 %v2852, %v2856
    %s2858 = scalar_lea.vmem [#allocation2], 48
    %2859 = vst.msk [vmem:[%s2858] sm:$0xff] %vm81, %v2857
    %s2860 = scalar_lea.vmem [#allocation4], 56
    %v2861 = vld [vmem:[%s2860] sm:$0xff]
    %v2863 = vsel %vm81, %v2857, 0
    %2865 = vmatprep.subr.mxu0 0.0
    %2866 = vmatpush1.msra.mxu0 0.0
    %2867 = vmatprep.subr.mxu0 0.0
    %2868 = vmatpush1.msra.mxu0 0.0
    %2869 = vmatprep.subr.mxu0 0.0
    %2870 = vmatpush1.msra.mxu0 0.0
    %2871 = vmatprep.subr.mxu0 0.0
    %2872 = vmatpush1.msra.mxu0 0.0
    %2873 = vmatprep.subr.mxu0 0.0
    %2874 = vmatpush1.msra.mxu0 0.0
    %2875 = vmatprep.subr.mxu0 0.0
    %2876 = vmatpush1.msra.mxu0 0.0
    %2877 = vmatprep.subr.mxu0 0.0
    %2878 = vmatpush1.msra.mxu0 0.0
    %2879 = vmatprep.subr.mxu0 0.0
    %2880 = vmatpush1.msra.mxu0 0.0
    %2881 = vmatprep.subr.mxu0 0.0
    %2882 = vmatpush1.msra.mxu0 0.0
    %2883 = vmatprep.subr.mxu0 0.0
    %2884 = vmatpush1.msra.mxu0 0.0
    %2885 = vmatprep.subr.mxu0 0.0
    %2886 = vmatpush1.msra.mxu0 0.0
    %2887 = vmatprep.subr.mxu0 0.0
    %2888 = vmatpush1.msra.mxu0 0.0
    %2889 = vmatprep.subr.mxu0 0.0
    %2890 = vmatpush1.msra.mxu0 %v600
    %2891 = vmatprep.subr.mxu0 0.0
    %2892 = vmatpush1.msra.mxu0 %v599
    %2893 = vmatprep.subr.mxu0 0.0
    %2894 = vmatpush1.msra.mxu0 %v598
    %2895 = vmatprep.subr.mxu0 0.0
    %2896 = vmatpush1.msra.mxu0 %v597
    %2897 = vmatprep.subr.mxu0 0.0
    %2898 = vmatpush2.msra.mxu0 0.0
    %2899 = vmatprep.subr.mxu0 0.0
    %2900 = vmatpush2.msra.mxu0 0.0
    %2901 = vmatprep.subr.mxu0 0.0
    %2902 = vmatpush2.msra.mxu0 0.0
    %2903 = vmatprep.subr.mxu0 0.0
    %2904 = vmatpush2.msra.mxu0 0.0
    %2905 = vmatprep.subr.mxu0 0.0
    %2906 = vmatpush2.msra.mxu0 0.0
    %2907 = vmatprep.subr.mxu0 0.0
    %2908 = vmatpush2.msra.mxu0 0.0
    %2909 = vmatprep.subr.mxu0 0.0
    %2910 = vmatpush2.msra.mxu0 0.0
    %2911 = vmatprep.subr.mxu0 0.0
    %2912 = vmatpush2.msra.mxu0 0.0
    %2913 = vmatprep.subr.mxu0 0.0
    %2914 = vmatpush2.msra.mxu0 0.0
    %2915 = vmatprep.subr.mxu0 0.0
    %2916 = vmatpush2.msra.mxu0 0.0
    %2917 = vmatprep.subr.mxu0 0.0
    %2918 = vmatpush2.msra.mxu0 0.0
    %2919 = vmatprep.subr.mxu0 0.0
    %2920 = vmatpush2.msra.mxu0 0.0
    %2921 = vmatprep.subr.mxu0 0.0
    %2922 = vmatpush2.msra.mxu0 0.0
    %2923 = vmatprep.subr.mxu0 0.0
    %2924 = vmatpush2.msra.mxu0 0.0
    %2925 = vmatprep.subr.mxu0 0.0
    %2926 = vmatpush2.msra.mxu0 0.0
    %2927 = vmatprep.subr.mxu0 0.0
    %2928 = vmatpush2.msra.mxu0 0.0
    %2929 = vmatprep.mubr.f32.mxu0 0.0
    %2930 = vmatmul.mubr.f32.gmra.mxu0 %v2863
    %v2931 = vpop.f32.mrf.mxu0
    %v2932 = vadd.f32 0.0, %v2931
    %v2933 = vpop.f32.mrf.mxu0
    %2934 = vdwg.mxu0
    %v2935 = vadd.f32 %v2861, %v2932
    %v2936 = vxor.u32 %v2935, 2147483648
    %v2937 = vmul.f32 %v2936, 1.442695
    %v2938 = vpow.pop %v2937
    %v2939 = vadd.f32 %v2938, 1.0
    %v2940 = vrcp.pop %v2939
    %v2941 = vmul.f32 1.0, %v2940
    %s2942 = scalar_lea.vmem [#allocation5], 56
    %v2943 = vld [vmem:[%s2942] sm:$0xff]
    %2944 = vmatprep.subr.mxu0 0.0
    %2945 = vmatpush1.msra.mxu0 0.0
    %2946 = vmatprep.subr.mxu0 0.0
    %2947 = vmatpush1.msra.mxu0 0.0
    %2948 = vmatprep.subr.mxu0 0.0
    %2949 = vmatpush1.msra.mxu0 0.0
    %2950 = vmatprep.subr.mxu0 0.0
    %2951 = vmatpush1.msra.mxu0 0.0
    %2952 = vmatprep.subr.mxu0 0.0
    %2953 = vmatpush1.msra.mxu0 0.0
    %2954 = vmatprep.subr.mxu0 0.0
    %2955 = vmatpush1.msra.mxu0 0.0
    %2956 = vmatprep.subr.mxu0 0.0
    %2957 = vmatpush1.msra.mxu0 0.0
    %2958 = vmatprep.subr.mxu0 0.0
    %2959 = vmatpush1.msra.mxu0 0.0
    %2960 = vmatprep.subr.mxu0 0.0
    %2961 = vmatpush1.msra.mxu0 0.0
    %2962 = vmatprep.subr.mxu0 0.0
    %2963 = vmatpush1.msra.mxu0 0.0
    %2964 = vmatprep.subr.mxu0 0.0
    %2965 = vmatpush1.msra.mxu0 0.0
    %2966 = vmatprep.subr.mxu0 0.0
    %2967 = vmatpush1.msra.mxu0 0.0
    %2968 = vmatprep.subr.mxu0 0.0
    %2969 = vmatpush1.msra.mxu0 %v605
    %2970 = vmatprep.subr.mxu0 0.0
    %2971 = vmatpush1.msra.mxu0 %v604
    %2972 = vmatprep.subr.mxu0 0.0
    %2973 = vmatpush1.msra.mxu0 %v603
    %2974 = vmatprep.subr.mxu0 0.0
    %2975 = vmatpush1.msra.mxu0 %v602
    %2976 = vmatprep.subr.mxu0 0.0
    %2977 = vmatpush2.msra.mxu0 0.0
    %2978 = vmatprep.subr.mxu0 0.0
    %2979 = vmatpush2.msra.mxu0 0.0
    %2980 = vmatprep.subr.mxu0 0.0
    %2981 = vmatpush2.msra.mxu0 0.0
    %2982 = vmatprep.subr.mxu0 0.0
    %2983 = vmatpush2.msra.mxu0 0.0
    %2984 = vmatprep.subr.mxu0 0.0
    %2985 = vmatpush2.msra.mxu0 0.0
    %2986 = vmatprep.subr.mxu0 0.0
    %2987 = vmatpush2.msra.mxu0 0.0
    %2988 = vmatprep.subr.mxu0 0.0
    %2989 = vmatpush2.msra.mxu0 0.0
    %2990 = vmatprep.subr.mxu0 0.0
    %2991 = vmatpush2.msra.mxu0 0.0
    %2992 = vmatprep.subr.mxu0 0.0
    %2993 = vmatpush2.msra.mxu0 0.0
    %2994 = vmatprep.subr.mxu0 0.0
    %2995 = vmatpush2.msra.mxu0 0.0
    %2996 = vmatprep.subr.mxu0 0.0
    %2997 = vmatpush2.msra.mxu0 0.0
    %2998 = vmatprep.subr.mxu0 0.0
    %2999 = vmatpush2.msra.mxu0 0.0
    %3000 = vmatprep.subr.mxu0 0.0
    %3001 = vmatpush2.msra.mxu0 0.0
    %3002 = vmatprep.subr.mxu0 0.0
    %3003 = vmatpush2.msra.mxu0 0.0
    %3004 = vmatprep.subr.mxu0 0.0
    %3005 = vmatpush2.msra.mxu0 0.0
    %3006 = vmatprep.subr.mxu0 0.0
    %3007 = vmatpush2.msra.mxu0 0.0
    %3008 = vmatprep.mubr.f32.mxu0 0.0
    %3009 = vmatmul.mubr.f32.gmra.mxu0 %v2863
    %v3010 = vpop.f32.mrf.mxu0
    %v3011 = vadd.f32 0.0, %v3010
    %v3012 = vpop.f32.mrf.mxu0
    %3013 = vdwg.mxu0
    %v3014 = vadd.f32 %v2943, %v3011
    %v3015 = vxor.u32 %v3014, 2147483648
    %v3016 = vmul.f32 %v3015, 1.442695
    %v3017 = vpow.pop %v3016
    %v3018 = vadd.f32 %v3017, 1.0
    %v3019 = vrcp.pop %v3018
    %v3020 = vmul.f32 1.0, %v3019
    %s3021 = scalar_lea.vmem [#allocation6], 56
    %v3022 = vld [vmem:[%s3021] sm:$0xff]
    %3023 = vmatprep.subr.mxu0 0.0
    %3024 = vmatpush1.msra.mxu0 0.0
    %3025 = vmatprep.subr.mxu0 0.0
    %3026 = vmatpush1.msra.mxu0 0.0
    %3027 = vmatprep.subr.mxu0 0.0
    %3028 = vmatpush1.msra.mxu0 0.0
    %3029 = vmatprep.subr.mxu0 0.0
    %3030 = vmatpush1.msra.mxu0 0.0
    %3031 = vmatprep.subr.mxu0 0.0
    %3032 = vmatpush1.msra.mxu0 0.0
    %3033 = vmatprep.subr.mxu0 0.0
    %3034 = vmatpush1.msra.mxu0 0.0
    %3035 = vmatprep.subr.mxu0 0.0
    %3036 = vmatpush1.msra.mxu0 0.0
    %3037 = vmatprep.subr.mxu0 0.0
    %3038 = vmatpush1.msra.mxu0 0.0
    %3039 = vmatprep.subr.mxu0 0.0
    %3040 = vmatpush1.msra.mxu0 0.0
    %3041 = vmatprep.subr.mxu0 0.0
    %3042 = vmatpush1.msra.mxu0 0.0
    %3043 = vmatprep.subr.mxu0 0.0
    %3044 = vmatpush1.msra.mxu0 0.0
    %3045 = vmatprep.subr.mxu0 0.0
    %3046 = vmatpush1.msra.mxu0 0.0
    %3047 = vmatprep.subr.mxu0 0.0
    %3048 = vmatpush1.msra.mxu0 %v610
    %3049 = vmatprep.subr.mxu0 0.0
    %3050 = vmatpush1.msra.mxu0 %v609
    %3051 = vmatprep.subr.mxu0 0.0
    %3052 = vmatpush1.msra.mxu0 %v608
    %3053 = vmatprep.subr.mxu0 0.0
    %3054 = vmatpush1.msra.mxu0 %v607
    %3055 = vmatprep.subr.mxu0 0.0
    %3056 = vmatpush2.msra.mxu0 0.0
    %3057 = vmatprep.subr.mxu0 0.0
    %3058 = vmatpush2.msra.mxu0 0.0
    %3059 = vmatprep.subr.mxu0 0.0
    %3060 = vmatpush2.msra.mxu0 0.0
    %3061 = vmatprep.subr.mxu0 0.0
    %3062 = vmatpush2.msra.mxu0 0.0
    %3063 = vmatprep.subr.mxu0 0.0
    %3064 = vmatpush2.msra.mxu0 0.0
    %3065 = vmatprep.subr.mxu0 0.0
    %3066 = vmatpush2.msra.mxu0 0.0
    %3067 = vmatprep.subr.mxu0 0.0
    %3068 = vmatpush2.msra.mxu0 0.0
    %3069 = vmatprep.subr.mxu0 0.0
    %3070 = vmatpush2.msra.mxu0 0.0
    %3071 = vmatprep.subr.mxu0 0.0
    %3072 = vmatpush2.msra.mxu0 0.0
    %3073 = vmatprep.subr.mxu0 0.0
    %3074 = vmatpush2.msra.mxu0 0.0
    %3075 = vmatprep.subr.mxu0 0.0
    %3076 = vmatpush2.msra.mxu0 0.0
    %3077 = vmatprep.subr.mxu0 0.0
    %3078 = vmatpush2.msra.mxu0 0.0
    %3079 = vmatprep.subr.mxu0 0.0
    %3080 = vmatpush2.msra.mxu0 0.0
    %3081 = vmatprep.subr.mxu0 0.0
    %3082 = vmatpush2.msra.mxu0 0.0
    %3083 = vmatprep.subr.mxu0 0.0
    %3084 = vmatpush2.msra.mxu0 0.0
    %3085 = vmatprep.subr.mxu0 0.0
    %3086 = vmatpush2.msra.mxu0 0.0
    %3087 = vmatprep.mubr.f32.mxu0 0.0
    %3088 = vmatmul.mubr.f32.gmra.mxu0 %v2863
    %v3089 = vpop.f32.mrf.mxu0
    %v3090 = vadd.f32 0.0, %v3089
    %v3091 = vpop.f32.mrf.mxu0
    %3092 = vdwg.mxu0
    %v3093 = vadd.f32 %v3022, %v3090
    %v3094 = vtanh.pop %v3093
    %s3095 = scalar_lea.vmem [#allocation7], 56
    %v3096 = vld [vmem:[%s3095] sm:$0xff]
    %3097 = vmatprep.subr.mxu0 0.0
    %3098 = vmatpush1.msra.mxu0 0.0
    %3099 = vmatprep.subr.mxu0 0.0
    %3100 = vmatpush1.msra.mxu0 0.0
    %3101 = vmatprep.subr.mxu0 0.0
    %3102 = vmatpush1.msra.mxu0 0.0
    %3103 = vmatprep.subr.mxu0 0.0
    %3104 = vmatpush1.msra.mxu0 0.0
    %3105 = vmatprep.subr.mxu0 0.0
    %3106 = vmatpush1.msra.mxu0 0.0
    %3107 = vmatprep.subr.mxu0 0.0
    %3108 = vmatpush1.msra.mxu0 0.0
    %3109 = vmatprep.subr.mxu0 0.0
    %3110 = vmatpush1.msra.mxu0 0.0
    %3111 = vmatprep.subr.mxu0 0.0
    %3112 = vmatpush1.msra.mxu0 0.0
    %3113 = vmatprep.subr.mxu0 0.0
    %3114 = vmatpush1.msra.mxu0 0.0
    %3115 = vmatprep.subr.mxu0 0.0
    %3116 = vmatpush1.msra.mxu0 0.0
    %3117 = vmatprep.subr.mxu0 0.0
    %3118 = vmatpush1.msra.mxu0 0.0
    %3119 = vmatprep.subr.mxu0 0.0
    %3120 = vmatpush1.msra.mxu0 0.0
    %3121 = vmatprep.subr.mxu0 0.0
    %3122 = vmatpush1.msra.mxu0 %v615
    %3123 = vmatprep.subr.mxu0 0.0
    %3124 = vmatpush1.msra.mxu0 %v614
    %3125 = vmatprep.subr.mxu0 0.0
    %3126 = vmatpush1.msra.mxu0 %v613
    %3127 = vmatprep.subr.mxu0 0.0
    %3128 = vmatpush1.msra.mxu0 %v612
    %3129 = vmatprep.subr.mxu0 0.0
    %3130 = vmatpush2.msra.mxu0 0.0
    %3131 = vmatprep.subr.mxu0 0.0
    %3132 = vmatpush2.msra.mxu0 0.0
    %3133 = vmatprep.subr.mxu0 0.0
    %3134 = vmatpush2.msra.mxu0 0.0
    %3135 = vmatprep.subr.mxu0 0.0
    %3136 = vmatpush2.msra.mxu0 0.0
    %3137 = vmatprep.subr.mxu0 0.0
    %3138 = vmatpush2.msra.mxu0 0.0
    %3139 = vmatprep.subr.mxu0 0.0
    %3140 = vmatpush2.msra.mxu0 0.0
    %3141 = vmatprep.subr.mxu0 0.0
    %3142 = vmatpush2.msra.mxu0 0.0
    %3143 = vmatprep.subr.mxu0 0.0
    %3144 = vmatpush2.msra.mxu0 0.0
    %3145 = vmatprep.subr.mxu0 0.0
    %3146 = vmatpush2.msra.mxu0 0.0
    %3147 = vmatprep.subr.mxu0 0.0
    %3148 = vmatpush2.msra.mxu0 0.0
    %3149 = vmatprep.subr.mxu0 0.0
    %3150 = vmatpush2.msra.mxu0 0.0
    %3151 = vmatprep.subr.mxu0 0.0
    %3152 = vmatpush2.msra.mxu0 0.0
    %3153 = vmatprep.subr.mxu0 0.0
    %3154 = vmatpush2.msra.mxu0 0.0
    %3155 = vmatprep.subr.mxu0 0.0
    %3156 = vmatpush2.msra.mxu0 0.0
    %3157 = vmatprep.subr.mxu0 0.0
    %3158 = vmatpush2.msra.mxu0 0.0
    %3159 = vmatprep.subr.mxu0 0.0
    %3160 = vmatpush2.msra.mxu0 0.0
    %3161 = vmatprep.mubr.f32.mxu0 0.0
    %3162 = vmatmul.mubr.f32.gmra.mxu0 %v2863
    %v3163 = vpop.f32.mrf.mxu0
    %v3164 = vadd.f32 0.0, %v3163
    %v3165 = vpop.f32.mrf.mxu0
    %3166 = vdwg.mxu0
    %v3167 = vadd.f32 %v3096, %v3164
    %v3168 = vxor.u32 %v3167, 2147483648
    %v3169 = vmul.f32 %v3168, 1.442695
    %v3170 = vpow.pop %v3169
    %v3171 = vadd.f32 %v3170, 1.0
    %v3172 = vrcp.pop %v3171
    %v3173 = vmul.f32 1.0, %v3172
    %v3174 = vmul.f32 %v3020, %v2855
    %v3175 = vmul.f32 %v2941, %v3094
    %v3176 = vadd.f32 %v3174, %v3175
    %v3177 = vtanh.pop %v3176
    %v3178 = vmul.f32 %v3173, %v3177
    %s3179 = scalar_lea.vmem [#allocation2], 56
    %3180 = vst.msk [vmem:[%s3179] sm:$0xff] %vm81, %v3178
    %3181 = vst.msk [vmem:[#allocation14] sm:$0xff] %vm81, %v3178
    %3182 = vst.msk [vmem:[#allocation16] sm:$0xff] %vm81, %v3176
    %v3183 = vld [vmem:[#allocation2] sm:$0xff]
    %v3184 = vld [vmem:[#allocation2 + $0x8] sm:$0xff]
    %v3185 = vld [vmem:[#allocation2 + $0x10] sm:$0xff]
    %v3186 = vld [vmem:[#allocation2 + $0x18] sm:$0xff]
    %v3187 = vld [vmem:[#allocation2 + $0x20] sm:$0xff]
    %v3188 = vld [vmem:[#allocation2 + $0x28] sm:$0xff]
    %v3189 = vld [vmem:[#allocation2 + $0x30] sm:$0xff]
    %v3190 = vld [vmem:[#allocation2 + $0x38] sm:$0xff]
    %s3191 = scalar_lea.vmem [#allocation8], 128
    %v3192 = vld [vmem:[%s3191] sm:$0xff]
    %v3193 = vld [vmem:[%s3191 + $0x8] sm:$0xff]
    %v3194 = vld [vmem:[%s3191 + $0x10] sm:$0xff]
    %v3195 = vld [vmem:[%s3191 + $0x18] sm:$0xff]
    %s3196 = scalar_lea.vmem %s5, 4
    %v3197 = vld [vmem:[%s3196] sm:$0x1]
    %v3199 = vlaneseq
    %v3200 = vshrl.u32 %v3199, 7
    %v3201 = vsub.s32 0, %v3200
    %v3202 = vrot.slane %v3197, %v3201
    %v3205 = vsel %vm81, %v3183, 0
    %v3208 = vsel %vm81, %v3184, 0
    %v3211 = vsel %vm81, %v3185, 0
    %v3214 = vsel %vm81, %v3186, 0
    %v3217 = vsel %vm81, %v3187, 0
    %v3220 = vsel %vm81, %v3188, 0
    %v3223 = vsel %vm81, %v3189, 0
    %v3226 = vsel %vm81, %v3190, 0
    %3228 = vmatprep.subr.mxu0 0.0
    %3229 = vmatpush1.msra.mxu0 0.0
    %3230 = vmatprep.subr.mxu0 0.0
    %3231 = vmatpush1.msra.mxu0 0.0
    %3232 = vmatprep.subr.mxu0 0.0
    %3233 = vmatpush1.msra.mxu0 0.0
    %3234 = vmatprep.subr.mxu0 0.0
    %3235 = vmatpush1.msra.mxu0 0.0
    %3236 = vmatprep.subr.mxu0 0.0
    %3237 = vmatpush1.msra.mxu0 0.0
    %3238 = vmatprep.subr.mxu0 0.0
    %3239 = vmatpush1.msra.mxu0 0.0
    %3240 = vmatprep.subr.mxu0 0.0
    %3241 = vmatpush1.msra.mxu0 0.0
    %3242 = vmatprep.subr.mxu0 0.0
    %3243 = vmatpush1.msra.mxu0 0.0
    %3244 = vmatprep.subr.mxu0 0.0
    %3245 = vmatpush1.msra.mxu0 0.0
    %3246 = vmatprep.subr.mxu0 0.0
    %3247 = vmatpush1.msra.mxu0 0.0
    %3248 = vmatprep.subr.mxu0 0.0
    %3249 = vmatpush1.msra.mxu0 0.0
    %3250 = vmatprep.subr.mxu0 0.0
    %3251 = vmatpush1.msra.mxu0 0.0
    %3252 = vmatprep.subr.mxu0 0.0
    %3253 = vmatpush1.msra.mxu0 %v3195
    %3254 = vmatprep.subr.mxu0 0.0
    %3255 = vmatpush1.msra.mxu0 %v3194
    %3256 = vmatprep.subr.mxu0 0.0
    %3257 = vmatpush1.msra.mxu0 %v3193
    %3258 = vmatprep.subr.mxu0 0.0
    %3259 = vmatpush1.msra.mxu0 %v3192
    %3260 = vmatprep.subr.mxu0 0.0
    %3261 = vmatpush2.msra.mxu0 0.0
    %3262 = vmatprep.subr.mxu0 0.0
    %3263 = vmatpush2.msra.mxu0 0.0
    %3264 = vmatprep.subr.mxu0 0.0
    %3265 = vmatpush2.msra.mxu0 0.0
    %3266 = vmatprep.subr.mxu0 0.0
    %3267 = vmatpush2.msra.mxu0 0.0
    %3268 = vmatprep.subr.mxu0 0.0
    %3269 = vmatpush2.msra.mxu0 0.0
    %3270 = vmatprep.subr.mxu0 0.0
    %3271 = vmatpush2.msra.mxu0 0.0
    %3272 = vmatprep.subr.mxu0 0.0
    %3273 = vmatpush2.msra.mxu0 0.0
    %3274 = vmatprep.subr.mxu0 0.0
    %3275 = vmatpush2.msra.mxu0 0.0
    %3276 = vmatprep.subr.mxu0 0.0
    %3277 = vmatpush2.msra.mxu0 0.0
    %3278 = vmatprep.subr.mxu0 0.0
    %3279 = vmatpush2.msra.mxu0 0.0
    %3280 = vmatprep.subr.mxu0 0.0
    %3281 = vmatpush2.msra.mxu0 0.0
    %3282 = vmatprep.subr.mxu0 0.0
    %3283 = vmatpush2.msra.mxu0 0.0
    %3284 = vmatprep.subr.mxu0 0.0
    %3285 = vmatpush2.msra.mxu0 0.0
    %3286 = vmatprep.subr.mxu0 0.0
    %3287 = vmatpush2.msra.mxu0 0.0
    %3288 = vmatprep.subr.mxu0 0.0
    %3289 = vmatpush2.msra.mxu0 0.0
    %3290 = vmatprep.subr.mxu0 0.0
    %3291 = vmatpush2.msra.mxu0 0.0
    %3292 = vmatprep.mubr.f32.mxu0 0.0
    %3293 = vmatmul.mubr.f32.gmra.mxu0 %v3205
    %v3294 = vpop.f32.mrf.mxu0
    %v3295 = vadd.f32 %v3202, %v3294
    %v3296 = vpop.f32.mrf.mxu0
    %3297 = vmatprep.mubr.f32.mxu0 0.0
    %3298 = vmatmul.mubr.f32.gmra.mxu0 %v3208
    %v3299 = vpop.f32.mrf.mxu0
    %v3300 = vadd.f32 %v3202, %v3299
    %v3301 = vpop.f32.mrf.mxu0
    %3302 = vmatprep.mubr.f32.mxu0 0.0
    %3303 = vmatmul.mubr.f32.gmra.mxu0 %v3211
    %v3304 = vpop.f32.mrf.mxu0
    %v3305 = vadd.f32 %v3202, %v3304
    %v3306 = vpop.f32.mrf.mxu0
    %3307 = vmatprep.mubr.f32.mxu0 0.0
    %3308 = vmatmul.mubr.f32.gmra.mxu0 %v3214
    %v3309 = vpop.f32.mrf.mxu0
    %v3310 = vadd.f32 %v3202, %v3309
    %v3311 = vpop.f32.mrf.mxu0
    %3312 = vmatprep.mubr.f32.mxu0 0.0
    %3313 = vmatmul.mubr.f32.gmra.mxu0 %v3217
    %v3314 = vpop.f32.mrf.mxu0
    %v3315 = vadd.f32 %v3202, %v3314
    %v3316 = vpop.f32.mrf.mxu0
    %3317 = vmatprep.mubr.f32.mxu0 0.0
    %3318 = vmatmul.mubr.f32.gmra.mxu0 %v3220
    %v3319 = vpop.f32.mrf.mxu0
    %v3320 = vadd.f32 %v3202, %v3319
    %v3321 = vpop.f32.mrf.mxu0
    %3322 = vmatprep.mubr.f32.mxu0 0.0
    %3323 = vmatmul.mubr.f32.gmra.mxu0 %v3223
    %v3324 = vpop.f32.mrf.mxu0
    %v3325 = vadd.f32 %v3202, %v3324
    %v3326 = vpop.f32.mrf.mxu0
    %3327 = vmatprep.mubr.f32.mxu0 0.0
    %3328 = vmatmul.mubr.f32.gmra.mxu0 %v3226
    %v3329 = vpop.f32.mrf.mxu0
    %v3330 = vadd.f32 %v3202, %v3329
    %v3331 = vpop.f32.mrf.mxu0
    %3332 = vdwg.mxu0
    %3333 = vst.msk [vmem:[#allocation4] sm:$0xff] %vm81, %v3295
    %3334 = vst.msk [vmem:[#allocation4 + $0x8] sm:$0xff] %vm81, %v3300
    %3335 = vst.msk [vmem:[#allocation4 + $0x10] sm:$0xff] %vm81, %v3305
    %3336 = vst.msk [vmem:[#allocation4 + $0x18] sm:$0xff] %vm81, %v3310
    %3337 = vst.msk [vmem:[#allocation4 + $0x20] sm:$0xff] %vm81, %v3315
    %3338 = vst.msk [vmem:[#allocation4 + $0x28] sm:$0xff] %vm81, %v3320
    %3339 = vst.msk [vmem:[#allocation4 + $0x30] sm:$0xff] %vm81, %v3325
    %3340 = vst.msk [vmem:[#allocation4 + $0x38] sm:$0xff] %vm81, %v3330
    %s3341 = scalar_lea.vmem [#allocation8], 160
    %v3342 = vld [vmem:[%s3341] sm:$0xff]
    %v3343 = vld [vmem:[%s3341 + $0x8] sm:$0xff]
    %v3344 = vld [vmem:[%s3341 + $0x10] sm:$0xff]
    %v3345 = vld [vmem:[%s3341 + $0x18] sm:$0xff]
    %s3346 = scalar_lea.vmem %s5, 5
    %v3347 = vld [vmem:[%s3346] sm:$0x1]
    %v3349 = vlaneseq
    %v3350 = vshrl.u32 %v3349, 7
    %v3351 = vsub.s32 0, %v3350
    %v3352 = vrot.slane %v3347, %v3351
    %3354 = vmatprep.subr.mxu0 0.0
    %3355 = vmatpush1.msra.mxu0 0.0
    %3356 = vmatprep.subr.mxu0 0.0
    %3357 = vmatpush1.msra.mxu0 0.0
    %3358 = vmatprep.subr.mxu0 0.0
    %3359 = vmatpush1.msra.mxu0 0.0
    %3360 = vmatprep.subr.mxu0 0.0
    %3361 = vmatpush1.msra.mxu0 0.0
    %3362 = vmatprep.subr.mxu0 0.0
    %3363 = vmatpush1.msra.mxu0 0.0
    %3364 = vmatprep.subr.mxu0 0.0
    %3365 = vmatpush1.msra.mxu0 0.0
    %3366 = vmatprep.subr.mxu0 0.0
    %3367 = vmatpush1.msra.mxu0 0.0
    %3368 = vmatprep.subr.mxu0 0.0
    %3369 = vmatpush1.msra.mxu0 0.0
    %3370 = vmatprep.subr.mxu0 0.0
    %3371 = vmatpush1.msra.mxu0 0.0
    %3372 = vmatprep.subr.mxu0 0.0
    %3373 = vmatpush1.msra.mxu0 0.0
    %3374 = vmatprep.subr.mxu0 0.0
    %3375 = vmatpush1.msra.mxu0 0.0
    %3376 = vmatprep.subr.mxu0 0.0
    %3377 = vmatpush1.msra.mxu0 0.0
    %3378 = vmatprep.subr.mxu0 0.0
    %3379 = vmatpush1.msra.mxu0 %v3345
    %3380 = vmatprep.subr.mxu0 0.0
    %3381 = vmatpush1.msra.mxu0 %v3344
    %3382 = vmatprep.subr.mxu0 0.0
    %3383 = vmatpush1.msra.mxu0 %v3343
    %3384 = vmatprep.subr.mxu0 0.0
    %3385 = vmatpush1.msra.mxu0 %v3342
    %3386 = vmatprep.subr.mxu0 0.0
    %3387 = vmatpush2.msra.mxu0 0.0
    %3388 = vmatprep.subr.mxu0 0.0
    %3389 = vmatpush2.msra.mxu0 0.0
    %3390 = vmatprep.subr.mxu0 0.0
    %3391 = vmatpush2.msra.mxu0 0.0
    %3392 = vmatprep.subr.mxu0 0.0
    %3393 = vmatpush2.msra.mxu0 0.0
    %3394 = vmatprep.subr.mxu0 0.0
    %3395 = vmatpush2.msra.mxu0 0.0
    %3396 = vmatprep.subr.mxu0 0.0
    %3397 = vmatpush2.msra.mxu0 0.0
    %3398 = vmatprep.subr.mxu0 0.0
    %3399 = vmatpush2.msra.mxu0 0.0
    %3400 = vmatprep.subr.mxu0 0.0
    %3401 = vmatpush2.msra.mxu0 0.0
    %3402 = vmatprep.subr.mxu0 0.0
    %3403 = vmatpush2.msra.mxu0 0.0
    %3404 = vmatprep.subr.mxu0 0.0
    %3405 = vmatpush2.msra.mxu0 0.0
    %3406 = vmatprep.subr.mxu0 0.0
    %3407 = vmatpush2.msra.mxu0 0.0
    %3408 = vmatprep.subr.mxu0 0.0
    %3409 = vmatpush2.msra.mxu0 0.0
    %3410 = vmatprep.subr.mxu0 0.0
    %3411 = vmatpush2.msra.mxu0 0.0
    %3412 = vmatprep.subr.mxu0 0.0
    %3413 = vmatpush2.msra.mxu0 0.0
    %3414 = vmatprep.subr.mxu0 0.0
    %3415 = vmatpush2.msra.mxu0 0.0
    %3416 = vmatprep.subr.mxu0 0.0
    %3417 = vmatpush2.msra.mxu0 0.0
    %3418 = vmatprep.mubr.f32.mxu0 0.0
    %3419 = vmatmul.mubr.f32.gmra.mxu0 %v3205
    %v3420 = vpop.f32.mrf.mxu0
    %v3421 = vadd.f32 %v3352, %v3420
    %v3422 = vpop.f32.mrf.mxu0
    %3423 = vmatprep.mubr.f32.mxu0 0.0
    %3424 = vmatmul.mubr.f32.gmra.mxu0 %v3208
    %v3425 = vpop.f32.mrf.mxu0
    %v3426 = vadd.f32 %v3352, %v3425
    %v3427 = vpop.f32.mrf.mxu0
    %3428 = vmatprep.mubr.f32.mxu0 0.0
    %3429 = vmatmul.mubr.f32.gmra.mxu0 %v3211
    %v3430 = vpop.f32.mrf.mxu0
    %v3431 = vadd.f32 %v3352, %v3430
    %v3432 = vpop.f32.mrf.mxu0
    %3433 = vmatprep.mubr.f32.mxu0 0.0
    %3434 = vmatmul.mubr.f32.gmra.mxu0 %v3214
    %v3435 = vpop.f32.mrf.mxu0
    %v3436 = vadd.f32 %v3352, %v3435
    %v3437 = vpop.f32.mrf.mxu0
    %3438 = vmatprep.mubr.f32.mxu0 0.0
    %3439 = vmatmul.mubr.f32.gmra.mxu0 %v3217
    %v3440 = vpop.f32.mrf.mxu0
    %v3441 = vadd.f32 %v3352, %v3440
    %v3442 = vpop.f32.mrf.mxu0
    %3443 = vmatprep.mubr.f32.mxu0 0.0
    %3444 = vmatmul.mubr.f32.gmra.mxu0 %v3220
    %v3445 = vpop.f32.mrf.mxu0
    %v3446 = vadd.f32 %v3352, %v3445
    %v3447 = vpop.f32.mrf.mxu0
    %3448 = vmatprep.mubr.f32.mxu0 0.0
    %3449 = vmatmul.mubr.f32.gmra.mxu0 %v3223
    %v3450 = vpop.f32.mrf.mxu0
    %v3451 = vadd.f32 %v3352, %v3450
    %v3452 = vpop.f32.mrf.mxu0
    %3453 = vmatprep.mubr.f32.mxu0 0.0
    %3454 = vmatmul.mubr.f32.gmra.mxu0 %v3226
    %v3455 = vpop.f32.mrf.mxu0
    %v3456 = vadd.f32 %v3352, %v3455
    %v3457 = vpop.f32.mrf.mxu0
    %3458 = vdwg.mxu0
    %3459 = vst.msk [vmem:[#allocation5] sm:$0xff] %vm81, %v3421
    %3460 = vst.msk [vmem:[#allocation5 + $0x8] sm:$0xff] %vm81, %v3426
    %3461 = vst.msk [vmem:[#allocation5 + $0x10] sm:$0xff] %vm81, %v3431
    %3462 = vst.msk [vmem:[#allocation5 + $0x18] sm:$0xff] %vm81, %v3436
    %3463 = vst.msk [vmem:[#allocation5 + $0x20] sm:$0xff] %vm81, %v3441
    %3464 = vst.msk [vmem:[#allocation5 + $0x28] sm:$0xff] %vm81, %v3446
    %3465 = vst.msk [vmem:[#allocation5 + $0x30] sm:$0xff] %vm81, %v3451
    %3466 = vst.msk [vmem:[#allocation5 + $0x38] sm:$0xff] %vm81, %v3456
    %s3467 = scalar_lea.vmem [#allocation8], 192
    %v3468 = vld [vmem:[%s3467] sm:$0xff]
    %v3469 = vld [vmem:[%s3467 + $0x8] sm:$0xff]
    %v3470 = vld [vmem:[%s3467 + $0x10] sm:$0xff]
    %v3471 = vld [vmem:[%s3467 + $0x18] sm:$0xff]
    %s3472 = scalar_lea.vmem %s5, 6
    %v3473 = vld [vmem:[%s3472] sm:$0x1]
    %v3475 = vlaneseq
    %v3476 = vshrl.u32 %v3475, 7
    %v3477 = vsub.s32 0, %v3476
    %v3478 = vrot.slane %v3473, %v3477
    %3480 = vmatprep.subr.mxu0 0.0
    %3481 = vmatpush1.msra.mxu0 0.0
    %3482 = vmatprep.subr.mxu0 0.0
    %3483 = vmatpush1.msra.mxu0 0.0
    %3484 = vmatprep.subr.mxu0 0.0
    %3485 = vmatpush1.msra.mxu0 0.0
    %3486 = vmatprep.subr.mxu0 0.0
    %3487 = vmatpush1.msra.mxu0 0.0
    %3488 = vmatprep.subr.mxu0 0.0
    %3489 = vmatpush1.msra.mxu0 0.0
    %3490 = vmatprep.subr.mxu0 0.0
    %3491 = vmatpush1.msra.mxu0 0.0
    %3492 = vmatprep.subr.mxu0 0.0
    %3493 = vmatpush1.msra.mxu0 0.0
    %3494 = vmatprep.subr.mxu0 0.0
    %3495 = vmatpush1.msra.mxu0 0.0
    %3496 = vmatprep.subr.mxu0 0.0
    %3497 = vmatpush1.msra.mxu0 0.0
    %3498 = vmatprep.subr.mxu0 0.0
    %3499 = vmatpush1.msra.mxu0 0.0
    %3500 = vmatprep.subr.mxu0 0.0
    %3501 = vmatpush1.msra.mxu0 0.0
    %3502 = vmatprep.subr.mxu0 0.0
    %3503 = vmatpush1.msra.mxu0 0.0
    %3504 = vmatprep.subr.mxu0 0.0
    %3505 = vmatpush1.msra.mxu0 %v3471
    %3506 = vmatprep.subr.mxu0 0.0
    %3507 = vmatpush1.msra.mxu0 %v3470
    %3508 = vmatprep.subr.mxu0 0.0
    %3509 = vmatpush1.msra.mxu0 %v3469
    %3510 = vmatprep.subr.mxu0 0.0
    %3511 = vmatpush1.msra.mxu0 %v3468
    %3512 = vmatprep.subr.mxu0 0.0
    %3513 = vmatpush2.msra.mxu0 0.0
    %3514 = vmatprep.subr.mxu0 0.0
    %3515 = vmatpush2.msra.mxu0 0.0
    %3516 = vmatprep.subr.mxu0 0.0
    %3517 = vmatpush2.msra.mxu0 0.0
    %3518 = vmatprep.subr.mxu0 0.0
    %3519 = vmatpush2.msra.mxu0 0.0
    %3520 = vmatprep.subr.mxu0 0.0
    %3521 = vmatpush2.msra.mxu0 0.0
    %3522 = vmatprep.subr.mxu0 0.0
    %3523 = vmatpush2.msra.mxu0 0.0
    %3524 = vmatprep.subr.mxu0 0.0
    %3525 = vmatpush2.msra.mxu0 0.0
    %3526 = vmatprep.subr.mxu0 0.0
    %3527 = vmatpush2.msra.mxu0 0.0
    %3528 = vmatprep.subr.mxu0 0.0
    %3529 = vmatpush2.msra.mxu0 0.0
    %3530 = vmatprep.subr.mxu0 0.0
    %3531 = vmatpush2.msra.mxu0 0.0
    %3532 = vmatprep.subr.mxu0 0.0
    %3533 = vmatpush2.msra.mxu0 0.0
    %3534 = vmatprep.subr.mxu0 0.0
    %3535 = vmatpush2.msra.mxu0 0.0
    %3536 = vmatprep.subr.mxu0 0.0
    %3537 = vmatpush2.msra.mxu0 0.0
    %3538 = vmatprep.subr.mxu0 0.0
    %3539 = vmatpush2.msra.mxu0 0.0
    %3540 = vmatprep.subr.mxu0 0.0
    %3541 = vmatpush2.msra.mxu0 0.0
    %3542 = vmatprep.subr.mxu0 0.0
    %3543 = vmatpush2.msra.mxu0 0.0
    %3544 = vmatprep.mubr.f32.mxu0 0.0
    %3545 = vmatmul.mubr.f32.gmra.mxu0 %v3205
    %v3546 = vpop.f32.mrf.mxu0
    %v3547 = vadd.f32 %v3478, %v3546
    %v3548 = vpop.f32.mrf.mxu0
    %3549 = vmatprep.mubr.f32.mxu0 0.0
    %3550 = vmatmul.mubr.f32.gmra.mxu0 %v3208
    %v3551 = vpop.f32.mrf.mxu0
    %v3552 = vadd.f32 %v3478, %v3551
    %v3553 = vpop.f32.mrf.mxu0
    %3554 = vmatprep.mubr.f32.mxu0 0.0
    %3555 = vmatmul.mubr.f32.gmra.mxu0 %v3211
    %v3556 = vpop.f32.mrf.mxu0
    %v3557 = vadd.f32 %v3478, %v3556
    %v3558 = vpop.f32.mrf.mxu0
    %3559 = vmatprep.mubr.f32.mxu0 0.0
    %3560 = vmatmul.mubr.f32.gmra.mxu0 %v3214
    %v3561 = vpop.f32.mrf.mxu0
    %v3562 = vadd.f32 %v3478, %v3561
    %v3563 = vpop.f32.mrf.mxu0
    %3564 = vmatprep.mubr.f32.mxu0 0.0
    %3565 = vmatmul.mubr.f32.gmra.mxu0 %v3217
    %v3566 = vpop.f32.mrf.mxu0
    %v3567 = vadd.f32 %v3478, %v3566
    %v3568 = vpop.f32.mrf.mxu0
    %3569 = vmatprep.mubr.f32.mxu0 0.0
    %3570 = vmatmul.mubr.f32.gmra.mxu0 %v3220
    %v3571 = vpop.f32.mrf.mxu0
    %v3572 = vadd.f32 %v3478, %v3571
    %v3573 = vpop.f32.mrf.mxu0
    %3574 = vmatprep.mubr.f32.mxu0 0.0
    %3575 = vmatmul.mubr.f32.gmra.mxu0 %v3223
    %v3576 = vpop.f32.mrf.mxu0
    %v3577 = vadd.f32 %v3478, %v3576
    %v3578 = vpop.f32.mrf.mxu0
    %3579 = vmatprep.mubr.f32.mxu0 0.0
    %3580 = vmatmul.mubr.f32.gmra.mxu0 %v3226
    %v3581 = vpop.f32.mrf.mxu0
    %v3582 = vadd.f32 %v3478, %v3581
    %v3583 = vpop.f32.mrf.mxu0
    %3584 = vdwg.mxu0
    %3585 = vst.msk [vmem:[#allocation6] sm:$0xff] %vm81, %v3547
    %3586 = vst.msk [vmem:[#allocation6 + $0x8] sm:$0xff] %vm81, %v3552
    %3587 = vst.msk [vmem:[#allocation6 + $0x10] sm:$0xff] %vm81, %v3557
    %3588 = vst.msk [vmem:[#allocation6 + $0x18] sm:$0xff] %vm81, %v3562
    %3589 = vst.msk [vmem:[#allocation6 + $0x20] sm:$0xff] %vm81, %v3567
    %3590 = vst.msk [vmem:[#allocation6 + $0x28] sm:$0xff] %vm81, %v3572
    %3591 = vst.msk [vmem:[#allocation6 + $0x30] sm:$0xff] %vm81, %v3577
    %3592 = vst.msk [vmem:[#allocation6 + $0x38] sm:$0xff] %vm81, %v3582
    %s3593 = scalar_lea.vmem [#allocation8], 224
    %v3594 = vld [vmem:[%s3593] sm:$0xff]
    %v3595 = vld [vmem:[%s3593 + $0x8] sm:$0xff]
    %v3596 = vld [vmem:[%s3593 + $0x10] sm:$0xff]
    %v3597 = vld [vmem:[%s3593 + $0x18] sm:$0xff]
    %s3598 = scalar_lea.vmem %s5, 7
    %v3599 = vld [vmem:[%s3598] sm:$0x1]
    %v3601 = vlaneseq
    %v3602 = vshrl.u32 %v3601, 7
    %v3603 = vsub.s32 0, %v3602
    %v3604 = vrot.slane %v3599, %v3603
    %3606 = vmatprep.subr.mxu0 0.0
    %3607 = vmatpush1.msra.mxu0 0.0
    %3608 = vmatprep.subr.mxu0 0.0
    %3609 = vmatpush1.msra.mxu0 0.0
    %3610 = vmatprep.subr.mxu0 0.0
    %3611 = vmatpush1.msra.mxu0 0.0
    %3612 = vmatprep.subr.mxu0 0.0
    %3613 = vmatpush1.msra.mxu0 0.0
    %3614 = vmatprep.subr.mxu0 0.0
    %3615 = vmatpush1.msra.mxu0 0.0
    %3616 = vmatprep.subr.mxu0 0.0
    %3617 = vmatpush1.msra.mxu0 0.0
    %3618 = vmatprep.subr.mxu0 0.0
    %3619 = vmatpush1.msra.mxu0 0.0
    %3620 = vmatprep.subr.mxu0 0.0
    %3621 = vmatpush1.msra.mxu0 0.0
    %3622 = vmatprep.subr.mxu0 0.0
    %3623 = vmatpush1.msra.mxu0 0.0
    %3624 = vmatprep.subr.mxu0 0.0
    %3625 = vmatpush1.msra.mxu0 0.0
    %3626 = vmatprep.subr.mxu0 0.0
    %3627 = vmatpush1.msra.mxu0 0.0
    %3628 = vmatprep.subr.mxu0 0.0
    %3629 = vmatpush1.msra.mxu0 0.0
    %3630 = vmatprep.subr.mxu0 0.0
    %3631 = vmatpush1.msra.mxu0 %v3597
    %3632 = vmatprep.subr.mxu0 0.0
    %3633 = vmatpush1.msra.mxu0 %v3596
    %3634 = vmatprep.subr.mxu0 0.0
    %3635 = vmatpush1.msra.mxu0 %v3595
    %3636 = vmatprep.subr.mxu0 0.0
    %3637 = vmatpush1.msra.mxu0 %v3594
    %3638 = vmatprep.subr.mxu0 0.0
    %3639 = vmatpush2.msra.mxu0 0.0
    %3640 = vmatprep.subr.mxu0 0.0
    %3641 = vmatpush2.msra.mxu0 0.0
    %3642 = vmatprep.subr.mxu0 0.0
    %3643 = vmatpush2.msra.mxu0 0.0
    %3644 = vmatprep.subr.mxu0 0.0
    %3645 = vmatpush2.msra.mxu0 0.0
    %3646 = vmatprep.subr.mxu0 0.0
    %3647 = vmatpush2.msra.mxu0 0.0
    %3648 = vmatprep.subr.mxu0 0.0
    %3649 = vmatpush2.msra.mxu0 0.0
    %3650 = vmatprep.subr.mxu0 0.0
    %3651 = vmatpush2.msra.mxu0 0.0
    %3652 = vmatprep.subr.mxu0 0.0
    %3653 = vmatpush2.msra.mxu0 0.0
    %3654 = vmatprep.subr.mxu0 0.0
    %3655 = vmatpush2.msra.mxu0 0.0
    %3656 = vmatprep.subr.mxu0 0.0
    %3657 = vmatpush2.msra.mxu0 0.0
    %3658 = vmatprep.subr.mxu0 0.0
    %3659 = vmatpush2.msra.mxu0 0.0
    %3660 = vmatprep.subr.mxu0 0.0
    %3661 = vmatpush2.msra.mxu0 0.0
    %3662 = vmatprep.subr.mxu0 0.0
    %3663 = vmatpush2.msra.mxu0 0.0
    %3664 = vmatprep.subr.mxu0 0.0
    %3665 = vmatpush2.msra.mxu0 0.0
    %3666 = vmatprep.subr.mxu0 0.0
    %3667 = vmatpush2.msra.mxu0 0.0
    %3668 = vmatprep.subr.mxu0 0.0
    %3669 = vmatpush2.msra.mxu0 0.0
    %3670 = vmatprep.mubr.f32.mxu0 0.0
    %3671 = vmatmul.mubr.f32.gmra.mxu0 %v3205
    %v3672 = vpop.f32.mrf.mxu0
    %v3673 = vadd.f32 %v3604, %v3672
    %v3674 = vpop.f32.mrf.mxu0
    %3675 = vmatprep.mubr.f32.mxu0 0.0
    %3676 = vmatmul.mubr.f32.gmra.mxu0 %v3208
    %v3677 = vpop.f32.mrf.mxu0
    %v3678 = vadd.f32 %v3604, %v3677
    %v3679 = vpop.f32.mrf.mxu0
    %3680 = vmatprep.mubr.f32.mxu0 0.0
    %3681 = vmatmul.mubr.f32.gmra.mxu0 %v3211
    %v3682 = vpop.f32.mrf.mxu0
    %v3683 = vadd.f32 %v3604, %v3682
    %v3684 = vpop.f32.mrf.mxu0
    %3685 = vmatprep.mubr.f32.mxu0 0.0
    %3686 = vmatmul.mubr.f32.gmra.mxu0 %v3214
    %v3687 = vpop.f32.mrf.mxu0
    %v3688 = vadd.f32 %v3604, %v3687
    %v3689 = vpop.f32.mrf.mxu0
    %3690 = vmatprep.mubr.f32.mxu0 0.0
    %3691 = vmatmul.mubr.f32.gmra.mxu0 %v3217
    %v3692 = vpop.f32.mrf.mxu0
    %v3693 = vadd.f32 %v3604, %v3692
    %v3694 = vpop.f32.mrf.mxu0
    %3695 = vmatprep.mubr.f32.mxu0 0.0
    %3696 = vmatmul.mubr.f32.gmra.mxu0 %v3220
    %v3697 = vpop.f32.mrf.mxu0
    %v3698 = vadd.f32 %v3604, %v3697
    %v3699 = vpop.f32.mrf.mxu0
    %3700 = vmatprep.mubr.f32.mxu0 0.0
    %3701 = vmatmul.mubr.f32.gmra.mxu0 %v3223
    %v3702 = vpop.f32.mrf.mxu0
    %v3703 = vadd.f32 %v3604, %v3702
    %v3704 = vpop.f32.mrf.mxu0
    %3705 = vmatprep.mubr.f32.mxu0 0.0
    %3706 = vmatmul.mubr.f32.gmra.mxu0 %v3226
    %v3707 = vpop.f32.mrf.mxu0
    %v3708 = vadd.f32 %v3604, %v3707
    %v3709 = vpop.f32.mrf.mxu0
    %3710 = vdwg.mxu0
    %3711 = vst.msk [vmem:[#allocation7] sm:$0xff] %vm81, %v3673
    %3712 = vst.msk [vmem:[#allocation7 + $0x8] sm:$0xff] %vm81, %v3678
    %3713 = vst.msk [vmem:[#allocation7 + $0x10] sm:$0xff] %vm81, %v3683
    %3714 = vst.msk [vmem:[#allocation7 + $0x18] sm:$0xff] %vm81, %v3688
    %3715 = vst.msk [vmem:[#allocation7 + $0x20] sm:$0xff] %vm81, %v3693
    %3716 = vst.msk [vmem:[#allocation7 + $0x28] sm:$0xff] %vm81, %v3698
    %3717 = vst.msk [vmem:[#allocation7 + $0x30] sm:$0xff] %vm81, %v3703
    %3718 = vst.msk [vmem:[#allocation7 + $0x38] sm:$0xff] %vm81, %v3708
    %s3719 = scalar_lea.vmem [#allocation11], 128
    %v3720 = vld [vmem:[%s3719] sm:$0xff]
    %v3721 = vld [vmem:[%s3719 + $0x8] sm:$0xff]
    %v3722 = vld [vmem:[%s3719 + $0x10] sm:$0xff]
    %v3723 = vld [vmem:[%s3719 + $0x18] sm:$0xff]
    %s3724 = scalar_lea.vmem [#allocation11], 160
    %v3725 = vld [vmem:[%s3724] sm:$0xff]
    %v3726 = vld [vmem:[%s3724 + $0x8] sm:$0xff]
    %v3727 = vld [vmem:[%s3724 + $0x10] sm:$0xff]
    %v3728 = vld [vmem:[%s3724 + $0x18] sm:$0xff]
    %s3729 = scalar_lea.vmem [#allocation11], 192
    %v3730 = vld [vmem:[%s3729] sm:$0xff]
    %v3731 = vld [vmem:[%s3729 + $0x8] sm:$0xff]
    %v3732 = vld [vmem:[%s3729 + $0x10] sm:$0xff]
    %v3733 = vld [vmem:[%s3729 + $0x18] sm:$0xff]
    %s3734 = scalar_lea.vmem [#allocation11], 224
    %v3735 = vld [vmem:[%s3734] sm:$0xff]
    %v3736 = vld [vmem:[%s3734 + $0x8] sm:$0xff]
    %v3737 = vld [vmem:[%s3734 + $0x10] sm:$0xff]
    %v3738 = vld [vmem:[%s3734 + $0x18] sm:$0xff]
    %s3739 = scalar_lea.vmem %s1, 8
    %v3740 = vld [vmem:[%s3739] sm:$0xff]
    %s3741 = scalar_lea.vmem %s2, 8
    %v3742 = vld [vmem:[%s3741] sm:$0xff]
    %v3743 = vld [vmem:[#allocation4] sm:$0xff]
    %v3745 = vsel %vm81, %v3740, 0
    %3747 = vmatprep.subr.mxu0 0.0
    %3748 = vmatpush1.msra.mxu0 0.0
    %3749 = vmatprep.subr.mxu0 0.0
    %3750 = vmatpush1.msra.mxu0 0.0
    %3751 = vmatprep.subr.mxu0 0.0
    %3752 = vmatpush1.msra.mxu0 0.0
    %3753 = vmatprep.subr.mxu0 0.0
    %3754 = vmatpush1.msra.mxu0 0.0
    %3755 = vmatprep.subr.mxu0 0.0
    %3756 = vmatpush1.msra.mxu0 0.0
    %3757 = vmatprep.subr.mxu0 0.0
    %3758 = vmatpush1.msra.mxu0 0.0
    %3759 = vmatprep.subr.mxu0 0.0
    %3760 = vmatpush1.msra.mxu0 0.0
    %3761 = vmatprep.subr.mxu0 0.0
    %3762 = vmatpush1.msra.mxu0 0.0
    %3763 = vmatprep.subr.mxu0 0.0
    %3764 = vmatpush1.msra.mxu0 0.0
    %3765 = vmatprep.subr.mxu0 0.0
    %3766 = vmatpush1.msra.mxu0 0.0
    %3767 = vmatprep.subr.mxu0 0.0
    %3768 = vmatpush1.msra.mxu0 0.0
    %3769 = vmatprep.subr.mxu0 0.0
    %3770 = vmatpush1.msra.mxu0 0.0
    %3771 = vmatprep.subr.mxu0 0.0
    %3772 = vmatpush1.msra.mxu0 %v3723
    %3773 = vmatprep.subr.mxu0 0.0
    %3774 = vmatpush1.msra.mxu0 %v3722
    %3775 = vmatprep.subr.mxu0 0.0
    %3776 = vmatpush1.msra.mxu0 %v3721
    %3777 = vmatprep.subr.mxu0 0.0
    %3778 = vmatpush1.msra.mxu0 %v3720
    %3779 = vmatprep.subr.mxu0 0.0
    %3780 = vmatpush2.msra.mxu0 0.0
    %3781 = vmatprep.subr.mxu0 0.0
    %3782 = vmatpush2.msra.mxu0 0.0
    %3783 = vmatprep.subr.mxu0 0.0
    %3784 = vmatpush2.msra.mxu0 0.0
    %3785 = vmatprep.subr.mxu0 0.0
    %3786 = vmatpush2.msra.mxu0 0.0
    %3787 = vmatprep.subr.mxu0 0.0
    %3788 = vmatpush2.msra.mxu0 0.0
    %3789 = vmatprep.subr.mxu0 0.0
    %3790 = vmatpush2.msra.mxu0 0.0
    %3791 = vmatprep.subr.mxu0 0.0
    %3792 = vmatpush2.msra.mxu0 0.0
    %3793 = vmatprep.subr.mxu0 0.0
    %3794 = vmatpush2.msra.mxu0 0.0
    %3795 = vmatprep.subr.mxu0 0.0
    %3796 = vmatpush2.msra.mxu0 0.0
    %3797 = vmatprep.subr.mxu0 0.0
    %3798 = vmatpush2.msra.mxu0 0.0
    %3799 = vmatprep.subr.mxu0 0.0
    %3800 = vmatpush2.msra.mxu0 0.0
    %3801 = vmatprep.subr.mxu0 0.0
    %3802 = vmatpush2.msra.mxu0 0.0
    %3803 = vmatprep.subr.mxu0 0.0
    %3804 = vmatpush2.msra.mxu0 0.0
    %3805 = vmatprep.subr.mxu0 0.0
    %3806 = vmatpush2.msra.mxu0 0.0
    %3807 = vmatprep.subr.mxu0 0.0
    %3808 = vmatpush2.msra.mxu0 0.0
    %3809 = vmatprep.subr.mxu0 0.0
    %3810 = vmatpush2.msra.mxu0 0.0
    %3811 = vmatprep.mubr.f32.mxu0 0.0
    %3812 = vmatmul.mubr.f32.gmra.mxu0 %v3745
    %v3813 = vpop.f32.mrf.mxu0
    %v3814 = vadd.f32 0.0, %v3813
    %v3815 = vpop.f32.mrf.mxu0
    %3816 = vdwg.mxu0
    %v3817 = vadd.f32 %v3743, %v3814
    %v3818 = vxor.u32 %v3817, 2147483648
    %v3819 = vmul.f32 %v3818, 1.442695
    %v3820 = vpow.pop %v3819
    %v3821 = vadd.f32 %v3820, 1.0
    %v3822 = vrcp.pop %v3821
    %v3823 = vmul.f32 1.0, %v3822
    %v3824 = vld [vmem:[#allocation5] sm:$0xff]
    %3825 = vmatprep.subr.mxu0 0.0
    %3826 = vmatpush1.msra.mxu0 0.0
    %3827 = vmatprep.subr.mxu0 0.0
    %3828 = vmatpush1.msra.mxu0 0.0
    %3829 = vmatprep.subr.mxu0 0.0
    %3830 = vmatpush1.msra.mxu0 0.0
    %3831 = vmatprep.subr.mxu0 0.0
    %3832 = vmatpush1.msra.mxu0 0.0
    %3833 = vmatprep.subr.mxu0 0.0
    %3834 = vmatpush1.msra.mxu0 0.0
    %3835 = vmatprep.subr.mxu0 0.0
    %3836 = vmatpush1.msra.mxu0 0.0
    %3837 = vmatprep.subr.mxu0 0.0
    %3838 = vmatpush1.msra.mxu0 0.0
    %3839 = vmatprep.subr.mxu0 0.0
    %3840 = vmatpush1.msra.mxu0 0.0
    %3841 = vmatprep.subr.mxu0 0.0
    %3842 = vmatpush1.msra.mxu0 0.0
    %3843 = vmatprep.subr.mxu0 0.0
    %3844 = vmatpush1.msra.mxu0 0.0
    %3845 = vmatprep.subr.mxu0 0.0
    %3846 = vmatpush1.msra.mxu0 0.0
    %3847 = vmatprep.subr.mxu0 0.0
    %3848 = vmatpush1.msra.mxu0 0.0
    %3849 = vmatprep.subr.mxu0 0.0
    %3850 = vmatpush1.msra.mxu0 %v3728
    %3851 = vmatprep.subr.mxu0 0.0
    %3852 = vmatpush1.msra.mxu0 %v3727
    %3853 = vmatprep.subr.mxu0 0.0
    %3854 = vmatpush1.msra.mxu0 %v3726
    %3855 = vmatprep.subr.mxu0 0.0
    %3856 = vmatpush1.msra.mxu0 %v3725
    %3857 = vmatprep.subr.mxu0 0.0
    %3858 = vmatpush2.msra.mxu0 0.0
    %3859 = vmatprep.subr.mxu0 0.0
    %3860 = vmatpush2.msra.mxu0 0.0
    %3861 = vmatprep.subr.mxu0 0.0
    %3862 = vmatpush2.msra.mxu0 0.0
    %3863 = vmatprep.subr.mxu0 0.0
    %3864 = vmatpush2.msra.mxu0 0.0
    %3865 = vmatprep.subr.mxu0 0.0
    %3866 = vmatpush2.msra.mxu0 0.0
    %3867 = vmatprep.subr.mxu0 0.0
    %3868 = vmatpush2.msra.mxu0 0.0
    %3869 = vmatprep.subr.mxu0 0.0
    %3870 = vmatpush2.msra.mxu0 0.0
    %3871 = vmatprep.subr.mxu0 0.0
    %3872 = vmatpush2.msra.mxu0 0.0
    %3873 = vmatprep.subr.mxu0 0.0
    %3874 = vmatpush2.msra.mxu0 0.0
    %3875 = vmatprep.subr.mxu0 0.0
    %3876 = vmatpush2.msra.mxu0 0.0
    %3877 = vmatprep.subr.mxu0 0.0
    %3878 = vmatpush2.msra.mxu0 0.0
    %3879 = vmatprep.subr.mxu0 0.0
    %3880 = vmatpush2.msra.mxu0 0.0
    %3881 = vmatprep.subr.mxu0 0.0
    %3882 = vmatpush2.msra.mxu0 0.0
    %3883 = vmatprep.subr.mxu0 0.0
    %3884 = vmatpush2.msra.mxu0 0.0
    %3885 = vmatprep.subr.mxu0 0.0
    %3886 = vmatpush2.msra.mxu0 0.0
    %3887 = vmatprep.subr.mxu0 0.0
    %3888 = vmatpush2.msra.mxu0 0.0
    %3889 = vmatprep.mubr.f32.mxu0 0.0
    %3890 = vmatmul.mubr.f32.gmra.mxu0 %v3745
    %v3891 = vpop.f32.mrf.mxu0
    %v3892 = vadd.f32 0.0, %v3891
    %v3893 = vpop.f32.mrf.mxu0
    %3894 = vdwg.mxu0
    %v3895 = vadd.f32 %v3824, %v3892
    %v3896 = vxor.u32 %v3895, 2147483648
    %v3897 = vmul.f32 %v3896, 1.442695
    %v3898 = vpow.pop %v3897
    %v3899 = vadd.f32 %v3898, 1.0
    %v3900 = vrcp.pop %v3899
    %v3901 = vmul.f32 1.0, %v3900
    %v3902 = vld [vmem:[#allocation6] sm:$0xff]
    %3903 = vmatprep.subr.mxu0 0.0
    %3904 = vmatpush1.msra.mxu0 0.0
    %3905 = vmatprep.subr.mxu0 0.0
    %3906 = vmatpush1.msra.mxu0 0.0
    %3907 = vmatprep.subr.mxu0 0.0
    %3908 = vmatpush1.msra.mxu0 0.0
    %3909 = vmatprep.subr.mxu0 0.0
    %3910 = vmatpush1.msra.mxu0 0.0
    %3911 = vmatprep.subr.mxu0 0.0
    %3912 = vmatpush1.msra.mxu0 0.0
    %3913 = vmatprep.subr.mxu0 0.0
    %3914 = vmatpush1.msra.mxu0 0.0
    %3915 = vmatprep.subr.mxu0 0.0
    %3916 = vmatpush1.msra.mxu0 0.0
    %3917 = vmatprep.subr.mxu0 0.0
    %3918 = vmatpush1.msra.mxu0 0.0
    %3919 = vmatprep.subr.mxu0 0.0
    %3920 = vmatpush1.msra.mxu0 0.0
    %3921 = vmatprep.subr.mxu0 0.0
    %3922 = vmatpush1.msra.mxu0 0.0
    %3923 = vmatprep.subr.mxu0 0.0
    %3924 = vmatpush1.msra.mxu0 0.0
    %3925 = vmatprep.subr.mxu0 0.0
    %3926 = vmatpush1.msra.mxu0 0.0
    %3927 = vmatprep.subr.mxu0 0.0
    %3928 = vmatpush1.msra.mxu0 %v3733
    %3929 = vmatprep.subr.mxu0 0.0
    %3930 = vmatpush1.msra.mxu0 %v3732
    %3931 = vmatprep.subr.mxu0 0.0
    %3932 = vmatpush1.msra.mxu0 %v3731
    %3933 = vmatprep.subr.mxu0 0.0
    %3934 = vmatpush1.msra.mxu0 %v3730
    %3935 = vmatprep.subr.mxu0 0.0
    %3936 = vmatpush2.msra.mxu0 0.0
    %3937 = vmatprep.subr.mxu0 0.0
    %3938 = vmatpush2.msra.mxu0 0.0
    %3939 = vmatprep.subr.mxu0 0.0
    %3940 = vmatpush2.msra.mxu0 0.0
    %3941 = vmatprep.subr.mxu0 0.0
    %3942 = vmatpush2.msra.mxu0 0.0
    %3943 = vmatprep.subr.mxu0 0.0
    %3944 = vmatpush2.msra.mxu0 0.0
    %3945 = vmatprep.subr.mxu0 0.0
    %3946 = vmatpush2.msra.mxu0 0.0
    %3947 = vmatprep.subr.mxu0 0.0
    %3948 = vmatpush2.msra.mxu0 0.0
    %3949 = vmatprep.subr.mxu0 0.0
    %3950 = vmatpush2.msra.mxu0 0.0
    %3951 = vmatprep.subr.mxu0 0.0
    %3952 = vmatpush2.msra.mxu0 0.0
    %3953 = vmatprep.subr.mxu0 0.0
    %3954 = vmatpush2.msra.mxu0 0.0
    %3955 = vmatprep.subr.mxu0 0.0
    %3956 = vmatpush2.msra.mxu0 0.0
    %3957 = vmatprep.subr.mxu0 0.0
    %3958 = vmatpush2.msra.mxu0 0.0
    %3959 = vmatprep.subr.mxu0 0.0
    %3960 = vmatpush2.msra.mxu0 0.0
    %3961 = vmatprep.subr.mxu0 0.0
    %3962 = vmatpush2.msra.mxu0 0.0
    %3963 = vmatprep.subr.mxu0 0.0
    %3964 = vmatpush2.msra.mxu0 0.0
    %3965 = vmatprep.subr.mxu0 0.0
    %3966 = vmatpush2.msra.mxu0 0.0
    %3967 = vmatprep.mubr.f32.mxu0 0.0
    %3968 = vmatmul.mubr.f32.gmra.mxu0 %v3745
    %v3969 = vpop.f32.mrf.mxu0
    %v3970 = vadd.f32 0.0, %v3969
    %v3971 = vpop.f32.mrf.mxu0
    %3972 = vdwg.mxu0
    %v3973 = vadd.f32 %v3902, %v3970
    %v3974 = vtanh.pop %v3973
    %v3975 = vld [vmem:[#allocation7] sm:$0xff]
    %3976 = vmatprep.subr.mxu0 0.0
    %3977 = vmatpush1.msra.mxu0 0.0
    %3978 = vmatprep.subr.mxu0 0.0
    %3979 = vmatpush1.msra.mxu0 0.0
    %3980 = vmatprep.subr.mxu0 0.0
    %3981 = vmatpush1.msra.mxu0 0.0
    %3982 = vmatprep.subr.mxu0 0.0
    %3983 = vmatpush1.msra.mxu0 0.0
    %3984 = vmatprep.subr.mxu0 0.0
    %3985 = vmatpush1.msra.mxu0 0.0
    %3986 = vmatprep.subr.mxu0 0.0
    %3987 = vmatpush1.msra.mxu0 0.0
    %3988 = vmatprep.subr.mxu0 0.0
    %3989 = vmatpush1.msra.mxu0 0.0
    %3990 = vmatprep.subr.mxu0 0.0
    %3991 = vmatpush1.msra.mxu0 0.0
    %3992 = vmatprep.subr.mxu0 0.0
    %3993 = vmatpush1.msra.mxu0 0.0
    %3994 = vmatprep.subr.mxu0 0.0
    %3995 = vmatpush1.msra.mxu0 0.0
    %3996 = vmatprep.subr.mxu0 0.0
    %3997 = vmatpush1.msra.mxu0 0.0
    %3998 = vmatprep.subr.mxu0 0.0
    %3999 = vmatpush1.msra.mxu0 0.0
    %4000 = vmatprep.subr.mxu0 0.0
    %4001 = vmatpush1.msra.mxu0 %v3738
    %4002 = vmatprep.subr.mxu0 0.0
    %4003 = vmatpush1.msra.mxu0 %v3737
    %4004 = vmatprep.subr.mxu0 0.0
    %4005 = vmatpush1.msra.mxu0 %v3736
    %4006 = vmatprep.subr.mxu0 0.0
    %4007 = vmatpush1.msra.mxu0 %v3735
    %4008 = vmatprep.subr.mxu0 0.0
    %4009 = vmatpush2.msra.mxu0 0.0
    %4010 = vmatprep.subr.mxu0 0.0
    %4011 = vmatpush2.msra.mxu0 0.0
    %4012 = vmatprep.subr.mxu0 0.0
    %4013 = vmatpush2.msra.mxu0 0.0
    %4014 = vmatprep.subr.mxu0 0.0
    %4015 = vmatpush2.msra.mxu0 0.0
    %4016 = vmatprep.subr.mxu0 0.0
    %4017 = vmatpush2.msra.mxu0 0.0
    %4018 = vmatprep.subr.mxu0 0.0
    %4019 = vmatpush2.msra.mxu0 0.0
    %4020 = vmatprep.subr.mxu0 0.0
    %4021 = vmatpush2.msra.mxu0 0.0
    %4022 = vmatprep.subr.mxu0 0.0
    %4023 = vmatpush2.msra.mxu0 0.0
    %4024 = vmatprep.subr.mxu0 0.0
    %4025 = vmatpush2.msra.mxu0 0.0
    %4026 = vmatprep.subr.mxu0 0.0
    %4027 = vmatpush2.msra.mxu0 0.0
    %4028 = vmatprep.subr.mxu0 0.0
    %4029 = vmatpush2.msra.mxu0 0.0
    %4030 = vmatprep.subr.mxu0 0.0
    %4031 = vmatpush2.msra.mxu0 0.0
    %4032 = vmatprep.subr.mxu0 0.0
    %4033 = vmatpush2.msra.mxu0 0.0
    %4034 = vmatprep.subr.mxu0 0.0
    %4035 = vmatpush2.msra.mxu0 0.0
    %4036 = vmatprep.subr.mxu0 0.0
    %4037 = vmatpush2.msra.mxu0 0.0
    %4038 = vmatprep.subr.mxu0 0.0
    %4039 = vmatpush2.msra.mxu0 0.0
    %4040 = vmatprep.mubr.f32.mxu0 0.0
    %4041 = vmatmul.mubr.f32.gmra.mxu0 %v3745
    %v4042 = vpop.f32.mrf.mxu0
    %v4043 = vadd.f32 0.0, %v4042
    %v4044 = vpop.f32.mrf.mxu0
    %4045 = vdwg.mxu0
    %v4046 = vadd.f32 %v3975, %v4043
    %v4047 = vxor.u32 %v4046, 2147483648
    %v4048 = vmul.f32 %v4047, 1.442695
    %v4049 = vpow.pop %v4048
    %v4050 = vadd.f32 %v4049, 1.0
    %v4051 = vrcp.pop %v4050
    %v4052 = vmul.f32 1.0, %v4051
    %v4053 = vmul.f32 %v3901, %v3742
    %v4054 = vmul.f32 %v3823, %v3974
    %v4055 = vadd.f32 %v4053, %v4054
    %v4056 = vtanh.pop %v4055
    %v4057 = vmul.f32 %v4052, %v4056
    %4058 = vst.msk [vmem:[#allocation3] sm:$0xff] %vm81, %v4057
    %v4059 = vld [vmem:[%s934] sm:$0xff]
    %v4061 = vsel %vm81, %v4057, 0
    %4063 = vmatprep.subr.mxu0 0.0
    %4064 = vmatpush1.msra.mxu0 0.0
    %4065 = vmatprep.subr.mxu0 0.0
    %4066 = vmatpush1.msra.mxu0 0.0
    %4067 = vmatprep.subr.mxu0 0.0
    %4068 = vmatpush1.msra.mxu0 0.0
    %4069 = vmatprep.subr.mxu0 0.0
    %4070 = vmatpush1.msra.mxu0 0.0
    %4071 = vmatprep.subr.mxu0 0.0
    %4072 = vmatpush1.msra.mxu0 0.0
    %4073 = vmatprep.subr.mxu0 0.0
    %4074 = vmatpush1.msra.mxu0 0.0
    %4075 = vmatprep.subr.mxu0 0.0
    %4076 = vmatpush1.msra.mxu0 0.0
    %4077 = vmatprep.subr.mxu0 0.0
    %4078 = vmatpush1.msra.mxu0 0.0
    %4079 = vmatprep.subr.mxu0 0.0
    %4080 = vmatpush1.msra.mxu0 0.0
    %4081 = vmatprep.subr.mxu0 0.0
    %4082 = vmatpush1.msra.mxu0 0.0
    %4083 = vmatprep.subr.mxu0 0.0
    %4084 = vmatpush1.msra.mxu0 0.0
    %4085 = vmatprep.subr.mxu0 0.0
    %4086 = vmatpush1.msra.mxu0 0.0
    %4087 = vmatprep.subr.mxu0 0.0
    %4088 = vmatpush1.msra.mxu0 %v3723
    %4089 = vmatprep.subr.mxu0 0.0
    %4090 = vmatpush1.msra.mxu0 %v3722
    %4091 = vmatprep.subr.mxu0 0.0
    %4092 = vmatpush1.msra.mxu0 %v3721
    %4093 = vmatprep.subr.mxu0 0.0
    %4094 = vmatpush1.msra.mxu0 %v3720
    %4095 = vmatprep.subr.mxu0 0.0
    %4096 = vmatpush2.msra.mxu0 0.0
    %4097 = vmatprep.subr.mxu0 0.0
    %4098 = vmatpush2.msra.mxu0 0.0
    %4099 = vmatprep.subr.mxu0 0.0
    %4100 = vmatpush2.msra.mxu0 0.0
    %4101 = vmatprep.subr.mxu0 0.0
    %4102 = vmatpush2.msra.mxu0 0.0
    %4103 = vmatprep.subr.mxu0 0.0
    %4104 = vmatpush2.msra.mxu0 0.0
    %4105 = vmatprep.subr.mxu0 0.0
    %4106 = vmatpush2.msra.mxu0 0.0
    %4107 = vmatprep.subr.mxu0 0.0
    %4108 = vmatpush2.msra.mxu0 0.0
    %4109 = vmatprep.subr.mxu0 0.0
    %4110 = vmatpush2.msra.mxu0 0.0
    %4111 = vmatprep.subr.mxu0 0.0
    %4112 = vmatpush2.msra.mxu0 0.0
    %4113 = vmatprep.subr.mxu0 0.0
    %4114 = vmatpush2.msra.mxu0 0.0
    %4115 = vmatprep.subr.mxu0 0.0
    %4116 = vmatpush2.msra.mxu0 0.0
    %4117 = vmatprep.subr.mxu0 0.0
    %4118 = vmatpush2.msra.mxu0 0.0
    %4119 = vmatprep.subr.mxu0 0.0
    %4120 = vmatpush2.msra.mxu0 0.0
    %4121 = vmatprep.subr.mxu0 0.0
    %4122 = vmatpush2.msra.mxu0 0.0
    %4123 = vmatprep.subr.mxu0 0.0
    %4124 = vmatpush2.msra.mxu0 0.0
    %4125 = vmatprep.subr.mxu0 0.0
    %4126 = vmatpush2.msra.mxu0 0.0
    %4127 = vmatprep.mubr.f32.mxu0 0.0
    %4128 = vmatmul.mubr.f32.gmra.mxu0 %v4061
    %v4129 = vpop.f32.mrf.mxu0
    %v4130 = vadd.f32 0.0, %v4129
    %v4131 = vpop.f32.mrf.mxu0
    %4132 = vdwg.mxu0
    %v4133 = vadd.f32 %v4059, %v4130
    %v4134 = vxor.u32 %v4133, 2147483648
    %v4135 = vmul.f32 %v4134, 1.442695
    %v4136 = vpow.pop %v4135
    %v4137 = vadd.f32 %v4136, 1.0
    %v4138 = vrcp.pop %v4137
    %v4139 = vmul.f32 1.0, %v4138
    %v4140 = vld [vmem:[%s1016] sm:$0xff]
    %4141 = vmatprep.subr.mxu0 0.0
    %4142 = vmatpush1.msra.mxu0 0.0
    %4143 = vmatprep.subr.mxu0 0.0
    %4144 = vmatpush1.msra.mxu0 0.0
    %4145 = vmatprep.subr.mxu0 0.0
    %4146 = vmatpush1.msra.mxu0 0.0
    %4147 = vmatprep.subr.mxu0 0.0
    %4148 = vmatpush1.msra.mxu0 0.0
    %4149 = vmatprep.subr.mxu0 0.0
    %4150 = vmatpush1.msra.mxu0 0.0
    %4151 = vmatprep.subr.mxu0 0.0
    %4152 = vmatpush1.msra.mxu0 0.0
    %4153 = vmatprep.subr.mxu0 0.0
    %4154 = vmatpush1.msra.mxu0 0.0
    %4155 = vmatprep.subr.mxu0 0.0
    %4156 = vmatpush1.msra.mxu0 0.0
    %4157 = vmatprep.subr.mxu0 0.0
    %4158 = vmatpush1.msra.mxu0 0.0
    %4159 = vmatprep.subr.mxu0 0.0
    %4160 = vmatpush1.msra.mxu0 0.0
    %4161 = vmatprep.subr.mxu0 0.0
    %4162 = vmatpush1.msra.mxu0 0.0
    %4163 = vmatprep.subr.mxu0 0.0
    %4164 = vmatpush1.msra.mxu0 0.0
    %4165 = vmatprep.subr.mxu0 0.0
    %4166 = vmatpush1.msra.mxu0 %v3728
    %4167 = vmatprep.subr.mxu0 0.0
    %4168 = vmatpush1.msra.mxu0 %v3727
    %4169 = vmatprep.subr.mxu0 0.0
    %4170 = vmatpush1.msra.mxu0 %v3726
    %4171 = vmatprep.subr.mxu0 0.0
    %4172 = vmatpush1.msra.mxu0 %v3725
    %4173 = vmatprep.subr.mxu0 0.0
    %4174 = vmatpush2.msra.mxu0 0.0
    %4175 = vmatprep.subr.mxu0 0.0
    %4176 = vmatpush2.msra.mxu0 0.0
    %4177 = vmatprep.subr.mxu0 0.0
    %4178 = vmatpush2.msra.mxu0 0.0
    %4179 = vmatprep.subr.mxu0 0.0
    %4180 = vmatpush2.msra.mxu0 0.0
    %4181 = vmatprep.subr.mxu0 0.0
    %4182 = vmatpush2.msra.mxu0 0.0
    %4183 = vmatprep.subr.mxu0 0.0
    %4184 = vmatpush2.msra.mxu0 0.0
    %4185 = vmatprep.subr.mxu0 0.0
    %4186 = vmatpush2.msra.mxu0 0.0
    %4187 = vmatprep.subr.mxu0 0.0
    %4188 = vmatpush2.msra.mxu0 0.0
    %4189 = vmatprep.subr.mxu0 0.0
    %4190 = vmatpush2.msra.mxu0 0.0
    %4191 = vmatprep.subr.mxu0 0.0
    %4192 = vmatpush2.msra.mxu0 0.0
    %4193 = vmatprep.subr.mxu0 0.0
    %4194 = vmatpush2.msra.mxu0 0.0
    %4195 = vmatprep.subr.mxu0 0.0
    %4196 = vmatpush2.msra.mxu0 0.0
    %4197 = vmatprep.subr.mxu0 0.0
    %4198 = vmatpush2.msra.mxu0 0.0
    %4199 = vmatprep.subr.mxu0 0.0
    %4200 = vmatpush2.msra.mxu0 0.0
    %4201 = vmatprep.subr.mxu0 0.0
    %4202 = vmatpush2.msra.mxu0 0.0
    %4203 = vmatprep.subr.mxu0 0.0
    %4204 = vmatpush2.msra.mxu0 0.0
    %4205 = vmatprep.mubr.f32.mxu0 0.0
    %4206 = vmatmul.mubr.f32.gmra.mxu0 %v4061
    %v4207 = vpop.f32.mrf.mxu0
    %v4208 = vadd.f32 0.0, %v4207
    %v4209 = vpop.f32.mrf.mxu0
    %4210 = vdwg.mxu0
    %v4211 = vadd.f32 %v4140, %v4208
    %v4212 = vxor.u32 %v4211, 2147483648
    %v4213 = vmul.f32 %v4212, 1.442695
    %v4214 = vpow.pop %v4213
    %v4215 = vadd.f32 %v4214, 1.0
    %v4216 = vrcp.pop %v4215
    %v4217 = vmul.f32 1.0, %v4216
    %v4218 = vld [vmem:[%s1095] sm:$0xff]
    %4219 = vmatprep.subr.mxu0 0.0
    %4220 = vmatpush1.msra.mxu0 0.0
    %4221 = vmatprep.subr.mxu0 0.0
    %4222 = vmatpush1.msra.mxu0 0.0
    %4223 = vmatprep.subr.mxu0 0.0
    %4224 = vmatpush1.msra.mxu0 0.0
    %4225 = vmatprep.subr.mxu0 0.0
    %4226 = vmatpush1.msra.mxu0 0.0
    %4227 = vmatprep.subr.mxu0 0.0
    %4228 = vmatpush1.msra.mxu0 0.0
    %4229 = vmatprep.subr.mxu0 0.0
    %4230 = vmatpush1.msra.mxu0 0.0
    %4231 = vmatprep.subr.mxu0 0.0
    %4232 = vmatpush1.msra.mxu0 0.0
    %4233 = vmatprep.subr.mxu0 0.0
    %4234 = vmatpush1.msra.mxu0 0.0
    %4235 = vmatprep.subr.mxu0 0.0
    %4236 = vmatpush1.msra.mxu0 0.0
    %4237 = vmatprep.subr.mxu0 0.0
    %4238 = vmatpush1.msra.mxu0 0.0
    %4239 = vmatprep.subr.mxu0 0.0
    %4240 = vmatpush1.msra.mxu0 0.0
    %4241 = vmatprep.subr.mxu0 0.0
    %4242 = vmatpush1.msra.mxu0 0.0
    %4243 = vmatprep.subr.mxu0 0.0
    %4244 = vmatpush1.msra.mxu0 %v3733
    %4245 = vmatprep.subr.mxu0 0.0
    %4246 = vmatpush1.msra.mxu0 %v3732
    %4247 = vmatprep.subr.mxu0 0.0
    %4248 = vmatpush1.msra.mxu0 %v3731
    %4249 = vmatprep.subr.mxu0 0.0
    %4250 = vmatpush1.msra.mxu0 %v3730
    %4251 = vmatprep.subr.mxu0 0.0
    %4252 = vmatpush2.msra.mxu0 0.0
    %4253 = vmatprep.subr.mxu0 0.0
    %4254 = vmatpush2.msra.mxu0 0.0
    %4255 = vmatprep.subr.mxu0 0.0
    %4256 = vmatpush2.msra.mxu0 0.0
    %4257 = vmatprep.subr.mxu0 0.0
    %4258 = vmatpush2.msra.mxu0 0.0
    %4259 = vmatprep.subr.mxu0 0.0
    %4260 = vmatpush2.msra.mxu0 0.0
    %4261 = vmatprep.subr.mxu0 0.0
    %4262 = vmatpush2.msra.mxu0 0.0
    %4263 = vmatprep.subr.mxu0 0.0
    %4264 = vmatpush2.msra.mxu0 0.0
    %4265 = vmatprep.subr.mxu0 0.0
    %4266 = vmatpush2.msra.mxu0 0.0
    %4267 = vmatprep.subr.mxu0 0.0
    %4268 = vmatpush2.msra.mxu0 0.0
    %4269 = vmatprep.subr.mxu0 0.0
    %4270 = vmatpush2.msra.mxu0 0.0
    %4271 = vmatprep.subr.mxu0 0.0
    %4272 = vmatpush2.msra.mxu0 0.0
    %4273 = vmatprep.subr.mxu0 0.0
    %4274 = vmatpush2.msra.mxu0 0.0
    %4275 = vmatprep.subr.mxu0 0.0
    %4276 = vmatpush2.msra.mxu0 0.0
    %4277 = vmatprep.subr.mxu0 0.0
    %4278 = vmatpush2.msra.mxu0 0.0
    %4279 = vmatprep.subr.mxu0 0.0
    %4280 = vmatpush2.msra.mxu0 0.0
    %4281 = vmatprep.subr.mxu0 0.0
    %4282 = vmatpush2.msra.mxu0 0.0
    %4283 = vmatprep.mubr.f32.mxu0 0.0
    %4284 = vmatmul.mubr.f32.gmra.mxu0 %v4061
    %v4285 = vpop.f32.mrf.mxu0
    %v4286 = vadd.f32 0.0, %v4285
    %v4287 = vpop.f32.mrf.mxu0
    %4288 = vdwg.mxu0
    %v4289 = vadd.f32 %v4218, %v4286
    %v4290 = vtanh.pop %v4289
    %v4291 = vld [vmem:[%s1169] sm:$0xff]
    %4292 = vmatprep.subr.mxu0 0.0
    %4293 = vmatpush1.msra.mxu0 0.0
    %4294 = vmatprep.subr.mxu0 0.0
    %4295 = vmatpush1.msra.mxu0 0.0
    %4296 = vmatprep.subr.mxu0 0.0
    %4297 = vmatpush1.msra.mxu0 0.0
    %4298 = vmatprep.subr.mxu0 0.0
    %4299 = vmatpush1.msra.mxu0 0.0
    %4300 = vmatprep.subr.mxu0 0.0
    %4301 = vmatpush1.msra.mxu0 0.0
    %4302 = vmatprep.subr.mxu0 0.0
    %4303 = vmatpush1.msra.mxu0 0.0
    %4304 = vmatprep.subr.mxu0 0.0
    %4305 = vmatpush1.msra.mxu0 0.0
    %4306 = vmatprep.subr.mxu0 0.0
    %4307 = vmatpush1.msra.mxu0 0.0
    %4308 = vmatprep.subr.mxu0 0.0
    %4309 = vmatpush1.msra.mxu0 0.0
    %4310 = vmatprep.subr.mxu0 0.0
    %4311 = vmatpush1.msra.mxu0 0.0
    %4312 = vmatprep.subr.mxu0 0.0
    %4313 = vmatpush1.msra.mxu0 0.0
    %4314 = vmatprep.subr.mxu0 0.0
    %4315 = vmatpush1.msra.mxu0 0.0
    %4316 = vmatprep.subr.mxu0 0.0
    %4317 = vmatpush1.msra.mxu0 %v3738
    %4318 = vmatprep.subr.mxu0 0.0
    %4319 = vmatpush1.msra.mxu0 %v3737
    %4320 = vmatprep.subr.mxu0 0.0
    %4321 = vmatpush1.msra.mxu0 %v3736
    %4322 = vmatprep.subr.mxu0 0.0
    %4323 = vmatpush1.msra.mxu0 %v3735
    %4324 = vmatprep.subr.mxu0 0.0
    %4325 = vmatpush2.msra.mxu0 0.0
    %4326 = vmatprep.subr.mxu0 0.0
    %4327 = vmatpush2.msra.mxu0 0.0
    %4328 = vmatprep.subr.mxu0 0.0
    %4329 = vmatpush2.msra.mxu0 0.0
    %4330 = vmatprep.subr.mxu0 0.0
    %4331 = vmatpush2.msra.mxu0 0.0
    %4332 = vmatprep.subr.mxu0 0.0
    %4333 = vmatpush2.msra.mxu0 0.0
    %4334 = vmatprep.subr.mxu0 0.0
    %4335 = vmatpush2.msra.mxu0 0.0
    %4336 = vmatprep.subr.mxu0 0.0
    %4337 = vmatpush2.msra.mxu0 0.0
    %4338 = vmatprep.subr.mxu0 0.0
    %4339 = vmatpush2.msra.mxu0 0.0
    %4340 = vmatprep.subr.mxu0 0.0
    %4341 = vmatpush2.msra.mxu0 0.0
    %4342 = vmatprep.subr.mxu0 0.0
    %4343 = vmatpush2.msra.mxu0 0.0
    %4344 = vmatprep.subr.mxu0 0.0
    %4345 = vmatpush2.msra.mxu0 0.0
    %4346 = vmatprep.subr.mxu0 0.0
    %4347 = vmatpush2.msra.mxu0 0.0
    %4348 = vmatprep.subr.mxu0 0.0
    %4349 = vmatpush2.msra.mxu0 0.0
    %4350 = vmatprep.subr.mxu0 0.0
    %4351 = vmatpush2.msra.mxu0 0.0
    %4352 = vmatprep.subr.mxu0 0.0
    %4353 = vmatpush2.msra.mxu0 0.0
    %4354 = vmatprep.subr.mxu0 0.0
    %4355 = vmatpush2.msra.mxu0 0.0
    %4356 = vmatprep.mubr.f32.mxu0 0.0
    %4357 = vmatmul.mubr.f32.gmra.mxu0 %v4061
    %v4358 = vpop.f32.mrf.mxu0
    %v4359 = vadd.f32 0.0, %v4358
    %v4360 = vpop.f32.mrf.mxu0
    %4361 = vdwg.mxu0
    %v4362 = vadd.f32 %v4291, %v4359
    %v4363 = vxor.u32 %v4362, 2147483648
    %v4364 = vmul.f32 %v4363, 1.442695
    %v4365 = vpow.pop %v4364
    %v4366 = vadd.f32 %v4365, 1.0
    %v4367 = vrcp.pop %v4366
    %v4368 = vmul.f32 1.0, %v4367
    %v4369 = vmul.f32 %v4217, %v4055
    %v4370 = vmul.f32 %v4139, %v4290
    %v4371 = vadd.f32 %v4369, %v4370
    %v4372 = vtanh.pop %v4371
    %v4373 = vmul.f32 %v4368, %v4372
    %s4374 = scalar_lea.vmem [#allocation3], 8
    %4375 = vst.msk [vmem:[%s4374] sm:$0xff] %vm81, %v4373
    %v4376 = vld [vmem:[%s1255] sm:$0xff]
    %v4378 = vsel %vm81, %v4373, 0
    %4380 = vmatprep.subr.mxu0 0.0
    %4381 = vmatpush1.msra.mxu0 0.0
    %4382 = vmatprep.subr.mxu0 0.0
    %4383 = vmatpush1.msra.mxu0 0.0
    %4384 = vmatprep.subr.mxu0 0.0
    %4385 = vmatpush1.msra.mxu0 0.0
    %4386 = vmatprep.subr.mxu0 0.0
    %4387 = vmatpush1.msra.mxu0 0.0
    %4388 = vmatprep.subr.mxu0 0.0
    %4389 = vmatpush1.msra.mxu0 0.0
    %4390 = vmatprep.subr.mxu0 0.0
    %4391 = vmatpush1.msra.mxu0 0.0
    %4392 = vmatprep.subr.mxu0 0.0
    %4393 = vmatpush1.msra.mxu0 0.0
    %4394 = vmatprep.subr.mxu0 0.0
    %4395 = vmatpush1.msra.mxu0 0.0
    %4396 = vmatprep.subr.mxu0 0.0
    %4397 = vmatpush1.msra.mxu0 0.0
    %4398 = vmatprep.subr.mxu0 0.0
    %4399 = vmatpush1.msra.mxu0 0.0
    %4400 = vmatprep.subr.mxu0 0.0
    %4401 = vmatpush1.msra.mxu0 0.0
    %4402 = vmatprep.subr.mxu0 0.0
    %4403 = vmatpush1.msra.mxu0 0.0
    %4404 = vmatprep.subr.mxu0 0.0
    %4405 = vmatpush1.msra.mxu0 %v3723
    %4406 = vmatprep.subr.mxu0 0.0
    %4407 = vmatpush1.msra.mxu0 %v3722
    %4408 = vmatprep.subr.mxu0 0.0
    %4409 = vmatpush1.msra.mxu0 %v3721
    %4410 = vmatprep.subr.mxu0 0.0
    %4411 = vmatpush1.msra.mxu0 %v3720
    %4412 = vmatprep.subr.mxu0 0.0
    %4413 = vmatpush2.msra.mxu0 0.0
    %4414 = vmatprep.subr.mxu0 0.0
    %4415 = vmatpush2.msra.mxu0 0.0
    %4416 = vmatprep.subr.mxu0 0.0
    %4417 = vmatpush2.msra.mxu0 0.0
    %4418 = vmatprep.subr.mxu0 0.0
    %4419 = vmatpush2.msra.mxu0 0.0
    %4420 = vmatprep.subr.mxu0 0.0
    %4421 = vmatpush2.msra.mxu0 0.0
    %4422 = vmatprep.subr.mxu0 0.0
    %4423 = vmatpush2.msra.mxu0 0.0
    %4424 = vmatprep.subr.mxu0 0.0
    %4425 = vmatpush2.msra.mxu0 0.0
    %4426 = vmatprep.subr.mxu0 0.0
    %4427 = vmatpush2.msra.mxu0 0.0
    %4428 = vmatprep.subr.mxu0 0.0
    %4429 = vmatpush2.msra.mxu0 0.0
    %4430 = vmatprep.subr.mxu0 0.0
    %4431 = vmatpush2.msra.mxu0 0.0
    %4432 = vmatprep.subr.mxu0 0.0
    %4433 = vmatpush2.msra.mxu0 0.0
    %4434 = vmatprep.subr.mxu0 0.0
    %4435 = vmatpush2.msra.mxu0 0.0
    %4436 = vmatprep.subr.mxu0 0.0
    %4437 = vmatpush2.msra.mxu0 0.0
    %4438 = vmatprep.subr.mxu0 0.0
    %4439 = vmatpush2.msra.mxu0 0.0
    %4440 = vmatprep.subr.mxu0 0.0
    %4441 = vmatpush2.msra.mxu0 0.0
    %4442 = vmatprep.subr.mxu0 0.0
    %4443 = vmatpush2.msra.mxu0 0.0
    %4444 = vmatprep.mubr.f32.mxu0 0.0
    %4445 = vmatmul.mubr.f32.gmra.mxu0 %v4378
    %v4446 = vpop.f32.mrf.mxu0
    %v4447 = vadd.f32 0.0, %v4446
    %v4448 = vpop.f32.mrf.mxu0
    %4449 = vdwg.mxu0
    %v4450 = vadd.f32 %v4376, %v4447
    %v4451 = vxor.u32 %v4450, 2147483648
    %v4452 = vmul.f32 %v4451, 1.442695
    %v4453 = vpow.pop %v4452
    %v4454 = vadd.f32 %v4453, 1.0
    %v4455 = vrcp.pop %v4454
    %v4456 = vmul.f32 1.0, %v4455
    %v4457 = vld [vmem:[%s1337] sm:$0xff]
    %4458 = vmatprep.subr.mxu0 0.0
    %4459 = vmatpush1.msra.mxu0 0.0
    %4460 = vmatprep.subr.mxu0 0.0
    %4461 = vmatpush1.msra.mxu0 0.0
    %4462 = vmatprep.subr.mxu0 0.0
    %4463 = vmatpush1.msra.mxu0 0.0
    %4464 = vmatprep.subr.mxu0 0.0
    %4465 = vmatpush1.msra.mxu0 0.0
    %4466 = vmatprep.subr.mxu0 0.0
    %4467 = vmatpush1.msra.mxu0 0.0
    %4468 = vmatprep.subr.mxu0 0.0
    %4469 = vmatpush1.msra.mxu0 0.0
    %4470 = vmatprep.subr.mxu0 0.0
    %4471 = vmatpush1.msra.mxu0 0.0
    %4472 = vmatprep.subr.mxu0 0.0
    %4473 = vmatpush1.msra.mxu0 0.0
    %4474 = vmatprep.subr.mxu0 0.0
    %4475 = vmatpush1.msra.mxu0 0.0
    %4476 = vmatprep.subr.mxu0 0.0
    %4477 = vmatpush1.msra.mxu0 0.0
    %4478 = vmatprep.subr.mxu0 0.0
    %4479 = vmatpush1.msra.mxu0 0.0
    %4480 = vmatprep.subr.mxu0 0.0
    %4481 = vmatpush1.msra.mxu0 0.0
    %4482 = vmatprep.subr.mxu0 0.0
    %4483 = vmatpush1.msra.mxu0 %v3728
    %4484 = vmatprep.subr.mxu0 0.0
    %4485 = vmatpush1.msra.mxu0 %v3727
    %4486 = vmatprep.subr.mxu0 0.0
    %4487 = vmatpush1.msra.mxu0 %v3726
    %4488 = vmatprep.subr.mxu0 0.0
    %4489 = vmatpush1.msra.mxu0 %v3725
    %4490 = vmatprep.subr.mxu0 0.0
    %4491 = vmatpush2.msra.mxu0 0.0
    %4492 = vmatprep.subr.mxu0 0.0
    %4493 = vmatpush2.msra.mxu0 0.0
    %4494 = vmatprep.subr.mxu0 0.0
    %4495 = vmatpush2.msra.mxu0 0.0
    %4496 = vmatprep.subr.mxu0 0.0
    %4497 = vmatpush2.msra.mxu0 0.0
    %4498 = vmatprep.subr.mxu0 0.0
    %4499 = vmatpush2.msra.mxu0 0.0
    %4500 = vmatprep.subr.mxu0 0.0
    %4501 = vmatpush2.msra.mxu0 0.0
    %4502 = vmatprep.subr.mxu0 0.0
    %4503 = vmatpush2.msra.mxu0 0.0
    %4504 = vmatprep.subr.mxu0 0.0
    %4505 = vmatpush2.msra.mxu0 0.0
    %4506 = vmatprep.subr.mxu0 0.0
    %4507 = vmatpush2.msra.mxu0 0.0
    %4508 = vmatprep.subr.mxu0 0.0
    %4509 = vmatpush2.msra.mxu0 0.0
    %4510 = vmatprep.subr.mxu0 0.0
    %4511 = vmatpush2.msra.mxu0 0.0
    %4512 = vmatprep.subr.mxu0 0.0
    %4513 = vmatpush2.msra.mxu0 0.0
    %4514 = vmatprep.subr.mxu0 0.0
    %4515 = vmatpush2.msra.mxu0 0.0
    %4516 = vmatprep.subr.mxu0 0.0
    %4517 = vmatpush2.msra.mxu0 0.0
    %4518 = vmatprep.subr.mxu0 0.0
    %4519 = vmatpush2.msra.mxu0 0.0
    %4520 = vmatprep.subr.mxu0 0.0
    %4521 = vmatpush2.msra.mxu0 0.0
    %4522 = vmatprep.mubr.f32.mxu0 0.0
    %4523 = vmatmul.mubr.f32.gmra.mxu0 %v4378
    %v4524 = vpop.f32.mrf.mxu0
    %v4525 = vadd.f32 0.0, %v4524
    %v4526 = vpop.f32.mrf.mxu0
    %4527 = vdwg.mxu0
    %v4528 = vadd.f32 %v4457, %v4525
    %v4529 = vxor.u32 %v4528, 2147483648
    %v4530 = vmul.f32 %v4529, 1.442695
    %v4531 = vpow.pop %v4530
    %v4532 = vadd.f32 %v4531, 1.0
    %v4533 = vrcp.pop %v4532
    %v4534 = vmul.f32 1.0, %v4533
    %v4535 = vld [vmem:[%s1416] sm:$0xff]
    %4536 = vmatprep.subr.mxu0 0.0
    %4537 = vmatpush1.msra.mxu0 0.0
    %4538 = vmatprep.subr.mxu0 0.0
    %4539 = vmatpush1.msra.mxu0 0.0
    %4540 = vmatprep.subr.mxu0 0.0
    %4541 = vmatpush1.msra.mxu0 0.0
    %4542 = vmatprep.subr.mxu0 0.0
    %4543 = vmatpush1.msra.mxu0 0.0
    %4544 = vmatprep.subr.mxu0 0.0
    %4545 = vmatpush1.msra.mxu0 0.0
    %4546 = vmatprep.subr.mxu0 0.0
    %4547 = vmatpush1.msra.mxu0 0.0
    %4548 = vmatprep.subr.mxu0 0.0
    %4549 = vmatpush1.msra.mxu0 0.0
    %4550 = vmatprep.subr.mxu0 0.0
    %4551 = vmatpush1.msra.mxu0 0.0
    %4552 = vmatprep.subr.mxu0 0.0
    %4553 = vmatpush1.msra.mxu0 0.0
    %4554 = vmatprep.subr.mxu0 0.0
    %4555 = vmatpush1.msra.mxu0 0.0
    %4556 = vmatprep.subr.mxu0 0.0
    %4557 = vmatpush1.msra.mxu0 0.0
    %4558 = vmatprep.subr.mxu0 0.0
    %4559 = vmatpush1.msra.mxu0 0.0
    %4560 = vmatprep.subr.mxu0 0.0
    %4561 = vmatpush1.msra.mxu0 %v3733
    %4562 = vmatprep.subr.mxu0 0.0
    %4563 = vmatpush1.msra.mxu0 %v3732
    %4564 = vmatprep.subr.mxu0 0.0
    %4565 = vmatpush1.msra.mxu0 %v3731
    %4566 = vmatprep.subr.mxu0 0.0
    %4567 = vmatpush1.msra.mxu0 %v3730
    %4568 = vmatprep.subr.mxu0 0.0
    %4569 = vmatpush2.msra.mxu0 0.0
    %4570 = vmatprep.subr.mxu0 0.0
    %4571 = vmatpush2.msra.mxu0 0.0
    %4572 = vmatprep.subr.mxu0 0.0
    %4573 = vmatpush2.msra.mxu0 0.0
    %4574 = vmatprep.subr.mxu0 0.0
    %4575 = vmatpush2.msra.mxu0 0.0
    %4576 = vmatprep.subr.mxu0 0.0
    %4577 = vmatpush2.msra.mxu0 0.0
    %4578 = vmatprep.subr.mxu0 0.0
    %4579 = vmatpush2.msra.mxu0 0.0
    %4580 = vmatprep.subr.mxu0 0.0
    %4581 = vmatpush2.msra.mxu0 0.0
    %4582 = vmatprep.subr.mxu0 0.0
    %4583 = vmatpush2.msra.mxu0 0.0
    %4584 = vmatprep.subr.mxu0 0.0
    %4585 = vmatpush2.msra.mxu0 0.0
    %4586 = vmatprep.subr.mxu0 0.0
    %4587 = vmatpush2.msra.mxu0 0.0
    %4588 = vmatprep.subr.mxu0 0.0
    %4589 = vmatpush2.msra.mxu0 0.0
    %4590 = vmatprep.subr.mxu0 0.0
    %4591 = vmatpush2.msra.mxu0 0.0
    %4592 = vmatprep.subr.mxu0 0.0
    %4593 = vmatpush2.msra.mxu0 0.0
    %4594 = vmatprep.subr.mxu0 0.0
    %4595 = vmatpush2.msra.mxu0 0.0
    %4596 = vmatprep.subr.mxu0 0.0
    %4597 = vmatpush2.msra.mxu0 0.0
    %4598 = vmatprep.subr.mxu0 0.0
    %4599 = vmatpush2.msra.mxu0 0.0
    %4600 = vmatprep.mubr.f32.mxu0 0.0
    %4601 = vmatmul.mubr.f32.gmra.mxu0 %v4378
    %v4602 = vpop.f32.mrf.mxu0
    %v4603 = vadd.f32 0.0, %v4602
    %v4604 = vpop.f32.mrf.mxu0
    %4605 = vdwg.mxu0
    %v4606 = vadd.f32 %v4535, %v4603
    %v4607 = vtanh.pop %v4606
    %v4608 = vld [vmem:[%s1490] sm:$0xff]
    %4609 = vmatprep.subr.mxu0 0.0
    %4610 = vmatpush1.msra.mxu0 0.0
    %4611 = vmatprep.subr.mxu0 0.0
    %4612 = vmatpush1.msra.mxu0 0.0
    %4613 = vmatprep.subr.mxu0 0.0
    %4614 = vmatpush1.msra.mxu0 0.0
    %4615 = vmatprep.subr.mxu0 0.0
    %4616 = vmatpush1.msra.mxu0 0.0
    %4617 = vmatprep.subr.mxu0 0.0
    %4618 = vmatpush1.msra.mxu0 0.0
    %4619 = vmatprep.subr.mxu0 0.0
    %4620 = vmatpush1.msra.mxu0 0.0
    %4621 = vmatprep.subr.mxu0 0.0
    %4622 = vmatpush1.msra.mxu0 0.0
    %4623 = vmatprep.subr.mxu0 0.0
    %4624 = vmatpush1.msra.mxu0 0.0
    %4625 = vmatprep.subr.mxu0 0.0
    %4626 = vmatpush1.msra.mxu0 0.0
    %4627 = vmatprep.subr.mxu0 0.0
    %4628 = vmatpush1.msra.mxu0 0.0
    %4629 = vmatprep.subr.mxu0 0.0
    %4630 = vmatpush1.msra.mxu0 0.0
    %4631 = vmatprep.subr.mxu0 0.0
    %4632 = vmatpush1.msra.mxu0 0.0
    %4633 = vmatprep.subr.mxu0 0.0
    %4634 = vmatpush1.msra.mxu0 %v3738
    %4635 = vmatprep.subr.mxu0 0.0
    %4636 = vmatpush1.msra.mxu0 %v3737
    %4637 = vmatprep.subr.mxu0 0.0
    %4638 = vmatpush1.msra.mxu0 %v3736
    %4639 = vmatprep.subr.mxu0 0.0
    %4640 = vmatpush1.msra.mxu0 %v3735
    %4641 = vmatprep.subr.mxu0 0.0
    %4642 = vmatpush2.msra.mxu0 0.0
    %4643 = vmatprep.subr.mxu0 0.0
    %4644 = vmatpush2.msra.mxu0 0.0
    %4645 = vmatprep.subr.mxu0 0.0
    %4646 = vmatpush2.msra.mxu0 0.0
    %4647 = vmatprep.subr.mxu0 0.0
    %4648 = vmatpush2.msra.mxu0 0.0
    %4649 = vmatprep.subr.mxu0 0.0
    %4650 = vmatpush2.msra.mxu0 0.0
    %4651 = vmatprep.subr.mxu0 0.0
    %4652 = vmatpush2.msra.mxu0 0.0
    %4653 = vmatprep.subr.mxu0 0.0
    %4654 = vmatpush2.msra.mxu0 0.0
    %4655 = vmatprep.subr.mxu0 0.0
    %4656 = vmatpush2.msra.mxu0 0.0
    %4657 = vmatprep.subr.mxu0 0.0
    %4658 = vmatpush2.msra.mxu0 0.0
    %4659 = vmatprep.subr.mxu0 0.0
    %4660 = vmatpush2.msra.mxu0 0.0
    %4661 = vmatprep.subr.mxu0 0.0
    %4662 = vmatpush2.msra.mxu0 0.0
    %4663 = vmatprep.subr.mxu0 0.0
    %4664 = vmatpush2.msra.mxu0 0.0
    %4665 = vmatprep.subr.mxu0 0.0
    %4666 = vmatpush2.msra.mxu0 0.0
    %4667 = vmatprep.subr.mxu0 0.0
    %4668 = vmatpush2.msra.mxu0 0.0
    %4669 = vmatprep.subr.mxu0 0.0
    %4670 = vmatpush2.msra.mxu0 0.0
    %4671 = vmatprep.subr.mxu0 0.0
    %4672 = vmatpush2.msra.mxu0 0.0
    %4673 = vmatprep.mubr.f32.mxu0 0.0
    %4674 = vmatmul.mubr.f32.gmra.mxu0 %v4378
    %v4675 = vpop.f32.mrf.mxu0
    %v4676 = vadd.f32 0.0, %v4675
    %v4677 = vpop.f32.mrf.mxu0
    %4678 = vdwg.mxu0
    %v4679 = vadd.f32 %v4608, %v4676
    %v4680 = vxor.u32 %v4679, 2147483648
    %v4681 = vmul.f32 %v4680, 1.442695
    %v4682 = vpow.pop %v4681
    %v4683 = vadd.f32 %v4682, 1.0
    %v4684 = vrcp.pop %v4683
    %v4685 = vmul.f32 1.0, %v4684
    %v4686 = vmul.f32 %v4534, %v4371
    %v4687 = vmul.f32 %v4456, %v4607
    %v4688 = vadd.f32 %v4686, %v4687
    %v4689 = vtanh.pop %v4688
    %v4690 = vmul.f32 %v4685, %v4689
    %s4691 = scalar_lea.vmem [#allocation3], 16
    %4692 = vst.msk [vmem:[%s4691] sm:$0xff] %vm81, %v4690
    %v4693 = vld [vmem:[%s1576] sm:$0xff]
    %v4695 = vsel %vm81, %v4690, 0
    %4697 = vmatprep.subr.mxu0 0.0
    %4698 = vmatpush1.msra.mxu0 0.0
    %4699 = vmatprep.subr.mxu0 0.0
    %4700 = vmatpush1.msra.mxu0 0.0
    %4701 = vmatprep.subr.mxu0 0.0
    %4702 = vmatpush1.msra.mxu0 0.0
    %4703 = vmatprep.subr.mxu0 0.0
    %4704 = vmatpush1.msra.mxu0 0.0
    %4705 = vmatprep.subr.mxu0 0.0
    %4706 = vmatpush1.msra.mxu0 0.0
    %4707 = vmatprep.subr.mxu0 0.0
    %4708 = vmatpush1.msra.mxu0 0.0
    %4709 = vmatprep.subr.mxu0 0.0
    %4710 = vmatpush1.msra.mxu0 0.0
    %4711 = vmatprep.subr.mxu0 0.0
    %4712 = vmatpush1.msra.mxu0 0.0
    %4713 = vmatprep.subr.mxu0 0.0
    %4714 = vmatpush1.msra.mxu0 0.0
    %4715 = vmatprep.subr.mxu0 0.0
    %4716 = vmatpush1.msra.mxu0 0.0
    %4717 = vmatprep.subr.mxu0 0.0
    %4718 = vmatpush1.msra.mxu0 0.0
    %4719 = vmatprep.subr.mxu0 0.0
    %4720 = vmatpush1.msra.mxu0 0.0
    %4721 = vmatprep.subr.mxu0 0.0
    %4722 = vmatpush1.msra.mxu0 %v3723
    %4723 = vmatprep.subr.mxu0 0.0
    %4724 = vmatpush1.msra.mxu0 %v3722
    %4725 = vmatprep.subr.mxu0 0.0
    %4726 = vmatpush1.msra.mxu0 %v3721
    %4727 = vmatprep.subr.mxu0 0.0
    %4728 = vmatpush1.msra.mxu0 %v3720
    %4729 = vmatprep.subr.mxu0 0.0
    %4730 = vmatpush2.msra.mxu0 0.0
    %4731 = vmatprep.subr.mxu0 0.0
    %4732 = vmatpush2.msra.mxu0 0.0
    %4733 = vmatprep.subr.mxu0 0.0
    %4734 = vmatpush2.msra.mxu0 0.0
    %4735 = vmatprep.subr.mxu0 0.0
    %4736 = vmatpush2.msra.mxu0 0.0
    %4737 = vmatprep.subr.mxu0 0.0
    %4738 = vmatpush2.msra.mxu0 0.0
    %4739 = vmatprep.subr.mxu0 0.0
    %4740 = vmatpush2.msra.mxu0 0.0
    %4741 = vmatprep.subr.mxu0 0.0
    %4742 = vmatpush2.msra.mxu0 0.0
    %4743 = vmatprep.subr.mxu0 0.0
    %4744 = vmatpush2.msra.mxu0 0.0
    %4745 = vmatprep.subr.mxu0 0.0
    %4746 = vmatpush2.msra.mxu0 0.0
    %4747 = vmatprep.subr.mxu0 0.0
    %4748 = vmatpush2.msra.mxu0 0.0
    %4749 = vmatprep.subr.mxu0 0.0
    %4750 = vmatpush2.msra.mxu0 0.0
    %4751 = vmatprep.subr.mxu0 0.0
    %4752 = vmatpush2.msra.mxu0 0.0
    %4753 = vmatprep.subr.mxu0 0.0
    %4754 = vmatpush2.msra.mxu0 0.0
    %4755 = vmatprep.subr.mxu0 0.0
    %4756 = vmatpush2.msra.mxu0 0.0
    %4757 = vmatprep.subr.mxu0 0.0
    %4758 = vmatpush2.msra.mxu0 0.0
    %4759 = vmatprep.subr.mxu0 0.0
    %4760 = vmatpush2.msra.mxu0 0.0
    %4761 = vmatprep.mubr.f32.mxu0 0.0
    %4762 = vmatmul.mubr.f32.gmra.mxu0 %v4695
    %v4763 = vpop.f32.mrf.mxu0
    %v4764 = vadd.f32 0.0, %v4763
    %v4765 = vpop.f32.mrf.mxu0
    %4766 = vdwg.mxu0
    %v4767 = vadd.f32 %v4693, %v4764
    %v4768 = vxor.u32 %v4767, 2147483648
    %v4769 = vmul.f32 %v4768, 1.442695
    %v4770 = vpow.pop %v4769
    %v4771 = vadd.f32 %v4770, 1.0
    %v4772 = vrcp.pop %v4771
    %v4773 = vmul.f32 1.0, %v4772
    %v4774 = vld [vmem:[%s1658] sm:$0xff]
    %4775 = vmatprep.subr.mxu0 0.0
    %4776 = vmatpush1.msra.mxu0 0.0
    %4777 = vmatprep.subr.mxu0 0.0
    %4778 = vmatpush1.msra.mxu0 0.0
    %4779 = vmatprep.subr.mxu0 0.0
    %4780 = vmatpush1.msra.mxu0 0.0
    %4781 = vmatprep.subr.mxu0 0.0
    %4782 = vmatpush1.msra.mxu0 0.0
    %4783 = vmatprep.subr.mxu0 0.0
    %4784 = vmatpush1.msra.mxu0 0.0
    %4785 = vmatprep.subr.mxu0 0.0
    %4786 = vmatpush1.msra.mxu0 0.0
    %4787 = vmatprep.subr.mxu0 0.0
    %4788 = vmatpush1.msra.mxu0 0.0
    %4789 = vmatprep.subr.mxu0 0.0
    %4790 = vmatpush1.msra.mxu0 0.0
    %4791 = vmatprep.subr.mxu0 0.0
    %4792 = vmatpush1.msra.mxu0 0.0
    %4793 = vmatprep.subr.mxu0 0.0
    %4794 = vmatpush1.msra.mxu0 0.0
    %4795 = vmatprep.subr.mxu0 0.0
    %4796 = vmatpush1.msra.mxu0 0.0
    %4797 = vmatprep.subr.mxu0 0.0
    %4798 = vmatpush1.msra.mxu0 0.0
    %4799 = vmatprep.subr.mxu0 0.0
    %4800 = vmatpush1.msra.mxu0 %v3728
    %4801 = vmatprep.subr.mxu0 0.0
    %4802 = vmatpush1.msra.mxu0 %v3727
    %4803 = vmatprep.subr.mxu0 0.0
    %4804 = vmatpush1.msra.mxu0 %v3726
    %4805 = vmatprep.subr.mxu0 0.0
    %4806 = vmatpush1.msra.mxu0 %v3725
    %4807 = vmatprep.subr.mxu0 0.0
    %4808 = vmatpush2.msra.mxu0 0.0
    %4809 = vmatprep.subr.mxu0 0.0
    %4810 = vmatpush2.msra.mxu0 0.0
    %4811 = vmatprep.subr.mxu0 0.0
    %4812 = vmatpush2.msra.mxu0 0.0
    %4813 = vmatprep.subr.mxu0 0.0
    %4814 = vmatpush2.msra.mxu0 0.0
    %4815 = vmatprep.subr.mxu0 0.0
    %4816 = vmatpush2.msra.mxu0 0.0
    %4817 = vmatprep.subr.mxu0 0.0
    %4818 = vmatpush2.msra.mxu0 0.0
    %4819 = vmatprep.subr.mxu0 0.0
    %4820 = vmatpush2.msra.mxu0 0.0
    %4821 = vmatprep.subr.mxu0 0.0
    %4822 = vmatpush2.msra.mxu0 0.0
    %4823 = vmatprep.subr.mxu0 0.0
    %4824 = vmatpush2.msra.mxu0 0.0
    %4825 = vmatprep.subr.mxu0 0.0
    %4826 = vmatpush2.msra.mxu0 0.0
    %4827 = vmatprep.subr.mxu0 0.0
    %4828 = vmatpush2.msra.mxu0 0.0
    %4829 = vmatprep.subr.mxu0 0.0
    %4830 = vmatpush2.msra.mxu0 0.0
    %4831 = vmatprep.subr.mxu0 0.0
    %4832 = vmatpush2.msra.mxu0 0.0
    %4833 = vmatprep.subr.mxu0 0.0
    %4834 = vmatpush2.msra.mxu0 0.0
    %4835 = vmatprep.subr.mxu0 0.0
    %4836 = vmatpush2.msra.mxu0 0.0
    %4837 = vmatprep.subr.mxu0 0.0
    %4838 = vmatpush2.msra.mxu0 0.0
    %4839 = vmatprep.mubr.f32.mxu0 0.0
    %4840 = vmatmul.mubr.f32.gmra.mxu0 %v4695
    %v4841 = vpop.f32.mrf.mxu0
    %v4842 = vadd.f32 0.0, %v4841
    %v4843 = vpop.f32.mrf.mxu0
    %4844 = vdwg.mxu0
    %v4845 = vadd.f32 %v4774, %v4842
    %v4846 = vxor.u32 %v4845, 2147483648
    %v4847 = vmul.f32 %v4846, 1.442695
    %v4848 = vpow.pop %v4847
    %v4849 = vadd.f32 %v4848, 1.0
    %v4850 = vrcp.pop %v4849
    %v4851 = vmul.f32 1.0, %v4850
    %v4852 = vld [vmem:[%s1737] sm:$0xff]
    %4853 = vmatprep.subr.mxu0 0.0
    %4854 = vmatpush1.msra.mxu0 0.0
    %4855 = vmatprep.subr.mxu0 0.0
    %4856 = vmatpush1.msra.mxu0 0.0
    %4857 = vmatprep.subr.mxu0 0.0
    %4858 = vmatpush1.msra.mxu0 0.0
    %4859 = vmatprep.subr.mxu0 0.0
    %4860 = vmatpush1.msra.mxu0 0.0
    %4861 = vmatprep.subr.mxu0 0.0
    %4862 = vmatpush1.msra.mxu0 0.0
    %4863 = vmatprep.subr.mxu0 0.0
    %4864 = vmatpush1.msra.mxu0 0.0
    %4865 = vmatprep.subr.mxu0 0.0
    %4866 = vmatpush1.msra.mxu0 0.0
    %4867 = vmatprep.subr.mxu0 0.0
    %4868 = vmatpush1.msra.mxu0 0.0
    %4869 = vmatprep.subr.mxu0 0.0
    %4870 = vmatpush1.msra.mxu0 0.0
    %4871 = vmatprep.subr.mxu0 0.0
    %4872 = vmatpush1.msra.mxu0 0.0
    %4873 = vmatprep.subr.mxu0 0.0
    %4874 = vmatpush1.msra.mxu0 0.0
    %4875 = vmatprep.subr.mxu0 0.0
    %4876 = vmatpush1.msra.mxu0 0.0
    %4877 = vmatprep.subr.mxu0 0.0
    %4878 = vmatpush1.msra.mxu0 %v3733
    %4879 = vmatprep.subr.mxu0 0.0
    %4880 = vmatpush1.msra.mxu0 %v3732
    %4881 = vmatprep.subr.mxu0 0.0
    %4882 = vmatpush1.msra.mxu0 %v3731
    %4883 = vmatprep.subr.mxu0 0.0
    %4884 = vmatpush1.msra.mxu0 %v3730
    %4885 = vmatprep.subr.mxu0 0.0
    %4886 = vmatpush2.msra.mxu0 0.0
    %4887 = vmatprep.subr.mxu0 0.0
    %4888 = vmatpush2.msra.mxu0 0.0
    %4889 = vmatprep.subr.mxu0 0.0
    %4890 = vmatpush2.msra.mxu0 0.0
    %4891 = vmatprep.subr.mxu0 0.0
    %4892 = vmatpush2.msra.mxu0 0.0
    %4893 = vmatprep.subr.mxu0 0.0
    %4894 = vmatpush2.msra.mxu0 0.0
    %4895 = vmatprep.subr.mxu0 0.0
    %4896 = vmatpush2.msra.mxu0 0.0
    %4897 = vmatprep.subr.mxu0 0.0
    %4898 = vmatpush2.msra.mxu0 0.0
    %4899 = vmatprep.subr.mxu0 0.0
    %4900 = vmatpush2.msra.mxu0 0.0
    %4901 = vmatprep.subr.mxu0 0.0
    %4902 = vmatpush2.msra.mxu0 0.0
    %4903 = vmatprep.subr.mxu0 0.0
    %4904 = vmatpush2.msra.mxu0 0.0
    %4905 = vmatprep.subr.mxu0 0.0
    %4906 = vmatpush2.msra.mxu0 0.0
    %4907 = vmatprep.subr.mxu0 0.0
    %4908 = vmatpush2.msra.mxu0 0.0
    %4909 = vmatprep.subr.mxu0 0.0
    %4910 = vmatpush2.msra.mxu0 0.0
    %4911 = vmatprep.subr.mxu0 0.0
    %4912 = vmatpush2.msra.mxu0 0.0
    %4913 = vmatprep.subr.mxu0 0.0
    %4914 = vmatpush2.msra.mxu0 0.0
    %4915 = vmatprep.subr.mxu0 0.0
    %4916 = vmatpush2.msra.mxu0 0.0
    %4917 = vmatprep.mubr.f32.mxu0 0.0
    %4918 = vmatmul.mubr.f32.gmra.mxu0 %v4695
    %v4919 = vpop.f32.mrf.mxu0
    %v4920 = vadd.f32 0.0, %v4919
    %v4921 = vpop.f32.mrf.mxu0
    %4922 = vdwg.mxu0
    %v4923 = vadd.f32 %v4852, %v4920
    %v4924 = vtanh.pop %v4923
    %v4925 = vld [vmem:[%s1811] sm:$0xff]
    %4926 = vmatprep.subr.mxu0 0.0
    %4927 = vmatpush1.msra.mxu0 0.0
    %4928 = vmatprep.subr.mxu0 0.0
    %4929 = vmatpush1.msra.mxu0 0.0
    %4930 = vmatprep.subr.mxu0 0.0
    %4931 = vmatpush1.msra.mxu0 0.0
    %4932 = vmatprep.subr.mxu0 0.0
    %4933 = vmatpush1.msra.mxu0 0.0
    %4934 = vmatprep.subr.mxu0 0.0
    %4935 = vmatpush1.msra.mxu0 0.0
    %4936 = vmatprep.subr.mxu0 0.0
    %4937 = vmatpush1.msra.mxu0 0.0
    %4938 = vmatprep.subr.mxu0 0.0
    %4939 = vmatpush1.msra.mxu0 0.0
    %4940 = vmatprep.subr.mxu0 0.0
    %4941 = vmatpush1.msra.mxu0 0.0
    %4942 = vmatprep.subr.mxu0 0.0
    %4943 = vmatpush1.msra.mxu0 0.0
    %4944 = vmatprep.subr.mxu0 0.0
    %4945 = vmatpush1.msra.mxu0 0.0
    %4946 = vmatprep.subr.mxu0 0.0
    %4947 = vmatpush1.msra.mxu0 0.0
    %4948 = vmatprep.subr.mxu0 0.0
    %4949 = vmatpush1.msra.mxu0 0.0
    %4950 = vmatprep.subr.mxu0 0.0
    %4951 = vmatpush1.msra.mxu0 %v3738
    %4952 = vmatprep.subr.mxu0 0.0
    %4953 = vmatpush1.msra.mxu0 %v3737
    %4954 = vmatprep.subr.mxu0 0.0
    %4955 = vmatpush1.msra.mxu0 %v3736
    %4956 = vmatprep.subr.mxu0 0.0
    %4957 = vmatpush1.msra.mxu0 %v3735
    %4958 = vmatprep.subr.mxu0 0.0
    %4959 = vmatpush2.msra.mxu0 0.0
    %4960 = vmatprep.subr.mxu0 0.0
    %4961 = vmatpush2.msra.mxu0 0.0
    %4962 = vmatprep.subr.mxu0 0.0
    %4963 = vmatpush2.msra.mxu0 0.0
    %4964 = vmatprep.subr.mxu0 0.0
    %4965 = vmatpush2.msra.mxu0 0.0
    %4966 = vmatprep.subr.mxu0 0.0
    %4967 = vmatpush2.msra.mxu0 0.0
    %4968 = vmatprep.subr.mxu0 0.0
    %4969 = vmatpush2.msra.mxu0 0.0
    %4970 = vmatprep.subr.mxu0 0.0
    %4971 = vmatpush2.msra.mxu0 0.0
    %4972 = vmatprep.subr.mxu0 0.0
    %4973 = vmatpush2.msra.mxu0 0.0
    %4974 = vmatprep.subr.mxu0 0.0
    %4975 = vmatpush2.msra.mxu0 0.0
    %4976 = vmatprep.subr.mxu0 0.0
    %4977 = vmatpush2.msra.mxu0 0.0
    %4978 = vmatprep.subr.mxu0 0.0
    %4979 = vmatpush2.msra.mxu0 0.0
    %4980 = vmatprep.subr.mxu0 0.0
    %4981 = vmatpush2.msra.mxu0 0.0
    %4982 = vmatprep.subr.mxu0 0.0
    %4983 = vmatpush2.msra.mxu0 0.0
    %4984 = vmatprep.subr.mxu0 0.0
    %4985 = vmatpush2.msra.mxu0 0.0
    %4986 = vmatprep.subr.mxu0 0.0
    %4987 = vmatpush2.msra.mxu0 0.0
    %4988 = vmatprep.subr.mxu0 0.0
    %4989 = vmatpush2.msra.mxu0 0.0
    %4990 = vmatprep.mubr.f32.mxu0 0.0
    %4991 = vmatmul.mubr.f32.gmra.mxu0 %v4695
    %v4992 = vpop.f32.mrf.mxu0
    %v4993 = vadd.f32 0.0, %v4992
    %v4994 = vpop.f32.mrf.mxu0
    %4995 = vdwg.mxu0
    %v4996 = vadd.f32 %v4925, %v4993
    %v4997 = vxor.u32 %v4996, 2147483648
    %v4998 = vmul.f32 %v4997, 1.442695
    %v4999 = vpow.pop %v4998
    %v5000 = vadd.f32 %v4999, 1.0
    %v5001 = vrcp.pop %v5000
    %v5002 = vmul.f32 1.0, %v5001
    %v5003 = vmul.f32 %v4851, %v4688
    %v5004 = vmul.f32 %v4773, %v4924
    %v5005 = vadd.f32 %v5003, %v5004
    %v5006 = vtanh.pop %v5005
    %v5007 = vmul.f32 %v5002, %v5006
    %s5008 = scalar_lea.vmem [#allocation3], 24
    %5009 = vst.msk [vmem:[%s5008] sm:$0xff] %vm81, %v5007
    %v5010 = vld [vmem:[%s1897] sm:$0xff]
    %v5012 = vsel %vm81, %v5007, 0
    %5014 = vmatprep.subr.mxu0 0.0
    %5015 = vmatpush1.msra.mxu0 0.0
    %5016 = vmatprep.subr.mxu0 0.0
    %5017 = vmatpush1.msra.mxu0 0.0
    %5018 = vmatprep.subr.mxu0 0.0
    %5019 = vmatpush1.msra.mxu0 0.0
    %5020 = vmatprep.subr.mxu0 0.0
    %5021 = vmatpush1.msra.mxu0 0.0
    %5022 = vmatprep.subr.mxu0 0.0
    %5023 = vmatpush1.msra.mxu0 0.0
    %5024 = vmatprep.subr.mxu0 0.0
    %5025 = vmatpush1.msra.mxu0 0.0
    %5026 = vmatprep.subr.mxu0 0.0
    %5027 = vmatpush1.msra.mxu0 0.0
    %5028 = vmatprep.subr.mxu0 0.0
    %5029 = vmatpush1.msra.mxu0 0.0
    %5030 = vmatprep.subr.mxu0 0.0
    %5031 = vmatpush1.msra.mxu0 0.0
    %5032 = vmatprep.subr.mxu0 0.0
    %5033 = vmatpush1.msra.mxu0 0.0
    %5034 = vmatprep.subr.mxu0 0.0
    %5035 = vmatpush1.msra.mxu0 0.0
    %5036 = vmatprep.subr.mxu0 0.0
    %5037 = vmatpush1.msra.mxu0 0.0
    %5038 = vmatprep.subr.mxu0 0.0
    %5039 = vmatpush1.msra.mxu0 %v3723
    %5040 = vmatprep.subr.mxu0 0.0
    %5041 = vmatpush1.msra.mxu0 %v3722
    %5042 = vmatprep.subr.mxu0 0.0
    %5043 = vmatpush1.msra.mxu0 %v3721
    %5044 = vmatprep.subr.mxu0 0.0
    %5045 = vmatpush1.msra.mxu0 %v3720
    %5046 = vmatprep.subr.mxu0 0.0
    %5047 = vmatpush2.msra.mxu0 0.0
    %5048 = vmatprep.subr.mxu0 0.0
    %5049 = vmatpush2.msra.mxu0 0.0
    %5050 = vmatprep.subr.mxu0 0.0
    %5051 = vmatpush2.msra.mxu0 0.0
    %5052 = vmatprep.subr.mxu0 0.0
    %5053 = vmatpush2.msra.mxu0 0.0
    %5054 = vmatprep.subr.mxu0 0.0
    %5055 = vmatpush2.msra.mxu0 0.0
    %5056 = vmatprep.subr.mxu0 0.0
    %5057 = vmatpush2.msra.mxu0 0.0
    %5058 = vmatprep.subr.mxu0 0.0
    %5059 = vmatpush2.msra.mxu0 0.0
    %5060 = vmatprep.subr.mxu0 0.0
    %5061 = vmatpush2.msra.mxu0 0.0
    %5062 = vmatprep.subr.mxu0 0.0
    %5063 = vmatpush2.msra.mxu0 0.0
    %5064 = vmatprep.subr.mxu0 0.0
    %5065 = vmatpush2.msra.mxu0 0.0
    %5066 = vmatprep.subr.mxu0 0.0
    %5067 = vmatpush2.msra.mxu0 0.0
    %5068 = vmatprep.subr.mxu0 0.0
    %5069 = vmatpush2.msra.mxu0 0.0
    %5070 = vmatprep.subr.mxu0 0.0
    %5071 = vmatpush2.msra.mxu0 0.0
    %5072 = vmatprep.subr.mxu0 0.0
    %5073 = vmatpush2.msra.mxu0 0.0
    %5074 = vmatprep.subr.mxu0 0.0
    %5075 = vmatpush2.msra.mxu0 0.0
    %5076 = vmatprep.subr.mxu0 0.0
    %5077 = vmatpush2.msra.mxu0 0.0
    %5078 = vmatprep.mubr.f32.mxu0 0.0
    %5079 = vmatmul.mubr.f32.gmra.mxu0 %v5012
    %v5080 = vpop.f32.mrf.mxu0
    %v5081 = vadd.f32 0.0, %v5080
    %v5082 = vpop.f32.mrf.mxu0
    %5083 = vdwg.mxu0
    %v5084 = vadd.f32 %v5010, %v5081
    %v5085 = vxor.u32 %v5084, 2147483648
    %v5086 = vmul.f32 %v5085, 1.442695
    %v5087 = vpow.pop %v5086
    %v5088 = vadd.f32 %v5087, 1.0
    %v5089 = vrcp.pop %v5088
    %v5090 = vmul.f32 1.0, %v5089
    %v5091 = vld [vmem:[%s1979] sm:$0xff]
    %5092 = vmatprep.subr.mxu0 0.0
    %5093 = vmatpush1.msra.mxu0 0.0
    %5094 = vmatprep.subr.mxu0 0.0
    %5095 = vmatpush1.msra.mxu0 0.0
    %5096 = vmatprep.subr.mxu0 0.0
    %5097 = vmatpush1.msra.mxu0 0.0
    %5098 = vmatprep.subr.mxu0 0.0
    %5099 = vmatpush1.msra.mxu0 0.0
    %5100 = vmatprep.subr.mxu0 0.0
    %5101 = vmatpush1.msra.mxu0 0.0
    %5102 = vmatprep.subr.mxu0 0.0
    %5103 = vmatpush1.msra.mxu0 0.0
    %5104 = vmatprep.subr.mxu0 0.0
    %5105 = vmatpush1.msra.mxu0 0.0
    %5106 = vmatprep.subr.mxu0 0.0
    %5107 = vmatpush1.msra.mxu0 0.0
    %5108 = vmatprep.subr.mxu0 0.0
    %5109 = vmatpush1.msra.mxu0 0.0
    %5110 = vmatprep.subr.mxu0 0.0
    %5111 = vmatpush1.msra.mxu0 0.0
    %5112 = vmatprep.subr.mxu0 0.0
    %5113 = vmatpush1.msra.mxu0 0.0
    %5114 = vmatprep.subr.mxu0 0.0
    %5115 = vmatpush1.msra.mxu0 0.0
    %5116 = vmatprep.subr.mxu0 0.0
    %5117 = vmatpush1.msra.mxu0 %v3728
    %5118 = vmatprep.subr.mxu0 0.0
    %5119 = vmatpush1.msra.mxu0 %v3727
    %5120 = vmatprep.subr.mxu0 0.0
    %5121 = vmatpush1.msra.mxu0 %v3726
    %5122 = vmatprep.subr.mxu0 0.0
    %5123 = vmatpush1.msra.mxu0 %v3725
    %5124 = vmatprep.subr.mxu0 0.0
    %5125 = vmatpush2.msra.mxu0 0.0
    %5126 = vmatprep.subr.mxu0 0.0
    %5127 = vmatpush2.msra.mxu0 0.0
    %5128 = vmatprep.subr.mxu0 0.0
    %5129 = vmatpush2.msra.mxu0 0.0
    %5130 = vmatprep.subr.mxu0 0.0
    %5131 = vmatpush2.msra.mxu0 0.0
    %5132 = vmatprep.subr.mxu0 0.0
    %5133 = vmatpush2.msra.mxu0 0.0
    %5134 = vmatprep.subr.mxu0 0.0
    %5135 = vmatpush2.msra.mxu0 0.0
    %5136 = vmatprep.subr.mxu0 0.0
    %5137 = vmatpush2.msra.mxu0 0.0
    %5138 = vmatprep.subr.mxu0 0.0
    %5139 = vmatpush2.msra.mxu0 0.0
    %5140 = vmatprep.subr.mxu0 0.0
    %5141 = vmatpush2.msra.mxu0 0.0
    %5142 = vmatprep.subr.mxu0 0.0
    %5143 = vmatpush2.msra.mxu0 0.0
    %5144 = vmatprep.subr.mxu0 0.0
    %5145 = vmatpush2.msra.mxu0 0.0
    %5146 = vmatprep.subr.mxu0 0.0
    %5147 = vmatpush2.msra.mxu0 0.0
    %5148 = vmatprep.subr.mxu0 0.0
    %5149 = vmatpush2.msra.mxu0 0.0
    %5150 = vmatprep.subr.mxu0 0.0
    %5151 = vmatpush2.msra.mxu0 0.0
    %5152 = vmatprep.subr.mxu0 0.0
    %5153 = vmatpush2.msra.mxu0 0.0
    %5154 = vmatprep.subr.mxu0 0.0
    %5155 = vmatpush2.msra.mxu0 0.0
    %5156 = vmatprep.mubr.f32.mxu0 0.0
    %5157 = vmatmul.mubr.f32.gmra.mxu0 %v5012
    %v5158 = vpop.f32.mrf.mxu0
    %v5159 = vadd.f32 0.0, %v5158
    %v5160 = vpop.f32.mrf.mxu0
    %5161 = vdwg.mxu0
    %v5162 = vadd.f32 %v5091, %v5159
    %v5163 = vxor.u32 %v5162, 2147483648
    %v5164 = vmul.f32 %v5163, 1.442695
    %v5165 = vpow.pop %v5164
    %v5166 = vadd.f32 %v5165, 1.0
    %v5167 = vrcp.pop %v5166
    %v5168 = vmul.f32 1.0, %v5167
    %v5169 = vld [vmem:[%s2058] sm:$0xff]
    %5170 = vmatprep.subr.mxu0 0.0
    %5171 = vmatpush1.msra.mxu0 0.0
    %5172 = vmatprep.subr.mxu0 0.0
    %5173 = vmatpush1.msra.mxu0 0.0
    %5174 = vmatprep.subr.mxu0 0.0
    %5175 = vmatpush1.msra.mxu0 0.0
    %5176 = vmatprep.subr.mxu0 0.0
    %5177 = vmatpush1.msra.mxu0 0.0
    %5178 = vmatprep.subr.mxu0 0.0
    %5179 = vmatpush1.msra.mxu0 0.0
    %5180 = vmatprep.subr.mxu0 0.0
    %5181 = vmatpush1.msra.mxu0 0.0
    %5182 = vmatprep.subr.mxu0 0.0
    %5183 = vmatpush1.msra.mxu0 0.0
    %5184 = vmatprep.subr.mxu0 0.0
    %5185 = vmatpush1.msra.mxu0 0.0
    %5186 = vmatprep.subr.mxu0 0.0
    %5187 = vmatpush1.msra.mxu0 0.0
    %5188 = vmatprep.subr.mxu0 0.0
    %5189 = vmatpush1.msra.mxu0 0.0
    %5190 = vmatprep.subr.mxu0 0.0
    %5191 = vmatpush1.msra.mxu0 0.0
    %5192 = vmatprep.subr.mxu0 0.0
    %5193 = vmatpush1.msra.mxu0 0.0
    %5194 = vmatprep.subr.mxu0 0.0
    %5195 = vmatpush1.msra.mxu0 %v3733
    %5196 = vmatprep.subr.mxu0 0.0
    %5197 = vmatpush1.msra.mxu0 %v3732
    %5198 = vmatprep.subr.mxu0 0.0
    %5199 = vmatpush1.msra.mxu0 %v3731
    %5200 = vmatprep.subr.mxu0 0.0
    %5201 = vmatpush1.msra.mxu0 %v3730
    %5202 = vmatprep.subr.mxu0 0.0
    %5203 = vmatpush2.msra.mxu0 0.0
    %5204 = vmatprep.subr.mxu0 0.0
    %5205 = vmatpush2.msra.mxu0 0.0
    %5206 = vmatprep.subr.mxu0 0.0
    %5207 = vmatpush2.msra.mxu0 0.0
    %5208 = vmatprep.subr.mxu0 0.0
    %5209 = vmatpush2.msra.mxu0 0.0
    %5210 = vmatprep.subr.mxu0 0.0
    %5211 = vmatpush2.msra.mxu0 0.0
    %5212 = vmatprep.subr.mxu0 0.0
    %5213 = vmatpush2.msra.mxu0 0.0
    %5214 = vmatprep.subr.mxu0 0.0
    %5215 = vmatpush2.msra.mxu0 0.0
    %5216 = vmatprep.subr.mxu0 0.0
    %5217 = vmatpush2.msra.mxu0 0.0
    %5218 = vmatprep.subr.mxu0 0.0
    %5219 = vmatpush2.msra.mxu0 0.0
    %5220 = vmatprep.subr.mxu0 0.0
    %5221 = vmatpush2.msra.mxu0 0.0
    %5222 = vmatprep.subr.mxu0 0.0
    %5223 = vmatpush2.msra.mxu0 0.0
    %5224 = vmatprep.subr.mxu0 0.0
    %5225 = vmatpush2.msra.mxu0 0.0
    %5226 = vmatprep.subr.mxu0 0.0
    %5227 = vmatpush2.msra.mxu0 0.0
    %5228 = vmatprep.subr.mxu0 0.0
    %5229 = vmatpush2.msra.mxu0 0.0
    %5230 = vmatprep.subr.mxu0 0.0
    %5231 = vmatpush2.msra.mxu0 0.0
    %5232 = vmatprep.subr.mxu0 0.0
    %5233 = vmatpush2.msra.mxu0 0.0
    %5234 = vmatprep.mubr.f32.mxu0 0.0
    %5235 = vmatmul.mubr.f32.gmra.mxu0 %v5012
    %v5236 = vpop.f32.mrf.mxu0
    %v5237 = vadd.f32 0.0, %v5236
    %v5238 = vpop.f32.mrf.mxu0
    %5239 = vdwg.mxu0
    %v5240 = vadd.f32 %v5169, %v5237
    %v5241 = vtanh.pop %v5240
    %v5242 = vld [vmem:[%s2132] sm:$0xff]
    %5243 = vmatprep.subr.mxu0 0.0
    %5244 = vmatpush1.msra.mxu0 0.0
    %5245 = vmatprep.subr.mxu0 0.0
    %5246 = vmatpush1.msra.mxu0 0.0
    %5247 = vmatprep.subr.mxu0 0.0
    %5248 = vmatpush1.msra.mxu0 0.0
    %5249 = vmatprep.subr.mxu0 0.0
    %5250 = vmatpush1.msra.mxu0 0.0
    %5251 = vmatprep.subr.mxu0 0.0
    %5252 = vmatpush1.msra.mxu0 0.0
    %5253 = vmatprep.subr.mxu0 0.0
    %5254 = vmatpush1.msra.mxu0 0.0
    %5255 = vmatprep.subr.mxu0 0.0
    %5256 = vmatpush1.msra.mxu0 0.0
    %5257 = vmatprep.subr.mxu0 0.0
    %5258 = vmatpush1.msra.mxu0 0.0
    %5259 = vmatprep.subr.mxu0 0.0
    %5260 = vmatpush1.msra.mxu0 0.0
    %5261 = vmatprep.subr.mxu0 0.0
    %5262 = vmatpush1.msra.mxu0 0.0
    %5263 = vmatprep.subr.mxu0 0.0
    %5264 = vmatpush1.msra.mxu0 0.0
    %5265 = vmatprep.subr.mxu0 0.0
    %5266 = vmatpush1.msra.mxu0 0.0
    %5267 = vmatprep.subr.mxu0 0.0
    %5268 = vmatpush1.msra.mxu0 %v3738
    %5269 = vmatprep.subr.mxu0 0.0
    %5270 = vmatpush1.msra.mxu0 %v3737
    %5271 = vmatprep.subr.mxu0 0.0
    %5272 = vmatpush1.msra.mxu0 %v3736
    %5273 = vmatprep.subr.mxu0 0.0
    %5274 = vmatpush1.msra.mxu0 %v3735
    %5275 = vmatprep.subr.mxu0 0.0
    %5276 = vmatpush2.msra.mxu0 0.0
    %5277 = vmatprep.subr.mxu0 0.0
    %5278 = vmatpush2.msra.mxu0 0.0
    %5279 = vmatprep.subr.mxu0 0.0
    %5280 = vmatpush2.msra.mxu0 0.0
    %5281 = vmatprep.subr.mxu0 0.0
    %5282 = vmatpush2.msra.mxu0 0.0
    %5283 = vmatprep.subr.mxu0 0.0
    %5284 = vmatpush2.msra.mxu0 0.0
    %5285 = vmatprep.subr.mxu0 0.0
    %5286 = vmatpush2.msra.mxu0 0.0
    %5287 = vmatprep.subr.mxu0 0.0
    %5288 = vmatpush2.msra.mxu0 0.0
    %5289 = vmatprep.subr.mxu0 0.0
    %5290 = vmatpush2.msra.mxu0 0.0
    %5291 = vmatprep.subr.mxu0 0.0
    %5292 = vmatpush2.msra.mxu0 0.0
    %5293 = vmatprep.subr.mxu0 0.0
    %5294 = vmatpush2.msra.mxu0 0.0
    %5295 = vmatprep.subr.mxu0 0.0
    %5296 = vmatpush2.msra.mxu0 0.0
    %5297 = vmatprep.subr.mxu0 0.0
    %5298 = vmatpush2.msra.mxu0 0.0
    %5299 = vmatprep.subr.mxu0 0.0
    %5300 = vmatpush2.msra.mxu0 0.0
    %5301 = vmatprep.subr.mxu0 0.0
    %5302 = vmatpush2.msra.mxu0 0.0
    %5303 = vmatprep.subr.mxu0 0.0
    %5304 = vmatpush2.msra.mxu0 0.0
    %5305 = vmatprep.subr.mxu0 0.0
    %5306 = vmatpush2.msra.mxu0 0.0
    %5307 = vmatprep.mubr.f32.mxu0 0.0
    %5308 = vmatmul.mubr.f32.gmra.mxu0 %v5012
    %v5309 = vpop.f32.mrf.mxu0
    %v5310 = vadd.f32 0.0, %v5309
    %v5311 = vpop.f32.mrf.mxu0
    %5312 = vdwg.mxu0
    %v5313 = vadd.f32 %v5242, %v5310
    %v5314 = vxor.u32 %v5313, 2147483648
    %v5315 = vmul.f32 %v5314, 1.442695
    %v5316 = vpow.pop %v5315
    %v5317 = vadd.f32 %v5316, 1.0
    %v5318 = vrcp.pop %v5317
    %v5319 = vmul.f32 1.0, %v5318
    %v5320 = vmul.f32 %v5168, %v5005
    %v5321 = vmul.f32 %v5090, %v5241
    %v5322 = vadd.f32 %v5320, %v5321
    %v5323 = vtanh.pop %v5322
    %v5324 = vmul.f32 %v5319, %v5323
    %s5325 = scalar_lea.vmem [#allocation3], 32
    %5326 = vst.msk [vmem:[%s5325] sm:$0xff] %vm81, %v5324
    %v5327 = vld [vmem:[%s2218] sm:$0xff]
    %v5329 = vsel %vm81, %v5324, 0
    %5331 = vmatprep.subr.mxu0 0.0
    %5332 = vmatpush1.msra.mxu0 0.0
    %5333 = vmatprep.subr.mxu0 0.0
    %5334 = vmatpush1.msra.mxu0 0.0
    %5335 = vmatprep.subr.mxu0 0.0
    %5336 = vmatpush1.msra.mxu0 0.0
    %5337 = vmatprep.subr.mxu0 0.0
    %5338 = vmatpush1.msra.mxu0 0.0
    %5339 = vmatprep.subr.mxu0 0.0
    %5340 = vmatpush1.msra.mxu0 0.0
    %5341 = vmatprep.subr.mxu0 0.0
    %5342 = vmatpush1.msra.mxu0 0.0
    %5343 = vmatprep.subr.mxu0 0.0
    %5344 = vmatpush1.msra.mxu0 0.0
    %5345 = vmatprep.subr.mxu0 0.0
    %5346 = vmatpush1.msra.mxu0 0.0
    %5347 = vmatprep.subr.mxu0 0.0
    %5348 = vmatpush1.msra.mxu0 0.0
    %5349 = vmatprep.subr.mxu0 0.0
    %5350 = vmatpush1.msra.mxu0 0.0
    %5351 = vmatprep.subr.mxu0 0.0
    %5352 = vmatpush1.msra.mxu0 0.0
    %5353 = vmatprep.subr.mxu0 0.0
    %5354 = vmatpush1.msra.mxu0 0.0
    %5355 = vmatprep.subr.mxu0 0.0
    %5356 = vmatpush1.msra.mxu0 %v3723
    %5357 = vmatprep.subr.mxu0 0.0
    %5358 = vmatpush1.msra.mxu0 %v3722
    %5359 = vmatprep.subr.mxu0 0.0
    %5360 = vmatpush1.msra.mxu0 %v3721
    %5361 = vmatprep.subr.mxu0 0.0
    %5362 = vmatpush1.msra.mxu0 %v3720
    %5363 = vmatprep.subr.mxu0 0.0
    %5364 = vmatpush2.msra.mxu0 0.0
    %5365 = vmatprep.subr.mxu0 0.0
    %5366 = vmatpush2.msra.mxu0 0.0
    %5367 = vmatprep.subr.mxu0 0.0
    %5368 = vmatpush2.msra.mxu0 0.0
    %5369 = vmatprep.subr.mxu0 0.0
    %5370 = vmatpush2.msra.mxu0 0.0
    %5371 = vmatprep.subr.mxu0 0.0
    %5372 = vmatpush2.msra.mxu0 0.0
    %5373 = vmatprep.subr.mxu0 0.0
    %5374 = vmatpush2.msra.mxu0 0.0
    %5375 = vmatprep.subr.mxu0 0.0
    %5376 = vmatpush2.msra.mxu0 0.0
    %5377 = vmatprep.subr.mxu0 0.0
    %5378 = vmatpush2.msra.mxu0 0.0
    %5379 = vmatprep.subr.mxu0 0.0
    %5380 = vmatpush2.msra.mxu0 0.0
    %5381 = vmatprep.subr.mxu0 0.0
    %5382 = vmatpush2.msra.mxu0 0.0
    %5383 = vmatprep.subr.mxu0 0.0
    %5384 = vmatpush2.msra.mxu0 0.0
    %5385 = vmatprep.subr.mxu0 0.0
    %5386 = vmatpush2.msra.mxu0 0.0
    %5387 = vmatprep.subr.mxu0 0.0
    %5388 = vmatpush2.msra.mxu0 0.0
    %5389 = vmatprep.subr.mxu0 0.0
    %5390 = vmatpush2.msra.mxu0 0.0
    %5391 = vmatprep.subr.mxu0 0.0
    %5392 = vmatpush2.msra.mxu0 0.0
    %5393 = vmatprep.subr.mxu0 0.0
    %5394 = vmatpush2.msra.mxu0 0.0
    %5395 = vmatprep.mubr.f32.mxu0 0.0
    %5396 = vmatmul.mubr.f32.gmra.mxu0 %v5329
    %v5397 = vpop.f32.mrf.mxu0
    %v5398 = vadd.f32 0.0, %v5397
    %v5399 = vpop.f32.mrf.mxu0
    %5400 = vdwg.mxu0
    %v5401 = vadd.f32 %v5327, %v5398
    %v5402 = vxor.u32 %v5401, 2147483648
    %v5403 = vmul.f32 %v5402, 1.442695
    %v5404 = vpow.pop %v5403
    %v5405 = vadd.f32 %v5404, 1.0
    %v5406 = vrcp.pop %v5405
    %v5407 = vmul.f32 1.0, %v5406
    %v5408 = vld [vmem:[%s2300] sm:$0xff]
    %5409 = vmatprep.subr.mxu0 0.0
    %5410 = vmatpush1.msra.mxu0 0.0
    %5411 = vmatprep.subr.mxu0 0.0
    %5412 = vmatpush1.msra.mxu0 0.0
    %5413 = vmatprep.subr.mxu0 0.0
    %5414 = vmatpush1.msra.mxu0 0.0
    %5415 = vmatprep.subr.mxu0 0.0
    %5416 = vmatpush1.msra.mxu0 0.0
    %5417 = vmatprep.subr.mxu0 0.0
    %5418 = vmatpush1.msra.mxu0 0.0
    %5419 = vmatprep.subr.mxu0 0.0
    %5420 = vmatpush1.msra.mxu0 0.0
    %5421 = vmatprep.subr.mxu0 0.0
    %5422 = vmatpush1.msra.mxu0 0.0
    %5423 = vmatprep.subr.mxu0 0.0
    %5424 = vmatpush1.msra.mxu0 0.0
    %5425 = vmatprep.subr.mxu0 0.0
    %5426 = vmatpush1.msra.mxu0 0.0
    %5427 = vmatprep.subr.mxu0 0.0
    %5428 = vmatpush1.msra.mxu0 0.0
    %5429 = vmatprep.subr.mxu0 0.0
    %5430 = vmatpush1.msra.mxu0 0.0
    %5431 = vmatprep.subr.mxu0 0.0
    %5432 = vmatpush1.msra.mxu0 0.0
    %5433 = vmatprep.subr.mxu0 0.0
    %5434 = vmatpush1.msra.mxu0 %v3728
    %5435 = vmatprep.subr.mxu0 0.0
    %5436 = vmatpush1.msra.mxu0 %v3727
    %5437 = vmatprep.subr.mxu0 0.0
    %5438 = vmatpush1.msra.mxu0 %v3726
    %5439 = vmatprep.subr.mxu0 0.0
    %5440 = vmatpush1.msra.mxu0 %v3725
    %5441 = vmatprep.subr.mxu0 0.0
    %5442 = vmatpush2.msra.mxu0 0.0
    %5443 = vmatprep.subr.mxu0 0.0
    %5444 = vmatpush2.msra.mxu0 0.0
    %5445 = vmatprep.subr.mxu0 0.0
    %5446 = vmatpush2.msra.mxu0 0.0
    %5447 = vmatprep.subr.mxu0 0.0
    %5448 = vmatpush2.msra.mxu0 0.0
    %5449 = vmatprep.subr.mxu0 0.0
    %5450 = vmatpush2.msra.mxu0 0.0
    %5451 = vmatprep.subr.mxu0 0.0
    %5452 = vmatpush2.msra.mxu0 0.0
    %5453 = vmatprep.subr.mxu0 0.0
    %5454 = vmatpush2.msra.mxu0 0.0
    %5455 = vmatprep.subr.mxu0 0.0
    %5456 = vmatpush2.msra.mxu0 0.0
    %5457 = vmatprep.subr.mxu0 0.0
    %5458 = vmatpush2.msra.mxu0 0.0
    %5459 = vmatprep.subr.mxu0 0.0
    %5460 = vmatpush2.msra.mxu0 0.0
    %5461 = vmatprep.subr.mxu0 0.0
    %5462 = vmatpush2.msra.mxu0 0.0
    %5463 = vmatprep.subr.mxu0 0.0
    %5464 = vmatpush2.msra.mxu0 0.0
    %5465 = vmatprep.subr.mxu0 0.0
    %5466 = vmatpush2.msra.mxu0 0.0
    %5467 = vmatprep.subr.mxu0 0.0
    %5468 = vmatpush2.msra.mxu0 0.0
    %5469 = vmatprep.subr.mxu0 0.0
    %5470 = vmatpush2.msra.mxu0 0.0
    %5471 = vmatprep.subr.mxu0 0.0
    %5472 = vmatpush2.msra.mxu0 0.0
    %5473 = vmatprep.mubr.f32.mxu0 0.0
    %5474 = vmatmul.mubr.f32.gmra.mxu0 %v5329
    %v5475 = vpop.f32.mrf.mxu0
    %v5476 = vadd.f32 0.0, %v5475
    %v5477 = vpop.f32.mrf.mxu0
    %5478 = vdwg.mxu0
    %v5479 = vadd.f32 %v5408, %v5476
    %v5480 = vxor.u32 %v5479, 2147483648
    %v5481 = vmul.f32 %v5480, 1.442695
    %v5482 = vpow.pop %v5481
    %v5483 = vadd.f32 %v5482, 1.0
    %v5484 = vrcp.pop %v5483
    %v5485 = vmul.f32 1.0, %v5484
    %v5486 = vld [vmem:[%s2379] sm:$0xff]
    %5487 = vmatprep.subr.mxu0 0.0
    %5488 = vmatpush1.msra.mxu0 0.0
    %5489 = vmatprep.subr.mxu0 0.0
    %5490 = vmatpush1.msra.mxu0 0.0
    %5491 = vmatprep.subr.mxu0 0.0
    %5492 = vmatpush1.msra.mxu0 0.0
    %5493 = vmatprep.subr.mxu0 0.0
    %5494 = vmatpush1.msra.mxu0 0.0
    %5495 = vmatprep.subr.mxu0 0.0
    %5496 = vmatpush1.msra.mxu0 0.0
    %5497 = vmatprep.subr.mxu0 0.0
    %5498 = vmatpush1.msra.mxu0 0.0
    %5499 = vmatprep.subr.mxu0 0.0
    %5500 = vmatpush1.msra.mxu0 0.0
    %5501 = vmatprep.subr.mxu0 0.0
    %5502 = vmatpush1.msra.mxu0 0.0
    %5503 = vmatprep.subr.mxu0 0.0
    %5504 = vmatpush1.msra.mxu0 0.0
    %5505 = vmatprep.subr.mxu0 0.0
    %5506 = vmatpush1.msra.mxu0 0.0
    %5507 = vmatprep.subr.mxu0 0.0
    %5508 = vmatpush1.msra.mxu0 0.0
    %5509 = vmatprep.subr.mxu0 0.0
    %5510 = vmatpush1.msra.mxu0 0.0
    %5511 = vmatprep.subr.mxu0 0.0
    %5512 = vmatpush1.msra.mxu0 %v3733
    %5513 = vmatprep.subr.mxu0 0.0
    %5514 = vmatpush1.msra.mxu0 %v3732
    %5515 = vmatprep.subr.mxu0 0.0
    %5516 = vmatpush1.msra.mxu0 %v3731
    %5517 = vmatprep.subr.mxu0 0.0
    %5518 = vmatpush1.msra.mxu0 %v3730
    %5519 = vmatprep.subr.mxu0 0.0
    %5520 = vmatpush2.msra.mxu0 0.0
    %5521 = vmatprep.subr.mxu0 0.0
    %5522 = vmatpush2.msra.mxu0 0.0
    %5523 = vmatprep.subr.mxu0 0.0
    %5524 = vmatpush2.msra.mxu0 0.0
    %5525 = vmatprep.subr.mxu0 0.0
    %5526 = vmatpush2.msra.mxu0 0.0
    %5527 = vmatprep.subr.mxu0 0.0
    %5528 = vmatpush2.msra.mxu0 0.0
    %5529 = vmatprep.subr.mxu0 0.0
    %5530 = vmatpush2.msra.mxu0 0.0
    %5531 = vmatprep.subr.mxu0 0.0
    %5532 = vmatpush2.msra.mxu0 0.0
    %5533 = vmatprep.subr.mxu0 0.0
    %5534 = vmatpush2.msra.mxu0 0.0
    %5535 = vmatprep.subr.mxu0 0.0
    %5536 = vmatpush2.msra.mxu0 0.0
    %5537 = vmatprep.subr.mxu0 0.0
    %5538 = vmatpush2.msra.mxu0 0.0
    %5539 = vmatprep.subr.mxu0 0.0
    %5540 = vmatpush2.msra.mxu0 0.0
    %5541 = vmatprep.subr.mxu0 0.0
    %5542 = vmatpush2.msra.mxu0 0.0
    %5543 = vmatprep.subr.mxu0 0.0
    %5544 = vmatpush2.msra.mxu0 0.0
    %5545 = vmatprep.subr.mxu0 0.0
    %5546 = vmatpush2.msra.mxu0 0.0
    %5547 = vmatprep.subr.mxu0 0.0
    %5548 = vmatpush2.msra.mxu0 0.0
    %5549 = vmatprep.subr.mxu0 0.0
    %5550 = vmatpush2.msra.mxu0 0.0
    %5551 = vmatprep.mubr.f32.mxu0 0.0
    %5552 = vmatmul.mubr.f32.gmra.mxu0 %v5329
    %v5553 = vpop.f32.mrf.mxu0
    %v5554 = vadd.f32 0.0, %v5553
    %v5555 = vpop.f32.mrf.mxu0
    %5556 = vdwg.mxu0
    %v5557 = vadd.f32 %v5486, %v5554
    %v5558 = vtanh.pop %v5557
    %v5559 = vld [vmem:[%s2453] sm:$0xff]
    %5560 = vmatprep.subr.mxu0 0.0
    %5561 = vmatpush1.msra.mxu0 0.0
    %5562 = vmatprep.subr.mxu0 0.0
    %5563 = vmatpush1.msra.mxu0 0.0
    %5564 = vmatprep.subr.mxu0 0.0
    %5565 = vmatpush1.msra.mxu0 0.0
    %5566 = vmatprep.subr.mxu0 0.0
    %5567 = vmatpush1.msra.mxu0 0.0
    %5568 = vmatprep.subr.mxu0 0.0
    %5569 = vmatpush1.msra.mxu0 0.0
    %5570 = vmatprep.subr.mxu0 0.0
    %5571 = vmatpush1.msra.mxu0 0.0
    %5572 = vmatprep.subr.mxu0 0.0
    %5573 = vmatpush1.msra.mxu0 0.0
    %5574 = vmatprep.subr.mxu0 0.0
    %5575 = vmatpush1.msra.mxu0 0.0
    %5576 = vmatprep.subr.mxu0 0.0
    %5577 = vmatpush1.msra.mxu0 0.0
    %5578 = vmatprep.subr.mxu0 0.0
    %5579 = vmatpush1.msra.mxu0 0.0
    %5580 = vmatprep.subr.mxu0 0.0
    %5581 = vmatpush1.msra.mxu0 0.0
    %5582 = vmatprep.subr.mxu0 0.0
    %5583 = vmatpush1.msra.mxu0 0.0
    %5584 = vmatprep.subr.mxu0 0.0
    %5585 = vmatpush1.msra.mxu0 %v3738
    %5586 = vmatprep.subr.mxu0 0.0
    %5587 = vmatpush1.msra.mxu0 %v3737
    %5588 = vmatprep.subr.mxu0 0.0
    %5589 = vmatpush1.msra.mxu0 %v3736
    %5590 = vmatprep.subr.mxu0 0.0
    %5591 = vmatpush1.msra.mxu0 %v3735
    %5592 = vmatprep.subr.mxu0 0.0
    %5593 = vmatpush2.msra.mxu0 0.0
    %5594 = vmatprep.subr.mxu0 0.0
    %5595 = vmatpush2.msra.mxu0 0.0
    %5596 = vmatprep.subr.mxu0 0.0
    %5597 = vmatpush2.msra.mxu0 0.0
    %5598 = vmatprep.subr.mxu0 0.0
    %5599 = vmatpush2.msra.mxu0 0.0
    %5600 = vmatprep.subr.mxu0 0.0
    %5601 = vmatpush2.msra.mxu0 0.0
    %5602 = vmatprep.subr.mxu0 0.0
    %5603 = vmatpush2.msra.mxu0 0.0
    %5604 = vmatprep.subr.mxu0 0.0
    %5605 = vmatpush2.msra.mxu0 0.0
    %5606 = vmatprep.subr.mxu0 0.0
    %5607 = vmatpush2.msra.mxu0 0.0
    %5608 = vmatprep.subr.mxu0 0.0
    %5609 = vmatpush2.msra.mxu0 0.0
    %5610 = vmatprep.subr.mxu0 0.0
    %5611 = vmatpush2.msra.mxu0 0.0
    %5612 = vmatprep.subr.mxu0 0.0
    %5613 = vmatpush2.msra.mxu0 0.0
    %5614 = vmatprep.subr.mxu0 0.0
    %5615 = vmatpush2.msra.mxu0 0.0
    %5616 = vmatprep.subr.mxu0 0.0
    %5617 = vmatpush2.msra.mxu0 0.0
    %5618 = vmatprep.subr.mxu0 0.0
    %5619 = vmatpush2.msra.mxu0 0.0
    %5620 = vmatprep.subr.mxu0 0.0
    %5621 = vmatpush2.msra.mxu0 0.0
    %5622 = vmatprep.subr.mxu0 0.0
    %5623 = vmatpush2.msra.mxu0 0.0
    %5624 = vmatprep.mubr.f32.mxu0 0.0
    %5625 = vmatmul.mubr.f32.gmra.mxu0 %v5329
    %v5626 = vpop.f32.mrf.mxu0
    %v5627 = vadd.f32 0.0, %v5626
    %v5628 = vpop.f32.mrf.mxu0
    %5629 = vdwg.mxu0
    %v5630 = vadd.f32 %v5559, %v5627
    %v5631 = vxor.u32 %v5630, 2147483648
    %v5632 = vmul.f32 %v5631, 1.442695
    %v5633 = vpow.pop %v5632
    %v5634 = vadd.f32 %v5633, 1.0
    %v5635 = vrcp.pop %v5634
    %v5636 = vmul.f32 1.0, %v5635
    %v5637 = vmul.f32 %v5485, %v5322
    %v5638 = vmul.f32 %v5407, %v5558
    %v5639 = vadd.f32 %v5637, %v5638
    %v5640 = vtanh.pop %v5639
    %v5641 = vmul.f32 %v5636, %v5640
    %s5642 = scalar_lea.vmem [#allocation3], 40
    %5643 = vst.msk [vmem:[%s5642] sm:$0xff] %vm81, %v5641
    %v5644 = vld [vmem:[%s2539] sm:$0xff]
    %v5646 = vsel %vm81, %v5641, 0
    %5648 = vmatprep.subr.mxu0 0.0
    %5649 = vmatpush1.msra.mxu0 0.0
    %5650 = vmatprep.subr.mxu0 0.0
    %5651 = vmatpush1.msra.mxu0 0.0
    %5652 = vmatprep.subr.mxu0 0.0
    %5653 = vmatpush1.msra.mxu0 0.0
    %5654 = vmatprep.subr.mxu0 0.0
    %5655 = vmatpush1.msra.mxu0 0.0
    %5656 = vmatprep.subr.mxu0 0.0
    %5657 = vmatpush1.msra.mxu0 0.0
    %5658 = vmatprep.subr.mxu0 0.0
    %5659 = vmatpush1.msra.mxu0 0.0
    %5660 = vmatprep.subr.mxu0 0.0
    %5661 = vmatpush1.msra.mxu0 0.0
    %5662 = vmatprep.subr.mxu0 0.0
    %5663 = vmatpush1.msra.mxu0 0.0
    %5664 = vmatprep.subr.mxu0 0.0
    %5665 = vmatpush1.msra.mxu0 0.0
    %5666 = vmatprep.subr.mxu0 0.0
    %5667 = vmatpush1.msra.mxu0 0.0
    %5668 = vmatprep.subr.mxu0 0.0
    %5669 = vmatpush1.msra.mxu0 0.0
    %5670 = vmatprep.subr.mxu0 0.0
    %5671 = vmatpush1.msra.mxu0 0.0
    %5672 = vmatprep.subr.mxu0 0.0
    %5673 = vmatpush1.msra.mxu0 %v3723
    %5674 = vmatprep.subr.mxu0 0.0
    %5675 = vmatpush1.msra.mxu0 %v3722
    %5676 = vmatprep.subr.mxu0 0.0
    %5677 = vmatpush1.msra.mxu0 %v3721
    %5678 = vmatprep.subr.mxu0 0.0
    %5679 = vmatpush1.msra.mxu0 %v3720
    %5680 = vmatprep.subr.mxu0 0.0
    %5681 = vmatpush2.msra.mxu0 0.0
    %5682 = vmatprep.subr.mxu0 0.0
    %5683 = vmatpush2.msra.mxu0 0.0
    %5684 = vmatprep.subr.mxu0 0.0
    %5685 = vmatpush2.msra.mxu0 0.0
    %5686 = vmatprep.subr.mxu0 0.0
    %5687 = vmatpush2.msra.mxu0 0.0
    %5688 = vmatprep.subr.mxu0 0.0
    %5689 = vmatpush2.msra.mxu0 0.0
    %5690 = vmatprep.subr.mxu0 0.0
    %5691 = vmatpush2.msra.mxu0 0.0
    %5692 = vmatprep.subr.mxu0 0.0
    %5693 = vmatpush2.msra.mxu0 0.0
    %5694 = vmatprep.subr.mxu0 0.0
    %5695 = vmatpush2.msra.mxu0 0.0
    %5696 = vmatprep.subr.mxu0 0.0
    %5697 = vmatpush2.msra.mxu0 0.0
    %5698 = vmatprep.subr.mxu0 0.0
    %5699 = vmatpush2.msra.mxu0 0.0
    %5700 = vmatprep.subr.mxu0 0.0
    %5701 = vmatpush2.msra.mxu0 0.0
    %5702 = vmatprep.subr.mxu0 0.0
    %5703 = vmatpush2.msra.mxu0 0.0
    %5704 = vmatprep.subr.mxu0 0.0
    %5705 = vmatpush2.msra.mxu0 0.0
    %5706 = vmatprep.subr.mxu0 0.0
    %5707 = vmatpush2.msra.mxu0 0.0
    %5708 = vmatprep.subr.mxu0 0.0
    %5709 = vmatpush2.msra.mxu0 0.0
    %5710 = vmatprep.subr.mxu0 0.0
    %5711 = vmatpush2.msra.mxu0 0.0
    %5712 = vmatprep.mubr.f32.mxu0 0.0
    %5713 = vmatmul.mubr.f32.gmra.mxu0 %v5646
    %v5714 = vpop.f32.mrf.mxu0
    %v5715 = vadd.f32 0.0, %v5714
    %v5716 = vpop.f32.mrf.mxu0
    %5717 = vdwg.mxu0
    %v5718 = vadd.f32 %v5644, %v5715
    %v5719 = vxor.u32 %v5718, 2147483648
    %v5720 = vmul.f32 %v5719, 1.442695
    %v5721 = vpow.pop %v5720
    %v5722 = vadd.f32 %v5721, 1.0
    %v5723 = vrcp.pop %v5722
    %v5724 = vmul.f32 1.0, %v5723
    %v5725 = vld [vmem:[%s2621] sm:$0xff]
    %5726 = vmatprep.subr.mxu0 0.0
    %5727 = vmatpush1.msra.mxu0 0.0
    %5728 = vmatprep.subr.mxu0 0.0
    %5729 = vmatpush1.msra.mxu0 0.0
    %5730 = vmatprep.subr.mxu0 0.0
    %5731 = vmatpush1.msra.mxu0 0.0
    %5732 = vmatprep.subr.mxu0 0.0
    %5733 = vmatpush1.msra.mxu0 0.0
    %5734 = vmatprep.subr.mxu0 0.0
    %5735 = vmatpush1.msra.mxu0 0.0
    %5736 = vmatprep.subr.mxu0 0.0
    %5737 = vmatpush1.msra.mxu0 0.0
    %5738 = vmatprep.subr.mxu0 0.0
    %5739 = vmatpush1.msra.mxu0 0.0
    %5740 = vmatprep.subr.mxu0 0.0
    %5741 = vmatpush1.msra.mxu0 0.0
    %5742 = vmatprep.subr.mxu0 0.0
    %5743 = vmatpush1.msra.mxu0 0.0
    %5744 = vmatprep.subr.mxu0 0.0
    %5745 = vmatpush1.msra.mxu0 0.0
    %5746 = vmatprep.subr.mxu0 0.0
    %5747 = vmatpush1.msra.mxu0 0.0
    %5748 = vmatprep.subr.mxu0 0.0
    %5749 = vmatpush1.msra.mxu0 0.0
    %5750 = vmatprep.subr.mxu0 0.0
    %5751 = vmatpush1.msra.mxu0 %v3728
    %5752 = vmatprep.subr.mxu0 0.0
    %5753 = vmatpush1.msra.mxu0 %v3727
    %5754 = vmatprep.subr.mxu0 0.0
    %5755 = vmatpush1.msra.mxu0 %v3726
    %5756 = vmatprep.subr.mxu0 0.0
    %5757 = vmatpush1.msra.mxu0 %v3725
    %5758 = vmatprep.subr.mxu0 0.0
    %5759 = vmatpush2.msra.mxu0 0.0
    %5760 = vmatprep.subr.mxu0 0.0
    %5761 = vmatpush2.msra.mxu0 0.0
    %5762 = vmatprep.subr.mxu0 0.0
    %5763 = vmatpush2.msra.mxu0 0.0
    %5764 = vmatprep.subr.mxu0 0.0
    %5765 = vmatpush2.msra.mxu0 0.0
    %5766 = vmatprep.subr.mxu0 0.0
    %5767 = vmatpush2.msra.mxu0 0.0
    %5768 = vmatprep.subr.mxu0 0.0
    %5769 = vmatpush2.msra.mxu0 0.0
    %5770 = vmatprep.subr.mxu0 0.0
    %5771 = vmatpush2.msra.mxu0 0.0
    %5772 = vmatprep.subr.mxu0 0.0
    %5773 = vmatpush2.msra.mxu0 0.0
    %5774 = vmatprep.subr.mxu0 0.0
    %5775 = vmatpush2.msra.mxu0 0.0
    %5776 = vmatprep.subr.mxu0 0.0
    %5777 = vmatpush2.msra.mxu0 0.0
    %5778 = vmatprep.subr.mxu0 0.0
    %5779 = vmatpush2.msra.mxu0 0.0
    %5780 = vmatprep.subr.mxu0 0.0
    %5781 = vmatpush2.msra.mxu0 0.0
    %5782 = vmatprep.subr.mxu0 0.0
    %5783 = vmatpush2.msra.mxu0 0.0
    %5784 = vmatprep.subr.mxu0 0.0
    %5785 = vmatpush2.msra.mxu0 0.0
    %5786 = vmatprep.subr.mxu0 0.0
    %5787 = vmatpush2.msra.mxu0 0.0
    %5788 = vmatprep.subr.mxu0 0.0
    %5789 = vmatpush2.msra.mxu0 0.0
    %5790 = vmatprep.mubr.f32.mxu0 0.0
    %5791 = vmatmul.mubr.f32.gmra.mxu0 %v5646
    %v5792 = vpop.f32.mrf.mxu0
    %v5793 = vadd.f32 0.0, %v5792
    %v5794 = vpop.f32.mrf.mxu0
    %5795 = vdwg.mxu0
    %v5796 = vadd.f32 %v5725, %v5793
    %v5797 = vxor.u32 %v5796, 2147483648
    %v5798 = vmul.f32 %v5797, 1.442695
    %v5799 = vpow.pop %v5798
    %v5800 = vadd.f32 %v5799, 1.0
    %v5801 = vrcp.pop %v5800
    %v5802 = vmul.f32 1.0, %v5801
    %v5803 = vld [vmem:[%s2700] sm:$0xff]
    %5804 = vmatprep.subr.mxu0 0.0
    %5805 = vmatpush1.msra.mxu0 0.0
    %5806 = vmatprep.subr.mxu0 0.0
    %5807 = vmatpush1.msra.mxu0 0.0
    %5808 = vmatprep.subr.mxu0 0.0
    %5809 = vmatpush1.msra.mxu0 0.0
    %5810 = vmatprep.subr.mxu0 0.0
    %5811 = vmatpush1.msra.mxu0 0.0
    %5812 = vmatprep.subr.mxu0 0.0
    %5813 = vmatpush1.msra.mxu0 0.0
    %5814 = vmatprep.subr.mxu0 0.0
    %5815 = vmatpush1.msra.mxu0 0.0
    %5816 = vmatprep.subr.mxu0 0.0
    %5817 = vmatpush1.msra.mxu0 0.0
    %5818 = vmatprep.subr.mxu0 0.0
    %5819 = vmatpush1.msra.mxu0 0.0
    %5820 = vmatprep.subr.mxu0 0.0
    %5821 = vmatpush1.msra.mxu0 0.0
    %5822 = vmatprep.subr.mxu0 0.0
    %5823 = vmatpush1.msra.mxu0 0.0
    %5824 = vmatprep.subr.mxu0 0.0
    %5825 = vmatpush1.msra.mxu0 0.0
    %5826 = vmatprep.subr.mxu0 0.0
    %5827 = vmatpush1.msra.mxu0 0.0
    %5828 = vmatprep.subr.mxu0 0.0
    %5829 = vmatpush1.msra.mxu0 %v3733
    %5830 = vmatprep.subr.mxu0 0.0
    %5831 = vmatpush1.msra.mxu0 %v3732
    %5832 = vmatprep.subr.mxu0 0.0
    %5833 = vmatpush1.msra.mxu0 %v3731
    %5834 = vmatprep.subr.mxu0 0.0
    %5835 = vmatpush1.msra.mxu0 %v3730
    %5836 = vmatprep.subr.mxu0 0.0
    %5837 = vmatpush2.msra.mxu0 0.0
    %5838 = vmatprep.subr.mxu0 0.0
    %5839 = vmatpush2.msra.mxu0 0.0
    %5840 = vmatprep.subr.mxu0 0.0
    %5841 = vmatpush2.msra.mxu0 0.0
    %5842 = vmatprep.subr.mxu0 0.0
    %5843 = vmatpush2.msra.mxu0 0.0
    %5844 = vmatprep.subr.mxu0 0.0
    %5845 = vmatpush2.msra.mxu0 0.0
    %5846 = vmatprep.subr.mxu0 0.0
    %5847 = vmatpush2.msra.mxu0 0.0
    %5848 = vmatprep.subr.mxu0 0.0
    %5849 = vmatpush2.msra.mxu0 0.0
    %5850 = vmatprep.subr.mxu0 0.0
    %5851 = vmatpush2.msra.mxu0 0.0
    %5852 = vmatprep.subr.mxu0 0.0
    %5853 = vmatpush2.msra.mxu0 0.0
    %5854 = vmatprep.subr.mxu0 0.0
    %5855 = vmatpush2.msra.mxu0 0.0
    %5856 = vmatprep.subr.mxu0 0.0
    %5857 = vmatpush2.msra.mxu0 0.0
    %5858 = vmatprep.subr.mxu0 0.0
    %5859 = vmatpush2.msra.mxu0 0.0
    %5860 = vmatprep.subr.mxu0 0.0
    %5861 = vmatpush2.msra.mxu0 0.0
    %5862 = vmatprep.subr.mxu0 0.0
    %5863 = vmatpush2.msra.mxu0 0.0
    %5864 = vmatprep.subr.mxu0 0.0
    %5865 = vmatpush2.msra.mxu0 0.0
    %5866 = vmatprep.subr.mxu0 0.0
    %5867 = vmatpush2.msra.mxu0 0.0
    %5868 = vmatprep.mubr.f32.mxu0 0.0
    %5869 = vmatmul.mubr.f32.gmra.mxu0 %v5646
    %v5870 = vpop.f32.mrf.mxu0
    %v5871 = vadd.f32 0.0, %v5870
    %v5872 = vpop.f32.mrf.mxu0
    %5873 = vdwg.mxu0
    %v5874 = vadd.f32 %v5803, %v5871
    %v5875 = vtanh.pop %v5874
    %v5876 = vld [vmem:[%s2774] sm:$0xff]
    %5877 = vmatprep.subr.mxu0 0.0
    %5878 = vmatpush1.msra.mxu0 0.0
    %5879 = vmatprep.subr.mxu0 0.0
    %5880 = vmatpush1.msra.mxu0 0.0
    %5881 = vmatprep.subr.mxu0 0.0
    %5882 = vmatpush1.msra.mxu0 0.0
    %5883 = vmatprep.subr.mxu0 0.0
    %5884 = vmatpush1.msra.mxu0 0.0
    %5885 = vmatprep.subr.mxu0 0.0
    %5886 = vmatpush1.msra.mxu0 0.0
    %5887 = vmatprep.subr.mxu0 0.0
    %5888 = vmatpush1.msra.mxu0 0.0
    %5889 = vmatprep.subr.mxu0 0.0
    %5890 = vmatpush1.msra.mxu0 0.0
    %5891 = vmatprep.subr.mxu0 0.0
    %5892 = vmatpush1.msra.mxu0 0.0
    %5893 = vmatprep.subr.mxu0 0.0
    %5894 = vmatpush1.msra.mxu0 0.0
    %5895 = vmatprep.subr.mxu0 0.0
    %5896 = vmatpush1.msra.mxu0 0.0
    %5897 = vmatprep.subr.mxu0 0.0
    %5898 = vmatpush1.msra.mxu0 0.0
    %5899 = vmatprep.subr.mxu0 0.0
    %5900 = vmatpush1.msra.mxu0 0.0
    %5901 = vmatprep.subr.mxu0 0.0
    %5902 = vmatpush1.msra.mxu0 %v3738
    %5903 = vmatprep.subr.mxu0 0.0
    %5904 = vmatpush1.msra.mxu0 %v3737
    %5905 = vmatprep.subr.mxu0 0.0
    %5906 = vmatpush1.msra.mxu0 %v3736
    %5907 = vmatprep.subr.mxu0 0.0
    %5908 = vmatpush1.msra.mxu0 %v3735
    %5909 = vmatprep.subr.mxu0 0.0
    %5910 = vmatpush2.msra.mxu0 0.0
    %5911 = vmatprep.subr.mxu0 0.0
    %5912 = vmatpush2.msra.mxu0 0.0
    %5913 = vmatprep.subr.mxu0 0.0
    %5914 = vmatpush2.msra.mxu0 0.0
    %5915 = vmatprep.subr.mxu0 0.0
    %5916 = vmatpush2.msra.mxu0 0.0
    %5917 = vmatprep.subr.mxu0 0.0
    %5918 = vmatpush2.msra.mxu0 0.0
    %5919 = vmatprep.subr.mxu0 0.0
    %5920 = vmatpush2.msra.mxu0 0.0
    %5921 = vmatprep.subr.mxu0 0.0
    %5922 = vmatpush2.msra.mxu0 0.0
    %5923 = vmatprep.subr.mxu0 0.0
    %5924 = vmatpush2.msra.mxu0 0.0
    %5925 = vmatprep.subr.mxu0 0.0
    %5926 = vmatpush2.msra.mxu0 0.0
    %5927 = vmatprep.subr.mxu0 0.0
    %5928 = vmatpush2.msra.mxu0 0.0
    %5929 = vmatprep.subr.mxu0 0.0
    %5930 = vmatpush2.msra.mxu0 0.0
    %5931 = vmatprep.subr.mxu0 0.0
    %5932 = vmatpush2.msra.mxu0 0.0
    %5933 = vmatprep.subr.mxu0 0.0
    %5934 = vmatpush2.msra.mxu0 0.0
    %5935 = vmatprep.subr.mxu0 0.0
    %5936 = vmatpush2.msra.mxu0 0.0
    %5937 = vmatprep.subr.mxu0 0.0
    %5938 = vmatpush2.msra.mxu0 0.0
    %5939 = vmatprep.subr.mxu0 0.0
    %5940 = vmatpush2.msra.mxu0 0.0
    %5941 = vmatprep.mubr.f32.mxu0 0.0
    %5942 = vmatmul.mubr.f32.gmra.mxu0 %v5646
    %v5943 = vpop.f32.mrf.mxu0
    %v5944 = vadd.f32 0.0, %v5943
    %v5945 = vpop.f32.mrf.mxu0
    %5946 = vdwg.mxu0
    %v5947 = vadd.f32 %v5876, %v5944
    %v5948 = vxor.u32 %v5947, 2147483648
    %v5949 = vmul.f32 %v5948, 1.442695
    %v5950 = vpow.pop %v5949
    %v5951 = vadd.f32 %v5950, 1.0
    %v5952 = vrcp.pop %v5951
    %v5953 = vmul.f32 1.0, %v5952
    %v5954 = vmul.f32 %v5802, %v5639
    %v5955 = vmul.f32 %v5724, %v5875
    %v5956 = vadd.f32 %v5954, %v5955
    %v5957 = vtanh.pop %v5956
    %v5958 = vmul.f32 %v5953, %v5957
    %s5959 = scalar_lea.vmem [#allocation3], 48
    %5960 = vst.msk [vmem:[%s5959] sm:$0xff] %vm81, %v5958
    %v5961 = vld [vmem:[%s2860] sm:$0xff]
    %v5963 = vsel %vm81, %v5958, 0
    %5965 = vmatprep.subr.mxu0 0.0
    %5966 = vmatpush1.msra.mxu0 0.0
    %5967 = vmatprep.subr.mxu0 0.0
    %5968 = vmatpush1.msra.mxu0 0.0
    %5969 = vmatprep.subr.mxu0 0.0
    %5970 = vmatpush1.msra.mxu0 0.0
    %5971 = vmatprep.subr.mxu0 0.0
    %5972 = vmatpush1.msra.mxu0 0.0
    %5973 = vmatprep.subr.mxu0 0.0
    %5974 = vmatpush1.msra.mxu0 0.0
    %5975 = vmatprep.subr.mxu0 0.0
    %5976 = vmatpush1.msra.mxu0 0.0
    %5977 = vmatprep.subr.mxu0 0.0
    %5978 = vmatpush1.msra.mxu0 0.0
    %5979 = vmatprep.subr.mxu0 0.0
    %5980 = vmatpush1.msra.mxu0 0.0
    %5981 = vmatprep.subr.mxu0 0.0
    %5982 = vmatpush1.msra.mxu0 0.0
    %5983 = vmatprep.subr.mxu0 0.0
    %5984 = vmatpush1.msra.mxu0 0.0
    %5985 = vmatprep.subr.mxu0 0.0
    %5986 = vmatpush1.msra.mxu0 0.0
    %5987 = vmatprep.subr.mxu0 0.0
    %5988 = vmatpush1.msra.mxu0 0.0
    %5989 = vmatprep.subr.mxu0 0.0
    %5990 = vmatpush1.msra.mxu0 %v3723
    %5991 = vmatprep.subr.mxu0 0.0
    %5992 = vmatpush1.msra.mxu0 %v3722
    %5993 = vmatprep.subr.mxu0 0.0
    %5994 = vmatpush1.msra.mxu0 %v3721
    %5995 = vmatprep.subr.mxu0 0.0
    %5996 = vmatpush1.msra.mxu0 %v3720
    %5997 = vmatprep.subr.mxu0 0.0
    %5998 = vmatpush2.msra.mxu0 0.0
    %5999 = vmatprep.subr.mxu0 0.0
    %6000 = vmatpush2.msra.mxu0 0.0
    %6001 = vmatprep.subr.mxu0 0.0
    %6002 = vmatpush2.msra.mxu0 0.0
    %6003 = vmatprep.subr.mxu0 0.0
    %6004 = vmatpush2.msra.mxu0 0.0
    %6005 = vmatprep.subr.mxu0 0.0
    %6006 = vmatpush2.msra.mxu0 0.0
    %6007 = vmatprep.subr.mxu0 0.0
    %6008 = vmatpush2.msra.mxu0 0.0
    %6009 = vmatprep.subr.mxu0 0.0
    %6010 = vmatpush2.msra.mxu0 0.0
    %6011 = vmatprep.subr.mxu0 0.0
    %6012 = vmatpush2.msra.mxu0 0.0
    %6013 = vmatprep.subr.mxu0 0.0
    %6014 = vmatpush2.msra.mxu0 0.0
    %6015 = vmatprep.subr.mxu0 0.0
    %6016 = vmatpush2.msra.mxu0 0.0
    %6017 = vmatprep.subr.mxu0 0.0
    %6018 = vmatpush2.msra.mxu0 0.0
    %6019 = vmatprep.subr.mxu0 0.0
    %6020 = vmatpush2.msra.mxu0 0.0
    %6021 = vmatprep.subr.mxu0 0.0
    %6022 = vmatpush2.msra.mxu0 0.0
    %6023 = vmatprep.subr.mxu0 0.0
    %6024 = vmatpush2.msra.mxu0 0.0
    %6025 = vmatprep.subr.mxu0 0.0
    %6026 = vmatpush2.msra.mxu0 0.0
    %6027 = vmatprep.subr.mxu0 0.0
    %6028 = vmatpush2.msra.mxu0 0.0
    %6029 = vmatprep.mubr.f32.mxu0 0.0
    %6030 = vmatmul.mubr.f32.gmra.mxu0 %v5963
    %v6031 = vpop.f32.mrf.mxu0
    %v6032 = vadd.f32 0.0, %v6031
    %v6033 = vpop.f32.mrf.mxu0
    %6034 = vdwg.mxu0
    %v6035 = vadd.f32 %v5961, %v6032
    %v6036 = vxor.u32 %v6035, 2147483648
    %v6037 = vmul.f32 %v6036, 1.442695
    %v6038 = vpow.pop %v6037
    %v6039 = vadd.f32 %v6038, 1.0
    %v6040 = vrcp.pop %v6039
    %v6041 = vmul.f32 1.0, %v6040
    %v6042 = vld [vmem:[%s2942] sm:$0xff]
    %6043 = vmatprep.subr.mxu0 0.0
    %6044 = vmatpush1.msra.mxu0 0.0
    %6045 = vmatprep.subr.mxu0 0.0
    %6046 = vmatpush1.msra.mxu0 0.0
    %6047 = vmatprep.subr.mxu0 0.0
    %6048 = vmatpush1.msra.mxu0 0.0
    %6049 = vmatprep.subr.mxu0 0.0
    %6050 = vmatpush1.msra.mxu0 0.0
    %6051 = vmatprep.subr.mxu0 0.0
    %6052 = vmatpush1.msra.mxu0 0.0
    %6053 = vmatprep.subr.mxu0 0.0
    %6054 = vmatpush1.msra.mxu0 0.0
    %6055 = vmatprep.subr.mxu0 0.0
    %6056 = vmatpush1.msra.mxu0 0.0
    %6057 = vmatprep.subr.mxu0 0.0
    %6058 = vmatpush1.msra.mxu0 0.0
    %6059 = vmatprep.subr.mxu0 0.0
    %6060 = vmatpush1.msra.mxu0 0.0
    %6061 = vmatprep.subr.mxu0 0.0
    %6062 = vmatpush1.msra.mxu0 0.0
    %6063 = vmatprep.subr.mxu0 0.0
    %6064 = vmatpush1.msra.mxu0 0.0
    %6065 = vmatprep.subr.mxu0 0.0
    %6066 = vmatpush1.msra.mxu0 0.0
    %6067 = vmatprep.subr.mxu0 0.0
    %6068 = vmatpush1.msra.mxu0 %v3728
    %6069 = vmatprep.subr.mxu0 0.0
    %6070 = vmatpush1.msra.mxu0 %v3727
    %6071 = vmatprep.subr.mxu0 0.0
    %6072 = vmatpush1.msra.mxu0 %v3726
    %6073 = vmatprep.subr.mxu0 0.0
    %6074 = vmatpush1.msra.mxu0 %v3725
    %6075 = vmatprep.subr.mxu0 0.0
    %6076 = vmatpush2.msra.mxu0 0.0
    %6077 = vmatprep.subr.mxu0 0.0
    %6078 = vmatpush2.msra.mxu0 0.0
    %6079 = vmatprep.subr.mxu0 0.0
    %6080 = vmatpush2.msra.mxu0 0.0
    %6081 = vmatprep.subr.mxu0 0.0
    %6082 = vmatpush2.msra.mxu0 0.0
    %6083 = vmatprep.subr.mxu0 0.0
    %6084 = vmatpush2.msra.mxu0 0.0
    %6085 = vmatprep.subr.mxu0 0.0
    %6086 = vmatpush2.msra.mxu0 0.0
    %6087 = vmatprep.subr.mxu0 0.0
    %6088 = vmatpush2.msra.mxu0 0.0
    %6089 = vmatprep.subr.mxu0 0.0
    %6090 = vmatpush2.msra.mxu0 0.0
    %6091 = vmatprep.subr.mxu0 0.0
    %6092 = vmatpush2.msra.mxu0 0.0
    %6093 = vmatprep.subr.mxu0 0.0
    %6094 = vmatpush2.msra.mxu0 0.0
    %6095 = vmatprep.subr.mxu0 0.0
    %6096 = vmatpush2.msra.mxu0 0.0
    %6097 = vmatprep.subr.mxu0 0.0
    %6098 = vmatpush2.msra.mxu0 0.0
    %6099 = vmatprep.subr.mxu0 0.0
    %6100 = vmatpush2.msra.mxu0 0.0
    %6101 = vmatprep.subr.mxu0 0.0
    %6102 = vmatpush2.msra.mxu0 0.0
    %6103 = vmatprep.subr.mxu0 0.0
    %6104 = vmatpush2.msra.mxu0 0.0
    %6105 = vmatprep.subr.mxu0 0.0
    %6106 = vmatpush2.msra.mxu0 0.0
    %6107 = vmatprep.mubr.f32.mxu0 0.0
    %6108 = vmatmul.mubr.f32.gmra.mxu0 %v5963
    %v6109 = vpop.f32.mrf.mxu0
    %v6110 = vadd.f32 0.0, %v6109
    %v6111 = vpop.f32.mrf.mxu0
    %6112 = vdwg.mxu0
    %v6113 = vadd.f32 %v6042, %v6110
    %v6114 = vxor.u32 %v6113, 2147483648
    %v6115 = vmul.f32 %v6114, 1.442695
    %v6116 = vpow.pop %v6115
    %v6117 = vadd.f32 %v6116, 1.0
    %v6118 = vrcp.pop %v6117
    %v6119 = vmul.f32 1.0, %v6118
    %v6120 = vld [vmem:[%s3021] sm:$0xff]
    %6121 = vmatprep.subr.mxu0 0.0
    %6122 = vmatpush1.msra.mxu0 0.0
    %6123 = vmatprep.subr.mxu0 0.0
    %6124 = vmatpush1.msra.mxu0 0.0
    %6125 = vmatprep.subr.mxu0 0.0
    %6126 = vmatpush1.msra.mxu0 0.0
    %6127 = vmatprep.subr.mxu0 0.0
    %6128 = vmatpush1.msra.mxu0 0.0
    %6129 = vmatprep.subr.mxu0 0.0
    %6130 = vmatpush1.msra.mxu0 0.0
    %6131 = vmatprep.subr.mxu0 0.0
    %6132 = vmatpush1.msra.mxu0 0.0
    %6133 = vmatprep.subr.mxu0 0.0
    %6134 = vmatpush1.msra.mxu0 0.0
    %6135 = vmatprep.subr.mxu0 0.0
    %6136 = vmatpush1.msra.mxu0 0.0
    %6137 = vmatprep.subr.mxu0 0.0
    %6138 = vmatpush1.msra.mxu0 0.0
    %6139 = vmatprep.subr.mxu0 0.0
    %6140 = vmatpush1.msra.mxu0 0.0
    %6141 = vmatprep.subr.mxu0 0.0
    %6142 = vmatpush1.msra.mxu0 0.0
    %6143 = vmatprep.subr.mxu0 0.0
    %6144 = vmatpush1.msra.mxu0 0.0
    %6145 = vmatprep.subr.mxu0 0.0
    %6146 = vmatpush1.msra.mxu0 %v3733
    %6147 = vmatprep.subr.mxu0 0.0
    %6148 = vmatpush1.msra.mxu0 %v3732
    %6149 = vmatprep.subr.mxu0 0.0
    %6150 = vmatpush1.msra.mxu0 %v3731
    %6151 = vmatprep.subr.mxu0 0.0
    %6152 = vmatpush1.msra.mxu0 %v3730
    %6153 = vmatprep.subr.mxu0 0.0
    %6154 = vmatpush2.msra.mxu0 0.0
    %6155 = vmatprep.subr.mxu0 0.0
    %6156 = vmatpush2.msra.mxu0 0.0
    %6157 = vmatprep.subr.mxu0 0.0
    %6158 = vmatpush2.msra.mxu0 0.0
    %6159 = vmatprep.subr.mxu0 0.0
    %6160 = vmatpush2.msra.mxu0 0.0
    %6161 = vmatprep.subr.mxu0 0.0
    %6162 = vmatpush2.msra.mxu0 0.0
    %6163 = vmatprep.subr.mxu0 0.0
    %6164 = vmatpush2.msra.mxu0 0.0
    %6165 = vmatprep.subr.mxu0 0.0
    %6166 = vmatpush2.msra.mxu0 0.0
    %6167 = vmatprep.subr.mxu0 0.0
    %6168 = vmatpush2.msra.mxu0 0.0
    %6169 = vmatprep.subr.mxu0 0.0
    %6170 = vmatpush2.msra.mxu0 0.0
    %6171 = vmatprep.subr.mxu0 0.0
    %6172 = vmatpush2.msra.mxu0 0.0
    %6173 = vmatprep.subr.mxu0 0.0
    %6174 = vmatpush2.msra.mxu0 0.0
    %6175 = vmatprep.subr.mxu0 0.0
    %6176 = vmatpush2.msra.mxu0 0.0
    %6177 = vmatprep.subr.mxu0 0.0
    %6178 = vmatpush2.msra.mxu0 0.0
    %6179 = vmatprep.subr.mxu0 0.0
    %6180 = vmatpush2.msra.mxu0 0.0
    %6181 = vmatprep.subr.mxu0 0.0
    %6182 = vmatpush2.msra.mxu0 0.0
    %6183 = vmatprep.subr.mxu0 0.0
    %6184 = vmatpush2.msra.mxu0 0.0
    %6185 = vmatprep.mubr.f32.mxu0 0.0
    %6186 = vmatmul.mubr.f32.gmra.mxu0 %v5963
    %v6187 = vpop.f32.mrf.mxu0
    %v6188 = vadd.f32 0.0, %v6187
    %v6189 = vpop.f32.mrf.mxu0
    %6190 = vdwg.mxu0
    %v6191 = vadd.f32 %v6120, %v6188
    %v6192 = vtanh.pop %v6191
    %v6193 = vld [vmem:[%s3095] sm:$0xff]
    %6194 = vmatprep.subr.mxu0 0.0
    %6195 = vmatpush1.msra.mxu0 0.0
    %6196 = vmatprep.subr.mxu0 0.0
    %6197 = vmatpush1.msra.mxu0 0.0
    %6198 = vmatprep.subr.mxu0 0.0
    %6199 = vmatpush1.msra.mxu0 0.0
    %6200 = vmatprep.subr.mxu0 0.0
    %6201 = vmatpush1.msra.mxu0 0.0
    %6202 = vmatprep.subr.mxu0 0.0
    %6203 = vmatpush1.msra.mxu0 0.0
    %6204 = vmatprep.subr.mxu0 0.0
    %6205 = vmatpush1.msra.mxu0 0.0
    %6206 = vmatprep.subr.mxu0 0.0
    %6207 = vmatpush1.msra.mxu0 0.0
    %6208 = vmatprep.subr.mxu0 0.0
    %6209 = vmatpush1.msra.mxu0 0.0
    %6210 = vmatprep.subr.mxu0 0.0
    %6211 = vmatpush1.msra.mxu0 0.0
    %6212 = vmatprep.subr.mxu0 0.0
    %6213 = vmatpush1.msra.mxu0 0.0
    %6214 = vmatprep.subr.mxu0 0.0
    %6215 = vmatpush1.msra.mxu0 0.0
    %6216 = vmatprep.subr.mxu0 0.0
    %6217 = vmatpush1.msra.mxu0 0.0
    %6218 = vmatprep.subr.mxu0 0.0
    %6219 = vmatpush1.msra.mxu0 %v3738
    %6220 = vmatprep.subr.mxu0 0.0
    %6221 = vmatpush1.msra.mxu0 %v3737
    %6222 = vmatprep.subr.mxu0 0.0
    %6223 = vmatpush1.msra.mxu0 %v3736
    %6224 = vmatprep.subr.mxu0 0.0
    %6225 = vmatpush1.msra.mxu0 %v3735
    %6226 = vmatprep.subr.mxu0 0.0
    %6227 = vmatpush2.msra.mxu0 0.0
    %6228 = vmatprep.subr.mxu0 0.0
    %6229 = vmatpush2.msra.mxu0 0.0
    %6230 = vmatprep.subr.mxu0 0.0
    %6231 = vmatpush2.msra.mxu0 0.0
    %6232 = vmatprep.subr.mxu0 0.0
    %6233 = vmatpush2.msra.mxu0 0.0
    %6234 = vmatprep.subr.mxu0 0.0
    %6235 = vmatpush2.msra.mxu0 0.0
    %6236 = vmatprep.subr.mxu0 0.0
    %6237 = vmatpush2.msra.mxu0 0.0
    %6238 = vmatprep.subr.mxu0 0.0
    %6239 = vmatpush2.msra.mxu0 0.0
    %6240 = vmatprep.subr.mxu0 0.0
    %6241 = vmatpush2.msra.mxu0 0.0
    %6242 = vmatprep.subr.mxu0 0.0
    %6243 = vmatpush2.msra.mxu0 0.0
    %6244 = vmatprep.subr.mxu0 0.0
    %6245 = vmatpush2.msra.mxu0 0.0
    %6246 = vmatprep.subr.mxu0 0.0
    %6247 = vmatpush2.msra.mxu0 0.0
    %6248 = vmatprep.subr.mxu0 0.0
    %6249 = vmatpush2.msra.mxu0 0.0
    %6250 = vmatprep.subr.mxu0 0.0
    %6251 = vmatpush2.msra.mxu0 0.0
    %6252 = vmatprep.subr.mxu0 0.0
    %6253 = vmatpush2.msra.mxu0 0.0
    %6254 = vmatprep.subr.mxu0 0.0
    %6255 = vmatpush2.msra.mxu0 0.0
    %6256 = vmatprep.subr.mxu0 0.0
    %6257 = vmatpush2.msra.mxu0 0.0
    %6258 = vmatprep.mubr.f32.mxu0 0.0
    %6259 = vmatmul.mubr.f32.gmra.mxu0 %v5963
    %v6260 = vpop.f32.mrf.mxu0
    %v6261 = vadd.f32 0.0, %v6260
    %v6262 = vpop.f32.mrf.mxu0
    %6263 = vdwg.mxu0
    %v6264 = vadd.f32 %v6193, %v6261
    %v6265 = vxor.u32 %v6264, 2147483648
    %v6266 = vmul.f32 %v6265, 1.442695
    %v6267 = vpow.pop %v6266
    %v6268 = vadd.f32 %v6267, 1.0
    %v6269 = vrcp.pop %v6268
    %v6270 = vmul.f32 1.0, %v6269
    %v6271 = vmul.f32 %v6119, %v5956
    %v6272 = vmul.f32 %v6041, %v6192
    %v6273 = vadd.f32 %v6271, %v6272
    %v6274 = vtanh.pop %v6273
    %v6275 = vmul.f32 %v6270, %v6274
    %s6276 = scalar_lea.vmem [#allocation3], 56
    %6277 = vst.msk [vmem:[%s6276] sm:$0xff] %vm81, %v6275
    %s6278 = scalar_lea.vmem [#allocation14], 8
    %6279 = vst.msk [vmem:[%s6278] sm:$0xff] %vm81, %v6275
    %s6280 = scalar_lea.vmem [#allocation16], 8
    %6281 = vst.msk [vmem:[%s6280] sm:$0xff] %vm81, %v6273
    %v6282 = vld [vmem:[#allocation3] sm:$0xff]
    %v6283 = vld [vmem:[#allocation3 + $0x8] sm:$0xff]
    %v6284 = vld [vmem:[#allocation3 + $0x10] sm:$0xff]
    %v6285 = vld [vmem:[#allocation3 + $0x18] sm:$0xff]
    %v6286 = vld [vmem:[#allocation3 + $0x20] sm:$0xff]
    %v6287 = vld [vmem:[#allocation3 + $0x28] sm:$0xff]
    %v6288 = vld [vmem:[#allocation3 + $0x30] sm:$0xff]
    %v6289 = vld [vmem:[#allocation3 + $0x38] sm:$0xff]
    %v6290 = vld [vmem:[%s6] sm:$0xff]
    %v6291 = vld [vmem:[%s6 + $0x8] sm:$0xff]
    %v6292 = vld [vmem:[%s6 + $0x10] sm:$0xff]
    %v6293 = vld [vmem:[%s6 + $0x18] sm:$0xff]
    %v6294 = vld [vmem:[%s7] sm:$0x1]
    %v6296 = vlaneseq
    %v6297 = vshrl.u32 %v6296, 7
    %v6298 = vsub.s32 0, %v6297
    %v6299 = vrot.slane %v6294, %v6298
    %v6302 = vsel %vm81, %v6282, 0
    %v6305 = vsel %vm81, %v6283, 0
    %v6308 = vsel %vm81, %v6284, 0
    %v6311 = vsel %vm81, %v6285, 0
    %v6314 = vsel %vm81, %v6286, 0
    %v6317 = vsel %vm81, %v6287, 0
    %v6320 = vsel %vm81, %v6288, 0
    %v6323 = vsel %vm81, %v6289, 0
    %6325 = vmatprep.subr.mxu0 0.0
    %6326 = vmatpush1.msra.mxu0 0.0
    %6327 = vmatprep.subr.mxu0 0.0
    %6328 = vmatpush1.msra.mxu0 0.0
    %6329 = vmatprep.subr.mxu0 0.0
    %6330 = vmatpush1.msra.mxu0 0.0
    %6331 = vmatprep.subr.mxu0 0.0
    %6332 = vmatpush1.msra.mxu0 0.0
    %6333 = vmatprep.subr.mxu0 0.0
    %6334 = vmatpush1.msra.mxu0 0.0
    %6335 = vmatprep.subr.mxu0 0.0
    %6336 = vmatpush1.msra.mxu0 0.0
    %6337 = vmatprep.subr.mxu0 0.0
    %6338 = vmatpush1.msra.mxu0 0.0
    %6339 = vmatprep.subr.mxu0 0.0
    %6340 = vmatpush1.msra.mxu0 0.0
    %6341 = vmatprep.subr.mxu0 0.0
    %6342 = vmatpush1.msra.mxu0 0.0
    %6343 = vmatprep.subr.mxu0 0.0
    %6344 = vmatpush1.msra.mxu0 0.0
    %6345 = vmatprep.subr.mxu0 0.0
    %6346 = vmatpush1.msra.mxu0 0.0
    %6347 = vmatprep.subr.mxu0 0.0
    %6348 = vmatpush1.msra.mxu0 0.0
    %6349 = vmatprep.subr.mxu0 0.0
    %6350 = vmatpush1.msra.mxu0 %v6293
    %6351 = vmatprep.subr.mxu0 0.0
    %6352 = vmatpush1.msra.mxu0 %v6292
    %6353 = vmatprep.subr.mxu0 0.0
    %6354 = vmatpush1.msra.mxu0 %v6291
    %6355 = vmatprep.subr.mxu0 0.0
    %6356 = vmatpush1.msra.mxu0 %v6290
    %6357 = vmatprep.subr.mxu0 0.0
    %6358 = vmatpush2.msra.mxu0 0.0
    %6359 = vmatprep.subr.mxu0 0.0
    %6360 = vmatpush2.msra.mxu0 0.0
    %6361 = vmatprep.subr.mxu0 0.0
    %6362 = vmatpush2.msra.mxu0 0.0
    %6363 = vmatprep.subr.mxu0 0.0
    %6364 = vmatpush2.msra.mxu0 0.0
    %6365 = vmatprep.subr.mxu0 0.0
    %6366 = vmatpush2.msra.mxu0 0.0
    %6367 = vmatprep.subr.mxu0 0.0
    %6368 = vmatpush2.msra.mxu0 0.0
    %6369 = vmatprep.subr.mxu0 0.0
    %6370 = vmatpush2.msra.mxu0 0.0
    %6371 = vmatprep.subr.mxu0 0.0
    %6372 = vmatpush2.msra.mxu0 0.0
    %6373 = vmatprep.subr.mxu0 0.0
    %6374 = vmatpush2.msra.mxu0 0.0
    %6375 = vmatprep.subr.mxu0 0.0
    %6376 = vmatpush2.msra.mxu0 0.0
    %6377 = vmatprep.subr.mxu0 0.0
    %6378 = vmatpush2.msra.mxu0 0.0
    %6379 = vmatprep.subr.mxu0 0.0
    %6380 = vmatpush2.msra.mxu0 0.0
    %6381 = vmatprep.subr.mxu0 0.0
    %6382 = vmatpush2.msra.mxu0 0.0
    %6383 = vmatprep.subr.mxu0 0.0
    %6384 = vmatpush2.msra.mxu0 0.0
    %6385 = vmatprep.subr.mxu0 0.0
    %6386 = vmatpush2.msra.mxu0 0.0
    %6387 = vmatprep.subr.mxu0 0.0
    %6388 = vmatpush2.msra.mxu0 0.0
    %6389 = vmatprep.mubr.f32.mxu0 0.0
    %6390 = vmatmul.mubr.f32.gmra.mxu0 %v6302
    %v6391 = vpop.f32.mrf.mxu0
    %v6392 = vadd.f32 %v6299, %v6391
    %v6393 = vpop.f32.mrf.mxu0
    %6394 = vmatprep.mubr.f32.mxu0 0.0
    %6395 = vmatmul.mubr.f32.gmra.mxu0 %v6305
    %v6396 = vpop.f32.mrf.mxu0
    %v6397 = vadd.f32 %v6299, %v6396
    %v6398 = vpop.f32.mrf.mxu0
    %6399 = vmatprep.mubr.f32.mxu0 0.0
    %6400 = vmatmul.mubr.f32.gmra.mxu0 %v6308
    %v6401 = vpop.f32.mrf.mxu0
    %v6402 = vadd.f32 %v6299, %v6401
    %v6403 = vpop.f32.mrf.mxu0
    %6404 = vmatprep.mubr.f32.mxu0 0.0
    %6405 = vmatmul.mubr.f32.gmra.mxu0 %v6311
    %v6406 = vpop.f32.mrf.mxu0
    %v6407 = vadd.f32 %v6299, %v6406
    %v6408 = vpop.f32.mrf.mxu0
    %6409 = vmatprep.mubr.f32.mxu0 0.0
    %6410 = vmatmul.mubr.f32.gmra.mxu0 %v6314
    %v6411 = vpop.f32.mrf.mxu0
    %v6412 = vadd.f32 %v6299, %v6411
    %v6413 = vpop.f32.mrf.mxu0
    %6414 = vmatprep.mubr.f32.mxu0 0.0
    %6415 = vmatmul.mubr.f32.gmra.mxu0 %v6317
    %v6416 = vpop.f32.mrf.mxu0
    %v6417 = vadd.f32 %v6299, %v6416
    %v6418 = vpop.f32.mrf.mxu0
    %6419 = vmatprep.mubr.f32.mxu0 0.0
    %6420 = vmatmul.mubr.f32.gmra.mxu0 %v6320
    %v6421 = vpop.f32.mrf.mxu0
    %v6422 = vadd.f32 %v6299, %v6421
    %v6423 = vpop.f32.mrf.mxu0
    %6424 = vmatprep.mubr.f32.mxu0 0.0
    %6425 = vmatmul.mubr.f32.gmra.mxu0 %v6323
    %v6426 = vpop.f32.mrf.mxu0
    %v6427 = vadd.f32 %v6299, %v6426
    %v6428 = vpop.f32.mrf.mxu0
    %6429 = vdwg.mxu0
    %6430 = vst [vmem:[#allocation13] sm:$0xff] %v6392
    %6431 = vst [vmem:[#allocation13 + $0x8] sm:$0xff] %v6397
    %6432 = vst [vmem:[#allocation13 + $0x10] sm:$0xff] %v6402
    %6433 = vst [vmem:[#allocation13 + $0x18] sm:$0xff] %v6407
    %6434 = vst [vmem:[#allocation13 + $0x20] sm:$0xff] %v6412
    %6435 = vst [vmem:[#allocation13 + $0x28] sm:$0xff] %v6417
    %6436 = vst [vmem:[#allocation13 + $0x30] sm:$0xff] %v6422
    %6437 = vst [vmem:[#allocation13 + $0x38] sm:$0xff] %v6427
    // Predicated region
    $region42: #{tpu_custom_call.1} parent=1 // pred_check
      _
    $region43: #{tpu_custom_call.1} parent=1 // pred_check_branch
      %6439 = sbr.rel (0) target = $region45
    $region44: #{tpu_custom_call.1} parent=1 // pred_region
      %s6441 = ssub.s32 1024, 1024
      %6442 = vsyncadd [#allocation10], %s6441
      %s6443 = sshll.u32 [#allocation13], 4
      %s6444 = int_to_ptr.vmem [resolvable:$true] %s6443
      %6449 = dma.vmem_to_hbm [thread:$0]  %s6444, 1024, %s8, [#allocation10], 128, 128, 8
    $region45: #{tpu_custom_call.1} parent=1 // pred_fallthru
      _
    // Predicated region
    $region46: #{tpu_custom_call.1} parent=1 // pred_check
      _
    $region47: #{tpu_custom_call.1} parent=1 // pred_check_branch
      %6451 = sbr.rel (0) target = $region49
    $region48: #{tpu_custom_call.1} parent=1 // pred_region
      %s6453 = ssub.s32 256, 256
      %6454 = vsyncadd [#allocation15], %s6453
      %s6455 = sshll.u32 [#allocation14], 4
      %s6456 = int_to_ptr.vmem [resolvable:$true] %s6455
      %6461 = dma.vmem_to_hbm [thread:$0]  %s6456, 256, %s9, [#allocation15], 128, 128, 8
    $region49: #{tpu_custom_call.1} parent=1 // pred_fallthru
      _
    // Predicated region
    $region50: #{tpu_custom_call.1} parent=1 // pred_check
      _
    $region51: #{tpu_custom_call.1} parent=1 // pred_check_branch
      %6463 = sbr.rel (0) target = $region53
    $region52: #{tpu_custom_call.1} parent=1 // pred_region
      %s6465 = ssub.s32 256, 256
      %6466 = vsyncadd [#allocation15], %s6465
      %s6467 = sshll.u32 [#allocation16], 4
      %s6468 = int_to_ptr.vmem [resolvable:$true] %s6467
      %6473 = dma.vmem_to_hbm [thread:$0]  %s6468, 256, %s10, [#allocation15], 128, 128, 8
    $region53: #{tpu_custom_call.1} parent=1 // pred_fallthru
      _
    // Predicated region
    $region54: #{tpu_custom_call.1} parent=1 // pred_check
      _
    $region55: #{tpu_custom_call.1} parent=1 // pred_check_branch
      %6475 = sbr.rel (0) target = $region57
    $region56: #{tpu_custom_call.1} parent=1 // pred_region
      %6476 = dma.done [#allocation10], 1024
    $region57: #{tpu_custom_call.1} parent=1 // pred_fallthru
      _
    // Predicated region
    $region58: #{tpu_custom_call.1} parent=1 // pred_check
      _
    $region59: #{tpu_custom_call.1} parent=1 // pred_check_branch
      %6478 = sbr.rel (0) target = $region61
    $region60: #{tpu_custom_call.1} parent=1 // pred_region
      %6479 = dma.done [#allocation15], 256
    $region61: #{tpu_custom_call.1} parent=1 // pred_fallthru
      _
    // Predicated region
    $region62: #{tpu_custom_call.1} parent=1 // pred_check
      _
    $region63: #{tpu_custom_call.1} parent=1 // pred_check_branch
      %6481 = sbr.rel (0) target = $region65
    $region64: #{tpu_custom_call.1} parent=1 // pred_region
      %6482 = dma.done [#allocation15], 256
    $region65: #{tpu_custom_call.1} parent=1 // pred_fallthru
      _
    %6483 = vsyncpa [#allocation9], 1
    %6484 = vsyncpa [#allocation12], 1
    %6485 = vsyncpa [#allocation10], 1
    %6486 = vsyncpa [#allocation15], 1

</llo_original>
